<compile_context>
chip_gen: v7x
topology: tpu7x:2x2x1
jax: 0.10.0
libtpu: 0.0.40
codegen_flags: <defaults>
</compile_context>

<pallas_src>
import functools
import math

import jax
import jax.numpy as jnp
from jax import lax
from jax.experimental import pallas as pl
from jax.experimental.pallas import tpu as pltpu


def mha_kernel(q_ref, k_ref, v_ref,
               wq_ref, bq_ref, wk_ref, bk_ref,
               wv_ref, bv_ref, wo_ref, bo_ref,
               o_ref, *, num_heads, d_k):
    # One batch element per grid step: refs are [S, D], D % 128 == 0 (lane-dense).
    S, D = q_ref.shape

    # Cast activations to bf16 at the MXU operand boundary (weights arrive bf16,
    # 1/sqrt(d_k) already folded into wq/bq by the wrapper).
    q_in = q_ref[...].astype(jnp.bfloat16)
    k_in = k_ref[...].astype(jnp.bfloat16)
    v_in = v_ref[...].astype(jnp.bfloat16)

    # Linear projections: bf16 operands, f32 accumulation, f32 bias add.
    # TODO(synk): when used as self-attention (Q is K is V) the three projections
    # can be fused into one [D, 3D] matmul packed in the wrapper.
    Qp = jnp.dot(q_in, wq_ref[...], preferred_element_type=jnp.float32) + bq_ref[...]
    Kp = jnp.dot(k_in, wk_ref[...], preferred_element_type=jnp.float32) + bk_ref[...]
    Vp = jnp.dot(v_in, wv_ref[...], preferred_element_type=jnp.float32) + bv_ref[...]

    # Per-head attention with the head-merge fused into the output projection:
    # out = sum_h softmax(Qh Kh^T) Vh @ W_o[h*d_k:(h+1)*d_k, :]  (+ b_o).
    # All slices are static and lane/sublane-aligned (d_k % 128 == 0) so no
    # stack/concat/relayout copies are materialized.
    acc = jnp.zeros((S, D), jnp.float32)
    for h in range(num_heads):
        lo, hi = h * d_k, (h + 1) * d_k
        Qh = Qp[:, lo:hi].astype(jnp.bfloat16)          # [S, d_k]
        Kh = Kp[:, lo:hi].astype(jnp.bfloat16)
        Vh = Vp[:, lo:hi].astype(jnp.bfloat16)

        # QK^T: contraction over the last dim of BOTH operands (no K transpose).
        s = lax.dot_general(Qh, Kh, (((1,), (1,)), ((), ())),
                            preferred_element_type=jnp.float32)   # [S, S] f32

        # Numerically-stable softmax in f32, reusing `s` for the exp result so
        # only one [S, S] f32 buffer is live; divide goes to the idle EUP.
        s = jnp.exp(s - jnp.max(s, axis=-1, keepdims=True))
        p = (s * pl.reciprocal(jnp.sum(s, axis=-1, keepdims=True), approx=True)
             ).astype(jnp.bfloat16)

        ctx = jnp.dot(p, Vh, preferred_element_type=jnp.float32)  # [S, d_k] f32
        acc = acc + jnp.dot(ctx.astype(jnp.bfloat16), wo_ref[lo:hi, :],
                            preferred_element_type=jnp.float32)

    # Single lane-dense, unmasked store of the whole [S, D] tile.
    o_ref[...] = (acc + bo_ref[...]).astype(o_ref.dtype)

    # TODO(synk): optional `mask` argument of the PyTorch forward is not plumbed
    # through (mask=None path only); masked use would add a jnp.where on `s`.
    # TODO(synk): for long sequences, replace the whole-[S,S]-scores design with a
    # flash-style KV-tiled online softmax (>=256-wide KV tiles on v6e/v7x, sized
    # for v7x's 64 MiB VMEM).


def multi_head_attention(Q, K, V, params, *, num_heads):
    """Pallas forward equivalent to MultiHeadAttention.forward (mask=None)."""
    B, S, D = Q.shape
    assert D % num_heads == 0, "d_model must be divisible by num_heads"
    d_k = D // num_heads
    # Kernel assumes lane-aligned head slices and sublane-aligned rows.
    assert d_k % 128 == 0 and S % 8 == 0, "kernel requires d_k % 128 == 0, S % 8 == 0"
    out_dtype = Q.dtype
    wq, bq, wk, bk, wv, bv, wo, bo = params

    # Host-side (once per call): bf16 weights for the MXU, f32 [1, D] biases,
    # and 1/sqrt(d_k) folded into the Q projection.
    scale = 1.0 / math.sqrt(d_k)
    w_bf = lambda w: w.astype(jnp.bfloat16)
    b_f32 = lambda b: b.astype(jnp.float32).reshape(1, D)
    wq_s, bq_s = w_bf(wq * scale), b_f32(bq * scale)

    # Flatten batch into rows so every grid step reads/writes one [S, D] tile.
    q2 = Q.reshape(B * S, D)
    k2 = K.reshape(B * S, D)
    v2 = V.reshape(B * S, D)

    kernel = functools.partial(mha_kernel, num_heads=num_heads, d_k=d_k)

    row_spec = pl.BlockSpec((S, D), lambda b: (b, 0))
    # Constant index_maps -> weights/biases stay VMEM-resident across grid steps.
    # TODO(synk): pipeline_mode=pl.Buffered(1) would drop their unused second
    # buffer (~8*D^2 bytes of VMEM) if/when supported for top-level pallas_call.
    w_spec = pl.BlockSpec((D, D), lambda b: (0, 0))
    b_spec = pl.BlockSpec((1, D), lambda b: (0, 0))

    out2 = pl.pallas_call(
        kernel,
        out_shape=jax.ShapeDtypeStruct((B * S, D), out_dtype),
        grid=(B,),
        in_specs=[row_spec, row_spec, row_spec,
                  w_spec, b_spec, w_spec, b_spec,
                  w_spec, b_spec, w_spec, b_spec],
        out_specs=row_spec,
        compiler_params=pltpu.CompilerParams(
            dimension_semantics=("parallel",),
            vmem_limit_bytes=32 * 1024 * 1024),
    )(q2, k2, v2,
      wq_s, bq_s, w_bf(wk), b_f32(bk),
      w_bf(wv), b_f32(bv), w_bf(wo), b_f32(bo))

    return out2.reshape(B, S, D)


def reference_mha(Q, K, V, params, *, num_heads):
    """Plain-JAX f32 reference mirroring the PyTorch forward (mask=None)."""
    B, S, D = Q.shape
    d_k = D // num_heads
    wq, bq, wk, bk, wv, bv, wo, bo = params

    def proj(x, w, b):
        return x @ w + b.reshape(1, 1, D)

    def to_heads(x):
        return x.reshape(B, S, num_heads, d_k).transpose(0, 2, 1, 3)

    Qh = to_heads(proj(Q, wq, bq))
    Kh = to_heads(proj(K, wk, bk))
    Vh = to_heads(proj(V, wv, bv))

    scores = jnp.einsum("bhqd,bhkd->bhqk", Qh, Kh) / math.sqrt(d_k)
    probs = jax.nn.softmax(scores, axis=-1)
    out = jnp.einsum("bhqk,bhkd->bhqd", probs, Vh)
    out = out.transpose(0, 2, 1, 3).reshape(B, S, D)
    return out @ wo + bo.reshape(1, 1, D)


if __name__ == "__main__":
    # d_model=512, heads=4 -> d_k=128: every head slice / matmul dim is a multiple
    # of 128 (lane-dense), S=128 fills sublanes, grid=(B,)=4 steps (even, >=4).
    B, S, D, H = 4, 128, 512, 4

    key = jax.random.PRNGKey(0)
    keys = jax.random.split(key, 11)
    scale = 1.0 / math.sqrt(D)

    Q = jax.random.normal(keys[0], (B, S, D), jnp.float32)
    K = jax.random.normal(keys[1], (B, S, D), jnp.float32)
    V = jax.random.normal(keys[2], (B, S, D), jnp.float32)

    wq = jax.random.uniform(keys[3], (D, D), jnp.float32, -scale, scale)
    bq = jax.random.uniform(keys[4], (D,), jnp.float32, -scale, scale)
    wk = jax.random.uniform(keys[5], (D, D), jnp.float32, -scale, scale)
    bk = jax.random.uniform(keys[6], (D,), jnp.float32, -scale, scale)
    wv = jax.random.uniform(keys[7], (D, D), jnp.float32, -scale, scale)
    bv = jax.random.uniform(keys[8], (D,), jnp.float32, -scale, scale)
    wo = jax.random.uniform(keys[9], (D, D), jnp.float32, -scale, scale)
    bo = jax.random.uniform(keys[10], (D,), jnp.float32, -scale, scale)

    params = (wq, bq, wk, bk, wv, bv, wo, bo)

    out = multi_head_attention(Q, K, V, params, num_heads=H)
    out = jax.block_until_ready(out)

    ref = reference_mha(Q, K, V, params, num_heads=H)
    assert out.shape == (B, S, D)
    err = float(jnp.max(jnp.abs(out - ref)))
    # bf16 matmul operands (f32 accumulation) + approx reciprocal -> relaxed
    # tolerance vs the pure-f32 reference.
    assert err < 5e-2, f"mismatch vs. reference: max abs err = {err}"

    print("KERNEL_OK")
</pallas_src>

<mosaic_0001>
module attributes {stable_mosaic.version = 11 : i64} {
  func.func @mha_kernel(%arg0: i32, %arg1: memref<128x512xf32, #tpu.memory_space<vmem>>, %arg2: memref<128x512xf32, #tpu.memory_space<vmem>>, %arg3: memref<128x512xf32, #tpu.memory_space<vmem>>, %arg4: memref<512x512xbf16, #tpu.memory_space<vmem>>, %arg5: memref<1x512xf32, #tpu.memory_space<vmem>>, %arg6: memref<512x512xbf16, #tpu.memory_space<vmem>>, %arg7: memref<1x512xf32, #tpu.memory_space<vmem>>, %arg8: memref<512x512xbf16, #tpu.memory_space<vmem>>, %arg9: memref<1x512xf32, #tpu.memory_space<vmem>>, %arg10: memref<512x512xbf16, #tpu.memory_space<vmem>>, %arg11: memref<1x512xf32, #tpu.memory_space<vmem>>, %arg12: memref<128x512xf32, #tpu.memory_space<vmem>>) attributes {dimension_semantics = [#tpu.dimension_semantics<parallel>], iteration_bounds = array<i64: 4>, scalar_prefetch = 0 : i64, scratch_operands = 0 : i64, tpu.core_type = #tpu.core_type<tc>, window_params = [{transform_indices = @transform_0, window_bounds = array<i64: 128, 512>}, {transform_indices = @transform_1, window_bounds = array<i64: 128, 512>}, {transform_indices = @transform_2, window_bounds = array<i64: 128, 512>}, {pipeline_mode = #tpu.pipeline_mode<synchronous>, transform_indices = @transform_3, window_bounds = array<i64: 512, 512>}, {pipeline_mode = #tpu.pipeline_mode<synchronous>, transform_indices = @transform_4, window_bounds = array<i64: 1, 512>}, {pipeline_mode = #tpu.pipeline_mode<synchronous>, transform_indices = @transform_5, window_bounds = array<i64: 512, 512>}, {pipeline_mode = #tpu.pipeline_mode<synchronous>, transform_indices = @transform_6, window_bounds = array<i64: 1, 512>}, {pipeline_mode = #tpu.pipeline_mode<synchronous>, transform_indices = @transform_7, window_bounds = array<i64: 512, 512>}, {pipeline_mode = #tpu.pipeline_mode<synchronous>, transform_indices = @transform_8, window_bounds = array<i64: 1, 512>}, {pipeline_mode = #tpu.pipeline_mode<synchronous>, transform_indices = @transform_9, window_bounds = array<i64: 512, 512>}, {pipeline_mode = #tpu.pipeline_mode<synchronous>, transform_indices = @transform_10, window_bounds = array<i64: 1, 512>}, {transform_indices = @transform_11, window_bounds = array<i64: 128, 512>}]} {
    %c0 = arith.constant 0 : index
    %c0_0 = arith.constant 0 : index
    %0 = vector.load %arg1[%c0, %c0_0] : memref<128x512xf32, #tpu.memory_space<vmem>>, vector<128x512xf32>
    %1 = arith.truncf %0 : vector<128x512xf32> to vector<128x512xbf16>
    %c0_1 = arith.constant 0 : index
    %c0_2 = arith.constant 0 : index
    %2 = vector.load %arg2[%c0_1, %c0_2] : memref<128x512xf32, #tpu.memory_space<vmem>>, vector<128x512xf32>
    %3 = arith.truncf %2 : vector<128x512xf32> to vector<128x512xbf16>
    %c0_3 = arith.constant 0 : index
    %c0_4 = arith.constant 0 : index
    %4 = vector.load %arg3[%c0_3, %c0_4] : memref<128x512xf32, #tpu.memory_space<vmem>>, vector<128x512xf32>
    %5 = arith.truncf %4 : vector<128x512xf32> to vector<128x512xbf16>
    %c0_5 = arith.constant 0 : index
    %c0_6 = arith.constant 0 : index
    %6 = vector.load %arg4[%c0_5, %c0_6] : memref<512x512xbf16, #tpu.memory_space<vmem>>, vector<512x512xbf16>
    %cst = arith.constant dense<0.000000e+00> : vector<128x512xf32>
    %7 = tpu.matmul %1, %6, %cst {dimension_numbers = #tpu.dot_dimension_numbers<[1], [0], [0], [1], [0, 0, 1, 1], [], []>} : vector<128x512xbf16>, vector<512x512xbf16>, vector<128x512xf32> -> vector<128x512xf32>
    %c0_7 = arith.constant 0 : index
    %c0_8 = arith.constant 0 : index
    %8 = vector.load %arg5[%c0_7, %c0_8] : memref<1x512xf32, #tpu.memory_space<vmem>>, vector<1x512xf32>
    %9 = vector.broadcast %8 : vector<1x512xf32> to vector<128x512xf32>
    %10 = arith.addf %7, %9 : vector<128x512xf32>
    %c0_9 = arith.constant 0 : index
    %c0_10 = arith.constant 0 : index
    %11 = vector.load %arg6[%c0_9, %c0_10] : memref<512x512xbf16, #tpu.memory_space<vmem>>, vector<512x512xbf16>
    %cst_11 = arith.constant dense<0.000000e+00> : vector<128x512xf32>
    %12 = tpu.matmul %3, %11, %cst_11 {dimension_numbers = #tpu.dot_dimension_numbers<[1], [0], [0], [1], [0, 0, 1, 1], [], []>} : vector<128x512xbf16>, vector<512x512xbf16>, vector<128x512xf32> -> vector<128x512xf32>
    %c0_12 = arith.constant 0 : index
    %c0_13 = arith.constant 0 : index
    %13 = vector.load %arg7[%c0_12, %c0_13] : memref<1x512xf32, #tpu.memory_space<vmem>>, vector<1x512xf32>
    %14 = vector.broadcast %13 : vector<1x512xf32> to vector<128x512xf32>
    %15 = arith.addf %12, %14 : vector<128x512xf32>
    %c0_14 = arith.constant 0 : index
    %c0_15 = arith.constant 0 : index
    %16 = vector.load %arg8[%c0_14, %c0_15] : memref<512x512xbf16, #tpu.memory_space<vmem>>, vector<512x512xbf16>
    %cst_16 = arith.constant dense<0.000000e+00> : vector<128x512xf32>
    %17 = tpu.matmul %5, %16, %cst_16 {dimension_numbers = #tpu.dot_dimension_numbers<[1], [0], [0], [1], [0, 0, 1, 1], [], []>} : vector<128x512xbf16>, vector<512x512xbf16>, vector<128x512xf32> -> vector<128x512xf32>
    %c0_17 = arith.constant 0 : index
    %c0_18 = arith.constant 0 : index
    %18 = vector.load %arg9[%c0_17, %c0_18] : memref<1x512xf32, #tpu.memory_space<vmem>>, vector<1x512xf32>
    %19 = vector.broadcast %18 : vector<1x512xf32> to vector<128x512xf32>
    %20 = arith.addf %17, %19 : vector<128x512xf32>
    %cst_19 = arith.constant 0.000000e+00 : f32
    %21 = vector.broadcast %cst_19 : f32 to vector<128x512xf32>
    %22 = vector.extract_strided_slice %10 {offsets = [0, 0], sizes = [128, 128], strides = [1, 1]} : vector<128x512xf32> to vector<128x128xf32>
    %23 = arith.truncf %22 : vector<128x128xf32> to vector<128x128xbf16>
    %24 = vector.extract_strided_slice %15 {offsets = [0, 0], sizes = [128, 128], strides = [1, 1]} : vector<128x512xf32> to vector<128x128xf32>
    %25 = arith.truncf %24 : vector<128x128xf32> to vector<128x128xbf16>
    %26 = vector.extract_strided_slice %20 {offsets = [0, 0], sizes = [128, 128], strides = [1, 1]} : vector<128x512xf32> to vector<128x128xf32>
    %27 = arith.truncf %26 : vector<128x128xf32> to vector<128x128xbf16>
    %cst_20 = arith.constant dense<0.000000e+00> : vector<128x128xf32>
    %28 = tpu.matmul %23, %25, %cst_20 {dimension_numbers = #tpu.dot_dimension_numbers<[1], [1], [0], [0], [0, 0, 1, 0], [], []>} : vector<128x128xbf16>, vector<128x128xbf16>, vector<128x128xf32> -> vector<128x128xf32>
    %cst_21 = arith.constant dense<0xFF800000> : vector<128xf32>
    %29 = vector.multi_reduction <maximumf>, %28, %cst_21 [1] : vector<128x128xf32> to vector<128xf32>
    %30 = vector.shape_cast %29 : vector<128xf32> to vector<128x1xf32>
    %31 = vector.broadcast %30 : vector<128x1xf32> to vector<128x128xf32>
    %32 = arith.subf %28, %31 : vector<128x128xf32>
    %33 = math.exp %32 : vector<128x128xf32>
    %cst_22 = arith.constant dense<0.000000e+00> : vector<128xf32>
    %34 = vector.multi_reduction <add>, %33, %cst_22 [1] : vector<128x128xf32> to vector<128xf32>
    %35 = vector.shape_cast %34 : vector<128xf32> to vector<128x1xf32>
    %36 = tpu.reciprocal %35 {approx = true} : vector<128x1xf32> -> vector<128x1xf32>
    %37 = vector.broadcast %36 : vector<128x1xf32> to vector<128x128xf32>
    %38 = arith.mulf %33, %37 : vector<128x128xf32>
    %39 = arith.truncf %38 : vector<128x128xf32> to vector<128x128xbf16>
    %cst_23 = arith.constant dense<0.000000e+00> : vector<128x128xf32>
    %40 = tpu.matmul %39, %27, %cst_23 {dimension_numbers = #tpu.dot_dimension_numbers<[1], [0], [0], [1], [0, 0, 1, 1], [], []>} : vector<128x128xbf16>, vector<128x128xbf16>, vector<128x128xf32> -> vector<128x128xf32>
    %41 = arith.truncf %40 : vector<128x128xf32> to vector<128x128xbf16>
    %c0_24 = arith.constant 0 : index
    %c0_25 = arith.constant 0 : index
    %42 = vector.load %arg10[%c0_24, %c0_25] : memref<512x512xbf16, #tpu.memory_space<vmem>>, vector<128x512xbf16>
    %cst_26 = arith.constant dense<0.000000e+00> : vector<128x512xf32>
    %43 = tpu.matmul %41, %42, %cst_26 {dimension_numbers = #tpu.dot_dimension_numbers<[1], [0], [0], [1], [0, 0, 1, 1], [], []>} : vector<128x128xbf16>, vector<128x512xbf16>, vector<128x512xf32> -> vector<128x512xf32>
    %44 = arith.addf %21, %43 : vector<128x512xf32>
    %45 = vector.extract_strided_slice %10 {offsets = [0, 128], sizes = [128, 128], strides = [1, 1]} : vector<128x512xf32> to vector<128x128xf32>
    %46 = arith.truncf %45 : vector<128x128xf32> to vector<128x128xbf16>
    %47 = vector.extract_strided_slice %15 {offsets = [0, 128], sizes = [128, 128], strides = [1, 1]} : vector<128x512xf32> to vector<128x128xf32>
    %48 = arith.truncf %47 : vector<128x128xf32> to vector<128x128xbf16>
    %49 = vector.extract_strided_slice %20 {offsets = [0, 128], sizes = [128, 128], strides = [1, 1]} : vector<128x512xf32> to vector<128x128xf32>
    %50 = arith.truncf %49 : vector<128x128xf32> to vector<128x128xbf16>
    %cst_27 = arith.constant dense<0.000000e+00> : vector<128x128xf32>
    %51 = tpu.matmul %46, %48, %cst_27 {dimension_numbers = #tpu.dot_dimension_numbers<[1], [1], [0], [0], [0, 0, 1, 0], [], []>} : vector<128x128xbf16>, vector<128x128xbf16>, vector<128x128xf32> -> vector<128x128xf32>
    %cst_28 = arith.constant dense<0xFF800000> : vector<128xf32>
    %52 = vector.multi_reduction <maximumf>, %51, %cst_28 [1] : vector<128x128xf32> to vector<128xf32>
    %53 = vector.shape_cast %52 : vector<128xf32> to vector<128x1xf32>
    %54 = vector.broadcast %53 : vector<128x1xf32> to vector<128x128xf32>
    %55 = arith.subf %51, %54 : vector<128x128xf32>
    %56 = math.exp %55 : vector<128x128xf32>
    %cst_29 = arith.constant dense<0.000000e+00> : vector<128xf32>
    %57 = vector.multi_reduction <add>, %56, %cst_29 [1] : vector<128x128xf32> to vector<128xf32>
    %58 = vector.shape_cast %57 : vector<128xf32> to vector<128x1xf32>
    %59 = tpu.reciprocal %58 {approx = true} : vector<128x1xf32> -> vector<128x1xf32>
    %60 = vector.broadcast %59 : vector<128x1xf32> to vector<128x128xf32>
    %61 = arith.mulf %56, %60 : vector<128x128xf32>
    %62 = arith.truncf %61 : vector<128x128xf32> to vector<128x128xbf16>
    %cst_30 = arith.constant dense<0.000000e+00> : vector<128x128xf32>
    %63 = tpu.matmul %62, %50, %cst_30 {dimension_numbers = #tpu.dot_dimension_numbers<[1], [0], [0], [1], [0, 0, 1, 1], [], []>} : vector<128x128xbf16>, vector<128x128xbf16>, vector<128x128xf32> -> vector<128x128xf32>
    %64 = arith.truncf %63 : vector<128x128xf32> to vector<128x128xbf16>
    %c128 = arith.constant 128 : index
    %c0_31 = arith.constant 0 : index
    %65 = vector.load %arg10[%c128, %c0_31] : memref<512x512xbf16, #tpu.memory_space<vmem>>, vector<128x512xbf16>
    %cst_32 = arith.constant dense<0.000000e+00> : vector<128x512xf32>
    %66 = tpu.matmul %64, %65, %cst_32 {dimension_numbers = #tpu.dot_dimension_numbers<[1], [0], [0], [1], [0, 0, 1, 1], [], []>} : vector<128x128xbf16>, vector<128x512xbf16>, vector<128x512xf32> -> vector<128x512xf32>
    %67 = arith.addf %44, %66 : vector<128x512xf32>
    %68 = vector.extract_strided_slice %10 {offsets = [0, 256], sizes = [128, 128], strides = [1, 1]} : vector<128x512xf32> to vector<128x128xf32>
    %69 = arith.truncf %68 : vector<128x128xf32> to vector<128x128xbf16>
    %70 = vector.extract_strided_slice %15 {offsets = [0, 256], sizes = [128, 128], strides = [1, 1]} : vector<128x512xf32> to vector<128x128xf32>
    %71 = arith.truncf %70 : vector<128x128xf32> to vector<128x128xbf16>
    %72 = vector.extract_strided_slice %20 {offsets = [0, 256], sizes = [128, 128], strides = [1, 1]} : vector<128x512xf32> to vector<128x128xf32>
    %73 = arith.truncf %72 : vector<128x128xf32> to vector<128x128xbf16>
    %cst_33 = arith.constant dense<0.000000e+00> : vector<128x128xf32>
    %74 = tpu.matmul %69, %71, %cst_33 {dimension_numbers = #tpu.dot_dimension_numbers<[1], [1], [0], [0], [0, 0, 1, 0], [], []>} : vector<128x128xbf16>, vector<128x128xbf16>, vector<128x128xf32> -> vector<128x128xf32>
    %cst_34 = arith.constant dense<0xFF800000> : vector<128xf32>
    %75 = vector.multi_reduction <maximumf>, %74, %cst_34 [1] : vector<128x128xf32> to vector<128xf32>
    %76 = vector.shape_cast %75 : vector<128xf32> to vector<128x1xf32>
    %77 = vector.broadcast %76 : vector<128x1xf32> to vector<128x128xf32>
    %78 = arith.subf %74, %77 : vector<128x128xf32>
    %79 = math.exp %78 : vector<128x128xf32>
    %cst_35 = arith.constant dense<0.000000e+00> : vector<128xf32>
    %80 = vector.multi_reduction <add>, %79, %cst_35 [1] : vector<128x128xf32> to vector<128xf32>
    %81 = vector.shape_cast %80 : vector<128xf32> to vector<128x1xf32>
    %82 = tpu.reciprocal %81 {approx = true} : vector<128x1xf32> -> vector<128x1xf32>
    %83 = vector.broadcast %82 : vector<128x1xf32> to vector<128x128xf32>
    %84 = arith.mulf %79, %83 : vector<128x128xf32>
    %85 = arith.truncf %84 : vector<128x128xf32> to vector<128x128xbf16>
    %cst_36 = arith.constant dense<0.000000e+00> : vector<128x128xf32>
    %86 = tpu.matmul %85, %73, %cst_36 {dimension_numbers = #tpu.dot_dimension_numbers<[1], [0], [0], [1], [0, 0, 1, 1], [], []>} : vector<128x128xbf16>, vector<128x128xbf16>, vector<128x128xf32> -> vector<128x128xf32>
    %87 = arith.truncf %86 : vector<128x128xf32> to vector<128x128xbf16>
    %c256 = arith.constant 256 : index
    %c0_37 = arith.constant 0 : index
    %88 = vector.load %arg10[%c256, %c0_37] : memref<512x512xbf16, #tpu.memory_space<vmem>>, vector<128x512xbf16>
    %cst_38 = arith.constant dense<0.000000e+00> : vector<128x512xf32>
    %89 = tpu.matmul %87, %88, %cst_38 {dimension_numbers = #tpu.dot_dimension_numbers<[1], [0], [0], [1], [0, 0, 1, 1], [], []>} : vector<128x128xbf16>, vector<128x512xbf16>, vector<128x512xf32> -> vector<128x512xf32>
    %90 = arith.addf %67, %89 : vector<128x512xf32>
    %91 = vector.extract_strided_slice %10 {offsets = [0, 384], sizes = [128, 128], strides = [1, 1]} : vector<128x512xf32> to vector<128x128xf32>
    %92 = arith.truncf %91 : vector<128x128xf32> to vector<128x128xbf16>
    %93 = vector.extract_strided_slice %15 {offsets = [0, 384], sizes = [128, 128], strides = [1, 1]} : vector<128x512xf32> to vector<128x128xf32>
    %94 = arith.truncf %93 : vector<128x128xf32> to vector<128x128xbf16>
    %95 = vector.extract_strided_slice %20 {offsets = [0, 384], sizes = [128, 128], strides = [1, 1]} : vector<128x512xf32> to vector<128x128xf32>
    %96 = arith.truncf %95 : vector<128x128xf32> to vector<128x128xbf16>
    %cst_39 = arith.constant dense<0.000000e+00> : vector<128x128xf32>
    %97 = tpu.matmul %92, %94, %cst_39 {dimension_numbers = #tpu.dot_dimension_numbers<[1], [1], [0], [0], [0, 0, 1, 0], [], []>} : vector<128x128xbf16>, vector<128x128xbf16>, vector<128x128xf32> -> vector<128x128xf32>
    %cst_40 = arith.constant dense<0xFF800000> : vector<128xf32>
    %98 = vector.multi_reduction <maximumf>, %97, %cst_40 [1] : vector<128x128xf32> to vector<128xf32>
    %99 = vector.shape_cast %98 : vector<128xf32> to vector<128x1xf32>
    %100 = vector.broadcast %99 : vector<128x1xf32> to vector<128x128xf32>
    %101 = arith.subf %97, %100 : vector<128x128xf32>
    %102 = math.exp %101 : vector<128x128xf32>
    %cst_41 = arith.constant dense<0.000000e+00> : vector<128xf32>
    %103 = vector.multi_reduction <add>, %102, %cst_41 [1] : vector<128x128xf32> to vector<128xf32>
    %104 = vector.shape_cast %103 : vector<128xf32> to vector<128x1xf32>
    %105 = tpu.reciprocal %104 {approx = true} : vector<128x1xf32> -> vector<128x1xf32>
    %106 = vector.broadcast %105 : vector<128x1xf32> to vector<128x128xf32>
    %107 = arith.mulf %102, %106 : vector<128x128xf32>
    %108 = arith.truncf %107 : vector<128x128xf32> to vector<128x128xbf16>
    %cst_42 = arith.constant dense<0.000000e+00> : vector<128x128xf32>
    %109 = tpu.matmul %108, %96, %cst_42 {dimension_numbers = #tpu.dot_dimension_numbers<[1], [0], [0], [1], [0, 0, 1, 1], [], []>} : vector<128x128xbf16>, vector<128x128xbf16>, vector<128x128xf32> -> vector<128x128xf32>
    %110 = arith.truncf %109 : vector<128x128xf32> to vector<128x128xbf16>
    %c384 = arith.constant 384 : index
    %c0_43 = arith.constant 0 : index
    %111 = vector.load %arg10[%c384, %c0_43] : memref<512x512xbf16, #tpu.memory_space<vmem>>, vector<128x512xbf16>
    %cst_44 = arith.constant dense<0.000000e+00> : vector<128x512xf32>
    %112 = tpu.matmul %110, %111, %cst_44 {dimension_numbers = #tpu.dot_dimension_numbers<[1], [0], [0], [1], [0, 0, 1, 1], [], []>} : vector<128x128xbf16>, vector<128x512xbf16>, vector<128x512xf32> -> vector<128x512xf32>
    %113 = arith.addf %90, %112 : vector<128x512xf32>
    %c0_45 = arith.constant 0 : index
    %c0_46 = arith.constant 0 : index
    %114 = vector.load %arg11[%c0_45, %c0_46] : memref<1x512xf32, #tpu.memory_space<vmem>>, vector<1x512xf32>
    %115 = vector.broadcast %114 : vector<1x512xf32> to vector<128x512xf32>
    %116 = arith.addf %113, %115 : vector<128x512xf32>
    %c0_47 = arith.constant 0 : index
    %c0_48 = arith.constant 0 : index
    %117 = vector.load %arg12[%c0_47, %c0_48] : memref<128x512xf32, #tpu.memory_space<vmem>>, vector<128x512xf32>
    tpu.vector_store %arg12[%c0_47, %c0_48], %116 {strides = array<i32>} : memref<128x512xf32, #tpu.memory_space<vmem>>, vector<128x512xf32>,
    return
  }
  func.func @transform_0(%arg0: i32) -> (i32, i32) {
    %c0_i32 = arith.constant 0 : i32
    %c0_i32_0 = arith.constant 0 : i32
    return %arg0, %c0_i32 : i32, i32
  }
  func.func @transform_1(%arg0: i32) -> (i32, i32) {
    %c0_i32 = arith.constant 0 : i32
    %c0_i32_0 = arith.constant 0 : i32
    return %arg0, %c0_i32 : i32, i32
  }
  func.func @transform_2(%arg0: i32) -> (i32, i32) {
    %c0_i32 = arith.constant 0 : i32
    %c0_i32_0 = arith.constant 0 : i32
    return %arg0, %c0_i32 : i32, i32
  }
  func.func @transform_3(%arg0: i32) -> (i32, i32) {
    %c0_i32 = arith.constant 0 : i32
    %c0_i32_0 = arith.constant 0 : i32
    %c0_i32_1 = arith.constant 0 : i32
    return %c0_i32, %c0_i32_0 : i32, i32
  }
  func.func @transform_4(%arg0: i32) -> (i32, i32) {
    %c0_i32 = arith.constant 0 : i32
    %c0_i32_0 = arith.constant 0 : i32
    %c0_i32_1 = arith.constant 0 : i32
    return %c0_i32, %c0_i32_0 : i32, i32
  }
  func.func @transform_5(%arg0: i32) -> (i32, i32) {
    %c0_i32 = arith.constant 0 : i32
    %c0_i32_0 = arith.constant 0 : i32
    %c0_i32_1 = arith.constant 0 : i32
    return %c0_i32, %c0_i32_0 : i32, i32
  }
  func.func @transform_6(%arg0: i32) -> (i32, i32) {
    %c0_i32 = arith.constant 0 : i32
    %c0_i32_0 = arith.constant 0 : i32
    %c0_i32_1 = arith.constant 0 : i32
    return %c0_i32, %c0_i32_0 : i32, i32
  }
  func.func @transform_7(%arg0: i32) -> (i32, i32) {
    %c0_i32 = arith.constant 0 : i32
    %c0_i32_0 = arith.constant 0 : i32
    %c0_i32_1 = arith.constant 0 : i32
    return %c0_i32, %c0_i32_0 : i32, i32
  }
  func.func @transform_8(%arg0: i32) -> (i32, i32) {
    %c0_i32 = arith.constant 0 : i32
    %c0_i32_0 = arith.constant 0 : i32
    %c0_i32_1 = arith.constant 0 : i32
    return %c0_i32, %c0_i32_0 : i32, i32
  }
  func.func @transform_9(%arg0: i32) -> (i32, i32) {
    %c0_i32 = arith.constant 0 : i32
    %c0_i32_0 = arith.constant 0 : i32
    %c0_i32_1 = arith.constant 0 : i32
    return %c0_i32, %c0_i32_0 : i32, i32
  }
  func.func @transform_10(%arg0: i32) -> (i32, i32) {
    %c0_i32 = arith.constant 0 : i32
    %c0_i32_0 = arith.constant 0 : i32
    %c0_i32_1 = arith.constant 0 : i32
    return %c0_i32, %c0_i32_0 : i32, i32
  }
  func.func @transform_11(%arg0: i32) -> (i32, i32) {
    %c0_i32 = arith.constant 0 : i32
    %c0_i32_0 = arith.constant 0 : i32
    return %arg0, %c0_i32 : i32, i32
  }
}

</mosaic_0001>

<llo_original>
// kernel: tpu_custom_call.1
$region0: #{tpu_custom_call.1}
  #allocation0 [shape = 'u32[]', space=smem, size = 0x4, offset = 0x4, fixed_abs, tag = 'smem constant byte address 0x4 - core index']
  #allocation1 [shape = 'u32[144,128]{1,0:T(1,128)}', space=vmem, size = 0x12000, scoped, tag = 'internal scratch']
  %s0 = inlined_call_operand.hbm [shape: f32[512,512], index: 0, kind: input, shape index: {}]
  %s1 = inlined_call_operand.hbm [shape: f32[512,512], index: 1, kind: input, shape index: {}]
  %s2 = inlined_call_operand.hbm [shape: f32[512,512], index: 2, kind: input, shape index: {}]
  %s3 = inlined_call_operand.hbm [shape: bf16[512,512], index: 3, kind: input, shape index: {}]
  %s4 = inlined_call_operand.vmem [shape: f32[1,512], index: 4, kind: input, shape index: {}]
  %s5 = inlined_call_operand.hbm [shape: bf16[512,512], index: 5, kind: input, shape index: {}]
  %s6 = inlined_call_operand.vmem [shape: f32[1,512], index: 6, kind: input, shape index: {}]
  %s7 = inlined_call_operand.hbm [shape: bf16[512,512], index: 7, kind: input, shape index: {}]
  %s8 = inlined_call_operand.vmem [shape: f32[1,512], index: 8, kind: input, shape index: {}]
  %s9 = inlined_call_operand.hbm [shape: bf16[512,512], index: 9, kind: input, shape index: {}]
  %s10 = inlined_call_operand.vmem [shape: f32[1,512], index: 10, kind: input, shape index: {}]
  %s11 = inlined_call_operand.hbm [shape: f32[512,512], index: 11, kind: output, shape index: {}]
  %s12 = sld [smem:[#allocation0]]
  $region105: #{tpu_custom_call.1} parent=0
    _
  %s14 = ssub.s32 1, %s12
  %s15 = scalar_select 0, %s14, %s12
  $region1: #{tpu_custom_call.1} parent=0
    #allocation2 [shape = 'u8[524288]{0}', space=vmem, size = 0x80000, scoped, tag = 'input window, operand 0']
    #allocation3 [shape = 's32[2]{0}', space=sflag, size = 0x8, scoped, tag = 'scoped memory for tpu_custom_call.1']
    #allocation4 [shape = 's32[2]{0}', space=sflag, size = 0x8, scoped, tag = 'scoped memory for tpu_custom_call.1']
    #allocation5 [shape = 'u8[524288]{0}', space=vmem, size = 0x80000, scoped, tag = 'input window, operand 1']
    #allocation6 [shape = 's32[2]{0}', space=sflag, size = 0x8, scoped, tag = 'scoped memory for tpu_custom_call.1']
    #allocation7 [shape = 'u8[524288]{0}', space=vmem, size = 0x80000, scoped, tag = 'input window, operand 2']
    #allocation8 [shape = 'u8[524288]{0}', space=vmem, size = 0x80000, scoped, tag = 'input window, operand 3, single buffered']
    #allocation9 [shape = 's32[1]{0}', space=sflag, size = 0x4, scoped, tag = 'scoped memory for tpu_custom_call.1']
    #allocation10 [shape = 'u8[524288]{0}', space=vmem, size = 0x80000, scoped, tag = 'input window, operand 5, single buffered']
    #allocation11 [shape = 'u8[524288]{0}', space=vmem, size = 0x80000, scoped, tag = 'input window, operand 7, single buffered']
    #allocation12 [shape = 's32[1]{0}', space=sflag, size = 0x4, scoped, tag = 'scoped memory for tpu_custom_call.1']
    #allocation13 [shape = 'u8[524288]{0}', space=vmem, size = 0x80000, scoped, tag = 'input window, operand 9, single buffered']
    #allocation14 [shape = 'u8[524288]{0}', space=vmem, size = 0x80000, scoped, tag = 'output window, operand 0']
    %16 = vsyncpa [#allocation3], 0
    %s17 = scalar_lea.sflag [#allocation3], 1
    %18 = vsyncpa %s17, 0
    %19 = vsyncpa [#allocation6], 0
    %s20 = scalar_lea.sflag [#allocation6], 1
    %21 = vsyncpa %s20, 0
    %22 = vsyncpa [#allocation9], 0
    %23 = vsyncpa [#allocation12], 0
    %24 = vsyncpa [#allocation4], 0
    %s25 = scalar_lea.sflag [#allocation4], 1
    %26 = vsyncpa %s25, 0
    loop: start=0, step=1, limit=6
    $region2: #{tpu_custom_call.1} parent=1 // loop_pre_header
      _
    $region3: #{tpu_custom_call.1} parent=1 // loop_header
      %s28 = sphi 0, %s32
      %p29 = scmp.ge.s32.totalorder %s28, 6
      %s38 = sphi 0, %s40
      %s41 = sphi 0, %s38
      %s42 = sphi 0, %s41
      %s58 = sphi 0, %s42
      %s64 = sphi 0, %s66
      %s67 = sphi 0, %s64
      %s68 = sphi 0, %s67
      %s84 = sphi 0, %s68
      %s90 = sphi 0, %s92
      %s93 = sphi 0, %s90
      %s94 = sphi 0, %s93
      %s110 = sphi 0, %s94
      %s114 = sphi 0, %s114
      %s116 = sphi 0, %s114
      %s117 = sphi 0, %s116
      %s131 = sphi 0, %s117
      %s135 = sphi 0, %s135
      %s137 = sphi 0, %s135
      %s138 = sphi 0, %s137
      %s152 = sphi 0, %s138
      %s156 = sphi 0, %s156
      %s158 = sphi 0, %s156
      %s159 = sphi 0, %s158
      %s173 = sphi 0, %s159
      %s177 = sphi 0, %s177
      %s179 = sphi 0, %s177
      %s180 = sphi 0, %s179
      %s194 = sphi 0, %s180
      %s198 = sphi 0, %s198
      %s200 = sphi 0, %s198
      %s201 = sphi 0, %s200
      %s215 = sphi 0, %s201
      %s219 = sphi 0, %s219
      %s221 = sphi 0, %s219
      %s222 = sphi 0, %s221
      %s236 = sphi 0, %s222
      %s240 = sphi 0, %s240
      %s242 = sphi 0, %s240
      %s243 = sphi 0, %s242
      %s257 = sphi 0, %s243
      %s261 = sphi 0, %s261
      %s263 = sphi 0, %s261
      %s264 = sphi 0, %s263
      %s278 = sphi 0, %s264
      %s284 = sphi 0, %s286
      %s287 = sphi 0, %s284
      %s288 = sphi 0, %s287
      %s304 = sphi 0, %s288
    $region4: #{tpu_custom_call.1} parent=1 // loop_header_branch
      %31 = sbr.rel (%p29) target = $region8
    $region5: #{tpu_custom_call.1} parent=1 // loop_body
      %s33 = ssub.s32 %s28, 1
      %s34 = ssub.s32 %s28, 2
      %s35 = sadd.s32 %s28, 1
      %s36 = ssub.s32 %s28, %s35
      %p37 = scmp.eq.s32.totalorder %s36, 0
      %s39 = sadd.s32 %s38, 1
      %s40 = scalar_select %p37, %s38, %s39
      %p43 = pneg %p37
      %p44 = scmp.eq.s32.totalorder %s28, 3
      %p45 = por %p43, %p44
      %p46 = scmp.ne.s32.totalorder %s38, %s41
      %p47 = scmp.eq.s32.totalorder %s28, 0
      %p48 = por %p46, %p47
      %p49 = scmp.ne.s32.totalorder %s38, %s41
      %p50 = scmp.eq.s32.totalorder %s33, 3
      %p51 = por %p49, %p50
      %p52 = scmp.ne.s32.totalorder %s41, %s42
      %p53 = scmp.eq.s32.totalorder %s33, 0
      %p54 = por %p52, %p53
      %p55 = scmp.ne.s32.totalorder %s41, %s42
      %p56 = scmp.eq.s32.totalorder %s34, 3
      %p57 = por %p55, %p56
      %p59 = scmp.ne.s32.totalorder %s42, %s58
      %p60 = scmp.eq.s32.totalorder %s34, 0
      %p61 = por %p59, %p60
      %s62 = ssub.s32 %s28, %s35
      %p63 = scmp.eq.s32.totalorder %s62, 0
      %s65 = sadd.s32 %s64, 1
      %s66 = scalar_select %p63, %s64, %s65
      %p69 = pneg %p63
      %p70 = scmp.eq.s32.totalorder %s28, 3
      %p71 = por %p69, %p70
      %p72 = scmp.ne.s32.totalorder %s64, %s67
      %p73 = scmp.eq.s32.totalorder %s28, 0
      %p74 = por %p72, %p73
      %p75 = scmp.ne.s32.totalorder %s64, %s67
      %p76 = scmp.eq.s32.totalorder %s33, 3
      %p77 = por %p75, %p76
      %p78 = scmp.ne.s32.totalorder %s67, %s68
      %p79 = scmp.eq.s32.totalorder %s33, 0
      %p80 = por %p78, %p79
      %p81 = scmp.ne.s32.totalorder %s67, %s68
      %p82 = scmp.eq.s32.totalorder %s34, 3
      %p83 = por %p81, %p82
      %p85 = scmp.ne.s32.totalorder %s68, %s84
      %p86 = scmp.eq.s32.totalorder %s34, 0
      %p87 = por %p85, %p86
      %s88 = ssub.s32 %s28, %s35
      %p89 = scmp.eq.s32.totalorder %s88, 0
      %s91 = sadd.s32 %s90, 1
      %s92 = scalar_select %p89, %s90, %s91
      %p95 = pneg %p89
      %p96 = scmp.eq.s32.totalorder %s28, 3
      %p97 = por %p95, %p96
      %p98 = scmp.ne.s32.totalorder %s90, %s93
      %p99 = scmp.eq.s32.totalorder %s28, 0
      %p100 = por %p98, %p99
      %p101 = scmp.ne.s32.totalorder %s90, %s93
      %p102 = scmp.eq.s32.totalorder %s33, 3
      %p103 = por %p101, %p102
      %p104 = scmp.ne.s32.totalorder %s93, %s94
      %p105 = scmp.eq.s32.totalorder %s33, 0
      %p106 = por %p104, %p105
      %p107 = scmp.ne.s32.totalorder %s93, %s94
      %p108 = scmp.eq.s32.totalorder %s34, 3
      %p109 = por %p107, %p108
      %p111 = scmp.ne.s32.totalorder %s94, %s110
      %p112 = scmp.eq.s32.totalorder %s34, 0
      %p113 = por %p111, %p112
      %s115 = sadd.s32 %s114, 1
      %p118 = scmp.eq.s32.totalorder %s28, 3
      %p119 = scmp.ne.s32.totalorder %s114, %s116
      %p120 = scmp.eq.s32.totalorder %s28, 0
      %p121 = por %p119, %p120
      %p122 = scmp.ne.s32.totalorder %s114, %s116
      %p123 = scmp.eq.s32.totalorder %s33, 3
      %p124 = por %p122, %p123
      %p125 = scmp.ne.s32.totalorder %s116, %s117
      %p126 = scmp.eq.s32.totalorder %s33, 0
      %p127 = por %p125, %p126
      %p128 = scmp.ne.s32.totalorder %s116, %s117
      %p129 = scmp.eq.s32.totalorder %s34, 3
      %p130 = por %p128, %p129
      %p132 = scmp.ne.s32.totalorder %s117, %s131
      %p133 = scmp.eq.s32.totalorder %s34, 0
      %p134 = por %p132, %p133
      %s136 = sadd.s32 %s135, 1
      %p139 = scmp.eq.s32.totalorder %s28, 3
      %p140 = scmp.ne.s32.totalorder %s135, %s137
      %p141 = scmp.eq.s32.totalorder %s28, 0
      %p142 = por %p140, %p141
      %p143 = scmp.ne.s32.totalorder %s135, %s137
      %p144 = scmp.eq.s32.totalorder %s33, 3
      %p145 = por %p143, %p144
      %p146 = scmp.ne.s32.totalorder %s137, %s138
      %p147 = scmp.eq.s32.totalorder %s33, 0
      %p148 = por %p146, %p147
      %p149 = scmp.ne.s32.totalorder %s137, %s138
      %p150 = scmp.eq.s32.totalorder %s34, 3
      %p151 = por %p149, %p150
      %p153 = scmp.ne.s32.totalorder %s138, %s152
      %p154 = scmp.eq.s32.totalorder %s34, 0
      %p155 = por %p153, %p154
      %s157 = sadd.s32 %s156, 1
      %p160 = scmp.eq.s32.totalorder %s28, 3
      %p161 = scmp.ne.s32.totalorder %s156, %s158
      %p162 = scmp.eq.s32.totalorder %s28, 0
      %p163 = por %p161, %p162
      %p164 = scmp.ne.s32.totalorder %s156, %s158
      %p165 = scmp.eq.s32.totalorder %s33, 3
      %p166 = por %p164, %p165
      %p167 = scmp.ne.s32.totalorder %s158, %s159
      %p168 = scmp.eq.s32.totalorder %s33, 0
      %p169 = por %p167, %p168
      %p170 = scmp.ne.s32.totalorder %s158, %s159
      %p171 = scmp.eq.s32.totalorder %s34, 3
      %p172 = por %p170, %p171
      %p174 = scmp.ne.s32.totalorder %s159, %s173
      %p175 = scmp.eq.s32.totalorder %s34, 0
      %p176 = por %p174, %p175
      %s178 = sadd.s32 %s177, 1
      %p181 = scmp.eq.s32.totalorder %s28, 3
      %p182 = scmp.ne.s32.totalorder %s177, %s179
      %p183 = scmp.eq.s32.totalorder %s28, 0
      %p184 = por %p182, %p183
      %p185 = scmp.ne.s32.totalorder %s177, %s179
      %p186 = scmp.eq.s32.totalorder %s33, 3
      %p187 = por %p185, %p186
      %p188 = scmp.ne.s32.totalorder %s179, %s180
      %p189 = scmp.eq.s32.totalorder %s33, 0
      %p190 = por %p188, %p189
      %p191 = scmp.ne.s32.totalorder %s179, %s180
      %p192 = scmp.eq.s32.totalorder %s34, 3
      %p193 = por %p191, %p192
      %p195 = scmp.ne.s32.totalorder %s180, %s194
      %p196 = scmp.eq.s32.totalorder %s34, 0
      %p197 = por %p195, %p196
      %s199 = sadd.s32 %s198, 1
      %p202 = scmp.eq.s32.totalorder %s28, 3
      %p203 = scmp.ne.s32.totalorder %s198, %s200
      %p204 = scmp.eq.s32.totalorder %s28, 0
      %p205 = por %p203, %p204
      %p206 = scmp.ne.s32.totalorder %s198, %s200
      %p207 = scmp.eq.s32.totalorder %s33, 3
      %p208 = por %p206, %p207
      %p209 = scmp.ne.s32.totalorder %s200, %s201
      %p210 = scmp.eq.s32.totalorder %s33, 0
      %p211 = por %p209, %p210
      %p212 = scmp.ne.s32.totalorder %s200, %s201
      %p213 = scmp.eq.s32.totalorder %s34, 3
      %p214 = por %p212, %p213
      %p216 = scmp.ne.s32.totalorder %s201, %s215
      %p217 = scmp.eq.s32.totalorder %s34, 0
      %p218 = por %p216, %p217
      %s220 = sadd.s32 %s219, 1
      %p223 = scmp.eq.s32.totalorder %s28, 3
      %p224 = scmp.ne.s32.totalorder %s219, %s221
      %p225 = scmp.eq.s32.totalorder %s28, 0
      %p226 = por %p224, %p225
      %p227 = scmp.ne.s32.totalorder %s219, %s221
      %p228 = scmp.eq.s32.totalorder %s33, 3
      %p229 = por %p227, %p228
      %p230 = scmp.ne.s32.totalorder %s221, %s222
      %p231 = scmp.eq.s32.totalorder %s33, 0
      %p232 = por %p230, %p231
      %p233 = scmp.ne.s32.totalorder %s221, %s222
      %p234 = scmp.eq.s32.totalorder %s34, 3
      %p235 = por %p233, %p234
      %p237 = scmp.ne.s32.totalorder %s222, %s236
      %p238 = scmp.eq.s32.totalorder %s34, 0
      %p239 = por %p237, %p238
      %s241 = sadd.s32 %s240, 1
      %p244 = scmp.eq.s32.totalorder %s28, 3
      %p245 = scmp.ne.s32.totalorder %s240, %s242
      %p246 = scmp.eq.s32.totalorder %s28, 0
      %p247 = por %p245, %p246
      %p248 = scmp.ne.s32.totalorder %s240, %s242
      %p249 = scmp.eq.s32.totalorder %s33, 3
      %p250 = por %p248, %p249
      %p251 = scmp.ne.s32.totalorder %s242, %s243
      %p252 = scmp.eq.s32.totalorder %s33, 0
      %p253 = por %p251, %p252
      %p254 = scmp.ne.s32.totalorder %s242, %s243
      %p255 = scmp.eq.s32.totalorder %s34, 3
      %p256 = por %p254, %p255
      %p258 = scmp.ne.s32.totalorder %s243, %s257
      %p259 = scmp.eq.s32.totalorder %s34, 0
      %p260 = por %p258, %p259
      %s262 = sadd.s32 %s261, 1
      %p265 = scmp.eq.s32.totalorder %s28, 3
      %p266 = scmp.ne.s32.totalorder %s261, %s263
      %p267 = scmp.eq.s32.totalorder %s28, 0
      %p268 = por %p266, %p267
      %p269 = scmp.ne.s32.totalorder %s261, %s263
      %p270 = scmp.eq.s32.totalorder %s33, 3
      %p271 = por %p269, %p270
      %p272 = scmp.ne.s32.totalorder %s263, %s264
      %p273 = scmp.eq.s32.totalorder %s33, 0
      %p274 = por %p272, %p273
      %p275 = scmp.ne.s32.totalorder %s263, %s264
      %p276 = scmp.eq.s32.totalorder %s34, 3
      %p277 = por %p275, %p276
      %p279 = scmp.ne.s32.totalorder %s264, %s278
      %p280 = scmp.eq.s32.totalorder %s34, 0
      %p281 = por %p279, %p280
      %s282 = ssub.s32 %s28, %s35
      %p283 = scmp.eq.s32.totalorder %s282, 0
      %s285 = sadd.s32 %s284, 1
      %s286 = scalar_select %p283, %s284, %s285
      %p289 = pneg %p283
      %p290 = scmp.eq.s32.totalorder %s28, 3
      %p291 = por %p289, %p290
      %p292 = scmp.ne.s32.totalorder %s284, %s287
      %p293 = scmp.eq.s32.totalorder %s28, 0
      %p294 = por %p292, %p293
      %p295 = scmp.ne.s32.totalorder %s284, %s287
      %p296 = scmp.eq.s32.totalorder %s33, 3
      %p297 = por %p295, %p296
      %p298 = scmp.ne.s32.totalorder %s287, %s288
      %p299 = scmp.eq.s32.totalorder %s33, 0
      %p300 = por %p298, %p299
      %p301 = scmp.ne.s32.totalorder %s287, %s288
      %p302 = scmp.eq.s32.totalorder %s34, 3
      %p303 = por %p301, %p302
      %p305 = scmp.ne.s32.totalorder %s288, %s304
      %p306 = scmp.eq.s32.totalorder %s34, 0
      %p307 = por %p305, %p306
      %p308 = scmp.le.s32.totalorder 1, %s28
      %p309 = scmp.lt.s32.totalorder %s28, 5
      %p310 = pnand %p308, %p309
      %p311 = pneg %p310
      // Predicated region
      $region9: #{tpu_custom_call.1} parent=5 // pred_check
        _
      $region10: #{tpu_custom_call.1} parent=5 // pred_check_branch
        %313 = sbr.rel (%p310) target = $region12
      $region11: #{tpu_custom_call.1} parent=5 // pred_region
        %s314 = ssub.s32 %s28, 1
        // Predicated region
        $region13: #{tpu_custom_call.1} parent=11 // pred_check
          %p315 = pneg %p127
        $region14: #{tpu_custom_call.1} parent=11 // pred_check_branch
          %317 = sbr.rel (%p315) target = $region16
        $region15: #{tpu_custom_call.1} parent=11 // pred_region
          %s319 = ssub.s32 16384, 16384
          %320 = vsyncadd [#allocation9], %s319
          %s321 = sshll.u32 [#allocation8], 4
          %s322 = int_to_ptr.vmem [resolvable:$true] %s321
          %327 = dma.hbm_to_vmem [thread:$0]  %s3, 16384, %s322, [#allocation9], 256, 256, 16
        $region16: #{tpu_custom_call.1} parent=11 // pred_fallthru
          _
        // Predicated region
        $region17: #{tpu_custom_call.1} parent=11 // pred_check
          %p328 = pneg %p148
        $region18: #{tpu_custom_call.1} parent=11 // pred_check_branch
          %330 = sbr.rel (%p328) target = $region20
        $region19: #{tpu_custom_call.1} parent=11 // pred_region
          _
        $region20: #{tpu_custom_call.1} parent=11 // pred_fallthru
          _
        // Predicated region
        $region21: #{tpu_custom_call.1} parent=11 // pred_check
          %p331 = pneg %p169
        $region22: #{tpu_custom_call.1} parent=11 // pred_check_branch
          %333 = sbr.rel (%p331) target = $region24
        $region23: #{tpu_custom_call.1} parent=11 // pred_region
          %s335 = ssub.s32 16384, 16384
          %336 = vsyncadd [#allocation9], %s335
          %s337 = sshll.u32 [#allocation10], 4
          %s338 = int_to_ptr.vmem [resolvable:$true] %s337
          %343 = dma.hbm_to_vmem [thread:$0]  %s5, 16384, %s338, [#allocation9], 256, 256, 16
        $region24: #{tpu_custom_call.1} parent=11 // pred_fallthru
          _
        // Predicated region
        $region25: #{tpu_custom_call.1} parent=11 // pred_check
          %p344 = pneg %p190
        $region26: #{tpu_custom_call.1} parent=11 // pred_check_branch
          %346 = sbr.rel (%p344) target = $region28
        $region27: #{tpu_custom_call.1} parent=11 // pred_region
          _
        $region28: #{tpu_custom_call.1} parent=11 // pred_fallthru
          _
        // Predicated region
        $region29: #{tpu_custom_call.1} parent=11 // pred_check
          %p347 = pneg %p211
        $region30: #{tpu_custom_call.1} parent=11 // pred_check_branch
          %349 = sbr.rel (%p347) target = $region32
        $region31: #{tpu_custom_call.1} parent=11 // pred_region
          %s351 = ssub.s32 16384, 16384
          %352 = vsyncadd [#allocation12], %s351
          %s353 = sshll.u32 [#allocation11], 4
          %s354 = int_to_ptr.vmem [resolvable:$true] %s353
          %359 = dma.hbm_to_vmem [thread:$0]  %s7, 16384, %s354, [#allocation12], 256, 256, 16
        $region32: #{tpu_custom_call.1} parent=11 // pred_fallthru
          _
        // Predicated region
        $region33: #{tpu_custom_call.1} parent=11 // pred_check
          %p360 = pneg %p232
        $region34: #{tpu_custom_call.1} parent=11 // pred_check_branch
          %362 = sbr.rel (%p360) target = $region36
        $region35: #{tpu_custom_call.1} parent=11 // pred_region
          _
        $region36: #{tpu_custom_call.1} parent=11 // pred_fallthru
          _
        // Predicated region
        $region37: #{tpu_custom_call.1} parent=11 // pred_check
          %p363 = pneg %p253
        $region38: #{tpu_custom_call.1} parent=11 // pred_check_branch
          %365 = sbr.rel (%p363) target = $region40
        $region39: #{tpu_custom_call.1} parent=11 // pred_region
          %s367 = ssub.s32 16384, 16384
          %368 = vsyncadd [#allocation12], %s367
          %s369 = sshll.u32 [#allocation13], 4
          %s370 = int_to_ptr.vmem [resolvable:$true] %s369
          %375 = dma.hbm_to_vmem [thread:$0]  %s9, 16384, %s370, [#allocation12], 256, 256, 16
        $region40: #{tpu_custom_call.1} parent=11 // pred_fallthru
          _
        // Predicated region
        $region41: #{tpu_custom_call.1} parent=11 // pred_check
          %p376 = pneg %p274
        $region42: #{tpu_custom_call.1} parent=11 // pred_check_branch
          %378 = sbr.rel (%p376) target = $region44
        $region43: #{tpu_custom_call.1} parent=11 // pred_region
          _
        $region44: #{tpu_custom_call.1} parent=11 // pred_fallthru
          _
      $region12: #{tpu_custom_call.1} parent=5 // pred_fallthru
        _
      %p379 = scmp.lt.s32.totalorder %s28, 4
      // Predicated region
      $region45: #{tpu_custom_call.1} parent=5 // pred_check
        %p380 = pneg %p379
      $region46: #{tpu_custom_call.1} parent=5 // pred_check_branch
        %382 = sbr.rel (%p380) target = $region48
      $region47: #{tpu_custom_call.1} parent=5 // pred_region
        // Predicated region
        $region49: #{tpu_custom_call.1} parent=47 // pred_check
          %p383 = pneg %p48
        $region50: #{tpu_custom_call.1} parent=47 // pred_check_branch
          %385 = sbr.rel (%p383) target = $region52
        $region51: #{tpu_custom_call.1} parent=47 // pred_region
          %s386 = sand.u32 %s38, 1
          %s387 = scalar_lea.sflag [#allocation3], %s386
          %s388 = sand.u32 %s38, 1
          %s389 = smul.addr %s388, 512
          %s390 = scalar_lea.vmem [#allocation2], %s389
          %s391 = smul.u32 16, %s28
          %s393 = ssub.s32 8192, 8192
          %394 = vsyncadd %s387, %s393
          %s395 = smul.addr %s391, 4
          %s396 = smul.addr %s395, 128
          %s397 = scalar_lea.hbm %s0, %s396
          %s398 = sshll.u32 %s390, 4
          %s399 = int_to_ptr.vmem [resolvable:$true] %s398
          %404 = dma.hbm_to_vmem [thread:$0]  %s397, 8192, %s399, %s387, 512, 512, 32
        $region52: #{tpu_custom_call.1} parent=47 // pred_fallthru
          _
        // Predicated region
        $region53: #{tpu_custom_call.1} parent=47 // pred_check
          %p405 = pneg %p74
        $region54: #{tpu_custom_call.1} parent=47 // pred_check_branch
          %407 = sbr.rel (%p405) target = $region56
        $region55: #{tpu_custom_call.1} parent=47 // pred_region
          %s408 = sand.u32 %s28, 1
          %s409 = scalar_lea.sflag [#allocation6], %s408
          %s410 = sand.u32 %s64, 1
          %s411 = smul.addr %s410, 512
          %s412 = scalar_lea.vmem [#allocation5], %s411
          %s413 = smul.u32 16, %s28
          %s415 = ssub.s32 8192, 8192
          %416 = vsyncadd %s409, %s415
          %s417 = smul.addr %s413, 4
          %s418 = smul.addr %s417, 128
          %s419 = scalar_lea.hbm %s1, %s418
          %s420 = sshll.u32 %s412, 4
          %s421 = int_to_ptr.vmem [resolvable:$true] %s420
          %426 = dma.hbm_to_vmem [thread:$0]  %s419, 8192, %s421, %s409, 512, 512, 32
        $region56: #{tpu_custom_call.1} parent=47 // pred_fallthru
          _
        // Predicated region
        $region57: #{tpu_custom_call.1} parent=47 // pred_check
          %p427 = pneg %p100
        $region58: #{tpu_custom_call.1} parent=47 // pred_check_branch
          %429 = sbr.rel (%p427) target = $region60
        $region59: #{tpu_custom_call.1} parent=47 // pred_region
          %s430 = sand.u32 %s28, 1
          %s431 = scalar_lea.sflag [#allocation6], %s430
          %s432 = sand.u32 %s90, 1
          %s433 = smul.addr %s432, 512
          %s434 = scalar_lea.vmem [#allocation7], %s433
          %s435 = smul.u32 16, %s28
          %s437 = ssub.s32 8192, 8192
          %438 = vsyncadd %s431, %s437
          %s439 = smul.addr %s435, 4
          %s440 = smul.addr %s439, 128
          %s441 = scalar_lea.hbm %s2, %s440
          %s442 = sshll.u32 %s434, 4
          %s443 = int_to_ptr.vmem [resolvable:$true] %s442
          %448 = dma.hbm_to_vmem [thread:$0]  %s441, 8192, %s443, %s431, 512, 512, 32
        $region60: #{tpu_custom_call.1} parent=47 // pred_fallthru
          _
      $region48: #{tpu_custom_call.1} parent=5 // pred_fallthru
        _
      %p449 = scmp.le.s32.totalorder 1, %s28
      %p450 = scmp.lt.s32.totalorder %s28, 5
      %p451 = pnand %p449, %p450
      %p452 = pneg %p451
      // Predicated region
      $region61: #{tpu_custom_call.1} parent=5 // pred_check
        _
      $region62: #{tpu_custom_call.1} parent=5 // pred_check_branch
        %454 = sbr.rel (%p451) target = $region64
      $region63: #{tpu_custom_call.1} parent=5 // pred_region
        %s455 = ssub.s32 %s28, 1
        %s456 = sand.u32 %s41, 1
        %s457 = scalar_lea.sflag [#allocation3], %s456
        %s458 = sand.u32 %s41, 1
        %s459 = smul.addr %s458, 512
        %s460 = scalar_lea.vmem [#allocation2], %s459
        // Predicated region
        $region65: #{tpu_custom_call.1} parent=63 // pred_check
          %p461 = pneg %p54
        $region66: #{tpu_custom_call.1} parent=63 // pred_check_branch
          %463 = sbr.rel (%p461) target = $region68
        $region67: #{tpu_custom_call.1} parent=63 // pred_region
          %464 = dma.done %s457, 8192
        $region68: #{tpu_custom_call.1} parent=63 // pred_fallthru
          _
        %s465 = sand.u32 %s33, 1
        %s466 = scalar_lea.sflag [#allocation6], %s465
        %s467 = sand.u32 %s67, 1
        %s468 = smul.addr %s467, 512
        %s469 = scalar_lea.vmem [#allocation5], %s468
        // Predicated region
        $region69: #{tpu_custom_call.1} parent=63 // pred_check
          %p470 = pneg %p80
        $region70: #{tpu_custom_call.1} parent=63 // pred_check_branch
          %472 = sbr.rel (%p470) target = $region72
        $region71: #{tpu_custom_call.1} parent=63 // pred_region
          %473 = dma.done %s466, 8192
        $region72: #{tpu_custom_call.1} parent=63 // pred_fallthru
          _
        %s474 = sand.u32 %s33, 1
        %s475 = scalar_lea.sflag [#allocation6], %s474
        %s476 = sand.u32 %s93, 1
        %s477 = smul.addr %s476, 512
        %s478 = scalar_lea.vmem [#allocation7], %s477
        // Predicated region
        $region73: #{tpu_custom_call.1} parent=63 // pred_check
          %p479 = pneg %p106
        $region74: #{tpu_custom_call.1} parent=63 // pred_check_branch
          %481 = sbr.rel (%p479) target = $region76
        $region75: #{tpu_custom_call.1} parent=63 // pred_region
          %482 = dma.done %s475, 8192
        $region76: #{tpu_custom_call.1} parent=63 // pred_fallthru
          _
        // Predicated region
        $region77: #{tpu_custom_call.1} parent=63 // pred_check
          %p483 = pneg %p127
        $region78: #{tpu_custom_call.1} parent=63 // pred_check_branch
          %485 = sbr.rel (%p483) target = $region80
        $region79: #{tpu_custom_call.1} parent=63 // pred_region
          %486 = dma.done [#allocation9], 16384
        $region80: #{tpu_custom_call.1} parent=63 // pred_fallthru
          _
        // Predicated region
        $region81: #{tpu_custom_call.1} parent=63 // pred_check
          %p487 = pneg %p169
        $region82: #{tpu_custom_call.1} parent=63 // pred_check_branch
          %489 = sbr.rel (%p487) target = $region84
        $region83: #{tpu_custom_call.1} parent=63 // pred_region
          %490 = dma.done [#allocation9], 16384
        $region84: #{tpu_custom_call.1} parent=63 // pred_fallthru
          _
        // Predicated region
        $region85: #{tpu_custom_call.1} parent=63 // pred_check
          %p491 = pneg %p211
        $region86: #{tpu_custom_call.1} parent=63 // pred_check_branch
          %493 = sbr.rel (%p491) target = $region88
        $region87: #{tpu_custom_call.1} parent=63 // pred_region
          %494 = dma.done [#allocation12], 16384
        $region88: #{tpu_custom_call.1} parent=63 // pred_fallthru
          _
        // Predicated region
        $region89: #{tpu_custom_call.1} parent=63 // pred_check
          %p495 = pneg %p253
        $region90: #{tpu_custom_call.1} parent=63 // pred_check_branch
          %497 = sbr.rel (%p495) target = $region92
        $region91: #{tpu_custom_call.1} parent=63 // pred_region
          %498 = dma.done [#allocation12], 16384
        $region92: #{tpu_custom_call.1} parent=63 // pred_fallthru
          _
        %s499 = sand.u32 %s41, 1
        %s500 = scalar_lea.sflag [#allocation3], %s499
        %s501 = sand.u32 %s41, 1
        %s502 = smul.addr %s501, 512
        %s503 = scalar_lea.vmem [#allocation2], %s502
        %p504 = pneg %p54
        %p505 = pneg %p51
        %s506 = sand.u32 %s33, 1
        %s507 = scalar_lea.sflag [#allocation6], %s506
        %s508 = sand.u32 %s67, 1
        %s509 = smul.addr %s508, 512
        %s510 = scalar_lea.vmem [#allocation5], %s509
        %p511 = pneg %p80
        %p512 = pneg %p77
        %s513 = sand.u32 %s33, 1
        %s514 = scalar_lea.sflag [#allocation6], %s513
        %s515 = sand.u32 %s93, 1
        %s516 = smul.addr %s515, 512
        %s517 = scalar_lea.vmem [#allocation7], %s516
        %p518 = pneg %p106
        %p519 = pneg %p103
        %p520 = pneg %p127
        %p521 = pneg %p124
        %p522 = pneg %p148
        %p523 = pneg %p145
        %p524 = pneg %p169
        %p525 = pneg %p166
        %p526 = pneg %p190
        %p527 = pneg %p187
        %p528 = pneg %p211
        %p529 = pneg %p208
        %p530 = pneg %p232
        %p531 = pneg %p229
        %p532 = pneg %p253
        %p533 = pneg %p250
        %p534 = pneg %p274
        %p535 = pneg %p271
        %p536 = pneg %p300
        %p537 = pneg %p297
        %s538 = sand.u32 %s287, 1
        %s539 = scalar_lea.sflag [#allocation4], %s538
        %s540 = sand.u32 %s287, 1
        %s541 = smul.addr %s540, 512
        %s542 = scalar_lea.vmem [#allocation14], %s541
        %s543 = smul.u32 16, %s33
        %s544 = smul.u32 16, %s33
        %s545 = smul.u32 16, %s33
        %s546 = smul.u32 16, %s33
        %v548 = vld [vmem:[%s460] sm:$0xff]
        %v549 = vld [vmem:[%s460 + $0x8] sm:$0xff]
        %v550 = vld [vmem:[%s460 + $0x10] sm:$0xff]
        %v551 = vld [vmem:[%s460 + $0x18] sm:$0xff]
        %v552 = vld [vmem:[%s460 + $0x20] sm:$0xff]
        %v553 = vld [vmem:[%s460 + $0x28] sm:$0xff]
        %v554 = vld [vmem:[%s460 + $0x30] sm:$0xff]
        %v555 = vld [vmem:[%s460 + $0x38] sm:$0xff]
        %v556 = vld [vmem:[%s460 + $0x40] sm:$0xff]
        %v557 = vld [vmem:[%s460 + $0x48] sm:$0xff]
        %v558 = vld [vmem:[%s460 + $0x50] sm:$0xff]
        %v559 = vld [vmem:[%s460 + $0x58] sm:$0xff]
        %v560 = vld [vmem:[%s460 + $0x60] sm:$0xff]
        %v561 = vld [vmem:[%s460 + $0x68] sm:$0xff]
        %v562 = vld [vmem:[%s460 + $0x70] sm:$0xff]
        %v563 = vld [vmem:[%s460 + $0x78] sm:$0xff]
        %v564 = vld [vmem:[%s460 + $0x80] sm:$0xff]
        %v565 = vld [vmem:[%s460 + $0x88] sm:$0xff]
        %v566 = vld [vmem:[%s460 + $0x90] sm:$0xff]
        %v567 = vld [vmem:[%s460 + $0x98] sm:$0xff]
        %v568 = vld [vmem:[%s460 + $0xa0] sm:$0xff]
        %v569 = vld [vmem:[%s460 + $0xa8] sm:$0xff]
        %v570 = vld [vmem:[%s460 + $0xb0] sm:$0xff]
        %v571 = vld [vmem:[%s460 + $0xb8] sm:$0xff]
        %v572 = vld [vmem:[%s460 + $0xc0] sm:$0xff]
        %v573 = vld [vmem:[%s460 + $0xc8] sm:$0xff]
        %v574 = vld [vmem:[%s460 + $0xd0] sm:$0xff]
        %v575 = vld [vmem:[%s460 + $0xd8] sm:$0xff]
        %v576 = vld [vmem:[%s460 + $0xe0] sm:$0xff]
        %v577 = vld [vmem:[%s460 + $0xe8] sm:$0xff]
        %v578 = vld [vmem:[%s460 + $0xf0] sm:$0xff]
        %v579 = vld [vmem:[%s460 + $0xf8] sm:$0xff]
        %v580 = vld [vmem:[%s460 + $0x100] sm:$0xff]
        %v581 = vld [vmem:[%s460 + $0x108] sm:$0xff]
        %v582 = vld [vmem:[%s460 + $0x110] sm:$0xff]
        %v583 = vld [vmem:[%s460 + $0x118] sm:$0xff]
        %v584 = vld [vmem:[%s460 + $0x120] sm:$0xff]
        %v585 = vld [vmem:[%s460 + $0x128] sm:$0xff]
        %v586 = vld [vmem:[%s460 + $0x130] sm:$0xff]
        %v587 = vld [vmem:[%s460 + $0x138] sm:$0xff]
        %v588 = vld [vmem:[%s460 + $0x140] sm:$0xff]
        %v589 = vld [vmem:[%s460 + $0x148] sm:$0xff]
        %v590 = vld [vmem:[%s460 + $0x150] sm:$0xff]
        %v591 = vld [vmem:[%s460 + $0x158] sm:$0xff]
        %v592 = vld [vmem:[%s460 + $0x160] sm:$0xff]
        %v593 = vld [vmem:[%s460 + $0x168] sm:$0xff]
        %v594 = vld [vmem:[%s460 + $0x170] sm:$0xff]
        %v595 = vld [vmem:[%s460 + $0x178] sm:$0xff]
        %v596 = vld [vmem:[%s460 + $0x180] sm:$0xff]
        %v597 = vld [vmem:[%s460 + $0x188] sm:$0xff]
        %v598 = vld [vmem:[%s460 + $0x190] sm:$0xff]
        %v599 = vld [vmem:[%s460 + $0x198] sm:$0xff]
        %v600 = vld [vmem:[%s460 + $0x1a0] sm:$0xff]
        %v601 = vld [vmem:[%s460 + $0x1a8] sm:$0xff]
        %v602 = vld [vmem:[%s460 + $0x1b0] sm:$0xff]
        %v603 = vld [vmem:[%s460 + $0x1b8] sm:$0xff]
        %v604 = vld [vmem:[%s460 + $0x1c0] sm:$0xff]
        %v605 = vld [vmem:[%s460 + $0x1c8] sm:$0xff]
        %v606 = vld [vmem:[%s460 + $0x1d0] sm:$0xff]
        %v607 = vld [vmem:[%s460 + $0x1d8] sm:$0xff]
        %v608 = vld [vmem:[%s460 + $0x1e0] sm:$0xff]
        %v609 = vld [vmem:[%s460 + $0x1e8] sm:$0xff]
        %v610 = vld [vmem:[%s460 + $0x1f0] sm:$0xff]
        %v611 = vld [vmem:[%s460 + $0x1f8] sm:$0xff]
        %v612 = vpack.c.bf16 %v552, %v548
        %v613 = vpack.c.bf16 %v553, %v549
        %v614 = vpack.c.bf16 %v554, %v550
        %v615 = vpack.c.bf16 %v555, %v551
        %v616 = vpack.c.bf16 %v560, %v556
        %v617 = vpack.c.bf16 %v561, %v557
        %v618 = vpack.c.bf16 %v562, %v558
        %v619 = vpack.c.bf16 %v563, %v559
        %v620 = vpack.c.bf16 %v568, %v564
        %v621 = vpack.c.bf16 %v569, %v565
        %v622 = vpack.c.bf16 %v570, %v566
        %v623 = vpack.c.bf16 %v571, %v567
        %v624 = vpack.c.bf16 %v576, %v572
        %v625 = vpack.c.bf16 %v577, %v573
        %v626 = vpack.c.bf16 %v578, %v574
        %v627 = vpack.c.bf16 %v579, %v575
        %v628 = vpack.c.bf16 %v584, %v580
        %v629 = vpack.c.bf16 %v585, %v581
        %v630 = vpack.c.bf16 %v586, %v582
        %v631 = vpack.c.bf16 %v587, %v583
        %v632 = vpack.c.bf16 %v592, %v588
        %v633 = vpack.c.bf16 %v593, %v589
        %v634 = vpack.c.bf16 %v594, %v590
        %v635 = vpack.c.bf16 %v595, %v591
        %v636 = vpack.c.bf16 %v600, %v596
        %v637 = vpack.c.bf16 %v601, %v597
        %v638 = vpack.c.bf16 %v602, %v598
        %v639 = vpack.c.bf16 %v603, %v599
        %v640 = vpack.c.bf16 %v608, %v604
        %v641 = vpack.c.bf16 %v609, %v605
        %v642 = vpack.c.bf16 %v610, %v606
        %v643 = vpack.c.bf16 %v611, %v607
        %v644 = vld [vmem:[%s469] sm:$0xff]
        %v645 = vld [vmem:[%s469 + $0x8] sm:$0xff]
        %v646 = vld [vmem:[%s469 + $0x10] sm:$0xff]
        %v647 = vld [vmem:[%s469 + $0x18] sm:$0xff]
        %v648 = vld [vmem:[%s469 + $0x20] sm:$0xff]
        %v649 = vld [vmem:[%s469 + $0x28] sm:$0xff]
        %v650 = vld [vmem:[%s469 + $0x30] sm:$0xff]
        %v651 = vld [vmem:[%s469 + $0x38] sm:$0xff]
        %v652 = vld [vmem:[%s469 + $0x40] sm:$0xff]
        %v653 = vld [vmem:[%s469 + $0x48] sm:$0xff]
        %v654 = vld [vmem:[%s469 + $0x50] sm:$0xff]
        %v655 = vld [vmem:[%s469 + $0x58] sm:$0xff]
        %v656 = vld [vmem:[%s469 + $0x60] sm:$0xff]
        %v657 = vld [vmem:[%s469 + $0x68] sm:$0xff]
        %v658 = vld [vmem:[%s469 + $0x70] sm:$0xff]
        %v659 = vld [vmem:[%s469 + $0x78] sm:$0xff]
        %v660 = vld [vmem:[%s469 + $0x80] sm:$0xff]
        %v661 = vld [vmem:[%s469 + $0x88] sm:$0xff]
        %v662 = vld [vmem:[%s469 + $0x90] sm:$0xff]
        %v663 = vld [vmem:[%s469 + $0x98] sm:$0xff]
        %v664 = vld [vmem:[%s469 + $0xa0] sm:$0xff]
        %v665 = vld [vmem:[%s469 + $0xa8] sm:$0xff]
        %v666 = vld [vmem:[%s469 + $0xb0] sm:$0xff]
        %v667 = vld [vmem:[%s469 + $0xb8] sm:$0xff]
        %v668 = vld [vmem:[%s469 + $0xc0] sm:$0xff]
        %v669 = vld [vmem:[%s469 + $0xc8] sm:$0xff]
        %v670 = vld [vmem:[%s469 + $0xd0] sm:$0xff]
        %v671 = vld [vmem:[%s469 + $0xd8] sm:$0xff]
        %v672 = vld [vmem:[%s469 + $0xe0] sm:$0xff]
        %v673 = vld [vmem:[%s469 + $0xe8] sm:$0xff]
        %v674 = vld [vmem:[%s469 + $0xf0] sm:$0xff]
        %v675 = vld [vmem:[%s469 + $0xf8] sm:$0xff]
        %v676 = vld [vmem:[%s469 + $0x100] sm:$0xff]
        %v677 = vld [vmem:[%s469 + $0x108] sm:$0xff]
        %v678 = vld [vmem:[%s469 + $0x110] sm:$0xff]
        %v679 = vld [vmem:[%s469 + $0x118] sm:$0xff]
        %v680 = vld [vmem:[%s469 + $0x120] sm:$0xff]
        %v681 = vld [vmem:[%s469 + $0x128] sm:$0xff]
        %v682 = vld [vmem:[%s469 + $0x130] sm:$0xff]
        %v683 = vld [vmem:[%s469 + $0x138] sm:$0xff]
        %v684 = vld [vmem:[%s469 + $0x140] sm:$0xff]
        %v685 = vld [vmem:[%s469 + $0x148] sm:$0xff]
        %v686 = vld [vmem:[%s469 + $0x150] sm:$0xff]
        %v687 = vld [vmem:[%s469 + $0x158] sm:$0xff]
        %v688 = vld [vmem:[%s469 + $0x160] sm:$0xff]
        %v689 = vld [vmem:[%s469 + $0x168] sm:$0xff]
        %v690 = vld [vmem:[%s469 + $0x170] sm:$0xff]
        %v691 = vld [vmem:[%s469 + $0x178] sm:$0xff]
        %v692 = vld [vmem:[%s469 + $0x180] sm:$0xff]
        %v693 = vld [vmem:[%s469 + $0x188] sm:$0xff]
        %v694 = vld [vmem:[%s469 + $0x190] sm:$0xff]
        %v695 = vld [vmem:[%s469 + $0x198] sm:$0xff]
        %v696 = vld [vmem:[%s469 + $0x1a0] sm:$0xff]
        %v697 = vld [vmem:[%s469 + $0x1a8] sm:$0xff]
        %v698 = vld [vmem:[%s469 + $0x1b0] sm:$0xff]
        %v699 = vld [vmem:[%s469 + $0x1b8] sm:$0xff]
        %v700 = vld [vmem:[%s469 + $0x1c0] sm:$0xff]
        %v701 = vld [vmem:[%s469 + $0x1c8] sm:$0xff]
        %v702 = vld [vmem:[%s469 + $0x1d0] sm:$0xff]
        %v703 = vld [vmem:[%s469 + $0x1d8] sm:$0xff]
        %v704 = vld [vmem:[%s469 + $0x1e0] sm:$0xff]
        %v705 = vld [vmem:[%s469 + $0x1e8] sm:$0xff]
        %v706 = vld [vmem:[%s469 + $0x1f0] sm:$0xff]
        %v707 = vld [vmem:[%s469 + $0x1f8] sm:$0xff]
        %v708 = vpack.c.bf16 %v648, %v644
        %v709 = vpack.c.bf16 %v649, %v645
        %v710 = vpack.c.bf16 %v650, %v646
        %v711 = vpack.c.bf16 %v651, %v647
        %v712 = vpack.c.bf16 %v656, %v652
        %v713 = vpack.c.bf16 %v657, %v653
        %v714 = vpack.c.bf16 %v658, %v654
        %v715 = vpack.c.bf16 %v659, %v655
        %v716 = vpack.c.bf16 %v664, %v660
        %v717 = vpack.c.bf16 %v665, %v661
        %v718 = vpack.c.bf16 %v666, %v662
        %v719 = vpack.c.bf16 %v667, %v663
        %v720 = vpack.c.bf16 %v672, %v668
        %v721 = vpack.c.bf16 %v673, %v669
        %v722 = vpack.c.bf16 %v674, %v670
        %v723 = vpack.c.bf16 %v675, %v671
        %v724 = vpack.c.bf16 %v680, %v676
        %v725 = vpack.c.bf16 %v681, %v677
        %v726 = vpack.c.bf16 %v682, %v678
        %v727 = vpack.c.bf16 %v683, %v679
        %v728 = vpack.c.bf16 %v688, %v684
        %v729 = vpack.c.bf16 %v689, %v685
        %v730 = vpack.c.bf16 %v690, %v686
        %v731 = vpack.c.bf16 %v691, %v687
        %v732 = vpack.c.bf16 %v696, %v692
        %v733 = vpack.c.bf16 %v697, %v693
        %v734 = vpack.c.bf16 %v698, %v694
        %v735 = vpack.c.bf16 %v699, %v695
        %v736 = vpack.c.bf16 %v704, %v700
        %v737 = vpack.c.bf16 %v705, %v701
        %v738 = vpack.c.bf16 %v706, %v702
        %v739 = vpack.c.bf16 %v707, %v703
        %v740 = vld [vmem:[%s478] sm:$0xff]
        %v741 = vld [vmem:[%s478 + $0x8] sm:$0xff]
        %v742 = vld [vmem:[%s478 + $0x10] sm:$0xff]
        %v743 = vld [vmem:[%s478 + $0x18] sm:$0xff]
        %v744 = vld [vmem:[%s478 + $0x20] sm:$0xff]
        %v745 = vld [vmem:[%s478 + $0x28] sm:$0xff]
        %v746 = vld [vmem:[%s478 + $0x30] sm:$0xff]
        %v747 = vld [vmem:[%s478 + $0x38] sm:$0xff]
        %v748 = vld [vmem:[%s478 + $0x40] sm:$0xff]
        %v749 = vld [vmem:[%s478 + $0x48] sm:$0xff]
        %v750 = vld [vmem:[%s478 + $0x50] sm:$0xff]
        %v751 = vld [vmem:[%s478 + $0x58] sm:$0xff]
        %v752 = vld [vmem:[%s478 + $0x60] sm:$0xff]
        %v753 = vld [vmem:[%s478 + $0x68] sm:$0xff]
        %v754 = vld [vmem:[%s478 + $0x70] sm:$0xff]
        %v755 = vld [vmem:[%s478 + $0x78] sm:$0xff]
        %v756 = vld [vmem:[%s478 + $0x80] sm:$0xff]
        %v757 = vld [vmem:[%s478 + $0x88] sm:$0xff]
        %v758 = vld [vmem:[%s478 + $0x90] sm:$0xff]
        %v759 = vld [vmem:[%s478 + $0x98] sm:$0xff]
        %v760 = vld [vmem:[%s478 + $0xa0] sm:$0xff]
        %v761 = vld [vmem:[%s478 + $0xa8] sm:$0xff]
        %v762 = vld [vmem:[%s478 + $0xb0] sm:$0xff]
        %v763 = vld [vmem:[%s478 + $0xb8] sm:$0xff]
        %v764 = vld [vmem:[%s478 + $0xc0] sm:$0xff]
        %v765 = vld [vmem:[%s478 + $0xc8] sm:$0xff]
        %v766 = vld [vmem:[%s478 + $0xd0] sm:$0xff]
        %v767 = vld [vmem:[%s478 + $0xd8] sm:$0xff]
        %v768 = vld [vmem:[%s478 + $0xe0] sm:$0xff]
        %v769 = vld [vmem:[%s478 + $0xe8] sm:$0xff]
        %v770 = vld [vmem:[%s478 + $0xf0] sm:$0xff]
        %v771 = vld [vmem:[%s478 + $0xf8] sm:$0xff]
        %v772 = vld [vmem:[%s478 + $0x100] sm:$0xff]
        %v773 = vld [vmem:[%s478 + $0x108] sm:$0xff]
        %v774 = vld [vmem:[%s478 + $0x110] sm:$0xff]
        %v775 = vld [vmem:[%s478 + $0x118] sm:$0xff]
        %v776 = vld [vmem:[%s478 + $0x120] sm:$0xff]
        %v777 = vld [vmem:[%s478 + $0x128] sm:$0xff]
        %v778 = vld [vmem:[%s478 + $0x130] sm:$0xff]
        %v779 = vld [vmem:[%s478 + $0x138] sm:$0xff]
        %v780 = vld [vmem:[%s478 + $0x140] sm:$0xff]
        %v781 = vld [vmem:[%s478 + $0x148] sm:$0xff]
        %v782 = vld [vmem:[%s478 + $0x150] sm:$0xff]
        %v783 = vld [vmem:[%s478 + $0x158] sm:$0xff]
        %v784 = vld [vmem:[%s478 + $0x160] sm:$0xff]
        %v785 = vld [vmem:[%s478 + $0x168] sm:$0xff]
        %v786 = vld [vmem:[%s478 + $0x170] sm:$0xff]
        %v787 = vld [vmem:[%s478 + $0x178] sm:$0xff]
        %v788 = vld [vmem:[%s478 + $0x180] sm:$0xff]
        %v789 = vld [vmem:[%s478 + $0x188] sm:$0xff]
        %v790 = vld [vmem:[%s478 + $0x190] sm:$0xff]
        %v791 = vld [vmem:[%s478 + $0x198] sm:$0xff]
        %v792 = vld [vmem:[%s478 + $0x1a0] sm:$0xff]
        %v793 = vld [vmem:[%s478 + $0x1a8] sm:$0xff]
        %v794 = vld [vmem:[%s478 + $0x1b0] sm:$0xff]
        %v795 = vld [vmem:[%s478 + $0x1b8] sm:$0xff]
        %v796 = vld [vmem:[%s478 + $0x1c0] sm:$0xff]
        %v797 = vld [vmem:[%s478 + $0x1c8] sm:$0xff]
        %v798 = vld [vmem:[%s478 + $0x1d0] sm:$0xff]
        %v799 = vld [vmem:[%s478 + $0x1d8] sm:$0xff]
        %v800 = vld [vmem:[%s478 + $0x1e0] sm:$0xff]
        %v801 = vld [vmem:[%s478 + $0x1e8] sm:$0xff]
        %v802 = vld [vmem:[%s478 + $0x1f0] sm:$0xff]
        %v803 = vld [vmem:[%s478 + $0x1f8] sm:$0xff]
        %v804 = vpack.c.bf16 %v744, %v740
        %v805 = vpack.c.bf16 %v745, %v741
        %v806 = vpack.c.bf16 %v746, %v742
        %v807 = vpack.c.bf16 %v747, %v743
        %v808 = vpack.c.bf16 %v752, %v748
        %v809 = vpack.c.bf16 %v753, %v749
        %v810 = vpack.c.bf16 %v754, %v750
        %v811 = vpack.c.bf16 %v755, %v751
        %v812 = vpack.c.bf16 %v760, %v756
        %v813 = vpack.c.bf16 %v761, %v757
        %v814 = vpack.c.bf16 %v762, %v758
        %v815 = vpack.c.bf16 %v763, %v759
        %v816 = vpack.c.bf16 %v768, %v764
        %v817 = vpack.c.bf16 %v769, %v765
        %v818 = vpack.c.bf16 %v770, %v766
        %v819 = vpack.c.bf16 %v771, %v767
        %v820 = vpack.c.bf16 %v776, %v772
        %v821 = vpack.c.bf16 %v777, %v773
        %v822 = vpack.c.bf16 %v778, %v774
        %v823 = vpack.c.bf16 %v779, %v775
        %v824 = vpack.c.bf16 %v784, %v780
        %v825 = vpack.c.bf16 %v785, %v781
        %v826 = vpack.c.bf16 %v786, %v782
        %v827 = vpack.c.bf16 %v787, %v783
        %v828 = vpack.c.bf16 %v792, %v788
        %v829 = vpack.c.bf16 %v793, %v789
        %v830 = vpack.c.bf16 %v794, %v790
        %v831 = vpack.c.bf16 %v795, %v791
        %v832 = vpack.c.bf16 %v800, %v796
        %v833 = vpack.c.bf16 %v801, %v797
        %v834 = vpack.c.bf16 %v802, %v798
        %v835 = vpack.c.bf16 %v803, %v799
        %v836 = vld [vmem:[#allocation8] sm:$0xff]
        %v837 = vld [vmem:[#allocation8 + $0x8] sm:$0xff]
        %v838 = vld [vmem:[#allocation8 + $0x10] sm:$0xff]
        %v839 = vld [vmem:[#allocation8 + $0x18] sm:$0xff]
        %v840 = vld [vmem:[#allocation8 + $0x20] sm:$0xff]
        %v841 = vld [vmem:[#allocation8 + $0x28] sm:$0xff]
        %v842 = vld [vmem:[#allocation8 + $0x30] sm:$0xff]
        %v843 = vld [vmem:[#allocation8 + $0x38] sm:$0xff]
        %v844 = vld [vmem:[#allocation8 + $0x40] sm:$0xff]
        %v845 = vld [vmem:[#allocation8 + $0x48] sm:$0xff]
        %v846 = vld [vmem:[#allocation8 + $0x50] sm:$0xff]
        %v847 = vld [vmem:[#allocation8 + $0x58] sm:$0xff]
        %v848 = vld [vmem:[#allocation8 + $0x60] sm:$0xff]
        %v849 = vld [vmem:[#allocation8 + $0x68] sm:$0xff]
        %v850 = vld [vmem:[#allocation8 + $0x70] sm:$0xff]
        %v851 = vld [vmem:[#allocation8 + $0x78] sm:$0xff]
        %v852 = vld [vmem:[#allocation8 + $0x80] sm:$0xff]
        %v853 = vld [vmem:[#allocation8 + $0x88] sm:$0xff]
        %v854 = vld [vmem:[#allocation8 + $0x90] sm:$0xff]
        %v855 = vld [vmem:[#allocation8 + $0x98] sm:$0xff]
        %v856 = vld [vmem:[#allocation8 + $0xa0] sm:$0xff]
        %v857 = vld [vmem:[#allocation8 + $0xa8] sm:$0xff]
        %v858 = vld [vmem:[#allocation8 + $0xb0] sm:$0xff]
        %v859 = vld [vmem:[#allocation8 + $0xb8] sm:$0xff]
        %v860 = vld [vmem:[#allocation8 + $0xc0] sm:$0xff]
        %v861 = vld [vmem:[#allocation8 + $0xc8] sm:$0xff]
        %v862 = vld [vmem:[#allocation8 + $0xd0] sm:$0xff]
        %v863 = vld [vmem:[#allocation8 + $0xd8] sm:$0xff]
        %v864 = vld [vmem:[#allocation8 + $0xe0] sm:$0xff]
        %v865 = vld [vmem:[#allocation8 + $0xe8] sm:$0xff]
        %v866 = vld [vmem:[#allocation8 + $0xf0] sm:$0xff]
        %v867 = vld [vmem:[#allocation8 + $0xf8] sm:$0xff]
        %v868 = vld [vmem:[#allocation8 + $0x100] sm:$0xff]
        %v869 = vld [vmem:[#allocation8 + $0x108] sm:$0xff]
        %v870 = vld [vmem:[#allocation8 + $0x110] sm:$0xff]
        %v871 = vld [vmem:[#allocation8 + $0x118] sm:$0xff]
        %v872 = vld [vmem:[#allocation8 + $0x120] sm:$0xff]
        %v873 = vld [vmem:[#allocation8 + $0x128] sm:$0xff]
        %v874 = vld [vmem:[#allocation8 + $0x130] sm:$0xff]
        %v875 = vld [vmem:[#allocation8 + $0x138] sm:$0xff]
        %v876 = vld [vmem:[#allocation8 + $0x140] sm:$0xff]
        %v877 = vld [vmem:[#allocation8 + $0x148] sm:$0xff]
        %v878 = vld [vmem:[#allocation8 + $0x150] sm:$0xff]
        %v879 = vld [vmem:[#allocation8 + $0x158] sm:$0xff]
        %v880 = vld [vmem:[#allocation8 + $0x160] sm:$0xff]
        %v881 = vld [vmem:[#allocation8 + $0x168] sm:$0xff]
        %v882 = vld [vmem:[#allocation8 + $0x170] sm:$0xff]
        %v883 = vld [vmem:[#allocation8 + $0x178] sm:$0xff]
        %v884 = vld [vmem:[#allocation8 + $0x180] sm:$0xff]
        %v885 = vld [vmem:[#allocation8 + $0x188] sm:$0xff]
        %v886 = vld [vmem:[#allocation8 + $0x190] sm:$0xff]
        %v887 = vld [vmem:[#allocation8 + $0x198] sm:$0xff]
        %v888 = vld [vmem:[#allocation8 + $0x1a0] sm:$0xff]
        %v889 = vld [vmem:[#allocation8 + $0x1a8] sm:$0xff]
        %v890 = vld [vmem:[#allocation8 + $0x1b0] sm:$0xff]
        %v891 = vld [vmem:[#allocation8 + $0x1b8] sm:$0xff]
        %v892 = vld [vmem:[#allocation8 + $0x1c0] sm:$0xff]
        %v893 = vld [vmem:[#allocation8 + $0x1c8] sm:$0xff]
        %v894 = vld [vmem:[#allocation8 + $0x1d0] sm:$0xff]
        %v895 = vld [vmem:[#allocation8 + $0x1d8] sm:$0xff]
        %v896 = vld [vmem:[#allocation8 + $0x1e0] sm:$0xff]
        %v897 = vld [vmem:[#allocation8 + $0x1e8] sm:$0xff]
        %v898 = vld [vmem:[#allocation8 + $0x1f0] sm:$0xff]
        %v899 = vld [vmem:[#allocation8 + $0x1f8] sm:$0xff]
        %v900 = vld [vmem:[#allocation8 + $0x200] sm:$0xff]
        %v901 = vld [vmem:[#allocation8 + $0x208] sm:$0xff]
        %v902 = vld [vmem:[#allocation8 + $0x210] sm:$0xff]
        %v903 = vld [vmem:[#allocation8 + $0x218] sm:$0xff]
        %v904 = vld [vmem:[#allocation8 + $0x220] sm:$0xff]
        %v905 = vld [vmem:[#allocation8 + $0x228] sm:$0xff]
        %v906 = vld [vmem:[#allocation8 + $0x230] sm:$0xff]
        %v907 = vld [vmem:[#allocation8 + $0x238] sm:$0xff]
        %v908 = vld [vmem:[#allocation8 + $0x240] sm:$0xff]
        %v909 = vld [vmem:[#allocation8 + $0x248] sm:$0xff]
        %v910 = vld [vmem:[#allocation8 + $0x250] sm:$0xff]
        %v911 = vld [vmem:[#allocation8 + $0x258] sm:$0xff]
        %v912 = vld [vmem:[#allocation8 + $0x260] sm:$0xff]
        %v913 = vld [vmem:[#allocation8 + $0x268] sm:$0xff]
        %v914 = vld [vmem:[#allocation8 + $0x270] sm:$0xff]
        %v915 = vld [vmem:[#allocation8 + $0x278] sm:$0xff]
        %v916 = vld [vmem:[#allocation8 + $0x280] sm:$0xff]
        %v917 = vld [vmem:[#allocation8 + $0x288] sm:$0xff]
        %v918 = vld [vmem:[#allocation8 + $0x290] sm:$0xff]
        %v919 = vld [vmem:[#allocation8 + $0x298] sm:$0xff]
        %v920 = vld [vmem:[#allocation8 + $0x2a0] sm:$0xff]
        %v921 = vld [vmem:[#allocation8 + $0x2a8] sm:$0xff]
        %v922 = vld [vmem:[#allocation8 + $0x2b0] sm:$0xff]
        %v923 = vld [vmem:[#allocation8 + $0x2b8] sm:$0xff]
        %v924 = vld [vmem:[#allocation8 + $0x2c0] sm:$0xff]
        %v925 = vld [vmem:[#allocation8 + $0x2c8] sm:$0xff]
        %v926 = vld [vmem:[#allocation8 + $0x2d0] sm:$0xff]
        %v927 = vld [vmem:[#allocation8 + $0x2d8] sm:$0xff]
        %v928 = vld [vmem:[#allocation8 + $0x2e0] sm:$0xff]
        %v929 = vld [vmem:[#allocation8 + $0x2e8] sm:$0xff]
        %v930 = vld [vmem:[#allocation8 + $0x2f0] sm:$0xff]
        %v931 = vld [vmem:[#allocation8 + $0x2f8] sm:$0xff]
        %v932 = vld [vmem:[#allocation8 + $0x300] sm:$0xff]
        %v933 = vld [vmem:[#allocation8 + $0x308] sm:$0xff]
        %v934 = vld [vmem:[#allocation8 + $0x310] sm:$0xff]
        %v935 = vld [vmem:[#allocation8 + $0x318] sm:$0xff]
        %v936 = vld [vmem:[#allocation8 + $0x320] sm:$0xff]
        %v937 = vld [vmem:[#allocation8 + $0x328] sm:$0xff]
        %v938 = vld [vmem:[#allocation8 + $0x330] sm:$0xff]
        %v939 = vld [vmem:[#allocation8 + $0x338] sm:$0xff]
        %v940 = vld [vmem:[#allocation8 + $0x340] sm:$0xff]
        %v941 = vld [vmem:[#allocation8 + $0x348] sm:$0xff]
        %v942 = vld [vmem:[#allocation8 + $0x350] sm:$0xff]
        %v943 = vld [vmem:[#allocation8 + $0x358] sm:$0xff]
        %v944 = vld [vmem:[#allocation8 + $0x360] sm:$0xff]
        %v945 = vld [vmem:[#allocation8 + $0x368] sm:$0xff]
        %v946 = vld [vmem:[#allocation8 + $0x370] sm:$0xff]
        %v947 = vld [vmem:[#allocation8 + $0x378] sm:$0xff]
        %v948 = vld [vmem:[#allocation8 + $0x380] sm:$0xff]
        %v949 = vld [vmem:[#allocation8 + $0x388] sm:$0xff]
        %v950 = vld [vmem:[#allocation8 + $0x390] sm:$0xff]
        %v951 = vld [vmem:[#allocation8 + $0x398] sm:$0xff]
        %v952 = vld [vmem:[#allocation8 + $0x3a0] sm:$0xff]
        %v953 = vld [vmem:[#allocation8 + $0x3a8] sm:$0xff]
        %v954 = vld [vmem:[#allocation8 + $0x3b0] sm:$0xff]
        %v955 = vld [vmem:[#allocation8 + $0x3b8] sm:$0xff]
        %v956 = vld [vmem:[#allocation8 + $0x3c0] sm:$0xff]
        %v957 = vld [vmem:[#allocation8 + $0x3c8] sm:$0xff]
        %v958 = vld [vmem:[#allocation8 + $0x3d0] sm:$0xff]
        %v959 = vld [vmem:[#allocation8 + $0x3d8] sm:$0xff]
        %v960 = vld [vmem:[#allocation8 + $0x3e0] sm:$0xff]
        %v961 = vld [vmem:[#allocation8 + $0x3e8] sm:$0xff]
        %v962 = vld [vmem:[#allocation8 + $0x3f0] sm:$0xff]
        %v963 = vld [vmem:[#allocation8 + $0x3f8] sm:$0xff]
        %v964 = vld [vmem:[%s4] sm:$0xf]
        %v966 = vlaneseq
        %v967 = vshrl.u32 %v966, 7
        %v968 = vsub.s32 0, %v967
        %v969 = vrot.slane %v964, %v968
        %v970 = vlaneseq
        %v971 = vshrl.u32 %v970, 7
        %v972 = vsub.s32 1, %v971
        %v973 = vrot.slane %v964, %v972
        %v974 = vlaneseq
        %v975 = vshrl.u32 %v974, 7
        %v976 = vsub.s32 2, %v975
        %v977 = vrot.slane %v964, %v976
        %v978 = vlaneseq
        %v979 = vshrl.u32 %v978, 7
        %v980 = vsub.s32 3, %v979
        %v981 = vrot.slane %v964, %v980
        %v1114 = vunpack.c.l.b16 %v836
        %v1115 = vunpack.c.h.b16 %v836
        %v1116 = vunpack.c.l.b16 %v837
        %v1117 = vunpack.c.h.b16 %v837
        %v1118 = vunpack.c.l.b16 %v838
        %v1119 = vunpack.c.h.b16 %v838
        %v1120 = vunpack.c.l.b16 %v839
        %v1121 = vunpack.c.h.b16 %v839
        %v1122 = vunpack.c.l.b16 %v840
        %v1123 = vunpack.c.h.b16 %v840
        %v1124 = vunpack.c.l.b16 %v841
        %v1125 = vunpack.c.h.b16 %v841
        %v1126 = vunpack.c.l.b16 %v842
        %v1127 = vunpack.c.h.b16 %v842
        %v1128 = vunpack.c.l.b16 %v843
        %v1129 = vunpack.c.h.b16 %v843
        %v1130 = vunpack.c.l.b16 %v844
        %v1131 = vunpack.c.h.b16 %v844
        %v1132 = vunpack.c.l.b16 %v845
        %v1133 = vunpack.c.h.b16 %v845
        %v1134 = vunpack.c.l.b16 %v846
        %v1135 = vunpack.c.h.b16 %v846
        %v1136 = vunpack.c.l.b16 %v847
        %v1137 = vunpack.c.h.b16 %v847
        %v1138 = vunpack.c.l.b16 %v848
        %v1139 = vunpack.c.h.b16 %v848
        %v1140 = vunpack.c.l.b16 %v849
        %v1141 = vunpack.c.h.b16 %v849
        %v1142 = vunpack.c.l.b16 %v850
        %v1143 = vunpack.c.h.b16 %v850
        %v1144 = vunpack.c.l.b16 %v851
        %v1145 = vunpack.c.h.b16 %v851
        %v1146 = vunpack.c.l.b16 %v852
        %v1147 = vunpack.c.h.b16 %v852
        %v1148 = vunpack.c.l.b16 %v853
        %v1149 = vunpack.c.h.b16 %v853
        %v1150 = vunpack.c.l.b16 %v854
        %v1151 = vunpack.c.h.b16 %v854
        %v1152 = vunpack.c.l.b16 %v855
        %v1153 = vunpack.c.h.b16 %v855
        %v1154 = vunpack.c.l.b16 %v856
        %v1155 = vunpack.c.h.b16 %v856
        %v1156 = vunpack.c.l.b16 %v857
        %v1157 = vunpack.c.h.b16 %v857
        %v1158 = vunpack.c.l.b16 %v858
        %v1159 = vunpack.c.h.b16 %v858
        %v1160 = vunpack.c.l.b16 %v859
        %v1161 = vunpack.c.h.b16 %v859
        %v1162 = vunpack.c.l.b16 %v860
        %v1163 = vunpack.c.h.b16 %v860
        %v1164 = vunpack.c.l.b16 %v861
        %v1165 = vunpack.c.h.b16 %v861
        %v1166 = vunpack.c.l.b16 %v862
        %v1167 = vunpack.c.h.b16 %v862
        %v1168 = vunpack.c.l.b16 %v863
        %v1169 = vunpack.c.h.b16 %v863
        %v1170 = vunpack.c.l.b16 %v864
        %v1171 = vunpack.c.h.b16 %v864
        %v1172 = vunpack.c.l.b16 %v865
        %v1173 = vunpack.c.h.b16 %v865
        %v1174 = vunpack.c.l.b16 %v866
        %v1175 = vunpack.c.h.b16 %v866
        %v1176 = vunpack.c.l.b16 %v867
        %v1177 = vunpack.c.h.b16 %v867
        %v1178 = vunpack.c.l.b16 %v868
        %v1179 = vunpack.c.h.b16 %v868
        %v1180 = vunpack.c.l.b16 %v869
        %v1181 = vunpack.c.h.b16 %v869
        %v1182 = vunpack.c.l.b16 %v870
        %v1183 = vunpack.c.h.b16 %v870
        %v1184 = vunpack.c.l.b16 %v871
        %v1185 = vunpack.c.h.b16 %v871
        %v1186 = vunpack.c.l.b16 %v872
        %v1187 = vunpack.c.h.b16 %v872
        %v1188 = vunpack.c.l.b16 %v873
        %v1189 = vunpack.c.h.b16 %v873
        %v1190 = vunpack.c.l.b16 %v874
        %v1191 = vunpack.c.h.b16 %v874
        %v1192 = vunpack.c.l.b16 %v875
        %v1193 = vunpack.c.h.b16 %v875
        %v1194 = vunpack.c.l.b16 %v876
        %v1195 = vunpack.c.h.b16 %v876
        %v1196 = vunpack.c.l.b16 %v877
        %v1197 = vunpack.c.h.b16 %v877
        %v1198 = vunpack.c.l.b16 %v878
        %v1199 = vunpack.c.h.b16 %v878
        %v1200 = vunpack.c.l.b16 %v879
        %v1201 = vunpack.c.h.b16 %v879
        %v1202 = vunpack.c.l.b16 %v880
        %v1203 = vunpack.c.h.b16 %v880
        %v1204 = vunpack.c.l.b16 %v881
        %v1205 = vunpack.c.h.b16 %v881
        %v1206 = vunpack.c.l.b16 %v882
        %v1207 = vunpack.c.h.b16 %v882
        %v1208 = vunpack.c.l.b16 %v883
        %v1209 = vunpack.c.h.b16 %v883
        %v1210 = vunpack.c.l.b16 %v884
        %v1211 = vunpack.c.h.b16 %v884
        %v1212 = vunpack.c.l.b16 %v885
        %v1213 = vunpack.c.h.b16 %v885
        %v1214 = vunpack.c.l.b16 %v886
        %v1215 = vunpack.c.h.b16 %v886
        %v1216 = vunpack.c.l.b16 %v887
        %v1217 = vunpack.c.h.b16 %v887
        %v1218 = vunpack.c.l.b16 %v888
        %v1219 = vunpack.c.h.b16 %v888
        %v1220 = vunpack.c.l.b16 %v889
        %v1221 = vunpack.c.h.b16 %v889
        %v1222 = vunpack.c.l.b16 %v890
        %v1223 = vunpack.c.h.b16 %v890
        %v1224 = vunpack.c.l.b16 %v891
        %v1225 = vunpack.c.h.b16 %v891
        %v1226 = vunpack.c.l.b16 %v892
        %v1227 = vunpack.c.h.b16 %v892
        %v1228 = vunpack.c.l.b16 %v893
        %v1229 = vunpack.c.h.b16 %v893
        %v1230 = vunpack.c.l.b16 %v894
        %v1231 = vunpack.c.h.b16 %v894
        %v1232 = vunpack.c.l.b16 %v895
        %v1233 = vunpack.c.h.b16 %v895
        %v1234 = vunpack.c.l.b16 %v896
        %v1235 = vunpack.c.h.b16 %v896
        %v1236 = vunpack.c.l.b16 %v897
        %v1237 = vunpack.c.h.b16 %v897
        %v1238 = vunpack.c.l.b16 %v898
        %v1239 = vunpack.c.h.b16 %v898
        %v1240 = vunpack.c.l.b16 %v899
        %v1241 = vunpack.c.h.b16 %v899
        %v1242 = vunpack.c.l.b16 %v900
        %v1243 = vunpack.c.h.b16 %v900
        %v1244 = vunpack.c.l.b16 %v901
        %v1245 = vunpack.c.h.b16 %v901
        %v1246 = vunpack.c.l.b16 %v902
        %v1247 = vunpack.c.h.b16 %v902
        %v1248 = vunpack.c.l.b16 %v903
        %v1249 = vunpack.c.h.b16 %v903
        %v1250 = vunpack.c.l.b16 %v904
        %v1251 = vunpack.c.h.b16 %v904
        %v1252 = vunpack.c.l.b16 %v905
        %v1253 = vunpack.c.h.b16 %v905
        %v1254 = vunpack.c.l.b16 %v906
        %v1255 = vunpack.c.h.b16 %v906
        %v1256 = vunpack.c.l.b16 %v907
        %v1257 = vunpack.c.h.b16 %v907
        %v1258 = vunpack.c.l.b16 %v908
        %v1259 = vunpack.c.h.b16 %v908
        %v1260 = vunpack.c.l.b16 %v909
        %v1261 = vunpack.c.h.b16 %v909
        %v1262 = vunpack.c.l.b16 %v910
        %v1263 = vunpack.c.h.b16 %v910
        %v1264 = vunpack.c.l.b16 %v911
        %v1265 = vunpack.c.h.b16 %v911
        %v1266 = vunpack.c.l.b16 %v912
        %v1267 = vunpack.c.h.b16 %v912
        %v1268 = vunpack.c.l.b16 %v913
        %v1269 = vunpack.c.h.b16 %v913
        %v1270 = vunpack.c.l.b16 %v914
        %v1271 = vunpack.c.h.b16 %v914
        %v1272 = vunpack.c.l.b16 %v915
        %v1273 = vunpack.c.h.b16 %v915
        %v1274 = vunpack.c.l.b16 %v916
        %v1275 = vunpack.c.h.b16 %v916
        %v1276 = vunpack.c.l.b16 %v917
        %v1277 = vunpack.c.h.b16 %v917
        %v1278 = vunpack.c.l.b16 %v918
        %v1279 = vunpack.c.h.b16 %v918
        %v1280 = vunpack.c.l.b16 %v919
        %v1281 = vunpack.c.h.b16 %v919
        %v1282 = vunpack.c.l.b16 %v920
        %v1283 = vunpack.c.h.b16 %v920
        %v1284 = vunpack.c.l.b16 %v921
        %v1285 = vunpack.c.h.b16 %v921
        %v1286 = vunpack.c.l.b16 %v922
        %v1287 = vunpack.c.h.b16 %v922
        %v1288 = vunpack.c.l.b16 %v923
        %v1289 = vunpack.c.h.b16 %v923
        %v1290 = vunpack.c.l.b16 %v924
        %v1291 = vunpack.c.h.b16 %v924
        %v1292 = vunpack.c.l.b16 %v925
        %v1293 = vunpack.c.h.b16 %v925
        %v1294 = vunpack.c.l.b16 %v926
        %v1295 = vunpack.c.h.b16 %v926
        %v1296 = vunpack.c.l.b16 %v927
        %v1297 = vunpack.c.h.b16 %v927
        %v1298 = vunpack.c.l.b16 %v928
        %v1299 = vunpack.c.h.b16 %v928
        %v1300 = vunpack.c.l.b16 %v929
        %v1301 = vunpack.c.h.b16 %v929
        %v1302 = vunpack.c.l.b16 %v930
        %v1303 = vunpack.c.h.b16 %v930
        %v1304 = vunpack.c.l.b16 %v931
        %v1305 = vunpack.c.h.b16 %v931
        %v1306 = vunpack.c.l.b16 %v932
        %v1307 = vunpack.c.h.b16 %v932
        %v1308 = vunpack.c.l.b16 %v933
        %v1309 = vunpack.c.h.b16 %v933
        %v1310 = vunpack.c.l.b16 %v934
        %v1311 = vunpack.c.h.b16 %v934
        %v1312 = vunpack.c.l.b16 %v935
        %v1313 = vunpack.c.h.b16 %v935
        %v1314 = vunpack.c.l.b16 %v936
        %v1315 = vunpack.c.h.b16 %v936
        %v1316 = vunpack.c.l.b16 %v937
        %v1317 = vunpack.c.h.b16 %v937
        %v1318 = vunpack.c.l.b16 %v938
        %v1319 = vunpack.c.h.b16 %v938
        %v1320 = vunpack.c.l.b16 %v939
        %v1321 = vunpack.c.h.b16 %v939
        %v1322 = vunpack.c.l.b16 %v940
        %v1323 = vunpack.c.h.b16 %v940
        %v1324 = vunpack.c.l.b16 %v941
        %v1325 = vunpack.c.h.b16 %v941
        %v1326 = vunpack.c.l.b16 %v942
        %v1327 = vunpack.c.h.b16 %v942
        %v1328 = vunpack.c.l.b16 %v943
        %v1329 = vunpack.c.h.b16 %v943
        %v1330 = vunpack.c.l.b16 %v944
        %v1331 = vunpack.c.h.b16 %v944
        %v1332 = vunpack.c.l.b16 %v945
        %v1333 = vunpack.c.h.b16 %v945
        %v1334 = vunpack.c.l.b16 %v946
        %v1335 = vunpack.c.h.b16 %v946
        %v1336 = vunpack.c.l.b16 %v947
        %v1337 = vunpack.c.h.b16 %v947
        %v1338 = vunpack.c.l.b16 %v948
        %v1339 = vunpack.c.h.b16 %v948
        %v1340 = vunpack.c.l.b16 %v949
        %v1341 = vunpack.c.h.b16 %v949
        %v1342 = vunpack.c.l.b16 %v950
        %v1343 = vunpack.c.h.b16 %v950
        %v1344 = vunpack.c.l.b16 %v951
        %v1345 = vunpack.c.h.b16 %v951
        %v1346 = vunpack.c.l.b16 %v952
        %v1347 = vunpack.c.h.b16 %v952
        %v1348 = vunpack.c.l.b16 %v953
        %v1349 = vunpack.c.h.b16 %v953
        %v1350 = vunpack.c.l.b16 %v954
        %v1351 = vunpack.c.h.b16 %v954
        %v1352 = vunpack.c.l.b16 %v955
        %v1353 = vunpack.c.h.b16 %v955
        %v1354 = vunpack.c.l.b16 %v956
        %v1355 = vunpack.c.h.b16 %v956
        %v1356 = vunpack.c.l.b16 %v957
        %v1357 = vunpack.c.h.b16 %v957
        %v1358 = vunpack.c.l.b16 %v958
        %v1359 = vunpack.c.h.b16 %v958
        %v1360 = vunpack.c.l.b16 %v959
        %v1361 = vunpack.c.h.b16 %v959
        %v1362 = vunpack.c.l.b16 %v960
        %v1363 = vunpack.c.h.b16 %v960
        %v1364 = vunpack.c.l.b16 %v961
        %v1365 = vunpack.c.h.b16 %v961
        %v1366 = vunpack.c.l.b16 %v962
        %v1367 = vunpack.c.h.b16 %v962
        %v1368 = vunpack.c.l.b16 %v963
        %v1369 = vunpack.c.h.b16 %v963
        %v1370 = vpack.c.b16 %v1118, %v1114
        %v1371 = vpack.c.b16 %v1119, %v1115
        %v1372 = vpack.c.b16 %v1120, %v1116
        %v1373 = vpack.c.b16 %v1121, %v1117
        %v1374 = vpack.c.b16 %v1126, %v1122
        %v1375 = vpack.c.b16 %v1127, %v1123
        %v1376 = vpack.c.b16 %v1128, %v1124
        %v1377 = vpack.c.b16 %v1129, %v1125
        %v1378 = vpack.c.b16 %v1134, %v1130
        %v1379 = vpack.c.b16 %v1135, %v1131
        %v1380 = vpack.c.b16 %v1136, %v1132
        %v1381 = vpack.c.b16 %v1137, %v1133
        %v1382 = vpack.c.b16 %v1142, %v1138
        %v1383 = vpack.c.b16 %v1143, %v1139
        %v1384 = vpack.c.b16 %v1144, %v1140
        %v1385 = vpack.c.b16 %v1145, %v1141
        %v1386 = vpack.c.b16 %v1150, %v1146
        %v1387 = vpack.c.b16 %v1151, %v1147
        %v1388 = vpack.c.b16 %v1152, %v1148
        %v1389 = vpack.c.b16 %v1153, %v1149
        %v1390 = vpack.c.b16 %v1158, %v1154
        %v1391 = vpack.c.b16 %v1159, %v1155
        %v1392 = vpack.c.b16 %v1160, %v1156
        %v1393 = vpack.c.b16 %v1161, %v1157
        %v1394 = vpack.c.b16 %v1166, %v1162
        %v1395 = vpack.c.b16 %v1167, %v1163
        %v1396 = vpack.c.b16 %v1168, %v1164
        %v1397 = vpack.c.b16 %v1169, %v1165
        %v1398 = vpack.c.b16 %v1174, %v1170
        %v1399 = vpack.c.b16 %v1175, %v1171
        %v1400 = vpack.c.b16 %v1176, %v1172
        %v1401 = vpack.c.b16 %v1177, %v1173
        %v1402 = vpack.c.b16 %v1182, %v1178
        %v1403 = vpack.c.b16 %v1183, %v1179
        %v1404 = vpack.c.b16 %v1184, %v1180
        %v1405 = vpack.c.b16 %v1185, %v1181
        %v1406 = vpack.c.b16 %v1190, %v1186
        %v1407 = vpack.c.b16 %v1191, %v1187
        %v1408 = vpack.c.b16 %v1192, %v1188
        %v1409 = vpack.c.b16 %v1193, %v1189
        %v1410 = vpack.c.b16 %v1198, %v1194
        %v1411 = vpack.c.b16 %v1199, %v1195
        %v1412 = vpack.c.b16 %v1200, %v1196
        %v1413 = vpack.c.b16 %v1201, %v1197
        %v1414 = vpack.c.b16 %v1206, %v1202
        %v1415 = vpack.c.b16 %v1207, %v1203
        %v1416 = vpack.c.b16 %v1208, %v1204
        %v1417 = vpack.c.b16 %v1209, %v1205
        %v1418 = vpack.c.b16 %v1214, %v1210
        %v1419 = vpack.c.b16 %v1215, %v1211
        %v1420 = vpack.c.b16 %v1216, %v1212
        %v1421 = vpack.c.b16 %v1217, %v1213
        %v1422 = vpack.c.b16 %v1222, %v1218
        %v1423 = vpack.c.b16 %v1223, %v1219
        %v1424 = vpack.c.b16 %v1224, %v1220
        %v1425 = vpack.c.b16 %v1225, %v1221
        %v1426 = vpack.c.b16 %v1230, %v1226
        %v1427 = vpack.c.b16 %v1231, %v1227
        %v1428 = vpack.c.b16 %v1232, %v1228
        %v1429 = vpack.c.b16 %v1233, %v1229
        %v1430 = vpack.c.b16 %v1238, %v1234
        %v1431 = vpack.c.b16 %v1239, %v1235
        %v1432 = vpack.c.b16 %v1240, %v1236
        %v1433 = vpack.c.b16 %v1241, %v1237
        %v1434 = vpack.c.b16 %v1246, %v1242
        %v1435 = vpack.c.b16 %v1247, %v1243
        %v1436 = vpack.c.b16 %v1248, %v1244
        %v1437 = vpack.c.b16 %v1249, %v1245
        %v1438 = vpack.c.b16 %v1254, %v1250
        %v1439 = vpack.c.b16 %v1255, %v1251
        %v1440 = vpack.c.b16 %v1256, %v1252
        %v1441 = vpack.c.b16 %v1257, %v1253
        %v1442 = vpack.c.b16 %v1262, %v1258
        %v1443 = vpack.c.b16 %v1263, %v1259
        %v1444 = vpack.c.b16 %v1264, %v1260
        %v1445 = vpack.c.b16 %v1265, %v1261
        %v1446 = vpack.c.b16 %v1270, %v1266
        %v1447 = vpack.c.b16 %v1271, %v1267
        %v1448 = vpack.c.b16 %v1272, %v1268
        %v1449 = vpack.c.b16 %v1273, %v1269
        %v1450 = vpack.c.b16 %v1278, %v1274
        %v1451 = vpack.c.b16 %v1279, %v1275
        %v1452 = vpack.c.b16 %v1280, %v1276
        %v1453 = vpack.c.b16 %v1281, %v1277
        %v1454 = vpack.c.b16 %v1286, %v1282
        %v1455 = vpack.c.b16 %v1287, %v1283
        %v1456 = vpack.c.b16 %v1288, %v1284
        %v1457 = vpack.c.b16 %v1289, %v1285
        %v1458 = vpack.c.b16 %v1294, %v1290
        %v1459 = vpack.c.b16 %v1295, %v1291
        %v1460 = vpack.c.b16 %v1296, %v1292
        %v1461 = vpack.c.b16 %v1297, %v1293
        %v1462 = vpack.c.b16 %v1302, %v1298
        %v1463 = vpack.c.b16 %v1303, %v1299
        %v1464 = vpack.c.b16 %v1304, %v1300
        %v1465 = vpack.c.b16 %v1305, %v1301
        %v1466 = vpack.c.b16 %v1310, %v1306
        %v1467 = vpack.c.b16 %v1311, %v1307
        %v1468 = vpack.c.b16 %v1312, %v1308
        %v1469 = vpack.c.b16 %v1313, %v1309
        %v1470 = vpack.c.b16 %v1318, %v1314
        %v1471 = vpack.c.b16 %v1319, %v1315
        %v1472 = vpack.c.b16 %v1320, %v1316
        %v1473 = vpack.c.b16 %v1321, %v1317
        %v1474 = vpack.c.b16 %v1326, %v1322
        %v1475 = vpack.c.b16 %v1327, %v1323
        %v1476 = vpack.c.b16 %v1328, %v1324
        %v1477 = vpack.c.b16 %v1329, %v1325
        %v1478 = vpack.c.b16 %v1334, %v1330
        %v1479 = vpack.c.b16 %v1335, %v1331
        %v1480 = vpack.c.b16 %v1336, %v1332
        %v1481 = vpack.c.b16 %v1337, %v1333
        %v1482 = vpack.c.b16 %v1342, %v1338
        %v1483 = vpack.c.b16 %v1343, %v1339
        %v1484 = vpack.c.b16 %v1344, %v1340
        %v1485 = vpack.c.b16 %v1345, %v1341
        %v1486 = vpack.c.b16 %v1350, %v1346
        %v1487 = vpack.c.b16 %v1351, %v1347
        %v1488 = vpack.c.b16 %v1352, %v1348
        %v1489 = vpack.c.b16 %v1353, %v1349
        %v1490 = vpack.c.b16 %v1358, %v1354
        %v1491 = vpack.c.b16 %v1359, %v1355
        %v1492 = vpack.c.b16 %v1360, %v1356
        %v1493 = vpack.c.b16 %v1361, %v1357
        %v1494 = vpack.c.b16 %v1366, %v1362
        %v1495 = vpack.c.b16 %v1367, %v1363
        %v1496 = vpack.c.b16 %v1368, %v1364
        %v1497 = vpack.c.b16 %v1369, %v1365
        %1626 = vmatprep.subr.bf16.mxu0 %v1371
        %1627 = vmatpush1.bf16.msra.mxu0 %v1370
        %1628 = vmatprep.subr.bf16.mxu0 %v1375
        %1629 = vmatpush1.bf16.msra.mxu0 %v1374
        %1630 = vmatprep.subr.bf16.mxu0 %v1379
        %1631 = vmatpush1.bf16.msra.mxu0 %v1378
        %1632 = vmatprep.subr.bf16.mxu0 %v1383
        %1633 = vmatpush1.bf16.msra.mxu0 %v1382
        %1634 = vmatprep.subr.bf16.mxu0 %v1387
        %1635 = vmatpush1.bf16.msra.mxu0 %v1386
        %1636 = vmatprep.subr.bf16.mxu0 %v1391
        %1637 = vmatpush1.bf16.msra.mxu0 %v1390
        %1638 = vmatprep.subr.bf16.mxu0 %v1395
        %1639 = vmatpush1.bf16.msra.mxu0 %v1394
        %1640 = vmatprep.subr.bf16.mxu0 %v1399
        %1641 = vmatpush1.bf16.msra.mxu0 %v1398
        %1642 = vmatprep.subr.bf16.mxu0 %v1403
        %1643 = vmatpush1.bf16.msra.mxu0 %v1402
        %1644 = vmatprep.subr.bf16.mxu0 %v1407
        %1645 = vmatpush1.bf16.msra.mxu0 %v1406
        %1646 = vmatprep.subr.bf16.mxu0 %v1411
        %1647 = vmatpush1.bf16.msra.mxu0 %v1410
        %1648 = vmatprep.subr.bf16.mxu0 %v1415
        %1649 = vmatpush1.bf16.msra.mxu0 %v1414
        %1650 = vmatprep.subr.bf16.mxu0 %v1419
        %1651 = vmatpush1.bf16.msra.mxu0 %v1418
        %1652 = vmatprep.subr.bf16.mxu0 %v1423
        %1653 = vmatpush1.bf16.msra.mxu0 %v1422
        %1654 = vmatprep.subr.bf16.mxu0 %v1427
        %1655 = vmatpush1.bf16.msra.mxu0 %v1426
        %1656 = vmatprep.subr.bf16.mxu0 %v1431
        %1657 = vmatpush1.bf16.msra.mxu0 %v1430
        %1658 = vmatprep.mubr.bf16.mxu0 %v613
        %1659 = vmatmul.mubr.bf16.gmra.mrb[0].mxu0 %v612
        %v1660 = vpop.f32.mrb[0].mxu0
        %v1661 = vadd.f32 %v969, %v1660
        %v1662 = vpop.f32.mrb[0].mxu0
        %v1663 = vadd.f32 %v973, %v1662
        %v1664 = vpop.f32.mrb[0].mxu0
        %v1665 = vadd.f32 %v969, %v1664
        %v1666 = vpop.f32.mrb[0].mxu0
        %v1667 = vadd.f32 %v973, %v1666
        %1668 = vmatprep.mubr.bf16.mxu0 %v617
        %1669 = vmatmul.mubr.bf16.gmra.mrb[0].mxu0 %v616
        %v1670 = vpop.f32.mrb[0].mxu0
        %v1671 = vadd.f32 %v969, %v1670
        %v1672 = vpop.f32.mrb[0].mxu0
        %v1673 = vadd.f32 %v973, %v1672
        %v1674 = vpop.f32.mrb[0].mxu0
        %v1675 = vadd.f32 %v969, %v1674
        %v1676 = vpop.f32.mrb[0].mxu0
        %v1677 = vadd.f32 %v973, %v1676
        %1678 = vmatprep.mubr.bf16.mxu0 %v621
        %1679 = vmatmul.mubr.bf16.gmra.mrb[0].mxu0 %v620
        %v1680 = vpop.f32.mrb[0].mxu0
        %v1681 = vadd.f32 %v969, %v1680
        %v1682 = vpop.f32.mrb[0].mxu0
        %v1683 = vadd.f32 %v973, %v1682
        %v1684 = vpop.f32.mrb[0].mxu0
        %v1685 = vadd.f32 %v969, %v1684
        %v1686 = vpop.f32.mrb[0].mxu0
        %v1687 = vadd.f32 %v973, %v1686
        %1688 = vmatprep.mubr.bf16.mxu0 %v625
        %1689 = vmatmul.mubr.bf16.gmra.mrb[0].mxu0 %v624
        %v1690 = vpop.f32.mrb[0].mxu0
        %v1691 = vadd.f32 %v969, %v1690
        %v1692 = vpop.f32.mrb[0].mxu0
        %v1693 = vadd.f32 %v973, %v1692
        %v1694 = vpop.f32.mrb[0].mxu0
        %v1695 = vadd.f32 %v969, %v1694
        %v1696 = vpop.f32.mrb[0].mxu0
        %v1697 = vadd.f32 %v973, %v1696
        %1698 = vmatprep.mubr.bf16.mxu0 %v629
        %1699 = vmatmul.mubr.bf16.gmra.mrb[0].mxu0 %v628
        %v1700 = vpop.f32.mrb[0].mxu0
        %v1701 = vadd.f32 %v969, %v1700
        %v1702 = vpop.f32.mrb[0].mxu0
        %v1703 = vadd.f32 %v973, %v1702
        %v1704 = vpop.f32.mrb[0].mxu0
        %v1705 = vadd.f32 %v969, %v1704
        %v1706 = vpop.f32.mrb[0].mxu0
        %v1707 = vadd.f32 %v973, %v1706
        %1708 = vmatprep.mubr.bf16.mxu0 %v633
        %1709 = vmatmul.mubr.bf16.gmra.mrb[0].mxu0 %v632
        %v1710 = vpop.f32.mrb[0].mxu0
        %v1711 = vadd.f32 %v969, %v1710
        %v1712 = vpop.f32.mrb[0].mxu0
        %v1713 = vadd.f32 %v973, %v1712
        %v1714 = vpop.f32.mrb[0].mxu0
        %v1715 = vadd.f32 %v969, %v1714
        %v1716 = vpop.f32.mrb[0].mxu0
        %v1717 = vadd.f32 %v973, %v1716
        %1718 = vmatprep.mubr.bf16.mxu0 %v637
        %1719 = vmatmul.mubr.bf16.gmra.mrb[0].mxu0 %v636
        %v1720 = vpop.f32.mrb[0].mxu0
        %v1721 = vadd.f32 %v969, %v1720
        %v1722 = vpop.f32.mrb[0].mxu0
        %v1723 = vadd.f32 %v973, %v1722
        %v1724 = vpop.f32.mrb[0].mxu0
        %v1725 = vadd.f32 %v969, %v1724
        %v1726 = vpop.f32.mrb[0].mxu0
        %v1727 = vadd.f32 %v973, %v1726
        %1728 = vmatprep.mubr.bf16.mxu0 %v641
        %1729 = vmatmul.mubr.bf16.gmra.mrb[0].mxu0 %v640
        %v1730 = vpop.f32.mrb[0].mxu0
        %v1731 = vadd.f32 %v969, %v1730
        %v1732 = vpop.f32.mrb[0].mxu0
        %v1733 = vadd.f32 %v973, %v1732
        %v1734 = vpop.f32.mrb[0].mxu0
        %v1735 = vadd.f32 %v969, %v1734
        %v1736 = vpop.f32.mrb[0].mxu0
        %v1737 = vadd.f32 %v973, %v1736
        %1738 = vdwg.mxu0
        %1739 = vmatprep.subr.bf16.mxu0 %v1435
        %1740 = vmatpush1.bf16.msra.mxu0 %v1434
        %1741 = vmatprep.subr.bf16.mxu0 %v1439
        %1742 = vmatpush1.bf16.msra.mxu0 %v1438
        %1743 = vmatprep.subr.bf16.mxu0 %v1443
        %1744 = vmatpush1.bf16.msra.mxu0 %v1442
        %1745 = vmatprep.subr.bf16.mxu0 %v1447
        %1746 = vmatpush1.bf16.msra.mxu0 %v1446
        %1747 = vmatprep.subr.bf16.mxu0 %v1451
        %1748 = vmatpush1.bf16.msra.mxu0 %v1450
        %1749 = vmatprep.subr.bf16.mxu0 %v1455
        %1750 = vmatpush1.bf16.msra.mxu0 %v1454
        %1751 = vmatprep.subr.bf16.mxu0 %v1459
        %1752 = vmatpush1.bf16.msra.mxu0 %v1458
        %1753 = vmatprep.subr.bf16.mxu0 %v1463
        %1754 = vmatpush1.bf16.msra.mxu0 %v1462
        %1755 = vmatprep.subr.bf16.mxu0 %v1467
        %1756 = vmatpush1.bf16.msra.mxu0 %v1466
        %1757 = vmatprep.subr.bf16.mxu0 %v1471
        %1758 = vmatpush1.bf16.msra.mxu0 %v1470
        %1759 = vmatprep.subr.bf16.mxu0 %v1475
        %1760 = vmatpush1.bf16.msra.mxu0 %v1474
        %1761 = vmatprep.subr.bf16.mxu0 %v1479
        %1762 = vmatpush1.bf16.msra.mxu0 %v1478
        %1763 = vmatprep.subr.bf16.mxu0 %v1483
        %1764 = vmatpush1.bf16.msra.mxu0 %v1482
        %1765 = vmatprep.subr.bf16.mxu0 %v1487
        %1766 = vmatpush1.bf16.msra.mxu0 %v1486
        %1767 = vmatprep.subr.bf16.mxu0 %v1491
        %1768 = vmatpush1.bf16.msra.mxu0 %v1490
        %1769 = vmatprep.subr.bf16.mxu0 %v1495
        %1770 = vmatpush1.bf16.msra.mxu0 %v1494
        %1771 = vmatprep.mubr.bf16.mxu0 %v615
        %1772 = vmatmul.mubr.bf16.gmra.mrb[0].mxu0 %v614
        %v1773 = vpop.f32.mrb[0].mxu0
        %v1774 = vadd.f32 %v1661, %v1773
        %v1775 = vpop.f32.mrb[0].mxu0
        %v1776 = vadd.f32 %v1663, %v1775
        %v1777 = vpop.f32.mrb[0].mxu0
        %v1778 = vadd.f32 %v1665, %v1777
        %v1779 = vpop.f32.mrb[0].mxu0
        %v1780 = vadd.f32 %v1667, %v1779
        %1781 = vmatprep.mubr.bf16.mxu0 %v619
        %1782 = vmatmul.mubr.bf16.gmra.mrb[0].mxu0 %v618
        %v1783 = vpop.f32.mrb[0].mxu0
        %v1784 = vadd.f32 %v1671, %v1783
        %v1785 = vpop.f32.mrb[0].mxu0
        %v1786 = vadd.f32 %v1673, %v1785
        %v1787 = vpop.f32.mrb[0].mxu0
        %v1788 = vadd.f32 %v1675, %v1787
        %v1789 = vpop.f32.mrb[0].mxu0
        %v1790 = vadd.f32 %v1677, %v1789
        %1791 = vmatprep.mubr.bf16.mxu0 %v623
        %1792 = vmatmul.mubr.bf16.gmra.mrb[0].mxu0 %v622
        %v1793 = vpop.f32.mrb[0].mxu0
        %v1794 = vadd.f32 %v1681, %v1793
        %v1795 = vpop.f32.mrb[0].mxu0
        %v1796 = vadd.f32 %v1683, %v1795
        %v1797 = vpop.f32.mrb[0].mxu0
        %v1798 = vadd.f32 %v1685, %v1797
        %v1799 = vpop.f32.mrb[0].mxu0
        %v1800 = vadd.f32 %v1687, %v1799
        %1801 = vmatprep.mubr.bf16.mxu0 %v627
        %1802 = vmatmul.mubr.bf16.gmra.mrb[0].mxu0 %v626
        %v1803 = vpop.f32.mrb[0].mxu0
        %v1804 = vadd.f32 %v1691, %v1803
        %v1805 = vpop.f32.mrb[0].mxu0
        %v1806 = vadd.f32 %v1693, %v1805
        %v1807 = vpop.f32.mrb[0].mxu0
        %v1808 = vadd.f32 %v1695, %v1807
        %v1809 = vpop.f32.mrb[0].mxu0
        %v1810 = vadd.f32 %v1697, %v1809
        %1811 = vmatprep.mubr.bf16.mxu0 %v631
        %1812 = vmatmul.mubr.bf16.gmra.mrb[0].mxu0 %v630
        %v1813 = vpop.f32.mrb[0].mxu0
        %v1814 = vadd.f32 %v1701, %v1813
        %v1815 = vpop.f32.mrb[0].mxu0
        %v1816 = vadd.f32 %v1703, %v1815
        %v1817 = vpop.f32.mrb[0].mxu0
        %v1818 = vadd.f32 %v1705, %v1817
        %v1819 = vpop.f32.mrb[0].mxu0
        %v1820 = vadd.f32 %v1707, %v1819
        %1821 = vmatprep.mubr.bf16.mxu0 %v635
        %1822 = vmatmul.mubr.bf16.gmra.mrb[0].mxu0 %v634
        %v1823 = vpop.f32.mrb[0].mxu0
        %v1824 = vadd.f32 %v1711, %v1823
        %v1825 = vpop.f32.mrb[0].mxu0
        %v1826 = vadd.f32 %v1713, %v1825
        %v1827 = vpop.f32.mrb[0].mxu0
        %v1828 = vadd.f32 %v1715, %v1827
        %v1829 = vpop.f32.mrb[0].mxu0
        %v1830 = vadd.f32 %v1717, %v1829
        %1831 = vmatprep.mubr.bf16.mxu0 %v639
        %1832 = vmatmul.mubr.bf16.gmra.mrb[0].mxu0 %v638
        %v1833 = vpop.f32.mrb[0].mxu0
        %v1834 = vadd.f32 %v1721, %v1833
        %v1835 = vpop.f32.mrb[0].mxu0
        %v1836 = vadd.f32 %v1723, %v1835
        %v1837 = vpop.f32.mrb[0].mxu0
        %v1838 = vadd.f32 %v1725, %v1837
        %v1839 = vpop.f32.mrb[0].mxu0
        %v1840 = vadd.f32 %v1727, %v1839
        %1841 = vmatprep.mubr.bf16.mxu0 %v643
        %1842 = vmatmul.mubr.bf16.gmra.mrb[0].mxu0 %v642
        %v1843 = vpop.f32.mrb[0].mxu0
        %v1844 = vadd.f32 %v1731, %v1843
        %v1845 = vpop.f32.mrb[0].mxu0
        %v1846 = vadd.f32 %v1733, %v1845
        %v1847 = vpop.f32.mrb[0].mxu0
        %v1848 = vadd.f32 %v1735, %v1847
        %v1849 = vpop.f32.mrb[0].mxu0
        %v1850 = vadd.f32 %v1737, %v1849
        %1851 = vdwg.mxu0
        %1852 = vmatprep.subr.bf16.mxu0 %v1373
        %1853 = vmatpush1.bf16.msra.mxu0 %v1372
        %1854 = vmatprep.subr.bf16.mxu0 %v1377
        %1855 = vmatpush1.bf16.msra.mxu0 %v1376
        %1856 = vmatprep.subr.bf16.mxu0 %v1381
        %1857 = vmatpush1.bf16.msra.mxu0 %v1380
        %1858 = vmatprep.subr.bf16.mxu0 %v1385
        %1859 = vmatpush1.bf16.msra.mxu0 %v1384
        %1860 = vmatprep.subr.bf16.mxu0 %v1389
        %1861 = vmatpush1.bf16.msra.mxu0 %v1388
        %1862 = vmatprep.subr.bf16.mxu0 %v1393
        %1863 = vmatpush1.bf16.msra.mxu0 %v1392
        %1864 = vmatprep.subr.bf16.mxu0 %v1397
        %1865 = vmatpush1.bf16.msra.mxu0 %v1396
        %1866 = vmatprep.subr.bf16.mxu0 %v1401
        %1867 = vmatpush1.bf16.msra.mxu0 %v1400
        %1868 = vmatprep.subr.bf16.mxu0 %v1405
        %1869 = vmatpush1.bf16.msra.mxu0 %v1404
        %1870 = vmatprep.subr.bf16.mxu0 %v1409
        %1871 = vmatpush1.bf16.msra.mxu0 %v1408
        %1872 = vmatprep.subr.bf16.mxu0 %v1413
        %1873 = vmatpush1.bf16.msra.mxu0 %v1412
        %1874 = vmatprep.subr.bf16.mxu0 %v1417
        %1875 = vmatpush1.bf16.msra.mxu0 %v1416
        %1876 = vmatprep.subr.bf16.mxu0 %v1421
        %1877 = vmatpush1.bf16.msra.mxu0 %v1420
        %1878 = vmatprep.subr.bf16.mxu0 %v1425
        %1879 = vmatpush1.bf16.msra.mxu0 %v1424
        %1880 = vmatprep.subr.bf16.mxu0 %v1429
        %1881 = vmatpush1.bf16.msra.mxu0 %v1428
        %1882 = vmatprep.subr.bf16.mxu0 %v1433
        %1883 = vmatpush1.bf16.msra.mxu0 %v1432
        %1884 = vmatprep.mubr.bf16.mxu0 %v613
        %1885 = vmatmul.mubr.bf16.gmra.mrb[0].mxu0 %v612
        %v1886 = vpop.f32.mrb[0].mxu0
        %v1887 = vadd.f32 %v977, %v1886
        %v1888 = vpop.f32.mrb[0].mxu0
        %v1889 = vadd.f32 %v981, %v1888
        %v1890 = vpop.f32.mrb[0].mxu0
        %v1891 = vadd.f32 %v977, %v1890
        %v1892 = vpop.f32.mrb[0].mxu0
        %v1893 = vadd.f32 %v981, %v1892
        %1894 = vmatprep.mubr.bf16.mxu0 %v617
        %1895 = vmatmul.mubr.bf16.gmra.mrb[0].mxu0 %v616
        %v1896 = vpop.f32.mrb[0].mxu0
        %v1897 = vadd.f32 %v977, %v1896
        %v1898 = vpop.f32.mrb[0].mxu0
        %v1899 = vadd.f32 %v981, %v1898
        %v1900 = vpop.f32.mrb[0].mxu0
        %v1901 = vadd.f32 %v977, %v1900
        %v1902 = vpop.f32.mrb[0].mxu0
        %v1903 = vadd.f32 %v981, %v1902
        %1904 = vmatprep.mubr.bf16.mxu0 %v621
        %1905 = vmatmul.mubr.bf16.gmra.mrb[0].mxu0 %v620
        %v1906 = vpop.f32.mrb[0].mxu0
        %v1907 = vadd.f32 %v977, %v1906
        %v1908 = vpop.f32.mrb[0].mxu0
        %v1909 = vadd.f32 %v981, %v1908
        %v1910 = vpop.f32.mrb[0].mxu0
        %v1911 = vadd.f32 %v977, %v1910
        %v1912 = vpop.f32.mrb[0].mxu0
        %v1913 = vadd.f32 %v981, %v1912
        %1914 = vmatprep.mubr.bf16.mxu0 %v625
        %1915 = vmatmul.mubr.bf16.gmra.mrb[0].mxu0 %v624
        %v1916 = vpop.f32.mrb[0].mxu0
        %v1917 = vadd.f32 %v977, %v1916
        %v1918 = vpop.f32.mrb[0].mxu0
        %v1919 = vadd.f32 %v981, %v1918
        %v1920 = vpop.f32.mrb[0].mxu0
        %v1921 = vadd.f32 %v977, %v1920
        %v1922 = vpop.f32.mrb[0].mxu0
        %v1923 = vadd.f32 %v981, %v1922
        %1924 = vmatprep.mubr.bf16.mxu0 %v629
        %1925 = vmatmul.mubr.bf16.gmra.mrb[0].mxu0 %v628
        %v1926 = vpop.f32.mrb[0].mxu0
        %v1927 = vadd.f32 %v977, %v1926
        %v1928 = vpop.f32.mrb[0].mxu0
        %v1929 = vadd.f32 %v981, %v1928
        %v1930 = vpop.f32.mrb[0].mxu0
        %v1931 = vadd.f32 %v977, %v1930
        %v1932 = vpop.f32.mrb[0].mxu0
        %v1933 = vadd.f32 %v981, %v1932
        %1934 = vmatprep.mubr.bf16.mxu0 %v633
        %1935 = vmatmul.mubr.bf16.gmra.mrb[0].mxu0 %v632
        %v1936 = vpop.f32.mrb[0].mxu0
        %v1937 = vadd.f32 %v977, %v1936
        %v1938 = vpop.f32.mrb[0].mxu0
        %v1939 = vadd.f32 %v981, %v1938
        %v1940 = vpop.f32.mrb[0].mxu0
        %v1941 = vadd.f32 %v977, %v1940
        %v1942 = vpop.f32.mrb[0].mxu0
        %v1943 = vadd.f32 %v981, %v1942
        %1944 = vmatprep.mubr.bf16.mxu0 %v637
        %1945 = vmatmul.mubr.bf16.gmra.mrb[0].mxu0 %v636
        %v1946 = vpop.f32.mrb[0].mxu0
        %v1947 = vadd.f32 %v977, %v1946
        %v1948 = vpop.f32.mrb[0].mxu0
        %v1949 = vadd.f32 %v981, %v1948
        %v1950 = vpop.f32.mrb[0].mxu0
        %v1951 = vadd.f32 %v977, %v1950
        %v1952 = vpop.f32.mrb[0].mxu0
        %v1953 = vadd.f32 %v981, %v1952
        %1954 = vmatprep.mubr.bf16.mxu0 %v641
        %1955 = vmatmul.mubr.bf16.gmra.mrb[0].mxu0 %v640
        %v1956 = vpop.f32.mrb[0].mxu0
        %v1957 = vadd.f32 %v977, %v1956
        %v1958 = vpop.f32.mrb[0].mxu0
        %v1959 = vadd.f32 %v981, %v1958
        %v1960 = vpop.f32.mrb[0].mxu0
        %v1961 = vadd.f32 %v977, %v1960
        %v1962 = vpop.f32.mrb[0].mxu0
        %v1963 = vadd.f32 %v981, %v1962
        %1964 = vdwg.mxu0
        %1965 = vmatprep.subr.bf16.mxu0 %v1437
        %1966 = vmatpush1.bf16.msra.mxu0 %v1436
        %1967 = vmatprep.subr.bf16.mxu0 %v1441
        %1968 = vmatpush1.bf16.msra.mxu0 %v1440
        %1969 = vmatprep.subr.bf16.mxu0 %v1445
        %1970 = vmatpush1.bf16.msra.mxu0 %v1444
        %1971 = vmatprep.subr.bf16.mxu0 %v1449
        %1972 = vmatpush1.bf16.msra.mxu0 %v1448
        %1973 = vmatprep.subr.bf16.mxu0 %v1453
        %1974 = vmatpush1.bf16.msra.mxu0 %v1452
        %1975 = vmatprep.subr.bf16.mxu0 %v1457
        %1976 = vmatpush1.bf16.msra.mxu0 %v1456
        %1977 = vmatprep.subr.bf16.mxu0 %v1461
        %1978 = vmatpush1.bf16.msra.mxu0 %v1460
        %1979 = vmatprep.subr.bf16.mxu0 %v1465
        %1980 = vmatpush1.bf16.msra.mxu0 %v1464
        %1981 = vmatprep.subr.bf16.mxu0 %v1469
        %1982 = vmatpush1.bf16.msra.mxu0 %v1468
        %1983 = vmatprep.subr.bf16.mxu0 %v1473
        %1984 = vmatpush1.bf16.msra.mxu0 %v1472
        %1985 = vmatprep.subr.bf16.mxu0 %v1477
        %1986 = vmatpush1.bf16.msra.mxu0 %v1476
        %1987 = vmatprep.subr.bf16.mxu0 %v1481
        %1988 = vmatpush1.bf16.msra.mxu0 %v1480
        %1989 = vmatprep.subr.bf16.mxu0 %v1485
        %1990 = vmatpush1.bf16.msra.mxu0 %v1484
        %1991 = vmatprep.subr.bf16.mxu0 %v1489
        %1992 = vmatpush1.bf16.msra.mxu0 %v1488
        %1993 = vmatprep.subr.bf16.mxu0 %v1493
        %1994 = vmatpush1.bf16.msra.mxu0 %v1492
        %1995 = vmatprep.subr.bf16.mxu0 %v1497
        %1996 = vmatpush1.bf16.msra.mxu0 %v1496
        %1997 = vmatprep.mubr.bf16.mxu0 %v615
        %1998 = vmatmul.mubr.bf16.gmra.mrb[0].mxu0 %v614
        %v1999 = vpop.f32.mrb[0].mxu0
        %v2000 = vadd.f32 %v1887, %v1999
        %v2001 = vpop.f32.mrb[0].mxu0
        %v2002 = vadd.f32 %v1889, %v2001
        %v2003 = vpop.f32.mrb[0].mxu0
        %v2004 = vadd.f32 %v1891, %v2003
        %v2005 = vpop.f32.mrb[0].mxu0
        %v2006 = vadd.f32 %v1893, %v2005
        %2007 = vmatprep.mubr.bf16.mxu0 %v619
        %2008 = vmatmul.mubr.bf16.gmra.mrb[0].mxu0 %v618
        %v2009 = vpop.f32.mrb[0].mxu0
        %v2010 = vadd.f32 %v1897, %v2009
        %v2011 = vpop.f32.mrb[0].mxu0
        %v2012 = vadd.f32 %v1899, %v2011
        %v2013 = vpop.f32.mrb[0].mxu0
        %v2014 = vadd.f32 %v1901, %v2013
        %v2015 = vpop.f32.mrb[0].mxu0
        %v2016 = vadd.f32 %v1903, %v2015
        %2017 = vmatprep.mubr.bf16.mxu0 %v623
        %2018 = vmatmul.mubr.bf16.gmra.mrb[0].mxu0 %v622
        %v2019 = vpop.f32.mrb[0].mxu0
        %v2020 = vadd.f32 %v1907, %v2019
        %v2021 = vpop.f32.mrb[0].mxu0
        %v2022 = vadd.f32 %v1909, %v2021
        %v2023 = vpop.f32.mrb[0].mxu0
        %v2024 = vadd.f32 %v1911, %v2023
        %v2025 = vpop.f32.mrb[0].mxu0
        %v2026 = vadd.f32 %v1913, %v2025
        %2027 = vmatprep.mubr.bf16.mxu0 %v627
        %2028 = vmatmul.mubr.bf16.gmra.mrb[0].mxu0 %v626
        %v2029 = vpop.f32.mrb[0].mxu0
        %v2030 = vadd.f32 %v1917, %v2029
        %v2031 = vpop.f32.mrb[0].mxu0
        %v2032 = vadd.f32 %v1919, %v2031
        %v2033 = vpop.f32.mrb[0].mxu0
        %v2034 = vadd.f32 %v1921, %v2033
        %v2035 = vpop.f32.mrb[0].mxu0
        %v2036 = vadd.f32 %v1923, %v2035
        %2037 = vmatprep.mubr.bf16.mxu0 %v631
        %2038 = vmatmul.mubr.bf16.gmra.mrb[0].mxu0 %v630
        %v2039 = vpop.f32.mrb[0].mxu0
        %v2040 = vadd.f32 %v1927, %v2039
        %v2041 = vpop.f32.mrb[0].mxu0
        %v2042 = vadd.f32 %v1929, %v2041
        %v2043 = vpop.f32.mrb[0].mxu0
        %v2044 = vadd.f32 %v1931, %v2043
        %v2045 = vpop.f32.mrb[0].mxu0
        %v2046 = vadd.f32 %v1933, %v2045
        %2047 = vmatprep.mubr.bf16.mxu0 %v635
        %2048 = vmatmul.mubr.bf16.gmra.mrb[0].mxu0 %v634
        %v2049 = vpop.f32.mrb[0].mxu0
        %v2050 = vadd.f32 %v1937, %v2049
        %v2051 = vpop.f32.mrb[0].mxu0
        %v2052 = vadd.f32 %v1939, %v2051
        %v2053 = vpop.f32.mrb[0].mxu0
        %v2054 = vadd.f32 %v1941, %v2053
        %v2055 = vpop.f32.mrb[0].mxu0
        %v2056 = vadd.f32 %v1943, %v2055
        %2057 = vmatprep.mubr.bf16.mxu0 %v639
        %2058 = vmatmul.mubr.bf16.gmra.mrb[0].mxu0 %v638
        %v2059 = vpop.f32.mrb[0].mxu0
        %v2060 = vadd.f32 %v1947, %v2059
        %v2061 = vpop.f32.mrb[0].mxu0
        %v2062 = vadd.f32 %v1949, %v2061
        %v2063 = vpop.f32.mrb[0].mxu0
        %v2064 = vadd.f32 %v1951, %v2063
        %v2065 = vpop.f32.mrb[0].mxu0
        %v2066 = vadd.f32 %v1953, %v2065
        %2067 = vmatprep.mubr.bf16.mxu0 %v643
        %2068 = vmatmul.mubr.bf16.gmra.mrb[0].mxu0 %v642
        %v2069 = vpop.f32.mrb[0].mxu0
        %v2070 = vadd.f32 %v1957, %v2069
        %v2071 = vpop.f32.mrb[0].mxu0
        %v2072 = vadd.f32 %v1959, %v2071
        %v2073 = vpop.f32.mrb[0].mxu0
        %v2074 = vadd.f32 %v1961, %v2073
        %v2075 = vpop.f32.mrb[0].mxu0
        %v2076 = vadd.f32 %v1963, %v2075
        %2077 = vdwg.mxu0
        %v2078 = vld [vmem:[#allocation10] sm:$0xff]
        %v2079 = vld [vmem:[#allocation10 + $0x8] sm:$0xff]
        %v2080 = vld [vmem:[#allocation10 + $0x10] sm:$0xff]
        %v2081 = vld [vmem:[#allocation10 + $0x18] sm:$0xff]
        %v2082 = vld [vmem:[#allocation10 + $0x20] sm:$0xff]
        %v2083 = vld [vmem:[#allocation10 + $0x28] sm:$0xff]
        %v2084 = vld [vmem:[#allocation10 + $0x30] sm:$0xff]
        %v2085 = vld [vmem:[#allocation10 + $0x38] sm:$0xff]
        %v2086 = vld [vmem:[#allocation10 + $0x40] sm:$0xff]
        %v2087 = vld [vmem:[#allocation10 + $0x48] sm:$0xff]
        %v2088 = vld [vmem:[#allocation10 + $0x50] sm:$0xff]
        %v2089 = vld [vmem:[#allocation10 + $0x58] sm:$0xff]
        %v2090 = vld [vmem:[#allocation10 + $0x60] sm:$0xff]
        %v2091 = vld [vmem:[#allocation10 + $0x68] sm:$0xff]
        %v2092 = vld [vmem:[#allocation10 + $0x70] sm:$0xff]
        %v2093 = vld [vmem:[#allocation10 + $0x78] sm:$0xff]
        %v2094 = vld [vmem:[#allocation10 + $0x80] sm:$0xff]
        %v2095 = vld [vmem:[#allocation10 + $0x88] sm:$0xff]
        %v2096 = vld [vmem:[#allocation10 + $0x90] sm:$0xff]
        %v2097 = vld [vmem:[#allocation10 + $0x98] sm:$0xff]
        %v2098 = vld [vmem:[#allocation10 + $0xa0] sm:$0xff]
        %v2099 = vld [vmem:[#allocation10 + $0xa8] sm:$0xff]
        %v2100 = vld [vmem:[#allocation10 + $0xb0] sm:$0xff]
        %v2101 = vld [vmem:[#allocation10 + $0xb8] sm:$0xff]
        %v2102 = vld [vmem:[#allocation10 + $0xc0] sm:$0xff]
        %v2103 = vld [vmem:[#allocation10 + $0xc8] sm:$0xff]
        %v2104 = vld [vmem:[#allocation10 + $0xd0] sm:$0xff]
        %v2105 = vld [vmem:[#allocation10 + $0xd8] sm:$0xff]
        %v2106 = vld [vmem:[#allocation10 + $0xe0] sm:$0xff]
        %v2107 = vld [vmem:[#allocation10 + $0xe8] sm:$0xff]
        %v2108 = vld [vmem:[#allocation10 + $0xf0] sm:$0xff]
        %v2109 = vld [vmem:[#allocation10 + $0xf8] sm:$0xff]
        %v2110 = vld [vmem:[#allocation10 + $0x100] sm:$0xff]
        %v2111 = vld [vmem:[#allocation10 + $0x108] sm:$0xff]
        %v2112 = vld [vmem:[#allocation10 + $0x110] sm:$0xff]
        %v2113 = vld [vmem:[#allocation10 + $0x118] sm:$0xff]
        %v2114 = vld [vmem:[#allocation10 + $0x120] sm:$0xff]
        %v2115 = vld [vmem:[#allocation10 + $0x128] sm:$0xff]
        %v2116 = vld [vmem:[#allocation10 + $0x130] sm:$0xff]
        %v2117 = vld [vmem:[#allocation10 + $0x138] sm:$0xff]
        %v2118 = vld [vmem:[#allocation10 + $0x140] sm:$0xff]
        %v2119 = vld [vmem:[#allocation10 + $0x148] sm:$0xff]
        %v2120 = vld [vmem:[#allocation10 + $0x150] sm:$0xff]
        %v2121 = vld [vmem:[#allocation10 + $0x158] sm:$0xff]
        %v2122 = vld [vmem:[#allocation10 + $0x160] sm:$0xff]
        %v2123 = vld [vmem:[#allocation10 + $0x168] sm:$0xff]
        %v2124 = vld [vmem:[#allocation10 + $0x170] sm:$0xff]
        %v2125 = vld [vmem:[#allocation10 + $0x178] sm:$0xff]
        %v2126 = vld [vmem:[#allocation10 + $0x180] sm:$0xff]
        %v2127 = vld [vmem:[#allocation10 + $0x188] sm:$0xff]
        %v2128 = vld [vmem:[#allocation10 + $0x190] sm:$0xff]
        %v2129 = vld [vmem:[#allocation10 + $0x198] sm:$0xff]
        %v2130 = vld [vmem:[#allocation10 + $0x1a0] sm:$0xff]
        %v2131 = vld [vmem:[#allocation10 + $0x1a8] sm:$0xff]
        %v2132 = vld [vmem:[#allocation10 + $0x1b0] sm:$0xff]
        %v2133 = vld [vmem:[#allocation10 + $0x1b8] sm:$0xff]
        %v2134 = vld [vmem:[#allocation10 + $0x1c0] sm:$0xff]
        %v2135 = vld [vmem:[#allocation10 + $0x1c8] sm:$0xff]
        %v2136 = vld [vmem:[#allocation10 + $0x1d0] sm:$0xff]
        %v2137 = vld [vmem:[#allocation10 + $0x1d8] sm:$0xff]
        %v2138 = vld [vmem:[#allocation10 + $0x1e0] sm:$0xff]
        %v2139 = vld [vmem:[#allocation10 + $0x1e8] sm:$0xff]
        %v2140 = vld [vmem:[#allocation10 + $0x1f0] sm:$0xff]
        %v2141 = vld [vmem:[#allocation10 + $0x1f8] sm:$0xff]
        %v2142 = vld [vmem:[#allocation10 + $0x200] sm:$0xff]
        %v2143 = vld [vmem:[#allocation10 + $0x208] sm:$0xff]
        %v2144 = vld [vmem:[#allocation10 + $0x210] sm:$0xff]
        %v2145 = vld [vmem:[#allocation10 + $0x218] sm:$0xff]
        %v2146 = vld [vmem:[#allocation10 + $0x220] sm:$0xff]
        %v2147 = vld [vmem:[#allocation10 + $0x228] sm:$0xff]
        %v2148 = vld [vmem:[#allocation10 + $0x230] sm:$0xff]
        %v2149 = vld [vmem:[#allocation10 + $0x238] sm:$0xff]
        %v2150 = vld [vmem:[#allocation10 + $0x240] sm:$0xff]
        %v2151 = vld [vmem:[#allocation10 + $0x248] sm:$0xff]
        %v2152 = vld [vmem:[#allocation10 + $0x250] sm:$0xff]
        %v2153 = vld [vmem:[#allocation10 + $0x258] sm:$0xff]
        %v2154 = vld [vmem:[#allocation10 + $0x260] sm:$0xff]
        %v2155 = vld [vmem:[#allocation10 + $0x268] sm:$0xff]
        %v2156 = vld [vmem:[#allocation10 + $0x270] sm:$0xff]
        %v2157 = vld [vmem:[#allocation10 + $0x278] sm:$0xff]
        %v2158 = vld [vmem:[#allocation10 + $0x280] sm:$0xff]
        %v2159 = vld [vmem:[#allocation10 + $0x288] sm:$0xff]
        %v2160 = vld [vmem:[#allocation10 + $0x290] sm:$0xff]
        %v2161 = vld [vmem:[#allocation10 + $0x298] sm:$0xff]
        %v2162 = vld [vmem:[#allocation10 + $0x2a0] sm:$0xff]
        %v2163 = vld [vmem:[#allocation10 + $0x2a8] sm:$0xff]
        %v2164 = vld [vmem:[#allocation10 + $0x2b0] sm:$0xff]
        %v2165 = vld [vmem:[#allocation10 + $0x2b8] sm:$0xff]
        %v2166 = vld [vmem:[#allocation10 + $0x2c0] sm:$0xff]
        %v2167 = vld [vmem:[#allocation10 + $0x2c8] sm:$0xff]
        %v2168 = vld [vmem:[#allocation10 + $0x2d0] sm:$0xff]
        %v2169 = vld [vmem:[#allocation10 + $0x2d8] sm:$0xff]
        %v2170 = vld [vmem:[#allocation10 + $0x2e0] sm:$0xff]
        %v2171 = vld [vmem:[#allocation10 + $0x2e8] sm:$0xff]
        %v2172 = vld [vmem:[#allocation10 + $0x2f0] sm:$0xff]
        %v2173 = vld [vmem:[#allocation10 + $0x2f8] sm:$0xff]
        %v2174 = vld [vmem:[#allocation10 + $0x300] sm:$0xff]
        %v2175 = vld [vmem:[#allocation10 + $0x308] sm:$0xff]
        %v2176 = vld [vmem:[#allocation10 + $0x310] sm:$0xff]
        %v2177 = vld [vmem:[#allocation10 + $0x318] sm:$0xff]
        %v2178 = vld [vmem:[#allocation10 + $0x320] sm:$0xff]
        %v2179 = vld [vmem:[#allocation10 + $0x328] sm:$0xff]
        %v2180 = vld [vmem:[#allocation10 + $0x330] sm:$0xff]
        %v2181 = vld [vmem:[#allocation10 + $0x338] sm:$0xff]
        %v2182 = vld [vmem:[#allocation10 + $0x340] sm:$0xff]
        %v2183 = vld [vmem:[#allocation10 + $0x348] sm:$0xff]
        %v2184 = vld [vmem:[#allocation10 + $0x350] sm:$0xff]
        %v2185 = vld [vmem:[#allocation10 + $0x358] sm:$0xff]
        %v2186 = vld [vmem:[#allocation10 + $0x360] sm:$0xff]
        %v2187 = vld [vmem:[#allocation10 + $0x368] sm:$0xff]
        %v2188 = vld [vmem:[#allocation10 + $0x370] sm:$0xff]
        %v2189 = vld [vmem:[#allocation10 + $0x378] sm:$0xff]
        %v2190 = vld [vmem:[#allocation10 + $0x380] sm:$0xff]
        %v2191 = vld [vmem:[#allocation10 + $0x388] sm:$0xff]
        %v2192 = vld [vmem:[#allocation10 + $0x390] sm:$0xff]
        %v2193 = vld [vmem:[#allocation10 + $0x398] sm:$0xff]
        %v2194 = vld [vmem:[#allocation10 + $0x3a0] sm:$0xff]
        %v2195 = vld [vmem:[#allocation10 + $0x3a8] sm:$0xff]
        %v2196 = vld [vmem:[#allocation10 + $0x3b0] sm:$0xff]
        %v2197 = vld [vmem:[#allocation10 + $0x3b8] sm:$0xff]
        %v2198 = vld [vmem:[#allocation10 + $0x3c0] sm:$0xff]
        %v2199 = vld [vmem:[#allocation10 + $0x3c8] sm:$0xff]
        %v2200 = vld [vmem:[#allocation10 + $0x3d0] sm:$0xff]
        %v2201 = vld [vmem:[#allocation10 + $0x3d8] sm:$0xff]
        %v2202 = vld [vmem:[#allocation10 + $0x3e0] sm:$0xff]
        %v2203 = vld [vmem:[#allocation10 + $0x3e8] sm:$0xff]
        %v2204 = vld [vmem:[#allocation10 + $0x3f0] sm:$0xff]
        %v2205 = vld [vmem:[#allocation10 + $0x3f8] sm:$0xff]
        %v2206 = vld [vmem:[%s6] sm:$0xf]
        %v2208 = vlaneseq
        %v2209 = vshrl.u32 %v2208, 7
        %v2210 = vsub.s32 0, %v2209
        %v2211 = vrot.slane %v2206, %v2210
        %v2212 = vlaneseq
        %v2213 = vshrl.u32 %v2212, 7
        %v2214 = vsub.s32 1, %v2213
        %v2215 = vrot.slane %v2206, %v2214
        %v2216 = vlaneseq
        %v2217 = vshrl.u32 %v2216, 7
        %v2218 = vsub.s32 2, %v2217
        %v2219 = vrot.slane %v2206, %v2218
        %v2220 = vlaneseq
        %v2221 = vshrl.u32 %v2220, 7
        %v2222 = vsub.s32 3, %v2221
        %v2223 = vrot.slane %v2206, %v2222
        %v2356 = vunpack.c.l.b16 %v2078
        %v2357 = vunpack.c.h.b16 %v2078
        %v2358 = vunpack.c.l.b16 %v2079
        %v2359 = vunpack.c.h.b16 %v2079
        %v2360 = vunpack.c.l.b16 %v2080
        %v2361 = vunpack.c.h.b16 %v2080
        %v2362 = vunpack.c.l.b16 %v2081
        %v2363 = vunpack.c.h.b16 %v2081
        %v2364 = vunpack.c.l.b16 %v2082
        %v2365 = vunpack.c.h.b16 %v2082
        %v2366 = vunpack.c.l.b16 %v2083
        %v2367 = vunpack.c.h.b16 %v2083
        %v2368 = vunpack.c.l.b16 %v2084
        %v2369 = vunpack.c.h.b16 %v2084
        %v2370 = vunpack.c.l.b16 %v2085
        %v2371 = vunpack.c.h.b16 %v2085
        %v2372 = vunpack.c.l.b16 %v2086
        %v2373 = vunpack.c.h.b16 %v2086
        %v2374 = vunpack.c.l.b16 %v2087
        %v2375 = vunpack.c.h.b16 %v2087
        %v2376 = vunpack.c.l.b16 %v2088
        %v2377 = vunpack.c.h.b16 %v2088
        %v2378 = vunpack.c.l.b16 %v2089
        %v2379 = vunpack.c.h.b16 %v2089
        %v2380 = vunpack.c.l.b16 %v2090
        %v2381 = vunpack.c.h.b16 %v2090
        %v2382 = vunpack.c.l.b16 %v2091
        %v2383 = vunpack.c.h.b16 %v2091
        %v2384 = vunpack.c.l.b16 %v2092
        %v2385 = vunpack.c.h.b16 %v2092
        %v2386 = vunpack.c.l.b16 %v2093
        %v2387 = vunpack.c.h.b16 %v2093
        %v2388 = vunpack.c.l.b16 %v2094
        %v2389 = vunpack.c.h.b16 %v2094
        %v2390 = vunpack.c.l.b16 %v2095
        %v2391 = vunpack.c.h.b16 %v2095
        %v2392 = vunpack.c.l.b16 %v2096
        %v2393 = vunpack.c.h.b16 %v2096
        %v2394 = vunpack.c.l.b16 %v2097
        %v2395 = vunpack.c.h.b16 %v2097
        %v2396 = vunpack.c.l.b16 %v2098
        %v2397 = vunpack.c.h.b16 %v2098
        %v2398 = vunpack.c.l.b16 %v2099
        %v2399 = vunpack.c.h.b16 %v2099
        %v2400 = vunpack.c.l.b16 %v2100
        %v2401 = vunpack.c.h.b16 %v2100
        %v2402 = vunpack.c.l.b16 %v2101
        %v2403 = vunpack.c.h.b16 %v2101
        %v2404 = vunpack.c.l.b16 %v2102
        %v2405 = vunpack.c.h.b16 %v2102
        %v2406 = vunpack.c.l.b16 %v2103
        %v2407 = vunpack.c.h.b16 %v2103
        %v2408 = vunpack.c.l.b16 %v2104
        %v2409 = vunpack.c.h.b16 %v2104
        %v2410 = vunpack.c.l.b16 %v2105
        %v2411 = vunpack.c.h.b16 %v2105
        %v2412 = vunpack.c.l.b16 %v2106
        %v2413 = vunpack.c.h.b16 %v2106
        %v2414 = vunpack.c.l.b16 %v2107
        %v2415 = vunpack.c.h.b16 %v2107
        %v2416 = vunpack.c.l.b16 %v2108
        %v2417 = vunpack.c.h.b16 %v2108
        %v2418 = vunpack.c.l.b16 %v2109
        %v2419 = vunpack.c.h.b16 %v2109
        %v2420 = vunpack.c.l.b16 %v2110
        %v2421 = vunpack.c.h.b16 %v2110
        %v2422 = vunpack.c.l.b16 %v2111
        %v2423 = vunpack.c.h.b16 %v2111
        %v2424 = vunpack.c.l.b16 %v2112
        %v2425 = vunpack.c.h.b16 %v2112
        %v2426 = vunpack.c.l.b16 %v2113
        %v2427 = vunpack.c.h.b16 %v2113
        %v2428 = vunpack.c.l.b16 %v2114
        %v2429 = vunpack.c.h.b16 %v2114
        %v2430 = vunpack.c.l.b16 %v2115
        %v2431 = vunpack.c.h.b16 %v2115
        %v2432 = vunpack.c.l.b16 %v2116
        %v2433 = vunpack.c.h.b16 %v2116
        %v2434 = vunpack.c.l.b16 %v2117
        %v2435 = vunpack.c.h.b16 %v2117
        %v2436 = vunpack.c.l.b16 %v2118
        %v2437 = vunpack.c.h.b16 %v2118
        %v2438 = vunpack.c.l.b16 %v2119
        %v2439 = vunpack.c.h.b16 %v2119
        %v2440 = vunpack.c.l.b16 %v2120
        %v2441 = vunpack.c.h.b16 %v2120
        %v2442 = vunpack.c.l.b16 %v2121
        %v2443 = vunpack.c.h.b16 %v2121
        %v2444 = vunpack.c.l.b16 %v2122
        %v2445 = vunpack.c.h.b16 %v2122
        %v2446 = vunpack.c.l.b16 %v2123
        %v2447 = vunpack.c.h.b16 %v2123
        %v2448 = vunpack.c.l.b16 %v2124
        %v2449 = vunpack.c.h.b16 %v2124
        %v2450 = vunpack.c.l.b16 %v2125
        %v2451 = vunpack.c.h.b16 %v2125
        %v2452 = vunpack.c.l.b16 %v2126
        %v2453 = vunpack.c.h.b16 %v2126
        %v2454 = vunpack.c.l.b16 %v2127
        %v2455 = vunpack.c.h.b16 %v2127
        %v2456 = vunpack.c.l.b16 %v2128
        %v2457 = vunpack.c.h.b16 %v2128
        %v2458 = vunpack.c.l.b16 %v2129
        %v2459 = vunpack.c.h.b16 %v2129
        %v2460 = vunpack.c.l.b16 %v2130
        %v2461 = vunpack.c.h.b16 %v2130
        %v2462 = vunpack.c.l.b16 %v2131
        %v2463 = vunpack.c.h.b16 %v2131
        %v2464 = vunpack.c.l.b16 %v2132
        %v2465 = vunpack.c.h.b16 %v2132
        %v2466 = vunpack.c.l.b16 %v2133
        %v2467 = vunpack.c.h.b16 %v2133
        %v2468 = vunpack.c.l.b16 %v2134
        %v2469 = vunpack.c.h.b16 %v2134
        %v2470 = vunpack.c.l.b16 %v2135
        %v2471 = vunpack.c.h.b16 %v2135
        %v2472 = vunpack.c.l.b16 %v2136
        %v2473 = vunpack.c.h.b16 %v2136
        %v2474 = vunpack.c.l.b16 %v2137
        %v2475 = vunpack.c.h.b16 %v2137
        %v2476 = vunpack.c.l.b16 %v2138
        %v2477 = vunpack.c.h.b16 %v2138
        %v2478 = vunpack.c.l.b16 %v2139
        %v2479 = vunpack.c.h.b16 %v2139
        %v2480 = vunpack.c.l.b16 %v2140
        %v2481 = vunpack.c.h.b16 %v2140
        %v2482 = vunpack.c.l.b16 %v2141
        %v2483 = vunpack.c.h.b16 %v2141
        %v2484 = vunpack.c.l.b16 %v2142
        %v2485 = vunpack.c.h.b16 %v2142
        %v2486 = vunpack.c.l.b16 %v2143
        %v2487 = vunpack.c.h.b16 %v2143
        %v2488 = vunpack.c.l.b16 %v2144
        %v2489 = vunpack.c.h.b16 %v2144
        %v2490 = vunpack.c.l.b16 %v2145
        %v2491 = vunpack.c.h.b16 %v2145
        %v2492 = vunpack.c.l.b16 %v2146
        %v2493 = vunpack.c.h.b16 %v2146
        %v2494 = vunpack.c.l.b16 %v2147
        %v2495 = vunpack.c.h.b16 %v2147
        %v2496 = vunpack.c.l.b16 %v2148
        %v2497 = vunpack.c.h.b16 %v2148
        %v2498 = vunpack.c.l.b16 %v2149
        %v2499 = vunpack.c.h.b16 %v2149
        %v2500 = vunpack.c.l.b16 %v2150
        %v2501 = vunpack.c.h.b16 %v2150
        %v2502 = vunpack.c.l.b16 %v2151
        %v2503 = vunpack.c.h.b16 %v2151
        %v2504 = vunpack.c.l.b16 %v2152
        %v2505 = vunpack.c.h.b16 %v2152
        %v2506 = vunpack.c.l.b16 %v2153
        %v2507 = vunpack.c.h.b16 %v2153
        %v2508 = vunpack.c.l.b16 %v2154
        %v2509 = vunpack.c.h.b16 %v2154
        %v2510 = vunpack.c.l.b16 %v2155
        %v2511 = vunpack.c.h.b16 %v2155
        %v2512 = vunpack.c.l.b16 %v2156
        %v2513 = vunpack.c.h.b16 %v2156
        %v2514 = vunpack.c.l.b16 %v2157
        %v2515 = vunpack.c.h.b16 %v2157
        %v2516 = vunpack.c.l.b16 %v2158
        %v2517 = vunpack.c.h.b16 %v2158
        %v2518 = vunpack.c.l.b16 %v2159
        %v2519 = vunpack.c.h.b16 %v2159
        %v2520 = vunpack.c.l.b16 %v2160
        %v2521 = vunpack.c.h.b16 %v2160
        %v2522 = vunpack.c.l.b16 %v2161
        %v2523 = vunpack.c.h.b16 %v2161
        %v2524 = vunpack.c.l.b16 %v2162
        %v2525 = vunpack.c.h.b16 %v2162
        %v2526 = vunpack.c.l.b16 %v2163
        %v2527 = vunpack.c.h.b16 %v2163
        %v2528 = vunpack.c.l.b16 %v2164
        %v2529 = vunpack.c.h.b16 %v2164
        %v2530 = vunpack.c.l.b16 %v2165
        %v2531 = vunpack.c.h.b16 %v2165
        %v2532 = vunpack.c.l.b16 %v2166
        %v2533 = vunpack.c.h.b16 %v2166
        %v2534 = vunpack.c.l.b16 %v2167
        %v2535 = vunpack.c.h.b16 %v2167
        %v2536 = vunpack.c.l.b16 %v2168
        %v2537 = vunpack.c.h.b16 %v2168
        %v2538 = vunpack.c.l.b16 %v2169
        %v2539 = vunpack.c.h.b16 %v2169
        %v2540 = vunpack.c.l.b16 %v2170
        %v2541 = vunpack.c.h.b16 %v2170
        %v2542 = vunpack.c.l.b16 %v2171
        %v2543 = vunpack.c.h.b16 %v2171
        %v2544 = vunpack.c.l.b16 %v2172
        %v2545 = vunpack.c.h.b16 %v2172
        %v2546 = vunpack.c.l.b16 %v2173
        %v2547 = vunpack.c.h.b16 %v2173
        %v2548 = vunpack.c.l.b16 %v2174
        %v2549 = vunpack.c.h.b16 %v2174
        %v2550 = vunpack.c.l.b16 %v2175
        %v2551 = vunpack.c.h.b16 %v2175
        %v2552 = vunpack.c.l.b16 %v2176
        %v2553 = vunpack.c.h.b16 %v2176
        %v2554 = vunpack.c.l.b16 %v2177
        %v2555 = vunpack.c.h.b16 %v2177
        %v2556 = vunpack.c.l.b16 %v2178
        %v2557 = vunpack.c.h.b16 %v2178
        %v2558 = vunpack.c.l.b16 %v2179
        %v2559 = vunpack.c.h.b16 %v2179
        %v2560 = vunpack.c.l.b16 %v2180
        %v2561 = vunpack.c.h.b16 %v2180
        %v2562 = vunpack.c.l.b16 %v2181
        %v2563 = vunpack.c.h.b16 %v2181
        %v2564 = vunpack.c.l.b16 %v2182
        %v2565 = vunpack.c.h.b16 %v2182
        %v2566 = vunpack.c.l.b16 %v2183
        %v2567 = vunpack.c.h.b16 %v2183
        %v2568 = vunpack.c.l.b16 %v2184
        %v2569 = vunpack.c.h.b16 %v2184
        %v2570 = vunpack.c.l.b16 %v2185
        %v2571 = vunpack.c.h.b16 %v2185
        %v2572 = vunpack.c.l.b16 %v2186
        %v2573 = vunpack.c.h.b16 %v2186
        %v2574 = vunpack.c.l.b16 %v2187
        %v2575 = vunpack.c.h.b16 %v2187
        %v2576 = vunpack.c.l.b16 %v2188
        %v2577 = vunpack.c.h.b16 %v2188
        %v2578 = vunpack.c.l.b16 %v2189
        %v2579 = vunpack.c.h.b16 %v2189
        %v2580 = vunpack.c.l.b16 %v2190
        %v2581 = vunpack.c.h.b16 %v2190
        %v2582 = vunpack.c.l.b16 %v2191
        %v2583 = vunpack.c.h.b16 %v2191
        %v2584 = vunpack.c.l.b16 %v2192
        %v2585 = vunpack.c.h.b16 %v2192
        %v2586 = vunpack.c.l.b16 %v2193
        %v2587 = vunpack.c.h.b16 %v2193
        %v2588 = vunpack.c.l.b16 %v2194
        %v2589 = vunpack.c.h.b16 %v2194
        %v2590 = vunpack.c.l.b16 %v2195
        %v2591 = vunpack.c.h.b16 %v2195
        %v2592 = vunpack.c.l.b16 %v2196
        %v2593 = vunpack.c.h.b16 %v2196
        %v2594 = vunpack.c.l.b16 %v2197
        %v2595 = vunpack.c.h.b16 %v2197
        %v2596 = vunpack.c.l.b16 %v2198
        %v2597 = vunpack.c.h.b16 %v2198
        %v2598 = vunpack.c.l.b16 %v2199
        %v2599 = vunpack.c.h.b16 %v2199
        %v2600 = vunpack.c.l.b16 %v2200
        %v2601 = vunpack.c.h.b16 %v2200
        %v2602 = vunpack.c.l.b16 %v2201
        %v2603 = vunpack.c.h.b16 %v2201
        %v2604 = vunpack.c.l.b16 %v2202
        %v2605 = vunpack.c.h.b16 %v2202
        %v2606 = vunpack.c.l.b16 %v2203
        %v2607 = vunpack.c.h.b16 %v2203
        %v2608 = vunpack.c.l.b16 %v2204
        %v2609 = vunpack.c.h.b16 %v2204
        %v2610 = vunpack.c.l.b16 %v2205
        %v2611 = vunpack.c.h.b16 %v2205
        %v2612 = vpack.c.b16 %v2360, %v2356
        %v2613 = vpack.c.b16 %v2361, %v2357
        %v2614 = vpack.c.b16 %v2362, %v2358
        %v2615 = vpack.c.b16 %v2363, %v2359
        %v2616 = vpack.c.b16 %v2368, %v2364
        %v2617 = vpack.c.b16 %v2369, %v2365
        %v2618 = vpack.c.b16 %v2370, %v2366
        %v2619 = vpack.c.b16 %v2371, %v2367
        %v2620 = vpack.c.b16 %v2376, %v2372
        %v2621 = vpack.c.b16 %v2377, %v2373
        %v2622 = vpack.c.b16 %v2378, %v2374
        %v2623 = vpack.c.b16 %v2379, %v2375
        %v2624 = vpack.c.b16 %v2384, %v2380
        %v2625 = vpack.c.b16 %v2385, %v2381
        %v2626 = vpack.c.b16 %v2386, %v2382
        %v2627 = vpack.c.b16 %v2387, %v2383
        %v2628 = vpack.c.b16 %v2392, %v2388
        %v2629 = vpack.c.b16 %v2393, %v2389
        %v2630 = vpack.c.b16 %v2394, %v2390
        %v2631 = vpack.c.b16 %v2395, %v2391
        %v2632 = vpack.c.b16 %v2400, %v2396
        %v2633 = vpack.c.b16 %v2401, %v2397
        %v2634 = vpack.c.b16 %v2402, %v2398
        %v2635 = vpack.c.b16 %v2403, %v2399
        %v2636 = vpack.c.b16 %v2408, %v2404
        %v2637 = vpack.c.b16 %v2409, %v2405
        %v2638 = vpack.c.b16 %v2410, %v2406
        %v2639 = vpack.c.b16 %v2411, %v2407
        %v2640 = vpack.c.b16 %v2416, %v2412
        %v2641 = vpack.c.b16 %v2417, %v2413
        %v2642 = vpack.c.b16 %v2418, %v2414
        %v2643 = vpack.c.b16 %v2419, %v2415
        %v2644 = vpack.c.b16 %v2424, %v2420
        %v2645 = vpack.c.b16 %v2425, %v2421
        %v2646 = vpack.c.b16 %v2426, %v2422
        %v2647 = vpack.c.b16 %v2427, %v2423
        %v2648 = vpack.c.b16 %v2432, %v2428
        %v2649 = vpack.c.b16 %v2433, %v2429
        %v2650 = vpack.c.b16 %v2434, %v2430
        %v2651 = vpack.c.b16 %v2435, %v2431
        %v2652 = vpack.c.b16 %v2440, %v2436
        %v2653 = vpack.c.b16 %v2441, %v2437
        %v2654 = vpack.c.b16 %v2442, %v2438
        %v2655 = vpack.c.b16 %v2443, %v2439
        %v2656 = vpack.c.b16 %v2448, %v2444
        %v2657 = vpack.c.b16 %v2449, %v2445
        %v2658 = vpack.c.b16 %v2450, %v2446
        %v2659 = vpack.c.b16 %v2451, %v2447
        %v2660 = vpack.c.b16 %v2456, %v2452
        %v2661 = vpack.c.b16 %v2457, %v2453
        %v2662 = vpack.c.b16 %v2458, %v2454
        %v2663 = vpack.c.b16 %v2459, %v2455
        %v2664 = vpack.c.b16 %v2464, %v2460
        %v2665 = vpack.c.b16 %v2465, %v2461
        %v2666 = vpack.c.b16 %v2466, %v2462
        %v2667 = vpack.c.b16 %v2467, %v2463
        %v2668 = vpack.c.b16 %v2472, %v2468
        %v2669 = vpack.c.b16 %v2473, %v2469
        %v2670 = vpack.c.b16 %v2474, %v2470
        %v2671 = vpack.c.b16 %v2475, %v2471
        %v2672 = vpack.c.b16 %v2480, %v2476
        %v2673 = vpack.c.b16 %v2481, %v2477
        %v2674 = vpack.c.b16 %v2482, %v2478
        %v2675 = vpack.c.b16 %v2483, %v2479
        %v2676 = vpack.c.b16 %v2488, %v2484
        %v2677 = vpack.c.b16 %v2489, %v2485
        %v2678 = vpack.c.b16 %v2490, %v2486
        %v2679 = vpack.c.b16 %v2491, %v2487
        %v2680 = vpack.c.b16 %v2496, %v2492
        %v2681 = vpack.c.b16 %v2497, %v2493
        %v2682 = vpack.c.b16 %v2498, %v2494
        %v2683 = vpack.c.b16 %v2499, %v2495
        %v2684 = vpack.c.b16 %v2504, %v2500
        %v2685 = vpack.c.b16 %v2505, %v2501
        %v2686 = vpack.c.b16 %v2506, %v2502
        %v2687 = vpack.c.b16 %v2507, %v2503
        %v2688 = vpack.c.b16 %v2512, %v2508
        %v2689 = vpack.c.b16 %v2513, %v2509
        %v2690 = vpack.c.b16 %v2514, %v2510
        %v2691 = vpack.c.b16 %v2515, %v2511
        %v2692 = vpack.c.b16 %v2520, %v2516
        %v2693 = vpack.c.b16 %v2521, %v2517
        %v2694 = vpack.c.b16 %v2522, %v2518
        %v2695 = vpack.c.b16 %v2523, %v2519
        %v2696 = vpack.c.b16 %v2528, %v2524
        %v2697 = vpack.c.b16 %v2529, %v2525
        %v2698 = vpack.c.b16 %v2530, %v2526
        %v2699 = vpack.c.b16 %v2531, %v2527
        %v2700 = vpack.c.b16 %v2536, %v2532
        %v2701 = vpack.c.b16 %v2537, %v2533
        %v2702 = vpack.c.b16 %v2538, %v2534
        %v2703 = vpack.c.b16 %v2539, %v2535
        %v2704 = vpack.c.b16 %v2544, %v2540
        %v2705 = vpack.c.b16 %v2545, %v2541
        %v2706 = vpack.c.b16 %v2546, %v2542
        %v2707 = vpack.c.b16 %v2547, %v2543
        %v2708 = vpack.c.b16 %v2552, %v2548
        %v2709 = vpack.c.b16 %v2553, %v2549
        %v2710 = vpack.c.b16 %v2554, %v2550
        %v2711 = vpack.c.b16 %v2555, %v2551
        %v2712 = vpack.c.b16 %v2560, %v2556
        %v2713 = vpack.c.b16 %v2561, %v2557
        %v2714 = vpack.c.b16 %v2562, %v2558
        %v2715 = vpack.c.b16 %v2563, %v2559
        %v2716 = vpack.c.b16 %v2568, %v2564
        %v2717 = vpack.c.b16 %v2569, %v2565
        %v2718 = vpack.c.b16 %v2570, %v2566
        %v2719 = vpack.c.b16 %v2571, %v2567
        %v2720 = vpack.c.b16 %v2576, %v2572
        %v2721 = vpack.c.b16 %v2577, %v2573
        %v2722 = vpack.c.b16 %v2578, %v2574
        %v2723 = vpack.c.b16 %v2579, %v2575
        %v2724 = vpack.c.b16 %v2584, %v2580
        %v2725 = vpack.c.b16 %v2585, %v2581
        %v2726 = vpack.c.b16 %v2586, %v2582
        %v2727 = vpack.c.b16 %v2587, %v2583
        %v2728 = vpack.c.b16 %v2592, %v2588
        %v2729 = vpack.c.b16 %v2593, %v2589
        %v2730 = vpack.c.b16 %v2594, %v2590
        %v2731 = vpack.c.b16 %v2595, %v2591
        %v2732 = vpack.c.b16 %v2600, %v2596
        %v2733 = vpack.c.b16 %v2601, %v2597
        %v2734 = vpack.c.b16 %v2602, %v2598
        %v2735 = vpack.c.b16 %v2603, %v2599
        %v2736 = vpack.c.b16 %v2608, %v2604
        %v2737 = vpack.c.b16 %v2609, %v2605
        %v2738 = vpack.c.b16 %v2610, %v2606
        %v2739 = vpack.c.b16 %v2611, %v2607
        %2868 = vmatprep.subr.bf16.mxu0 %v2613
        %2869 = vmatpush1.bf16.msra.mxu0 %v2612
        %2870 = vmatprep.subr.bf16.mxu0 %v2617
        %2871 = vmatpush1.bf16.msra.mxu0 %v2616
        %2872 = vmatprep.subr.bf16.mxu0 %v2621
        %2873 = vmatpush1.bf16.msra.mxu0 %v2620
        %2874 = vmatprep.subr.bf16.mxu0 %v2625
        %2875 = vmatpush1.bf16.msra.mxu0 %v2624
        %2876 = vmatprep.subr.bf16.mxu0 %v2629
        %2877 = vmatpush1.bf16.msra.mxu0 %v2628
        %2878 = vmatprep.subr.bf16.mxu0 %v2633
        %2879 = vmatpush1.bf16.msra.mxu0 %v2632
        %2880 = vmatprep.subr.bf16.mxu0 %v2637
        %2881 = vmatpush1.bf16.msra.mxu0 %v2636
        %2882 = vmatprep.subr.bf16.mxu0 %v2641
        %2883 = vmatpush1.bf16.msra.mxu0 %v2640
        %2884 = vmatprep.subr.bf16.mxu0 %v2645
        %2885 = vmatpush1.bf16.msra.mxu0 %v2644
        %2886 = vmatprep.subr.bf16.mxu0 %v2649
        %2887 = vmatpush1.bf16.msra.mxu0 %v2648
        %2888 = vmatprep.subr.bf16.mxu0 %v2653
        %2889 = vmatpush1.bf16.msra.mxu0 %v2652
        %2890 = vmatprep.subr.bf16.mxu0 %v2657
        %2891 = vmatpush1.bf16.msra.mxu0 %v2656
        %2892 = vmatprep.subr.bf16.mxu0 %v2661
        %2893 = vmatpush1.bf16.msra.mxu0 %v2660
        %2894 = vmatprep.subr.bf16.mxu0 %v2665
        %2895 = vmatpush1.bf16.msra.mxu0 %v2664
        %2896 = vmatprep.subr.bf16.mxu0 %v2669
        %2897 = vmatpush1.bf16.msra.mxu0 %v2668
        %2898 = vmatprep.subr.bf16.mxu0 %v2673
        %2899 = vmatpush1.bf16.msra.mxu0 %v2672
        %2900 = vmatprep.mubr.bf16.mxu0 %v709
        %2901 = vmatmul.mubr.bf16.gmra.mrb[0].mxu0 %v708
        %v2902 = vpop.f32.mrb[0].mxu0
        %v2903 = vadd.f32 %v2211, %v2902
        %v2904 = vpop.f32.mrb[0].mxu0
        %v2905 = vadd.f32 %v2215, %v2904
        %v2906 = vpop.f32.mrb[0].mxu0
        %v2907 = vadd.f32 %v2211, %v2906
        %v2908 = vpop.f32.mrb[0].mxu0
        %v2909 = vadd.f32 %v2215, %v2908
        %2910 = vmatprep.mubr.bf16.mxu0 %v713
        %2911 = vmatmul.mubr.bf16.gmra.mrb[0].mxu0 %v712
        %v2912 = vpop.f32.mrb[0].mxu0
        %v2913 = vadd.f32 %v2211, %v2912
        %v2914 = vpop.f32.mrb[0].mxu0
        %v2915 = vadd.f32 %v2215, %v2914
        %v2916 = vpop.f32.mrb[0].mxu0
        %v2917 = vadd.f32 %v2211, %v2916
        %v2918 = vpop.f32.mrb[0].mxu0
        %v2919 = vadd.f32 %v2215, %v2918
        %2920 = vmatprep.mubr.bf16.mxu0 %v717
        %2921 = vmatmul.mubr.bf16.gmra.mrb[0].mxu0 %v716
        %v2922 = vpop.f32.mrb[0].mxu0
        %v2923 = vadd.f32 %v2211, %v2922
        %v2924 = vpop.f32.mrb[0].mxu0
        %v2925 = vadd.f32 %v2215, %v2924
        %v2926 = vpop.f32.mrb[0].mxu0
        %v2927 = vadd.f32 %v2211, %v2926
        %v2928 = vpop.f32.mrb[0].mxu0
        %v2929 = vadd.f32 %v2215, %v2928
        %2930 = vmatprep.mubr.bf16.mxu0 %v721
        %2931 = vmatmul.mubr.bf16.gmra.mrb[0].mxu0 %v720
        %v2932 = vpop.f32.mrb[0].mxu0
        %v2933 = vadd.f32 %v2211, %v2932
        %v2934 = vpop.f32.mrb[0].mxu0
        %v2935 = vadd.f32 %v2215, %v2934
        %v2936 = vpop.f32.mrb[0].mxu0
        %v2937 = vadd.f32 %v2211, %v2936
        %v2938 = vpop.f32.mrb[0].mxu0
        %v2939 = vadd.f32 %v2215, %v2938
        %2940 = vmatprep.mubr.bf16.mxu0 %v725
        %2941 = vmatmul.mubr.bf16.gmra.mrb[0].mxu0 %v724
        %v2942 = vpop.f32.mrb[0].mxu0
        %v2943 = vadd.f32 %v2211, %v2942
        %v2944 = vpop.f32.mrb[0].mxu0
        %v2945 = vadd.f32 %v2215, %v2944
        %v2946 = vpop.f32.mrb[0].mxu0
        %v2947 = vadd.f32 %v2211, %v2946
        %v2948 = vpop.f32.mrb[0].mxu0
        %v2949 = vadd.f32 %v2215, %v2948
        %2950 = vmatprep.mubr.bf16.mxu0 %v729
        %2951 = vmatmul.mubr.bf16.gmra.mrb[0].mxu0 %v728
        %v2952 = vpop.f32.mrb[0].mxu0
        %v2953 = vadd.f32 %v2211, %v2952
        %v2954 = vpop.f32.mrb[0].mxu0
        %v2955 = vadd.f32 %v2215, %v2954
        %v2956 = vpop.f32.mrb[0].mxu0
        %v2957 = vadd.f32 %v2211, %v2956
        %v2958 = vpop.f32.mrb[0].mxu0
        %v2959 = vadd.f32 %v2215, %v2958
        %2960 = vmatprep.mubr.bf16.mxu0 %v733
        %2961 = vmatmul.mubr.bf16.gmra.mrb[0].mxu0 %v732
        %v2962 = vpop.f32.mrb[0].mxu0
        %v2963 = vadd.f32 %v2211, %v2962
        %v2964 = vpop.f32.mrb[0].mxu0
        %v2965 = vadd.f32 %v2215, %v2964
        %v2966 = vpop.f32.mrb[0].mxu0
        %v2967 = vadd.f32 %v2211, %v2966
        %v2968 = vpop.f32.mrb[0].mxu0
        %v2969 = vadd.f32 %v2215, %v2968
        %2970 = vmatprep.mubr.bf16.mxu0 %v737
        %2971 = vmatmul.mubr.bf16.gmra.mrb[0].mxu0 %v736
        %v2972 = vpop.f32.mrb[0].mxu0
        %v2973 = vadd.f32 %v2211, %v2972
        %v2974 = vpop.f32.mrb[0].mxu0
        %v2975 = vadd.f32 %v2215, %v2974
        %v2976 = vpop.f32.mrb[0].mxu0
        %v2977 = vadd.f32 %v2211, %v2976
        %v2978 = vpop.f32.mrb[0].mxu0
        %v2979 = vadd.f32 %v2215, %v2978
        %2980 = vdwg.mxu0
        %2981 = vmatprep.subr.bf16.mxu0 %v2677
        %2982 = vmatpush1.bf16.msra.mxu0 %v2676
        %2983 = vmatprep.subr.bf16.mxu0 %v2681
        %2984 = vmatpush1.bf16.msra.mxu0 %v2680
        %2985 = vmatprep.subr.bf16.mxu0 %v2685
        %2986 = vmatpush1.bf16.msra.mxu0 %v2684
        %2987 = vmatprep.subr.bf16.mxu0 %v2689
        %2988 = vmatpush1.bf16.msra.mxu0 %v2688
        %2989 = vmatprep.subr.bf16.mxu0 %v2693
        %2990 = vmatpush1.bf16.msra.mxu0 %v2692
        %2991 = vmatprep.subr.bf16.mxu0 %v2697
        %2992 = vmatpush1.bf16.msra.mxu0 %v2696
        %2993 = vmatprep.subr.bf16.mxu0 %v2701
        %2994 = vmatpush1.bf16.msra.mxu0 %v2700
        %2995 = vmatprep.subr.bf16.mxu0 %v2705
        %2996 = vmatpush1.bf16.msra.mxu0 %v2704
        %2997 = vmatprep.subr.bf16.mxu0 %v2709
        %2998 = vmatpush1.bf16.msra.mxu0 %v2708
        %2999 = vmatprep.subr.bf16.mxu0 %v2713
        %3000 = vmatpush1.bf16.msra.mxu0 %v2712
        %3001 = vmatprep.subr.bf16.mxu0 %v2717
        %3002 = vmatpush1.bf16.msra.mxu0 %v2716
        %3003 = vmatprep.subr.bf16.mxu0 %v2721
        %3004 = vmatpush1.bf16.msra.mxu0 %v2720
        %3005 = vmatprep.subr.bf16.mxu0 %v2725
        %3006 = vmatpush1.bf16.msra.mxu0 %v2724
        %3007 = vmatprep.subr.bf16.mxu0 %v2729
        %3008 = vmatpush1.bf16.msra.mxu0 %v2728
        %3009 = vmatprep.subr.bf16.mxu0 %v2733
        %3010 = vmatpush1.bf16.msra.mxu0 %v2732
        %3011 = vmatprep.subr.bf16.mxu0 %v2737
        %3012 = vmatpush1.bf16.msra.mxu0 %v2736
        %3013 = vmatprep.mubr.bf16.mxu0 %v711
        %3014 = vmatmul.mubr.bf16.gmra.mrb[0].mxu0 %v710
        %v3015 = vpop.f32.mrb[0].mxu0
        %v3016 = vadd.f32 %v2903, %v3015
        %v3017 = vpop.f32.mrb[0].mxu0
        %v3018 = vadd.f32 %v2905, %v3017
        %v3019 = vpop.f32.mrb[0].mxu0
        %v3020 = vadd.f32 %v2907, %v3019
        %v3021 = vpop.f32.mrb[0].mxu0
        %v3022 = vadd.f32 %v2909, %v3021
        %3023 = vmatprep.mubr.bf16.mxu0 %v715
        %3024 = vmatmul.mubr.bf16.gmra.mrb[0].mxu0 %v714
        %v3025 = vpop.f32.mrb[0].mxu0
        %v3026 = vadd.f32 %v2913, %v3025
        %v3027 = vpop.f32.mrb[0].mxu0
        %v3028 = vadd.f32 %v2915, %v3027
        %v3029 = vpop.f32.mrb[0].mxu0
        %v3030 = vadd.f32 %v2917, %v3029
        %v3031 = vpop.f32.mrb[0].mxu0
        %v3032 = vadd.f32 %v2919, %v3031
        %3033 = vmatprep.mubr.bf16.mxu0 %v719
        %3034 = vmatmul.mubr.bf16.gmra.mrb[0].mxu0 %v718
        %v3035 = vpop.f32.mrb[0].mxu0
        %v3036 = vadd.f32 %v2923, %v3035
        %v3037 = vpop.f32.mrb[0].mxu0
        %v3038 = vadd.f32 %v2925, %v3037
        %v3039 = vpop.f32.mrb[0].mxu0
        %v3040 = vadd.f32 %v2927, %v3039
        %v3041 = vpop.f32.mrb[0].mxu0
        %v3042 = vadd.f32 %v2929, %v3041
        %3043 = vmatprep.mubr.bf16.mxu0 %v723
        %3044 = vmatmul.mubr.bf16.gmra.mrb[0].mxu0 %v722
        %v3045 = vpop.f32.mrb[0].mxu0
        %v3046 = vadd.f32 %v2933, %v3045
        %v3047 = vpop.f32.mrb[0].mxu0
        %v3048 = vadd.f32 %v2935, %v3047
        %v3049 = vpop.f32.mrb[0].mxu0
        %v3050 = vadd.f32 %v2937, %v3049
        %v3051 = vpop.f32.mrb[0].mxu0
        %v3052 = vadd.f32 %v2939, %v3051
        %3053 = vmatprep.mubr.bf16.mxu0 %v727
        %3054 = vmatmul.mubr.bf16.gmra.mrb[0].mxu0 %v726
        %v3055 = vpop.f32.mrb[0].mxu0
        %v3056 = vadd.f32 %v2943, %v3055
        %v3057 = vpop.f32.mrb[0].mxu0
        %v3058 = vadd.f32 %v2945, %v3057
        %v3059 = vpop.f32.mrb[0].mxu0
        %v3060 = vadd.f32 %v2947, %v3059
        %v3061 = vpop.f32.mrb[0].mxu0
        %v3062 = vadd.f32 %v2949, %v3061
        %3063 = vmatprep.mubr.bf16.mxu0 %v731
        %3064 = vmatmul.mubr.bf16.gmra.mrb[0].mxu0 %v730
        %v3065 = vpop.f32.mrb[0].mxu0
        %v3066 = vadd.f32 %v2953, %v3065
        %v3067 = vpop.f32.mrb[0].mxu0
        %v3068 = vadd.f32 %v2955, %v3067
        %v3069 = vpop.f32.mrb[0].mxu0
        %v3070 = vadd.f32 %v2957, %v3069
        %v3071 = vpop.f32.mrb[0].mxu0
        %v3072 = vadd.f32 %v2959, %v3071
        %3073 = vmatprep.mubr.bf16.mxu0 %v735
        %3074 = vmatmul.mubr.bf16.gmra.mrb[0].mxu0 %v734
        %v3075 = vpop.f32.mrb[0].mxu0
        %v3076 = vadd.f32 %v2963, %v3075
        %v3077 = vpop.f32.mrb[0].mxu0
        %v3078 = vadd.f32 %v2965, %v3077
        %v3079 = vpop.f32.mrb[0].mxu0
        %v3080 = vadd.f32 %v2967, %v3079
        %v3081 = vpop.f32.mrb[0].mxu0
        %v3082 = vadd.f32 %v2969, %v3081
        %3083 = vmatprep.mubr.bf16.mxu0 %v739
        %3084 = vmatmul.mubr.bf16.gmra.mrb[0].mxu0 %v738
        %v3085 = vpop.f32.mrb[0].mxu0
        %v3086 = vadd.f32 %v2973, %v3085
        %v3087 = vpop.f32.mrb[0].mxu0
        %v3088 = vadd.f32 %v2975, %v3087
        %v3089 = vpop.f32.mrb[0].mxu0
        %v3090 = vadd.f32 %v2977, %v3089
        %v3091 = vpop.f32.mrb[0].mxu0
        %v3092 = vadd.f32 %v2979, %v3091
        %3093 = vdwg.mxu0
        %3094 = vmatprep.subr.bf16.mxu0 %v2615
        %3095 = vmatpush1.bf16.msra.mxu0 %v2614
        %3096 = vmatprep.subr.bf16.mxu0 %v2619
        %3097 = vmatpush1.bf16.msra.mxu0 %v2618
        %3098 = vmatprep.subr.bf16.mxu0 %v2623
        %3099 = vmatpush1.bf16.msra.mxu0 %v2622
        %3100 = vmatprep.subr.bf16.mxu0 %v2627
        %3101 = vmatpush1.bf16.msra.mxu0 %v2626
        %3102 = vmatprep.subr.bf16.mxu0 %v2631
        %3103 = vmatpush1.bf16.msra.mxu0 %v2630
        %3104 = vmatprep.subr.bf16.mxu0 %v2635
        %3105 = vmatpush1.bf16.msra.mxu0 %v2634
        %3106 = vmatprep.subr.bf16.mxu0 %v2639
        %3107 = vmatpush1.bf16.msra.mxu0 %v2638
        %3108 = vmatprep.subr.bf16.mxu0 %v2643
        %3109 = vmatpush1.bf16.msra.mxu0 %v2642
        %3110 = vmatprep.subr.bf16.mxu0 %v2647
        %3111 = vmatpush1.bf16.msra.mxu0 %v2646
        %3112 = vmatprep.subr.bf16.mxu0 %v2651
        %3113 = vmatpush1.bf16.msra.mxu0 %v2650
        %3114 = vmatprep.subr.bf16.mxu0 %v2655
        %3115 = vmatpush1.bf16.msra.mxu0 %v2654
        %3116 = vmatprep.subr.bf16.mxu0 %v2659
        %3117 = vmatpush1.bf16.msra.mxu0 %v2658
        %3118 = vmatprep.subr.bf16.mxu0 %v2663
        %3119 = vmatpush1.bf16.msra.mxu0 %v2662
        %3120 = vmatprep.subr.bf16.mxu0 %v2667
        %3121 = vmatpush1.bf16.msra.mxu0 %v2666
        %3122 = vmatprep.subr.bf16.mxu0 %v2671
        %3123 = vmatpush1.bf16.msra.mxu0 %v2670
        %3124 = vmatprep.subr.bf16.mxu0 %v2675
        %3125 = vmatpush1.bf16.msra.mxu0 %v2674
        %3126 = vmatprep.mubr.bf16.mxu0 %v709
        %3127 = vmatmul.mubr.bf16.gmra.mrb[0].mxu0 %v708
        %v3128 = vpop.f32.mrb[0].mxu0
        %v3129 = vadd.f32 %v2219, %v3128
        %v3130 = vpop.f32.mrb[0].mxu0
        %v3131 = vadd.f32 %v2223, %v3130
        %v3132 = vpop.f32.mrb[0].mxu0
        %v3133 = vadd.f32 %v2219, %v3132
        %v3134 = vpop.f32.mrb[0].mxu0
        %v3135 = vadd.f32 %v2223, %v3134
        %3136 = vmatprep.mubr.bf16.mxu0 %v713
        %3137 = vmatmul.mubr.bf16.gmra.mrb[0].mxu0 %v712
        %v3138 = vpop.f32.mrb[0].mxu0
        %v3139 = vadd.f32 %v2219, %v3138
        %v3140 = vpop.f32.mrb[0].mxu0
        %v3141 = vadd.f32 %v2223, %v3140
        %v3142 = vpop.f32.mrb[0].mxu0
        %v3143 = vadd.f32 %v2219, %v3142
        %v3144 = vpop.f32.mrb[0].mxu0
        %v3145 = vadd.f32 %v2223, %v3144
        %3146 = vmatprep.mubr.bf16.mxu0 %v717
        %3147 = vmatmul.mubr.bf16.gmra.mrb[0].mxu0 %v716
        %v3148 = vpop.f32.mrb[0].mxu0
        %v3149 = vadd.f32 %v2219, %v3148
        %v3150 = vpop.f32.mrb[0].mxu0
        %v3151 = vadd.f32 %v2223, %v3150
        %v3152 = vpop.f32.mrb[0].mxu0
        %v3153 = vadd.f32 %v2219, %v3152
        %v3154 = vpop.f32.mrb[0].mxu0
        %v3155 = vadd.f32 %v2223, %v3154
        %3156 = vmatprep.mubr.bf16.mxu0 %v721
        %3157 = vmatmul.mubr.bf16.gmra.mrb[0].mxu0 %v720
        %v3158 = vpop.f32.mrb[0].mxu0
        %v3159 = vadd.f32 %v2219, %v3158
        %v3160 = vpop.f32.mrb[0].mxu0
        %v3161 = vadd.f32 %v2223, %v3160
        %v3162 = vpop.f32.mrb[0].mxu0
        %v3163 = vadd.f32 %v2219, %v3162
        %v3164 = vpop.f32.mrb[0].mxu0
        %v3165 = vadd.f32 %v2223, %v3164
        %3166 = vmatprep.mubr.bf16.mxu0 %v725
        %3167 = vmatmul.mubr.bf16.gmra.mrb[0].mxu0 %v724
        %v3168 = vpop.f32.mrb[0].mxu0
        %v3169 = vadd.f32 %v2219, %v3168
        %v3170 = vpop.f32.mrb[0].mxu0
        %v3171 = vadd.f32 %v2223, %v3170
        %v3172 = vpop.f32.mrb[0].mxu0
        %v3173 = vadd.f32 %v2219, %v3172
        %v3174 = vpop.f32.mrb[0].mxu0
        %v3175 = vadd.f32 %v2223, %v3174
        %3176 = vmatprep.mubr.bf16.mxu0 %v729
        %3177 = vmatmul.mubr.bf16.gmra.mrb[0].mxu0 %v728
        %v3178 = vpop.f32.mrb[0].mxu0
        %v3179 = vadd.f32 %v2219, %v3178
        %v3180 = vpop.f32.mrb[0].mxu0
        %v3181 = vadd.f32 %v2223, %v3180
        %v3182 = vpop.f32.mrb[0].mxu0
        %v3183 = vadd.f32 %v2219, %v3182
        %v3184 = vpop.f32.mrb[0].mxu0
        %v3185 = vadd.f32 %v2223, %v3184
        %3186 = vmatprep.mubr.bf16.mxu0 %v733
        %3187 = vmatmul.mubr.bf16.gmra.mrb[0].mxu0 %v732
        %v3188 = vpop.f32.mrb[0].mxu0
        %v3189 = vadd.f32 %v2219, %v3188
        %v3190 = vpop.f32.mrb[0].mxu0
        %v3191 = vadd.f32 %v2223, %v3190
        %v3192 = vpop.f32.mrb[0].mxu0
        %v3193 = vadd.f32 %v2219, %v3192
        %v3194 = vpop.f32.mrb[0].mxu0
        %v3195 = vadd.f32 %v2223, %v3194
        %3196 = vmatprep.mubr.bf16.mxu0 %v737
        %3197 = vmatmul.mubr.bf16.gmra.mrb[0].mxu0 %v736
        %v3198 = vpop.f32.mrb[0].mxu0
        %v3199 = vadd.f32 %v2219, %v3198
        %v3200 = vpop.f32.mrb[0].mxu0
        %v3201 = vadd.f32 %v2223, %v3200
        %v3202 = vpop.f32.mrb[0].mxu0
        %v3203 = vadd.f32 %v2219, %v3202
        %v3204 = vpop.f32.mrb[0].mxu0
        %v3205 = vadd.f32 %v2223, %v3204
        %3206 = vdwg.mxu0
        %3207 = vmatprep.subr.bf16.mxu0 %v2679
        %3208 = vmatpush1.bf16.msra.mxu0 %v2678
        %3209 = vmatprep.subr.bf16.mxu0 %v2683
        %3210 = vmatpush1.bf16.msra.mxu0 %v2682
        %3211 = vmatprep.subr.bf16.mxu0 %v2687
        %3212 = vmatpush1.bf16.msra.mxu0 %v2686
        %3213 = vmatprep.subr.bf16.mxu0 %v2691
        %3214 = vmatpush1.bf16.msra.mxu0 %v2690
        %3215 = vmatprep.subr.bf16.mxu0 %v2695
        %3216 = vmatpush1.bf16.msra.mxu0 %v2694
        %3217 = vmatprep.subr.bf16.mxu0 %v2699
        %3218 = vmatpush1.bf16.msra.mxu0 %v2698
        %3219 = vmatprep.subr.bf16.mxu0 %v2703
        %3220 = vmatpush1.bf16.msra.mxu0 %v2702
        %3221 = vmatprep.subr.bf16.mxu0 %v2707
        %3222 = vmatpush1.bf16.msra.mxu0 %v2706
        %3223 = vmatprep.subr.bf16.mxu0 %v2711
        %3224 = vmatpush1.bf16.msra.mxu0 %v2710
        %3225 = vmatprep.subr.bf16.mxu0 %v2715
        %3226 = vmatpush1.bf16.msra.mxu0 %v2714
        %3227 = vmatprep.subr.bf16.mxu0 %v2719
        %3228 = vmatpush1.bf16.msra.mxu0 %v2718
        %3229 = vmatprep.subr.bf16.mxu0 %v2723
        %3230 = vmatpush1.bf16.msra.mxu0 %v2722
        %3231 = vmatprep.subr.bf16.mxu0 %v2727
        %3232 = vmatpush1.bf16.msra.mxu0 %v2726
        %3233 = vmatprep.subr.bf16.mxu0 %v2731
        %3234 = vmatpush1.bf16.msra.mxu0 %v2730
        %3235 = vmatprep.subr.bf16.mxu0 %v2735
        %3236 = vmatpush1.bf16.msra.mxu0 %v2734
        %3237 = vmatprep.subr.bf16.mxu0 %v2739
        %3238 = vmatpush1.bf16.msra.mxu0 %v2738
        %3239 = vmatprep.mubr.bf16.mxu0 %v711
        %3240 = vmatmul.mubr.bf16.gmra.mrb[0].mxu0 %v710
        %v3241 = vpop.f32.mrb[0].mxu0
        %v3242 = vadd.f32 %v3129, %v3241
        %v3243 = vpop.f32.mrb[0].mxu0
        %v3244 = vadd.f32 %v3131, %v3243
        %v3245 = vpop.f32.mrb[0].mxu0
        %v3246 = vadd.f32 %v3133, %v3245
        %v3247 = vpop.f32.mrb[0].mxu0
        %v3248 = vadd.f32 %v3135, %v3247
        %3249 = vmatprep.mubr.bf16.mxu0 %v715
        %3250 = vmatmul.mubr.bf16.gmra.mrb[0].mxu0 %v714
        %v3251 = vpop.f32.mrb[0].mxu0
        %v3252 = vadd.f32 %v3139, %v3251
        %v3253 = vpop.f32.mrb[0].mxu0
        %v3254 = vadd.f32 %v3141, %v3253
        %v3255 = vpop.f32.mrb[0].mxu0
        %v3256 = vadd.f32 %v3143, %v3255
        %v3257 = vpop.f32.mrb[0].mxu0
        %v3258 = vadd.f32 %v3145, %v3257
        %3259 = vmatprep.mubr.bf16.mxu0 %v719
        %3260 = vmatmul.mubr.bf16.gmra.mrb[0].mxu0 %v718
        %v3261 = vpop.f32.mrb[0].mxu0
        %v3262 = vadd.f32 %v3149, %v3261
        %v3263 = vpop.f32.mrb[0].mxu0
        %v3264 = vadd.f32 %v3151, %v3263
        %v3265 = vpop.f32.mrb[0].mxu0
        %v3266 = vadd.f32 %v3153, %v3265
        %v3267 = vpop.f32.mrb[0].mxu0
        %v3268 = vadd.f32 %v3155, %v3267
        %3269 = vmatprep.mubr.bf16.mxu0 %v723
        %3270 = vmatmul.mubr.bf16.gmra.mrb[0].mxu0 %v722
        %v3271 = vpop.f32.mrb[0].mxu0
        %v3272 = vadd.f32 %v3159, %v3271
        %v3273 = vpop.f32.mrb[0].mxu0
        %v3274 = vadd.f32 %v3161, %v3273
        %v3275 = vpop.f32.mrb[0].mxu0
        %v3276 = vadd.f32 %v3163, %v3275
        %v3277 = vpop.f32.mrb[0].mxu0
        %v3278 = vadd.f32 %v3165, %v3277
        %3279 = vmatprep.mubr.bf16.mxu0 %v727
        %3280 = vmatmul.mubr.bf16.gmra.mrb[0].mxu0 %v726
        %v3281 = vpop.f32.mrb[0].mxu0
        %v3282 = vadd.f32 %v3169, %v3281
        %v3283 = vpop.f32.mrb[0].mxu0
        %v3284 = vadd.f32 %v3171, %v3283
        %v3285 = vpop.f32.mrb[0].mxu0
        %v3286 = vadd.f32 %v3173, %v3285
        %v3287 = vpop.f32.mrb[0].mxu0
        %v3288 = vadd.f32 %v3175, %v3287
        %3289 = vmatprep.mubr.bf16.mxu0 %v731
        %3290 = vmatmul.mubr.bf16.gmra.mrb[0].mxu0 %v730
        %v3291 = vpop.f32.mrb[0].mxu0
        %v3292 = vadd.f32 %v3179, %v3291
        %v3293 = vpop.f32.mrb[0].mxu0
        %v3294 = vadd.f32 %v3181, %v3293
        %v3295 = vpop.f32.mrb[0].mxu0
        %v3296 = vadd.f32 %v3183, %v3295
        %v3297 = vpop.f32.mrb[0].mxu0
        %v3298 = vadd.f32 %v3185, %v3297
        %3299 = vmatprep.mubr.bf16.mxu0 %v735
        %3300 = vmatmul.mubr.bf16.gmra.mrb[0].mxu0 %v734
        %v3301 = vpop.f32.mrb[0].mxu0
        %v3302 = vadd.f32 %v3189, %v3301
        %v3303 = vpop.f32.mrb[0].mxu0
        %v3304 = vadd.f32 %v3191, %v3303
        %v3305 = vpop.f32.mrb[0].mxu0
        %v3306 = vadd.f32 %v3193, %v3305
        %v3307 = vpop.f32.mrb[0].mxu0
        %v3308 = vadd.f32 %v3195, %v3307
        %3309 = vmatprep.mubr.bf16.mxu0 %v739
        %3310 = vmatmul.mubr.bf16.gmra.mrb[0].mxu0 %v738
        %v3311 = vpop.f32.mrb[0].mxu0
        %v3312 = vadd.f32 %v3199, %v3311
        %v3313 = vpop.f32.mrb[0].mxu0
        %v3314 = vadd.f32 %v3201, %v3313
        %v3315 = vpop.f32.mrb[0].mxu0
        %v3316 = vadd.f32 %v3203, %v3315
        %v3317 = vpop.f32.mrb[0].mxu0
        %v3318 = vadd.f32 %v3205, %v3317
        %3319 = vdwg.mxu0
        %v3320 = vld [vmem:[#allocation11] sm:$0xff]
        %v3321 = vld [vmem:[#allocation11 + $0x8] sm:$0xff]
        %v3322 = vld [vmem:[#allocation11 + $0x10] sm:$0xff]
        %v3323 = vld [vmem:[#allocation11 + $0x18] sm:$0xff]
        %v3324 = vld [vmem:[#allocation11 + $0x20] sm:$0xff]
        %v3325 = vld [vmem:[#allocation11 + $0x28] sm:$0xff]
        %v3326 = vld [vmem:[#allocation11 + $0x30] sm:$0xff]
        %v3327 = vld [vmem:[#allocation11 + $0x38] sm:$0xff]
        %v3328 = vld [vmem:[#allocation11 + $0x40] sm:$0xff]
        %v3329 = vld [vmem:[#allocation11 + $0x48] sm:$0xff]
        %v3330 = vld [vmem:[#allocation11 + $0x50] sm:$0xff]
        %v3331 = vld [vmem:[#allocation11 + $0x58] sm:$0xff]
        %v3332 = vld [vmem:[#allocation11 + $0x60] sm:$0xff]
        %v3333 = vld [vmem:[#allocation11 + $0x68] sm:$0xff]
        %v3334 = vld [vmem:[#allocation11 + $0x70] sm:$0xff]
        %v3335 = vld [vmem:[#allocation11 + $0x78] sm:$0xff]
        %v3336 = vld [vmem:[#allocation11 + $0x80] sm:$0xff]
        %v3337 = vld [vmem:[#allocation11 + $0x88] sm:$0xff]
        %v3338 = vld [vmem:[#allocation11 + $0x90] sm:$0xff]
        %v3339 = vld [vmem:[#allocation11 + $0x98] sm:$0xff]
        %v3340 = vld [vmem:[#allocation11 + $0xa0] sm:$0xff]
        %v3341 = vld [vmem:[#allocation11 + $0xa8] sm:$0xff]
        %v3342 = vld [vmem:[#allocation11 + $0xb0] sm:$0xff]
        %v3343 = vld [vmem:[#allocation11 + $0xb8] sm:$0xff]
        %v3344 = vld [vmem:[#allocation11 + $0xc0] sm:$0xff]
        %v3345 = vld [vmem:[#allocation11 + $0xc8] sm:$0xff]
        %v3346 = vld [vmem:[#allocation11 + $0xd0] sm:$0xff]
        %v3347 = vld [vmem:[#allocation11 + $0xd8] sm:$0xff]
        %v3348 = vld [vmem:[#allocation11 + $0xe0] sm:$0xff]
        %v3349 = vld [vmem:[#allocation11 + $0xe8] sm:$0xff]
        %v3350 = vld [vmem:[#allocation11 + $0xf0] sm:$0xff]
        %v3351 = vld [vmem:[#allocation11 + $0xf8] sm:$0xff]
        %v3352 = vld [vmem:[#allocation11 + $0x100] sm:$0xff]
        %v3353 = vld [vmem:[#allocation11 + $0x108] sm:$0xff]
        %v3354 = vld [vmem:[#allocation11 + $0x110] sm:$0xff]
        %v3355 = vld [vmem:[#allocation11 + $0x118] sm:$0xff]
        %v3356 = vld [vmem:[#allocation11 + $0x120] sm:$0xff]
        %v3357 = vld [vmem:[#allocation11 + $0x128] sm:$0xff]
        %v3358 = vld [vmem:[#allocation11 + $0x130] sm:$0xff]
        %v3359 = vld [vmem:[#allocation11 + $0x138] sm:$0xff]
        %v3360 = vld [vmem:[#allocation11 + $0x140] sm:$0xff]
        %v3361 = vld [vmem:[#allocation11 + $0x148] sm:$0xff]
        %v3362 = vld [vmem:[#allocation11 + $0x150] sm:$0xff]
        %v3363 = vld [vmem:[#allocation11 + $0x158] sm:$0xff]
        %v3364 = vld [vmem:[#allocation11 + $0x160] sm:$0xff]
        %v3365 = vld [vmem:[#allocation11 + $0x168] sm:$0xff]
        %v3366 = vld [vmem:[#allocation11 + $0x170] sm:$0xff]
        %v3367 = vld [vmem:[#allocation11 + $0x178] sm:$0xff]
        %v3368 = vld [vmem:[#allocation11 + $0x180] sm:$0xff]
        %v3369 = vld [vmem:[#allocation11 + $0x188] sm:$0xff]
        %v3370 = vld [vmem:[#allocation11 + $0x190] sm:$0xff]
        %v3371 = vld [vmem:[#allocation11 + $0x198] sm:$0xff]
        %v3372 = vld [vmem:[#allocation11 + $0x1a0] sm:$0xff]
        %v3373 = vld [vmem:[#allocation11 + $0x1a8] sm:$0xff]
        %v3374 = vld [vmem:[#allocation11 + $0x1b0] sm:$0xff]
        %v3375 = vld [vmem:[#allocation11 + $0x1b8] sm:$0xff]
        %v3376 = vld [vmem:[#allocation11 + $0x1c0] sm:$0xff]
        %v3377 = vld [vmem:[#allocation11 + $0x1c8] sm:$0xff]
        %v3378 = vld [vmem:[#allocation11 + $0x1d0] sm:$0xff]
        %v3379 = vld [vmem:[#allocation11 + $0x1d8] sm:$0xff]
        %v3380 = vld [vmem:[#allocation11 + $0x1e0] sm:$0xff]
        %v3381 = vld [vmem:[#allocation11 + $0x1e8] sm:$0xff]
        %v3382 = vld [vmem:[#allocation11 + $0x1f0] sm:$0xff]
        %v3383 = vld [vmem:[#allocation11 + $0x1f8] sm:$0xff]
        %v3384 = vld [vmem:[#allocation11 + $0x200] sm:$0xff]
        %v3385 = vld [vmem:[#allocation11 + $0x208] sm:$0xff]
        %v3386 = vld [vmem:[#allocation11 + $0x210] sm:$0xff]
        %v3387 = vld [vmem:[#allocation11 + $0x218] sm:$0xff]
        %v3388 = vld [vmem:[#allocation11 + $0x220] sm:$0xff]
        %v3389 = vld [vmem:[#allocation11 + $0x228] sm:$0xff]
        %v3390 = vld [vmem:[#allocation11 + $0x230] sm:$0xff]
        %v3391 = vld [vmem:[#allocation11 + $0x238] sm:$0xff]
        %v3392 = vld [vmem:[#allocation11 + $0x240] sm:$0xff]
        %v3393 = vld [vmem:[#allocation11 + $0x248] sm:$0xff]
        %v3394 = vld [vmem:[#allocation11 + $0x250] sm:$0xff]
        %v3395 = vld [vmem:[#allocation11 + $0x258] sm:$0xff]
        %v3396 = vld [vmem:[#allocation11 + $0x260] sm:$0xff]
        %v3397 = vld [vmem:[#allocation11 + $0x268] sm:$0xff]
        %v3398 = vld [vmem:[#allocation11 + $0x270] sm:$0xff]
        %v3399 = vld [vmem:[#allocation11 + $0x278] sm:$0xff]
        %v3400 = vld [vmem:[#allocation11 + $0x280] sm:$0xff]
        %v3401 = vld [vmem:[#allocation11 + $0x288] sm:$0xff]
        %v3402 = vld [vmem:[#allocation11 + $0x290] sm:$0xff]
        %v3403 = vld [vmem:[#allocation11 + $0x298] sm:$0xff]
        %v3404 = vld [vmem:[#allocation11 + $0x2a0] sm:$0xff]
        %v3405 = vld [vmem:[#allocation11 + $0x2a8] sm:$0xff]
        %v3406 = vld [vmem:[#allocation11 + $0x2b0] sm:$0xff]
        %v3407 = vld [vmem:[#allocation11 + $0x2b8] sm:$0xff]
        %v3408 = vld [vmem:[#allocation11 + $0x2c0] sm:$0xff]
        %v3409 = vld [vmem:[#allocation11 + $0x2c8] sm:$0xff]
        %v3410 = vld [vmem:[#allocation11 + $0x2d0] sm:$0xff]
        %v3411 = vld [vmem:[#allocation11 + $0x2d8] sm:$0xff]
        %v3412 = vld [vmem:[#allocation11 + $0x2e0] sm:$0xff]
        %v3413 = vld [vmem:[#allocation11 + $0x2e8] sm:$0xff]
        %v3414 = vld [vmem:[#allocation11 + $0x2f0] sm:$0xff]
        %v3415 = vld [vmem:[#allocation11 + $0x2f8] sm:$0xff]
        %v3416 = vld [vmem:[#allocation11 + $0x300] sm:$0xff]
        %v3417 = vld [vmem:[#allocation11 + $0x308] sm:$0xff]
        %v3418 = vld [vmem:[#allocation11 + $0x310] sm:$0xff]
        %v3419 = vld [vmem:[#allocation11 + $0x318] sm:$0xff]
        %v3420 = vld [vmem:[#allocation11 + $0x320] sm:$0xff]
        %v3421 = vld [vmem:[#allocation11 + $0x328] sm:$0xff]
        %v3422 = vld [vmem:[#allocation11 + $0x330] sm:$0xff]
        %v3423 = vld [vmem:[#allocation11 + $0x338] sm:$0xff]
        %v3424 = vld [vmem:[#allocation11 + $0x340] sm:$0xff]
        %v3425 = vld [vmem:[#allocation11 + $0x348] sm:$0xff]
        %v3426 = vld [vmem:[#allocation11 + $0x350] sm:$0xff]
        %v3427 = vld [vmem:[#allocation11 + $0x358] sm:$0xff]
        %v3428 = vld [vmem:[#allocation11 + $0x360] sm:$0xff]
        %v3429 = vld [vmem:[#allocation11 + $0x368] sm:$0xff]
        %v3430 = vld [vmem:[#allocation11 + $0x370] sm:$0xff]
        %v3431 = vld [vmem:[#allocation11 + $0x378] sm:$0xff]
        %v3432 = vld [vmem:[#allocation11 + $0x380] sm:$0xff]
        %v3433 = vld [vmem:[#allocation11 + $0x388] sm:$0xff]
        %v3434 = vld [vmem:[#allocation11 + $0x390] sm:$0xff]
        %v3435 = vld [vmem:[#allocation11 + $0x398] sm:$0xff]
        %v3436 = vld [vmem:[#allocation11 + $0x3a0] sm:$0xff]
        %v3437 = vld [vmem:[#allocation11 + $0x3a8] sm:$0xff]
        %v3438 = vld [vmem:[#allocation11 + $0x3b0] sm:$0xff]
        %v3439 = vld [vmem:[#allocation11 + $0x3b8] sm:$0xff]
        %v3440 = vld [vmem:[#allocation11 + $0x3c0] sm:$0xff]
        %v3441 = vld [vmem:[#allocation11 + $0x3c8] sm:$0xff]
        %v3442 = vld [vmem:[#allocation11 + $0x3d0] sm:$0xff]
        %v3443 = vld [vmem:[#allocation11 + $0x3d8] sm:$0xff]
        %v3444 = vld [vmem:[#allocation11 + $0x3e0] sm:$0xff]
        %v3445 = vld [vmem:[#allocation11 + $0x3e8] sm:$0xff]
        %v3446 = vld [vmem:[#allocation11 + $0x3f0] sm:$0xff]
        %v3447 = vld [vmem:[#allocation11 + $0x3f8] sm:$0xff]
        %v3448 = vld [vmem:[%s8] sm:$0xf]
        %v3450 = vlaneseq
        %v3451 = vshrl.u32 %v3450, 7
        %v3452 = vsub.s32 0, %v3451
        %v3453 = vrot.slane %v3448, %v3452
        %v3454 = vlaneseq
        %v3455 = vshrl.u32 %v3454, 7
        %v3456 = vsub.s32 1, %v3455
        %v3457 = vrot.slane %v3448, %v3456
        %v3458 = vlaneseq
        %v3459 = vshrl.u32 %v3458, 7
        %v3460 = vsub.s32 2, %v3459
        %v3461 = vrot.slane %v3448, %v3460
        %v3462 = vlaneseq
        %v3463 = vshrl.u32 %v3462, 7
        %v3464 = vsub.s32 3, %v3463
        %v3465 = vrot.slane %v3448, %v3464
        %v3598 = vunpack.c.l.b16 %v3320
        %v3599 = vunpack.c.h.b16 %v3320
        %v3600 = vunpack.c.l.b16 %v3321
        %v3601 = vunpack.c.h.b16 %v3321
        %v3602 = vunpack.c.l.b16 %v3322
        %v3603 = vunpack.c.h.b16 %v3322
        %v3604 = vunpack.c.l.b16 %v3323
        %v3605 = vunpack.c.h.b16 %v3323
        %v3606 = vunpack.c.l.b16 %v3324
        %v3607 = vunpack.c.h.b16 %v3324
        %v3608 = vunpack.c.l.b16 %v3325
        %v3609 = vunpack.c.h.b16 %v3325
        %v3610 = vunpack.c.l.b16 %v3326
        %v3611 = vunpack.c.h.b16 %v3326
        %v3612 = vunpack.c.l.b16 %v3327
        %v3613 = vunpack.c.h.b16 %v3327
        %v3614 = vunpack.c.l.b16 %v3328
        %v3615 = vunpack.c.h.b16 %v3328
        %v3616 = vunpack.c.l.b16 %v3329
        %v3617 = vunpack.c.h.b16 %v3329
        %v3618 = vunpack.c.l.b16 %v3330
        %v3619 = vunpack.c.h.b16 %v3330
        %v3620 = vunpack.c.l.b16 %v3331
        %v3621 = vunpack.c.h.b16 %v3331
        %v3622 = vunpack.c.l.b16 %v3332
        %v3623 = vunpack.c.h.b16 %v3332
        %v3624 = vunpack.c.l.b16 %v3333
        %v3625 = vunpack.c.h.b16 %v3333
        %v3626 = vunpack.c.l.b16 %v3334
        %v3627 = vunpack.c.h.b16 %v3334
        %v3628 = vunpack.c.l.b16 %v3335
        %v3629 = vunpack.c.h.b16 %v3335
        %v3630 = vunpack.c.l.b16 %v3336
        %v3631 = vunpack.c.h.b16 %v3336
        %v3632 = vunpack.c.l.b16 %v3337
        %v3633 = vunpack.c.h.b16 %v3337
        %v3634 = vunpack.c.l.b16 %v3338
        %v3635 = vunpack.c.h.b16 %v3338
        %v3636 = vunpack.c.l.b16 %v3339
        %v3637 = vunpack.c.h.b16 %v3339
        %v3638 = vunpack.c.l.b16 %v3340
        %v3639 = vunpack.c.h.b16 %v3340
        %v3640 = vunpack.c.l.b16 %v3341
        %v3641 = vunpack.c.h.b16 %v3341
        %v3642 = vunpack.c.l.b16 %v3342
        %v3643 = vunpack.c.h.b16 %v3342
        %v3644 = vunpack.c.l.b16 %v3343
        %v3645 = vunpack.c.h.b16 %v3343
        %v3646 = vunpack.c.l.b16 %v3344
        %v3647 = vunpack.c.h.b16 %v3344
        %v3648 = vunpack.c.l.b16 %v3345
        %v3649 = vunpack.c.h.b16 %v3345
        %v3650 = vunpack.c.l.b16 %v3346
        %v3651 = vunpack.c.h.b16 %v3346
        %v3652 = vunpack.c.l.b16 %v3347
        %v3653 = vunpack.c.h.b16 %v3347
        %v3654 = vunpack.c.l.b16 %v3348
        %v3655 = vunpack.c.h.b16 %v3348
        %v3656 = vunpack.c.l.b16 %v3349
        %v3657 = vunpack.c.h.b16 %v3349
        %v3658 = vunpack.c.l.b16 %v3350
        %v3659 = vunpack.c.h.b16 %v3350
        %v3660 = vunpack.c.l.b16 %v3351
        %v3661 = vunpack.c.h.b16 %v3351
        %v3662 = vunpack.c.l.b16 %v3352
        %v3663 = vunpack.c.h.b16 %v3352
        %v3664 = vunpack.c.l.b16 %v3353
        %v3665 = vunpack.c.h.b16 %v3353
        %v3666 = vunpack.c.l.b16 %v3354
        %v3667 = vunpack.c.h.b16 %v3354
        %v3668 = vunpack.c.l.b16 %v3355
        %v3669 = vunpack.c.h.b16 %v3355
        %v3670 = vunpack.c.l.b16 %v3356
        %v3671 = vunpack.c.h.b16 %v3356
        %v3672 = vunpack.c.l.b16 %v3357
        %v3673 = vunpack.c.h.b16 %v3357
        %v3674 = vunpack.c.l.b16 %v3358
        %v3675 = vunpack.c.h.b16 %v3358
        %v3676 = vunpack.c.l.b16 %v3359
        %v3677 = vunpack.c.h.b16 %v3359
        %v3678 = vunpack.c.l.b16 %v3360
        %v3679 = vunpack.c.h.b16 %v3360
        %v3680 = vunpack.c.l.b16 %v3361
        %v3681 = vunpack.c.h.b16 %v3361
        %v3682 = vunpack.c.l.b16 %v3362
        %v3683 = vunpack.c.h.b16 %v3362
        %v3684 = vunpack.c.l.b16 %v3363
        %v3685 = vunpack.c.h.b16 %v3363
        %v3686 = vunpack.c.l.b16 %v3364
        %v3687 = vunpack.c.h.b16 %v3364
        %v3688 = vunpack.c.l.b16 %v3365
        %v3689 = vunpack.c.h.b16 %v3365
        %v3690 = vunpack.c.l.b16 %v3366
        %v3691 = vunpack.c.h.b16 %v3366
        %v3692 = vunpack.c.l.b16 %v3367
        %v3693 = vunpack.c.h.b16 %v3367
        %v3694 = vunpack.c.l.b16 %v3368
        %v3695 = vunpack.c.h.b16 %v3368
        %v3696 = vunpack.c.l.b16 %v3369
        %v3697 = vunpack.c.h.b16 %v3369
        %v3698 = vunpack.c.l.b16 %v3370
        %v3699 = vunpack.c.h.b16 %v3370
        %v3700 = vunpack.c.l.b16 %v3371
        %v3701 = vunpack.c.h.b16 %v3371
        %v3702 = vunpack.c.l.b16 %v3372
        %v3703 = vunpack.c.h.b16 %v3372
        %v3704 = vunpack.c.l.b16 %v3373
        %v3705 = vunpack.c.h.b16 %v3373
        %v3706 = vunpack.c.l.b16 %v3374
        %v3707 = vunpack.c.h.b16 %v3374
        %v3708 = vunpack.c.l.b16 %v3375
        %v3709 = vunpack.c.h.b16 %v3375
        %v3710 = vunpack.c.l.b16 %v3376
        %v3711 = vunpack.c.h.b16 %v3376
        %v3712 = vunpack.c.l.b16 %v3377
        %v3713 = vunpack.c.h.b16 %v3377
        %v3714 = vunpack.c.l.b16 %v3378
        %v3715 = vunpack.c.h.b16 %v3378
        %v3716 = vunpack.c.l.b16 %v3379
        %v3717 = vunpack.c.h.b16 %v3379
        %v3718 = vunpack.c.l.b16 %v3380
        %v3719 = vunpack.c.h.b16 %v3380
        %v3720 = vunpack.c.l.b16 %v3381
        %v3721 = vunpack.c.h.b16 %v3381
        %v3722 = vunpack.c.l.b16 %v3382
        %v3723 = vunpack.c.h.b16 %v3382
        %v3724 = vunpack.c.l.b16 %v3383
        %v3725 = vunpack.c.h.b16 %v3383
        %v3726 = vunpack.c.l.b16 %v3384
        %v3727 = vunpack.c.h.b16 %v3384
        %v3728 = vunpack.c.l.b16 %v3385
        %v3729 = vunpack.c.h.b16 %v3385
        %v3730 = vunpack.c.l.b16 %v3386
        %v3731 = vunpack.c.h.b16 %v3386
        %v3732 = vunpack.c.l.b16 %v3387
        %v3733 = vunpack.c.h.b16 %v3387
        %v3734 = vunpack.c.l.b16 %v3388
        %v3735 = vunpack.c.h.b16 %v3388
        %v3736 = vunpack.c.l.b16 %v3389
        %v3737 = vunpack.c.h.b16 %v3389
        %v3738 = vunpack.c.l.b16 %v3390
        %v3739 = vunpack.c.h.b16 %v3390
        %v3740 = vunpack.c.l.b16 %v3391
        %v3741 = vunpack.c.h.b16 %v3391
        %v3742 = vunpack.c.l.b16 %v3392
        %v3743 = vunpack.c.h.b16 %v3392
        %v3744 = vunpack.c.l.b16 %v3393
        %v3745 = vunpack.c.h.b16 %v3393
        %v3746 = vunpack.c.l.b16 %v3394
        %v3747 = vunpack.c.h.b16 %v3394
        %v3748 = vunpack.c.l.b16 %v3395
        %v3749 = vunpack.c.h.b16 %v3395
        %v3750 = vunpack.c.l.b16 %v3396
        %v3751 = vunpack.c.h.b16 %v3396
        %v3752 = vunpack.c.l.b16 %v3397
        %v3753 = vunpack.c.h.b16 %v3397
        %v3754 = vunpack.c.l.b16 %v3398
        %v3755 = vunpack.c.h.b16 %v3398
        %v3756 = vunpack.c.l.b16 %v3399
        %v3757 = vunpack.c.h.b16 %v3399
        %v3758 = vunpack.c.l.b16 %v3400
        %v3759 = vunpack.c.h.b16 %v3400
        %v3760 = vunpack.c.l.b16 %v3401
        %v3761 = vunpack.c.h.b16 %v3401
        %v3762 = vunpack.c.l.b16 %v3402
        %v3763 = vunpack.c.h.b16 %v3402
        %v3764 = vunpack.c.l.b16 %v3403
        %v3765 = vunpack.c.h.b16 %v3403
        %v3766 = vunpack.c.l.b16 %v3404
        %v3767 = vunpack.c.h.b16 %v3404
        %v3768 = vunpack.c.l.b16 %v3405
        %v3769 = vunpack.c.h.b16 %v3405
        %v3770 = vunpack.c.l.b16 %v3406
        %v3771 = vunpack.c.h.b16 %v3406
        %v3772 = vunpack.c.l.b16 %v3407
        %v3773 = vunpack.c.h.b16 %v3407
        %v3774 = vunpack.c.l.b16 %v3408
        %v3775 = vunpack.c.h.b16 %v3408
        %v3776 = vunpack.c.l.b16 %v3409
        %v3777 = vunpack.c.h.b16 %v3409
        %v3778 = vunpack.c.l.b16 %v3410
        %v3779 = vunpack.c.h.b16 %v3410
        %v3780 = vunpack.c.l.b16 %v3411
        %v3781 = vunpack.c.h.b16 %v3411
        %v3782 = vunpack.c.l.b16 %v3412
        %v3783 = vunpack.c.h.b16 %v3412
        %v3784 = vunpack.c.l.b16 %v3413
        %v3785 = vunpack.c.h.b16 %v3413
        %v3786 = vunpack.c.l.b16 %v3414
        %v3787 = vunpack.c.h.b16 %v3414
        %v3788 = vunpack.c.l.b16 %v3415
        %v3789 = vunpack.c.h.b16 %v3415
        %v3790 = vunpack.c.l.b16 %v3416
        %v3791 = vunpack.c.h.b16 %v3416
        %v3792 = vunpack.c.l.b16 %v3417
        %v3793 = vunpack.c.h.b16 %v3417
        %v3794 = vunpack.c.l.b16 %v3418
        %v3795 = vunpack.c.h.b16 %v3418
        %v3796 = vunpack.c.l.b16 %v3419
        %v3797 = vunpack.c.h.b16 %v3419
        %v3798 = vunpack.c.l.b16 %v3420
        %v3799 = vunpack.c.h.b16 %v3420
        %v3800 = vunpack.c.l.b16 %v3421
        %v3801 = vunpack.c.h.b16 %v3421
        %v3802 = vunpack.c.l.b16 %v3422
        %v3803 = vunpack.c.h.b16 %v3422
        %v3804 = vunpack.c.l.b16 %v3423
        %v3805 = vunpack.c.h.b16 %v3423
        %v3806 = vunpack.c.l.b16 %v3424
        %v3807 = vunpack.c.h.b16 %v3424
        %v3808 = vunpack.c.l.b16 %v3425
        %v3809 = vunpack.c.h.b16 %v3425
        %v3810 = vunpack.c.l.b16 %v3426
        %v3811 = vunpack.c.h.b16 %v3426
        %v3812 = vunpack.c.l.b16 %v3427
        %v3813 = vunpack.c.h.b16 %v3427
        %v3814 = vunpack.c.l.b16 %v3428
        %v3815 = vunpack.c.h.b16 %v3428
        %v3816 = vunpack.c.l.b16 %v3429
        %v3817 = vunpack.c.h.b16 %v3429
        %v3818 = vunpack.c.l.b16 %v3430
        %v3819 = vunpack.c.h.b16 %v3430
        %v3820 = vunpack.c.l.b16 %v3431
        %v3821 = vunpack.c.h.b16 %v3431
        %v3822 = vunpack.c.l.b16 %v3432
        %v3823 = vunpack.c.h.b16 %v3432
        %v3824 = vunpack.c.l.b16 %v3433
        %v3825 = vunpack.c.h.b16 %v3433
        %v3826 = vunpack.c.l.b16 %v3434
        %v3827 = vunpack.c.h.b16 %v3434
        %v3828 = vunpack.c.l.b16 %v3435
        %v3829 = vunpack.c.h.b16 %v3435
        %v3830 = vunpack.c.l.b16 %v3436
        %v3831 = vunpack.c.h.b16 %v3436
        %v3832 = vunpack.c.l.b16 %v3437
        %v3833 = vunpack.c.h.b16 %v3437
        %v3834 = vunpack.c.l.b16 %v3438
        %v3835 = vunpack.c.h.b16 %v3438
        %v3836 = vunpack.c.l.b16 %v3439
        %v3837 = vunpack.c.h.b16 %v3439
        %v3838 = vunpack.c.l.b16 %v3440
        %v3839 = vunpack.c.h.b16 %v3440
        %v3840 = vunpack.c.l.b16 %v3441
        %v3841 = vunpack.c.h.b16 %v3441
        %v3842 = vunpack.c.l.b16 %v3442
        %v3843 = vunpack.c.h.b16 %v3442
        %v3844 = vunpack.c.l.b16 %v3443
        %v3845 = vunpack.c.h.b16 %v3443
        %v3846 = vunpack.c.l.b16 %v3444
        %v3847 = vunpack.c.h.b16 %v3444
        %v3848 = vunpack.c.l.b16 %v3445
        %v3849 = vunpack.c.h.b16 %v3445
        %v3850 = vunpack.c.l.b16 %v3446
        %v3851 = vunpack.c.h.b16 %v3446
        %v3852 = vunpack.c.l.b16 %v3447
        %v3853 = vunpack.c.h.b16 %v3447
        %v3854 = vpack.c.b16 %v3602, %v3598
        %v3855 = vpack.c.b16 %v3603, %v3599
        %v3856 = vpack.c.b16 %v3604, %v3600
        %v3857 = vpack.c.b16 %v3605, %v3601
        %v3858 = vpack.c.b16 %v3610, %v3606
        %v3859 = vpack.c.b16 %v3611, %v3607
        %v3860 = vpack.c.b16 %v3612, %v3608
        %v3861 = vpack.c.b16 %v3613, %v3609
        %v3862 = vpack.c.b16 %v3618, %v3614
        %v3863 = vpack.c.b16 %v3619, %v3615
        %v3864 = vpack.c.b16 %v3620, %v3616
        %v3865 = vpack.c.b16 %v3621, %v3617
        %v3866 = vpack.c.b16 %v3626, %v3622
        %v3867 = vpack.c.b16 %v3627, %v3623
        %v3868 = vpack.c.b16 %v3628, %v3624
        %v3869 = vpack.c.b16 %v3629, %v3625
        %v3870 = vpack.c.b16 %v3634, %v3630
        %v3871 = vpack.c.b16 %v3635, %v3631
        %v3872 = vpack.c.b16 %v3636, %v3632
        %v3873 = vpack.c.b16 %v3637, %v3633
        %v3874 = vpack.c.b16 %v3642, %v3638
        %v3875 = vpack.c.b16 %v3643, %v3639
        %v3876 = vpack.c.b16 %v3644, %v3640
        %v3877 = vpack.c.b16 %v3645, %v3641
        %v3878 = vpack.c.b16 %v3650, %v3646
        %v3879 = vpack.c.b16 %v3651, %v3647
        %v3880 = vpack.c.b16 %v3652, %v3648
        %v3881 = vpack.c.b16 %v3653, %v3649
        %v3882 = vpack.c.b16 %v3658, %v3654
        %v3883 = vpack.c.b16 %v3659, %v3655
        %v3884 = vpack.c.b16 %v3660, %v3656
        %v3885 = vpack.c.b16 %v3661, %v3657
        %v3886 = vpack.c.b16 %v3666, %v3662
        %v3887 = vpack.c.b16 %v3667, %v3663
        %v3888 = vpack.c.b16 %v3668, %v3664
        %v3889 = vpack.c.b16 %v3669, %v3665
        %v3890 = vpack.c.b16 %v3674, %v3670
        %v3891 = vpack.c.b16 %v3675, %v3671
        %v3892 = vpack.c.b16 %v3676, %v3672
        %v3893 = vpack.c.b16 %v3677, %v3673
        %v3894 = vpack.c.b16 %v3682, %v3678
        %v3895 = vpack.c.b16 %v3683, %v3679
        %v3896 = vpack.c.b16 %v3684, %v3680
        %v3897 = vpack.c.b16 %v3685, %v3681
        %v3898 = vpack.c.b16 %v3690, %v3686
        %v3899 = vpack.c.b16 %v3691, %v3687
        %v3900 = vpack.c.b16 %v3692, %v3688
        %v3901 = vpack.c.b16 %v3693, %v3689
        %v3902 = vpack.c.b16 %v3698, %v3694
        %v3903 = vpack.c.b16 %v3699, %v3695
        %v3904 = vpack.c.b16 %v3700, %v3696
        %v3905 = vpack.c.b16 %v3701, %v3697
        %v3906 = vpack.c.b16 %v3706, %v3702
        %v3907 = vpack.c.b16 %v3707, %v3703
        %v3908 = vpack.c.b16 %v3708, %v3704
        %v3909 = vpack.c.b16 %v3709, %v3705
        %v3910 = vpack.c.b16 %v3714, %v3710
        %v3911 = vpack.c.b16 %v3715, %v3711
        %v3912 = vpack.c.b16 %v3716, %v3712
        %v3913 = vpack.c.b16 %v3717, %v3713
        %v3914 = vpack.c.b16 %v3722, %v3718
        %v3915 = vpack.c.b16 %v3723, %v3719
        %v3916 = vpack.c.b16 %v3724, %v3720
        %v3917 = vpack.c.b16 %v3725, %v3721
        %v3918 = vpack.c.b16 %v3730, %v3726
        %v3919 = vpack.c.b16 %v3731, %v3727
        %v3920 = vpack.c.b16 %v3732, %v3728
        %v3921 = vpack.c.b16 %v3733, %v3729
        %v3922 = vpack.c.b16 %v3738, %v3734
        %v3923 = vpack.c.b16 %v3739, %v3735
        %v3924 = vpack.c.b16 %v3740, %v3736
        %v3925 = vpack.c.b16 %v3741, %v3737
        %v3926 = vpack.c.b16 %v3746, %v3742
        %v3927 = vpack.c.b16 %v3747, %v3743
        %v3928 = vpack.c.b16 %v3748, %v3744
        %v3929 = vpack.c.b16 %v3749, %v3745
        %v3930 = vpack.c.b16 %v3754, %v3750
        %v3931 = vpack.c.b16 %v3755, %v3751
        %v3932 = vpack.c.b16 %v3756, %v3752
        %v3933 = vpack.c.b16 %v3757, %v3753
        %v3934 = vpack.c.b16 %v3762, %v3758
        %v3935 = vpack.c.b16 %v3763, %v3759
        %v3936 = vpack.c.b16 %v3764, %v3760
        %v3937 = vpack.c.b16 %v3765, %v3761
        %v3938 = vpack.c.b16 %v3770, %v3766
        %v3939 = vpack.c.b16 %v3771, %v3767
        %v3940 = vpack.c.b16 %v3772, %v3768
        %v3941 = vpack.c.b16 %v3773, %v3769
        %v3942 = vpack.c.b16 %v3778, %v3774
        %v3943 = vpack.c.b16 %v3779, %v3775
        %v3944 = vpack.c.b16 %v3780, %v3776
        %v3945 = vpack.c.b16 %v3781, %v3777
        %v3946 = vpack.c.b16 %v3786, %v3782
        %v3947 = vpack.c.b16 %v3787, %v3783
        %v3948 = vpack.c.b16 %v3788, %v3784
        %v3949 = vpack.c.b16 %v3789, %v3785
        %v3950 = vpack.c.b16 %v3794, %v3790
        %v3951 = vpack.c.b16 %v3795, %v3791
        %v3952 = vpack.c.b16 %v3796, %v3792
        %v3953 = vpack.c.b16 %v3797, %v3793
        %v3954 = vpack.c.b16 %v3802, %v3798
        %v3955 = vpack.c.b16 %v3803, %v3799
        %v3956 = vpack.c.b16 %v3804, %v3800
        %v3957 = vpack.c.b16 %v3805, %v3801
        %v3958 = vpack.c.b16 %v3810, %v3806
        %v3959 = vpack.c.b16 %v3811, %v3807
        %v3960 = vpack.c.b16 %v3812, %v3808
        %v3961 = vpack.c.b16 %v3813, %v3809
        %v3962 = vpack.c.b16 %v3818, %v3814
        %v3963 = vpack.c.b16 %v3819, %v3815
        %v3964 = vpack.c.b16 %v3820, %v3816
        %v3965 = vpack.c.b16 %v3821, %v3817
        %v3966 = vpack.c.b16 %v3826, %v3822
        %v3967 = vpack.c.b16 %v3827, %v3823
        %v3968 = vpack.c.b16 %v3828, %v3824
        %v3969 = vpack.c.b16 %v3829, %v3825
        %v3970 = vpack.c.b16 %v3834, %v3830
        %v3971 = vpack.c.b16 %v3835, %v3831
        %v3972 = vpack.c.b16 %v3836, %v3832
        %v3973 = vpack.c.b16 %v3837, %v3833
        %v3974 = vpack.c.b16 %v3842, %v3838
        %v3975 = vpack.c.b16 %v3843, %v3839
        %v3976 = vpack.c.b16 %v3844, %v3840
        %v3977 = vpack.c.b16 %v3845, %v3841
        %v3978 = vpack.c.b16 %v3850, %v3846
        %v3979 = vpack.c.b16 %v3851, %v3847
        %v3980 = vpack.c.b16 %v3852, %v3848
        %v3981 = vpack.c.b16 %v3853, %v3849
        %4110 = vmatprep.subr.bf16.mxu0 %v3855
        %4111 = vmatpush1.bf16.msra.mxu0 %v3854
        %4112 = vmatprep.subr.bf16.mxu0 %v3859
        %4113 = vmatpush1.bf16.msra.mxu0 %v3858
        %4114 = vmatprep.subr.bf16.mxu0 %v3863
        %4115 = vmatpush1.bf16.msra.mxu0 %v3862
        %4116 = vmatprep.subr.bf16.mxu0 %v3867
        %4117 = vmatpush1.bf16.msra.mxu0 %v3866
        %4118 = vmatprep.subr.bf16.mxu0 %v3871
        %4119 = vmatpush1.bf16.msra.mxu0 %v3870
        %4120 = vmatprep.subr.bf16.mxu0 %v3875
        %4121 = vmatpush1.bf16.msra.mxu0 %v3874
        %4122 = vmatprep.subr.bf16.mxu0 %v3879
        %4123 = vmatpush1.bf16.msra.mxu0 %v3878
        %4124 = vmatprep.subr.bf16.mxu0 %v3883
        %4125 = vmatpush1.bf16.msra.mxu0 %v3882
        %4126 = vmatprep.subr.bf16.mxu0 %v3887
        %4127 = vmatpush1.bf16.msra.mxu0 %v3886
        %4128 = vmatprep.subr.bf16.mxu0 %v3891
        %4129 = vmatpush1.bf16.msra.mxu0 %v3890
        %4130 = vmatprep.subr.bf16.mxu0 %v3895
        %4131 = vmatpush1.bf16.msra.mxu0 %v3894
        %4132 = vmatprep.subr.bf16.mxu0 %v3899
        %4133 = vmatpush1.bf16.msra.mxu0 %v3898
        %4134 = vmatprep.subr.bf16.mxu0 %v3903
        %4135 = vmatpush1.bf16.msra.mxu0 %v3902
        %4136 = vmatprep.subr.bf16.mxu0 %v3907
        %4137 = vmatpush1.bf16.msra.mxu0 %v3906
        %4138 = vmatprep.subr.bf16.mxu0 %v3911
        %4139 = vmatpush1.bf16.msra.mxu0 %v3910
        %4140 = vmatprep.subr.bf16.mxu0 %v3915
        %4141 = vmatpush1.bf16.msra.mxu0 %v3914
        %4142 = vmatprep.mubr.bf16.mxu0 %v805
        %4143 = vmatmul.mubr.bf16.gmra.mrb[0].mxu0 %v804
        %v4144 = vpop.f32.mrb[0].mxu0
        %v4145 = vadd.f32 %v3453, %v4144
        %v4146 = vpop.f32.mrb[0].mxu0
        %v4147 = vadd.f32 %v3457, %v4146
        %v4148 = vpop.f32.mrb[0].mxu0
        %v4149 = vadd.f32 %v3453, %v4148
        %v4150 = vpop.f32.mrb[0].mxu0
        %v4151 = vadd.f32 %v3457, %v4150
        %4152 = vmatprep.mubr.bf16.mxu0 %v809
        %4153 = vmatmul.mubr.bf16.gmra.mrb[0].mxu0 %v808
        %v4154 = vpop.f32.mrb[0].mxu0
        %v4155 = vadd.f32 %v3453, %v4154
        %v4156 = vpop.f32.mrb[0].mxu0
        %v4157 = vadd.f32 %v3457, %v4156
        %v4158 = vpop.f32.mrb[0].mxu0
        %v4159 = vadd.f32 %v3453, %v4158
        %v4160 = vpop.f32.mrb[0].mxu0
        %v4161 = vadd.f32 %v3457, %v4160
        %4162 = vmatprep.mubr.bf16.mxu0 %v813
        %4163 = vmatmul.mubr.bf16.gmra.mrb[0].mxu0 %v812
        %v4164 = vpop.f32.mrb[0].mxu0
        %v4165 = vadd.f32 %v3453, %v4164
        %v4166 = vpop.f32.mrb[0].mxu0
        %v4167 = vadd.f32 %v3457, %v4166
        %v4168 = vpop.f32.mrb[0].mxu0
        %v4169 = vadd.f32 %v3453, %v4168
        %v4170 = vpop.f32.mrb[0].mxu0
        %v4171 = vadd.f32 %v3457, %v4170
        %4172 = vmatprep.mubr.bf16.mxu0 %v817
        %4173 = vmatmul.mubr.bf16.gmra.mrb[0].mxu0 %v816
        %v4174 = vpop.f32.mrb[0].mxu0
        %v4175 = vadd.f32 %v3453, %v4174
        %v4176 = vpop.f32.mrb[0].mxu0
        %v4177 = vadd.f32 %v3457, %v4176
        %v4178 = vpop.f32.mrb[0].mxu0
        %v4179 = vadd.f32 %v3453, %v4178
        %v4180 = vpop.f32.mrb[0].mxu0
        %v4181 = vadd.f32 %v3457, %v4180
        %4182 = vmatprep.mubr.bf16.mxu0 %v821
        %4183 = vmatmul.mubr.bf16.gmra.mrb[0].mxu0 %v820
        %v4184 = vpop.f32.mrb[0].mxu0
        %v4185 = vadd.f32 %v3453, %v4184
        %v4186 = vpop.f32.mrb[0].mxu0
        %v4187 = vadd.f32 %v3457, %v4186
        %v4188 = vpop.f32.mrb[0].mxu0
        %v4189 = vadd.f32 %v3453, %v4188
        %v4190 = vpop.f32.mrb[0].mxu0
        %v4191 = vadd.f32 %v3457, %v4190
        %4192 = vmatprep.mubr.bf16.mxu0 %v825
        %4193 = vmatmul.mubr.bf16.gmra.mrb[0].mxu0 %v824
        %v4194 = vpop.f32.mrb[0].mxu0
        %v4195 = vadd.f32 %v3453, %v4194
        %v4196 = vpop.f32.mrb[0].mxu0
        %v4197 = vadd.f32 %v3457, %v4196
        %v4198 = vpop.f32.mrb[0].mxu0
        %v4199 = vadd.f32 %v3453, %v4198
        %v4200 = vpop.f32.mrb[0].mxu0
        %v4201 = vadd.f32 %v3457, %v4200
        %4202 = vmatprep.mubr.bf16.mxu0 %v829
        %4203 = vmatmul.mubr.bf16.gmra.mrb[0].mxu0 %v828
        %v4204 = vpop.f32.mrb[0].mxu0
        %v4205 = vadd.f32 %v3453, %v4204
        %v4206 = vpop.f32.mrb[0].mxu0
        %v4207 = vadd.f32 %v3457, %v4206
        %v4208 = vpop.f32.mrb[0].mxu0
        %v4209 = vadd.f32 %v3453, %v4208
        %v4210 = vpop.f32.mrb[0].mxu0
        %v4211 = vadd.f32 %v3457, %v4210
        %4212 = vmatprep.mubr.bf16.mxu0 %v833
        %4213 = vmatmul.mubr.bf16.gmra.mrb[0].mxu0 %v832
        %v4214 = vpop.f32.mrb[0].mxu0
        %v4215 = vadd.f32 %v3453, %v4214
        %v4216 = vpop.f32.mrb[0].mxu0
        %v4217 = vadd.f32 %v3457, %v4216
        %v4218 = vpop.f32.mrb[0].mxu0
        %v4219 = vadd.f32 %v3453, %v4218
        %v4220 = vpop.f32.mrb[0].mxu0
        %v4221 = vadd.f32 %v3457, %v4220
        %4222 = vdwg.mxu0
        %4223 = vmatprep.subr.bf16.mxu0 %v3919
        %4224 = vmatpush1.bf16.msra.mxu0 %v3918
        %4225 = vmatprep.subr.bf16.mxu0 %v3923
        %4226 = vmatpush1.bf16.msra.mxu0 %v3922
        %4227 = vmatprep.subr.bf16.mxu0 %v3927
        %4228 = vmatpush1.bf16.msra.mxu0 %v3926
        %4229 = vmatprep.subr.bf16.mxu0 %v3931
        %4230 = vmatpush1.bf16.msra.mxu0 %v3930
        %4231 = vmatprep.subr.bf16.mxu0 %v3935
        %4232 = vmatpush1.bf16.msra.mxu0 %v3934
        %4233 = vmatprep.subr.bf16.mxu0 %v3939
        %4234 = vmatpush1.bf16.msra.mxu0 %v3938
        %4235 = vmatprep.subr.bf16.mxu0 %v3943
        %4236 = vmatpush1.bf16.msra.mxu0 %v3942
        %4237 = vmatprep.subr.bf16.mxu0 %v3947
        %4238 = vmatpush1.bf16.msra.mxu0 %v3946
        %4239 = vmatprep.subr.bf16.mxu0 %v3951
        %4240 = vmatpush1.bf16.msra.mxu0 %v3950
        %4241 = vmatprep.subr.bf16.mxu0 %v3955
        %4242 = vmatpush1.bf16.msra.mxu0 %v3954
        %4243 = vmatprep.subr.bf16.mxu0 %v3959
        %4244 = vmatpush1.bf16.msra.mxu0 %v3958
        %4245 = vmatprep.subr.bf16.mxu0 %v3963
        %4246 = vmatpush1.bf16.msra.mxu0 %v3962
        %4247 = vmatprep.subr.bf16.mxu0 %v3967
        %4248 = vmatpush1.bf16.msra.mxu0 %v3966
        %4249 = vmatprep.subr.bf16.mxu0 %v3971
        %4250 = vmatpush1.bf16.msra.mxu0 %v3970
        %4251 = vmatprep.subr.bf16.mxu0 %v3975
        %4252 = vmatpush1.bf16.msra.mxu0 %v3974
        %4253 = vmatprep.subr.bf16.mxu0 %v3979
        %4254 = vmatpush1.bf16.msra.mxu0 %v3978
        %4255 = vmatprep.mubr.bf16.mxu0 %v807
        %4256 = vmatmul.mubr.bf16.gmra.mrb[0].mxu0 %v806
        %v4257 = vpop.f32.mrb[0].mxu0
        %v4258 = vadd.f32 %v4145, %v4257
        %v4259 = vpop.f32.mrb[0].mxu0
        %v4260 = vadd.f32 %v4147, %v4259
        %v4261 = vpop.f32.mrb[0].mxu0
        %v4262 = vadd.f32 %v4149, %v4261
        %v4263 = vpop.f32.mrb[0].mxu0
        %v4264 = vadd.f32 %v4151, %v4263
        %4265 = vmatprep.mubr.bf16.mxu0 %v811
        %4266 = vmatmul.mubr.bf16.gmra.mrb[0].mxu0 %v810
        %v4267 = vpop.f32.mrb[0].mxu0
        %v4268 = vadd.f32 %v4155, %v4267
        %v4269 = vpop.f32.mrb[0].mxu0
        %v4270 = vadd.f32 %v4157, %v4269
        %v4271 = vpop.f32.mrb[0].mxu0
        %v4272 = vadd.f32 %v4159, %v4271
        %v4273 = vpop.f32.mrb[0].mxu0
        %v4274 = vadd.f32 %v4161, %v4273
        %4275 = vmatprep.mubr.bf16.mxu0 %v815
        %4276 = vmatmul.mubr.bf16.gmra.mrb[0].mxu0 %v814
        %v4277 = vpop.f32.mrb[0].mxu0
        %v4278 = vadd.f32 %v4165, %v4277
        %v4279 = vpop.f32.mrb[0].mxu0
        %v4280 = vadd.f32 %v4167, %v4279
        %v4281 = vpop.f32.mrb[0].mxu0
        %v4282 = vadd.f32 %v4169, %v4281
        %v4283 = vpop.f32.mrb[0].mxu0
        %v4284 = vadd.f32 %v4171, %v4283
        %4285 = vmatprep.mubr.bf16.mxu0 %v819
        %4286 = vmatmul.mubr.bf16.gmra.mrb[0].mxu0 %v818
        %v4287 = vpop.f32.mrb[0].mxu0
        %v4288 = vadd.f32 %v4175, %v4287
        %v4289 = vpop.f32.mrb[0].mxu0
        %v4290 = vadd.f32 %v4177, %v4289
        %v4291 = vpop.f32.mrb[0].mxu0
        %v4292 = vadd.f32 %v4179, %v4291
        %v4293 = vpop.f32.mrb[0].mxu0
        %v4294 = vadd.f32 %v4181, %v4293
        %4295 = vmatprep.mubr.bf16.mxu0 %v823
        %4296 = vmatmul.mubr.bf16.gmra.mrb[0].mxu0 %v822
        %v4297 = vpop.f32.mrb[0].mxu0
        %v4298 = vadd.f32 %v4185, %v4297
        %v4299 = vpop.f32.mrb[0].mxu0
        %v4300 = vadd.f32 %v4187, %v4299
        %v4301 = vpop.f32.mrb[0].mxu0
        %v4302 = vadd.f32 %v4189, %v4301
        %v4303 = vpop.f32.mrb[0].mxu0
        %v4304 = vadd.f32 %v4191, %v4303
        %4305 = vmatprep.mubr.bf16.mxu0 %v827
        %4306 = vmatmul.mubr.bf16.gmra.mrb[0].mxu0 %v826
        %v4307 = vpop.f32.mrb[0].mxu0
        %v4308 = vadd.f32 %v4195, %v4307
        %v4309 = vpop.f32.mrb[0].mxu0
        %v4310 = vadd.f32 %v4197, %v4309
        %v4311 = vpop.f32.mrb[0].mxu0
        %v4312 = vadd.f32 %v4199, %v4311
        %v4313 = vpop.f32.mrb[0].mxu0
        %v4314 = vadd.f32 %v4201, %v4313
        %4315 = vmatprep.mubr.bf16.mxu0 %v831
        %4316 = vmatmul.mubr.bf16.gmra.mrb[0].mxu0 %v830
        %v4317 = vpop.f32.mrb[0].mxu0
        %v4318 = vadd.f32 %v4205, %v4317
        %v4319 = vpop.f32.mrb[0].mxu0
        %v4320 = vadd.f32 %v4207, %v4319
        %v4321 = vpop.f32.mrb[0].mxu0
        %v4322 = vadd.f32 %v4209, %v4321
        %v4323 = vpop.f32.mrb[0].mxu0
        %v4324 = vadd.f32 %v4211, %v4323
        %4325 = vmatprep.mubr.bf16.mxu0 %v835
        %4326 = vmatmul.mubr.bf16.gmra.mrb[0].mxu0 %v834
        %v4327 = vpop.f32.mrb[0].mxu0
        %v4328 = vadd.f32 %v4215, %v4327
        %v4329 = vpop.f32.mrb[0].mxu0
        %v4330 = vadd.f32 %v4217, %v4329
        %v4331 = vpop.f32.mrb[0].mxu0
        %v4332 = vadd.f32 %v4219, %v4331
        %v4333 = vpop.f32.mrb[0].mxu0
        %v4334 = vadd.f32 %v4221, %v4333
        %4335 = vdwg.mxu0
        %4336 = vmatprep.subr.bf16.mxu0 %v3857
        %4337 = vmatpush1.bf16.msra.mxu0 %v3856
        %4338 = vmatprep.subr.bf16.mxu0 %v3861
        %4339 = vmatpush1.bf16.msra.mxu0 %v3860
        %4340 = vmatprep.subr.bf16.mxu0 %v3865
        %4341 = vmatpush1.bf16.msra.mxu0 %v3864
        %4342 = vmatprep.subr.bf16.mxu0 %v3869
        %4343 = vmatpush1.bf16.msra.mxu0 %v3868
        %4344 = vmatprep.subr.bf16.mxu0 %v3873
        %4345 = vmatpush1.bf16.msra.mxu0 %v3872
        %4346 = vmatprep.subr.bf16.mxu0 %v3877
        %4347 = vmatpush1.bf16.msra.mxu0 %v3876
        %4348 = vmatprep.subr.bf16.mxu0 %v3881
        %4349 = vmatpush1.bf16.msra.mxu0 %v3880
        %4350 = vmatprep.subr.bf16.mxu0 %v3885
        %4351 = vmatpush1.bf16.msra.mxu0 %v3884
        %4352 = vmatprep.subr.bf16.mxu0 %v3889
        %4353 = vmatpush1.bf16.msra.mxu0 %v3888
        %4354 = vmatprep.subr.bf16.mxu0 %v3893
        %4355 = vmatpush1.bf16.msra.mxu0 %v3892
        %4356 = vmatprep.subr.bf16.mxu0 %v3897
        %4357 = vmatpush1.bf16.msra.mxu0 %v3896
        %4358 = vmatprep.subr.bf16.mxu0 %v3901
        %4359 = vmatpush1.bf16.msra.mxu0 %v3900
        %4360 = vmatprep.subr.bf16.mxu0 %v3905
        %4361 = vmatpush1.bf16.msra.mxu0 %v3904
        %4362 = vmatprep.subr.bf16.mxu0 %v3909
        %4363 = vmatpush1.bf16.msra.mxu0 %v3908
        %4364 = vmatprep.subr.bf16.mxu0 %v3913
        %4365 = vmatpush1.bf16.msra.mxu0 %v3912
        %4366 = vmatprep.subr.bf16.mxu0 %v3917
        %4367 = vmatpush1.bf16.msra.mxu0 %v3916
        %4368 = vmatprep.mubr.bf16.mxu0 %v805
        %4369 = vmatmul.mubr.bf16.gmra.mrb[0].mxu0 %v804
        %v4370 = vpop.f32.mrb[0].mxu0
        %v4371 = vadd.f32 %v3461, %v4370
        %v4372 = vpop.f32.mrb[0].mxu0
        %v4373 = vadd.f32 %v3465, %v4372
        %v4374 = vpop.f32.mrb[0].mxu0
        %v4375 = vadd.f32 %v3461, %v4374
        %v4376 = vpop.f32.mrb[0].mxu0
        %v4377 = vadd.f32 %v3465, %v4376
        %4378 = vmatprep.mubr.bf16.mxu0 %v809
        %4379 = vmatmul.mubr.bf16.gmra.mrb[0].mxu0 %v808
        %v4380 = vpop.f32.mrb[0].mxu0
        %v4381 = vadd.f32 %v3461, %v4380
        %v4382 = vpop.f32.mrb[0].mxu0
        %v4383 = vadd.f32 %v3465, %v4382
        %v4384 = vpop.f32.mrb[0].mxu0
        %v4385 = vadd.f32 %v3461, %v4384
        %v4386 = vpop.f32.mrb[0].mxu0
        %v4387 = vadd.f32 %v3465, %v4386
        %4388 = vmatprep.mubr.bf16.mxu0 %v813
        %4389 = vmatmul.mubr.bf16.gmra.mrb[0].mxu0 %v812
        %v4390 = vpop.f32.mrb[0].mxu0
        %v4391 = vadd.f32 %v3461, %v4390
        %v4392 = vpop.f32.mrb[0].mxu0
        %v4393 = vadd.f32 %v3465, %v4392
        %v4394 = vpop.f32.mrb[0].mxu0
        %v4395 = vadd.f32 %v3461, %v4394
        %v4396 = vpop.f32.mrb[0].mxu0
        %v4397 = vadd.f32 %v3465, %v4396
        %4398 = vmatprep.mubr.bf16.mxu0 %v817
        %4399 = vmatmul.mubr.bf16.gmra.mrb[0].mxu0 %v816
        %v4400 = vpop.f32.mrb[0].mxu0
        %v4401 = vadd.f32 %v3461, %v4400
        %v4402 = vpop.f32.mrb[0].mxu0
        %v4403 = vadd.f32 %v3465, %v4402
        %v4404 = vpop.f32.mrb[0].mxu0
        %v4405 = vadd.f32 %v3461, %v4404
        %v4406 = vpop.f32.mrb[0].mxu0
        %v4407 = vadd.f32 %v3465, %v4406
        %4408 = vmatprep.mubr.bf16.mxu0 %v821
        %4409 = vmatmul.mubr.bf16.gmra.mrb[0].mxu0 %v820
        %v4410 = vpop.f32.mrb[0].mxu0
        %v4411 = vadd.f32 %v3461, %v4410
        %v4412 = vpop.f32.mrb[0].mxu0
        %v4413 = vadd.f32 %v3465, %v4412
        %v4414 = vpop.f32.mrb[0].mxu0
        %v4415 = vadd.f32 %v3461, %v4414
        %v4416 = vpop.f32.mrb[0].mxu0
        %v4417 = vadd.f32 %v3465, %v4416
        %4418 = vmatprep.mubr.bf16.mxu0 %v825
        %4419 = vmatmul.mubr.bf16.gmra.mrb[0].mxu0 %v824
        %v4420 = vpop.f32.mrb[0].mxu0
        %v4421 = vadd.f32 %v3461, %v4420
        %v4422 = vpop.f32.mrb[0].mxu0
        %v4423 = vadd.f32 %v3465, %v4422
        %v4424 = vpop.f32.mrb[0].mxu0
        %v4425 = vadd.f32 %v3461, %v4424
        %v4426 = vpop.f32.mrb[0].mxu0
        %v4427 = vadd.f32 %v3465, %v4426
        %4428 = vmatprep.mubr.bf16.mxu0 %v829
        %4429 = vmatmul.mubr.bf16.gmra.mrb[0].mxu0 %v828
        %v4430 = vpop.f32.mrb[0].mxu0
        %v4431 = vadd.f32 %v3461, %v4430
        %v4432 = vpop.f32.mrb[0].mxu0
        %v4433 = vadd.f32 %v3465, %v4432
        %v4434 = vpop.f32.mrb[0].mxu0
        %v4435 = vadd.f32 %v3461, %v4434
        %v4436 = vpop.f32.mrb[0].mxu0
        %v4437 = vadd.f32 %v3465, %v4436
        %4438 = vmatprep.mubr.bf16.mxu0 %v833
        %4439 = vmatmul.mubr.bf16.gmra.mrb[0].mxu0 %v832
        %v4440 = vpop.f32.mrb[0].mxu0
        %v4441 = vadd.f32 %v3461, %v4440
        %v4442 = vpop.f32.mrb[0].mxu0
        %v4443 = vadd.f32 %v3465, %v4442
        %v4444 = vpop.f32.mrb[0].mxu0
        %v4445 = vadd.f32 %v3461, %v4444
        %v4446 = vpop.f32.mrb[0].mxu0
        %v4447 = vadd.f32 %v3465, %v4446
        %4448 = vdwg.mxu0
        %4449 = vmatprep.subr.bf16.mxu0 %v3921
        %4450 = vmatpush1.bf16.msra.mxu0 %v3920
        %4451 = vmatprep.subr.bf16.mxu0 %v3925
        %4452 = vmatpush1.bf16.msra.mxu0 %v3924
        %4453 = vmatprep.subr.bf16.mxu0 %v3929
        %4454 = vmatpush1.bf16.msra.mxu0 %v3928
        %4455 = vmatprep.subr.bf16.mxu0 %v3933
        %4456 = vmatpush1.bf16.msra.mxu0 %v3932
        %4457 = vmatprep.subr.bf16.mxu0 %v3937
        %4458 = vmatpush1.bf16.msra.mxu0 %v3936
        %4459 = vmatprep.subr.bf16.mxu0 %v3941
        %4460 = vmatpush1.bf16.msra.mxu0 %v3940
        %4461 = vmatprep.subr.bf16.mxu0 %v3945
        %4462 = vmatpush1.bf16.msra.mxu0 %v3944
        %4463 = vmatprep.subr.bf16.mxu0 %v3949
        %4464 = vmatpush1.bf16.msra.mxu0 %v3948
        %4465 = vmatprep.subr.bf16.mxu0 %v3953
        %4466 = vmatpush1.bf16.msra.mxu0 %v3952
        %4467 = vmatprep.subr.bf16.mxu0 %v3957
        %4468 = vmatpush1.bf16.msra.mxu0 %v3956
        %4469 = vmatprep.subr.bf16.mxu0 %v3961
        %4470 = vmatpush1.bf16.msra.mxu0 %v3960
        %4471 = vmatprep.subr.bf16.mxu0 %v3965
        %4472 = vmatpush1.bf16.msra.mxu0 %v3964
        %4473 = vmatprep.subr.bf16.mxu0 %v3969
        %4474 = vmatpush1.bf16.msra.mxu0 %v3968
        %4475 = vmatprep.subr.bf16.mxu0 %v3973
        %4476 = vmatpush1.bf16.msra.mxu0 %v3972
        %4477 = vmatprep.subr.bf16.mxu0 %v3977
        %4478 = vmatpush1.bf16.msra.mxu0 %v3976
        %4479 = vmatprep.subr.bf16.mxu0 %v3981
        %4480 = vmatpush1.bf16.msra.mxu0 %v3980
        %4481 = vmatprep.mubr.bf16.mxu0 %v807
        %4482 = vmatmul.mubr.bf16.gmra.mrb[0].mxu0 %v806
        %v4483 = vpop.f32.mrb[0].mxu0
        %v4484 = vadd.f32 %v4371, %v4483
        %v4485 = vpop.f32.mrb[0].mxu0
        %v4486 = vadd.f32 %v4373, %v4485
        %v4487 = vpop.f32.mrb[0].mxu0
        %v4488 = vadd.f32 %v4375, %v4487
        %v4489 = vpop.f32.mrb[0].mxu0
        %v4490 = vadd.f32 %v4377, %v4489
        %4491 = vmatprep.mubr.bf16.mxu0 %v811
        %4492 = vmatmul.mubr.bf16.gmra.mrb[0].mxu0 %v810
        %v4493 = vpop.f32.mrb[0].mxu0
        %v4494 = vadd.f32 %v4381, %v4493
        %v4495 = vpop.f32.mrb[0].mxu0
        %v4496 = vadd.f32 %v4383, %v4495
        %v4497 = vpop.f32.mrb[0].mxu0
        %v4498 = vadd.f32 %v4385, %v4497
        %v4499 = vpop.f32.mrb[0].mxu0
        %v4500 = vadd.f32 %v4387, %v4499
        %4501 = vmatprep.mubr.bf16.mxu0 %v815
        %4502 = vmatmul.mubr.bf16.gmra.mrb[0].mxu0 %v814
        %v4503 = vpop.f32.mrb[0].mxu0
        %v4504 = vadd.f32 %v4391, %v4503
        %v4505 = vpop.f32.mrb[0].mxu0
        %v4506 = vadd.f32 %v4393, %v4505
        %v4507 = vpop.f32.mrb[0].mxu0
        %v4508 = vadd.f32 %v4395, %v4507
        %v4509 = vpop.f32.mrb[0].mxu0
        %v4510 = vadd.f32 %v4397, %v4509
        %4511 = vmatprep.mubr.bf16.mxu0 %v819
        %4512 = vmatmul.mubr.bf16.gmra.mrb[0].mxu0 %v818
        %v4513 = vpop.f32.mrb[0].mxu0
        %v4514 = vadd.f32 %v4401, %v4513
        %v4515 = vpop.f32.mrb[0].mxu0
        %v4516 = vadd.f32 %v4403, %v4515
        %v4517 = vpop.f32.mrb[0].mxu0
        %v4518 = vadd.f32 %v4405, %v4517
        %v4519 = vpop.f32.mrb[0].mxu0
        %v4520 = vadd.f32 %v4407, %v4519
        %4521 = vmatprep.mubr.bf16.mxu0 %v823
        %4522 = vmatmul.mubr.bf16.gmra.mrb[0].mxu0 %v822
        %v4523 = vpop.f32.mrb[0].mxu0
        %v4524 = vadd.f32 %v4411, %v4523
        %v4525 = vpop.f32.mrb[0].mxu0
        %v4526 = vadd.f32 %v4413, %v4525
        %v4527 = vpop.f32.mrb[0].mxu0
        %v4528 = vadd.f32 %v4415, %v4527
        %v4529 = vpop.f32.mrb[0].mxu0
        %v4530 = vadd.f32 %v4417, %v4529
        %4531 = vmatprep.mubr.bf16.mxu0 %v827
        %4532 = vmatmul.mubr.bf16.gmra.mrb[0].mxu0 %v826
        %v4533 = vpop.f32.mrb[0].mxu0
        %v4534 = vadd.f32 %v4421, %v4533
        %v4535 = vpop.f32.mrb[0].mxu0
        %v4536 = vadd.f32 %v4423, %v4535
        %v4537 = vpop.f32.mrb[0].mxu0
        %v4538 = vadd.f32 %v4425, %v4537
        %v4539 = vpop.f32.mrb[0].mxu0
        %v4540 = vadd.f32 %v4427, %v4539
        %4541 = vmatprep.mubr.bf16.mxu0 %v831
        %4542 = vmatmul.mubr.bf16.gmra.mrb[0].mxu0 %v830
        %v4543 = vpop.f32.mrb[0].mxu0
        %v4544 = vadd.f32 %v4431, %v4543
        %v4545 = vpop.f32.mrb[0].mxu0
        %v4546 = vadd.f32 %v4433, %v4545
        %v4547 = vpop.f32.mrb[0].mxu0
        %v4548 = vadd.f32 %v4435, %v4547
        %v4549 = vpop.f32.mrb[0].mxu0
        %v4550 = vadd.f32 %v4437, %v4549
        %4551 = vmatprep.mubr.bf16.mxu0 %v835
        %4552 = vmatmul.mubr.bf16.gmra.mrb[0].mxu0 %v834
        %v4553 = vpop.f32.mrb[0].mxu0
        %v4554 = vadd.f32 %v4441, %v4553
        %v4555 = vpop.f32.mrb[0].mxu0
        %v4556 = vadd.f32 %v4443, %v4555
        %v4557 = vpop.f32.mrb[0].mxu0
        %v4558 = vadd.f32 %v4445, %v4557
        %v4559 = vpop.f32.mrb[0].mxu0
        %v4560 = vadd.f32 %v4447, %v4559
        %4561 = vdwg.mxu0
        %v4562 = vpack.c.bf16 %v1778, %v1774
        %v4563 = vpack.c.bf16 %v1788, %v1784
        %v4564 = vpack.c.bf16 %v1798, %v1794
        %v4565 = vpack.c.bf16 %v1808, %v1804
        %v4566 = vpack.c.bf16 %v1818, %v1814
        %v4567 = vpack.c.bf16 %v1828, %v1824
        %v4568 = vpack.c.bf16 %v1838, %v1834
        %v4569 = vpack.c.bf16 %v1848, %v1844
        %v4570 = vpack.c.bf16 %v3020, %v3016
        %v4571 = vpack.c.bf16 %v3030, %v3026
        %v4572 = vpack.c.bf16 %v3040, %v3036
        %v4573 = vpack.c.bf16 %v3050, %v3046
        %v4574 = vpack.c.bf16 %v3060, %v3056
        %v4575 = vpack.c.bf16 %v3070, %v3066
        %v4576 = vpack.c.bf16 %v3080, %v3076
        %v4577 = vpack.c.bf16 %v3090, %v3086
        %v4578 = vpack.c.bf16 %v4262, %v4258
        %v4579 = vpack.c.bf16 %v4272, %v4268
        %v4580 = vpack.c.bf16 %v4282, %v4278
        %v4581 = vpack.c.bf16 %v4292, %v4288
        %v4582 = vpack.c.bf16 %v4302, %v4298
        %v4583 = vpack.c.bf16 %v4312, %v4308
        %v4584 = vpack.c.bf16 %v4322, %v4318
        %v4585 = vpack.c.bf16 %v4332, %v4328
        %4586 = vmatprep.subr.bf16.mxu0 0
        %4587 = vmatpush1.bf16.xpose.msra.mxu0 %v4570
        %4588 = vmatprep.subr.bf16.mxu0 0
        %4589 = vmatpush1.bf16.xpose.msra.mxu0 %v4571
        %4590 = vmatprep.subr.bf16.mxu0 0
        %4591 = vmatpush1.bf16.xpose.msra.mxu0 %v4572
        %4592 = vmatprep.subr.bf16.mxu0 0
        %4593 = vmatpush1.bf16.xpose.msra.mxu0 %v4573
        %4594 = vmatprep.subr.bf16.mxu0 0
        %4595 = vmatpush1.bf16.xpose.msra.mxu0 %v4574
        %4596 = vmatprep.subr.bf16.mxu0 0
        %4597 = vmatpush1.bf16.xpose.msra.mxu0 %v4575
        %4598 = vmatprep.subr.bf16.mxu0 0
        %4599 = vmatpush1.bf16.xpose.msra.mxu0 %v4576
        %4600 = vmatprep.subr.bf16.mxu0 0
        %4601 = vmatpush1.bf16.xpose.msra.mxu0 %v4577
        %4602 = vmatprep.subr.bf16.mxu0 0
        %4603 = vmatpush1.bf16.xpose.msra.mxu0 0
        %4604 = vmatprep.subr.bf16.mxu0 0
        %4605 = vmatpush1.bf16.xpose.msra.mxu0 0
        %4606 = vmatprep.subr.bf16.mxu0 0
        %4607 = vmatpush1.bf16.xpose.msra.mxu0 0
        %4608 = vmatprep.subr.bf16.mxu0 0
        %4609 = vmatpush1.bf16.xpose.msra.mxu0 0
        %4610 = vmatprep.subr.bf16.mxu0 0
        %4611 = vmatpush1.bf16.xpose.msra.mxu0 0
        %4612 = vmatprep.subr.bf16.mxu0 0
        %4613 = vmatpush1.bf16.xpose.msra.mxu0 0
        %4614 = vmatprep.subr.bf16.mxu0 0
        %4615 = vmatpush1.bf16.xpose.msra.mxu0 0
        %4616 = vmatprep.subr.bf16.mxu0 0
        %4617 = vmatpush1.bf16.xpose.msra.mxu0 0
        %4618 = vmatprep.mubr.bf16.mxu0 0
        %4619 = vmatmul.mubr.bf16.gmra.mrb[0].mxu0 %v4562
        %v4620 = vpop.f32.mrb[0].mxu0
        %v4621 = vadd.f32 0.0, %v4620
        %v4622 = vpop.f32.mrb[0].mxu0
        %v4623 = vpop.f32.mrb[0].mxu0
        %v4624 = vadd.f32 0.0, %v4623
        %v4625 = vpop.f32.mrb[0].mxu0
        %4626 = vmatprep.mubr.bf16.mxu0 0
        %4627 = vmatmul.mubr.bf16.gmra.mrb[0].mxu0 %v4563
        %v4628 = vpop.f32.mrb[0].mxu0
        %v4629 = vadd.f32 0.0, %v4628
        %v4630 = vpop.f32.mrb[0].mxu0
        %v4631 = vpop.f32.mrb[0].mxu0
        %v4632 = vadd.f32 0.0, %v4631
        %v4633 = vpop.f32.mrb[0].mxu0
        %4634 = vmatprep.mubr.bf16.mxu0 0
        %4635 = vmatmul.mubr.bf16.gmra.mrb[0].mxu0 %v4564
        %v4636 = vpop.f32.mrb[0].mxu0
        %v4637 = vadd.f32 0.0, %v4636
        %v4638 = vpop.f32.mrb[0].mxu0
        %v4639 = vpop.f32.mrb[0].mxu0
        %v4640 = vadd.f32 0.0, %v4639
        %v4641 = vpop.f32.mrb[0].mxu0
        %4642 = vmatprep.mubr.bf16.mxu0 0
        %4643 = vmatmul.mubr.bf16.gmra.mrb[0].mxu0 %v4565
        %v4644 = vpop.f32.mrb[0].mxu0
        %v4645 = vadd.f32 0.0, %v4644
        %v4646 = vpop.f32.mrb[0].mxu0
        %v4647 = vpop.f32.mrb[0].mxu0
        %v4648 = vadd.f32 0.0, %v4647
        %v4649 = vpop.f32.mrb[0].mxu0
        %4650 = vmatprep.mubr.bf16.mxu0 0
        %4651 = vmatmul.mubr.bf16.gmra.mrb[0].mxu0 %v4566
        %v4652 = vpop.f32.mrb[0].mxu0
        %v4653 = vadd.f32 0.0, %v4652
        %v4654 = vpop.f32.mrb[0].mxu0
        %v4655 = vpop.f32.mrb[0].mxu0
        %v4656 = vadd.f32 0.0, %v4655
        %v4657 = vpop.f32.mrb[0].mxu0
        %4658 = vmatprep.mubr.bf16.mxu0 0
        %4659 = vmatmul.mubr.bf16.gmra.mrb[0].mxu0 %v4567
        %v4660 = vpop.f32.mrb[0].mxu0
        %v4661 = vadd.f32 0.0, %v4660
        %v4662 = vpop.f32.mrb[0].mxu0
        %v4663 = vpop.f32.mrb[0].mxu0
        %v4664 = vadd.f32 0.0, %v4663
        %v4665 = vpop.f32.mrb[0].mxu0
        %4666 = vmatprep.mubr.bf16.mxu0 0
        %4667 = vmatmul.mubr.bf16.gmra.mrb[0].mxu0 %v4568
        %v4668 = vpop.f32.mrb[0].mxu0
        %v4669 = vadd.f32 0.0, %v4668
        %v4670 = vpop.f32.mrb[0].mxu0
        %v4671 = vpop.f32.mrb[0].mxu0
        %v4672 = vadd.f32 0.0, %v4671
        %v4673 = vpop.f32.mrb[0].mxu0
        %4674 = vmatprep.mubr.bf16.mxu0 0
        %4675 = vmatmul.mubr.bf16.gmra.mrb[0].mxu0 %v4569
        %v4676 = vpop.f32.mrb[0].mxu0
        %v4677 = vadd.f32 0.0, %v4676
        %v4678 = vpop.f32.mrb[0].mxu0
        %v4679 = vpop.f32.mrb[0].mxu0
        %v4680 = vadd.f32 0.0, %v4679
        %v4681 = vpop.f32.mrb[0].mxu0
        %4682 = vdwg.mxu0
        %4683 = vmax.xlane.f32.xlu0 %v4621
        %v4684 = vpop.xlane.xlu0 %4683
        %4685 = vmax.xlane.f32.xlu0 %v4624
        %v4686 = vpop.xlane.xlu0 %4685
        %4687 = vmax.xlane.f32.xlu0 %v4629
        %v4688 = vpop.xlane.xlu0 %4687
        %4689 = vmax.xlane.f32.xlu0 %v4632
        %v4690 = vpop.xlane.xlu0 %4689
        %4691 = vmax.xlane.f32.xlu0 %v4637
        %v4692 = vpop.xlane.xlu0 %4691
        %4693 = vmax.xlane.f32.xlu0 %v4640
        %v4694 = vpop.xlane.xlu0 %4693
        %4695 = vmax.xlane.f32.xlu0 %v4645
        %v4696 = vpop.xlane.xlu0 %4695
        %4697 = vmax.xlane.f32.xlu0 %v4648
        %v4698 = vpop.xlane.xlu0 %4697
        %4699 = vmax.xlane.f32.xlu0 %v4653
        %v4700 = vpop.xlane.xlu0 %4699
        %4701 = vmax.xlane.f32.xlu0 %v4656
        %v4702 = vpop.xlane.xlu0 %4701
        %4703 = vmax.xlane.f32.xlu0 %v4661
        %v4704 = vpop.xlane.xlu0 %4703
        %4705 = vmax.xlane.f32.xlu0 %v4664
        %v4706 = vpop.xlane.xlu0 %4705
        %4707 = vmax.xlane.f32.xlu0 %v4669
        %v4708 = vpop.xlane.xlu0 %4707
        %4709 = vmax.xlane.f32.xlu0 %v4672
        %v4710 = vpop.xlane.xlu0 %4709
        %4711 = vmax.xlane.f32.xlu0 %v4677
        %v4712 = vpop.xlane.xlu0 %4711
        %4713 = vmax.xlane.f32.xlu0 %v4680
        %v4714 = vpop.xlane.xlu0 %4713
        %v4715 = vsub.f32 %v4621, %v4684
        %v4716 = vsub.f32 %v4624, %v4686
        %v4717 = vsub.f32 %v4629, %v4688
        %v4718 = vsub.f32 %v4632, %v4690
        %v4719 = vsub.f32 %v4637, %v4692
        %v4720 = vsub.f32 %v4640, %v4694
        %v4721 = vsub.f32 %v4645, %v4696
        %v4722 = vsub.f32 %v4648, %v4698
        %v4723 = vsub.f32 %v4653, %v4700
        %v4724 = vsub.f32 %v4656, %v4702
        %v4725 = vsub.f32 %v4661, %v4704
        %v4726 = vsub.f32 %v4664, %v4706
        %v4727 = vsub.f32 %v4669, %v4708
        %v4728 = vsub.f32 %v4672, %v4710
        %v4729 = vsub.f32 %v4677, %v4712
        %v4730 = vsub.f32 %v4680, %v4714
        %v4731 = vmul.f32 %v4715, 1.442695
        %v4732 = vpow.pop %v4731
        %v4733 = vmul.f32 %v4716, 1.442695
        %v4734 = vpow.pop %v4733
        %v4735 = vmul.f32 %v4717, 1.442695
        %v4736 = vpow.pop %v4735
        %v4737 = vmul.f32 %v4718, 1.442695
        %v4738 = vpow.pop %v4737
        %v4739 = vmul.f32 %v4719, 1.442695
        %v4740 = vpow.pop %v4739
        %v4741 = vmul.f32 %v4720, 1.442695
        %v4742 = vpow.pop %v4741
        %v4743 = vmul.f32 %v4721, 1.442695
        %v4744 = vpow.pop %v4743
        %v4745 = vmul.f32 %v4722, 1.442695
        %v4746 = vpow.pop %v4745
        %v4747 = vmul.f32 %v4723, 1.442695
        %v4748 = vpow.pop %v4747
        %v4749 = vmul.f32 %v4724, 1.442695
        %v4750 = vpow.pop %v4749
        %v4751 = vmul.f32 %v4725, 1.442695
        %v4752 = vpow.pop %v4751
        %v4753 = vmul.f32 %v4726, 1.442695
        %v4754 = vpow.pop %v4753
        %v4755 = vmul.f32 %v4727, 1.442695
        %v4756 = vpow.pop %v4755
        %v4757 = vmul.f32 %v4728, 1.442695
        %v4758 = vpow.pop %v4757
        %v4759 = vmul.f32 %v4729, 1.442695
        %v4760 = vpow.pop %v4759
        %v4761 = vmul.f32 %v4730, 1.442695
        %v4762 = vpow.pop %v4761
        %4763 = vadd.xlane.f32.xlu0 %v4732
        %v4764 = vpop.xlane.xlu0 %4763
        %4765 = vadd.xlane.f32.xlu0 %v4734
        %v4766 = vpop.xlane.xlu0 %4765
        %4767 = vadd.xlane.f32.xlu0 %v4736
        %v4768 = vpop.xlane.xlu0 %4767
        %4769 = vadd.xlane.f32.xlu0 %v4738
        %v4770 = vpop.xlane.xlu0 %4769
        %4771 = vadd.xlane.f32.xlu0 %v4740
        %v4772 = vpop.xlane.xlu0 %4771
        %4773 = vadd.xlane.f32.xlu0 %v4742
        %v4774 = vpop.xlane.xlu0 %4773
        %4775 = vadd.xlane.f32.xlu0 %v4744
        %v4776 = vpop.xlane.xlu0 %4775
        %4777 = vadd.xlane.f32.xlu0 %v4746
        %v4778 = vpop.xlane.xlu0 %4777
        %4779 = vadd.xlane.f32.xlu0 %v4748
        %v4780 = vpop.xlane.xlu0 %4779
        %4781 = vadd.xlane.f32.xlu0 %v4750
        %v4782 = vpop.xlane.xlu0 %4781
        %4783 = vadd.xlane.f32.xlu0 %v4752
        %v4784 = vpop.xlane.xlu0 %4783
        %4785 = vadd.xlane.f32.xlu0 %v4754
        %v4786 = vpop.xlane.xlu0 %4785
        %4787 = vadd.xlane.f32.xlu0 %v4756
        %v4788 = vpop.xlane.xlu0 %4787
        %4789 = vadd.xlane.f32.xlu0 %v4758
        %v4790 = vpop.xlane.xlu0 %4789
        %4791 = vadd.xlane.f32.xlu0 %v4760
        %v4792 = vpop.xlane.xlu0 %4791
        %4793 = vadd.xlane.f32.xlu0 %v4762
        %v4794 = vpop.xlane.xlu0 %4793
        %v4795 = vrcp.pop %v4764
        %v4796 = vrcp.pop %v4766
        %v4797 = vrcp.pop %v4768
        %v4798 = vrcp.pop %v4770
        %v4799 = vrcp.pop %v4772
        %v4800 = vrcp.pop %v4774
        %v4801 = vrcp.pop %v4776
        %v4802 = vrcp.pop %v4778
        %v4803 = vrcp.pop %v4780
        %v4804 = vrcp.pop %v4782
        %v4805 = vrcp.pop %v4784
        %v4806 = vrcp.pop %v4786
        %v4807 = vrcp.pop %v4788
        %v4808 = vrcp.pop %v4790
        %v4809 = vrcp.pop %v4792
        %v4810 = vrcp.pop %v4794
        %v4811 = vmul.f32 %v4732, %v4795
        %v4812 = vmul.f32 %v4734, %v4796
        %v4813 = vmul.f32 %v4736, %v4797
        %v4814 = vmul.f32 %v4738, %v4798
        %v4815 = vmul.f32 %v4740, %v4799
        %v4816 = vmul.f32 %v4742, %v4800
        %v4817 = vmul.f32 %v4744, %v4801
        %v4818 = vmul.f32 %v4746, %v4802
        %v4819 = vmul.f32 %v4748, %v4803
        %v4820 = vmul.f32 %v4750, %v4804
        %v4821 = vmul.f32 %v4752, %v4805
        %v4822 = vmul.f32 %v4754, %v4806
        %v4823 = vmul.f32 %v4756, %v4807
        %v4824 = vmul.f32 %v4758, %v4808
        %v4825 = vmul.f32 %v4760, %v4809
        %v4826 = vmul.f32 %v4762, %v4810
        %v4827 = vpack.c.bf16 %v4812, %v4811
        %v4828 = vpack.c.bf16 %v4814, %v4813
        %v4829 = vpack.c.bf16 %v4816, %v4815
        %v4830 = vpack.c.bf16 %v4818, %v4817
        %v4831 = vpack.c.bf16 %v4820, %v4819
        %v4832 = vpack.c.bf16 %v4822, %v4821
        %v4833 = vpack.c.bf16 %v4824, %v4823
        %v4834 = vpack.c.bf16 %v4826, %v4825
        %4835 = vmatprep.subr.bf16.mxu0 0
        %4836 = vmatpush1.bf16.msra.mxu0 %v4578
        %4837 = vmatprep.subr.bf16.mxu0 0
        %4838 = vmatpush1.bf16.msra.mxu0 %v4579
        %4839 = vmatprep.subr.bf16.mxu0 0
        %4840 = vmatpush1.bf16.msra.mxu0 %v4580
        %4841 = vmatprep.subr.bf16.mxu0 0
        %4842 = vmatpush1.bf16.msra.mxu0 %v4581
        %4843 = vmatprep.subr.bf16.mxu0 0
        %4844 = vmatpush1.bf16.msra.mxu0 %v4582
        %4845 = vmatprep.subr.bf16.mxu0 0
        %4846 = vmatpush1.bf16.msra.mxu0 %v4583
        %4847 = vmatprep.subr.bf16.mxu0 0
        %4848 = vmatpush1.bf16.msra.mxu0 %v4584
        %4849 = vmatprep.subr.bf16.mxu0 0
        %4850 = vmatpush1.bf16.msra.mxu0 %v4585
        %4851 = vmatprep.subr.bf16.mxu0 0
        %4852 = vmatpush1.bf16.msra.mxu0 0
        %4853 = vmatprep.subr.bf16.mxu0 0
        %4854 = vmatpush1.bf16.msra.mxu0 0
        %4855 = vmatprep.subr.bf16.mxu0 0
        %4856 = vmatpush1.bf16.msra.mxu0 0
        %4857 = vmatprep.subr.bf16.mxu0 0
        %4858 = vmatpush1.bf16.msra.mxu0 0
        %4859 = vmatprep.subr.bf16.mxu0 0
        %4860 = vmatpush1.bf16.msra.mxu0 0
        %4861 = vmatprep.subr.bf16.mxu0 0
        %4862 = vmatpush1.bf16.msra.mxu0 0
        %4863 = vmatprep.subr.bf16.mxu0 0
        %4864 = vmatpush1.bf16.msra.mxu0 0
        %4865 = vmatprep.subr.bf16.mxu0 0
        %4866 = vmatpush1.bf16.msra.mxu0 0
        %4867 = vmatprep.mubr.bf16.mxu0 0
        %4868 = vmatmul.mubr.bf16.gmra.mrb[0].mxu0 %v4827
        %v4869 = vpop.f32.mrb[0].mxu0
        %v4870 = vadd.f32 0.0, %v4869
        %v4871 = vpop.f32.mrb[0].mxu0
        %v4872 = vpop.f32.mrb[0].mxu0
        %v4873 = vadd.f32 0.0, %v4872
        %v4874 = vpop.f32.mrb[0].mxu0
        %4875 = vmatprep.mubr.bf16.mxu0 0
        %4876 = vmatmul.mubr.bf16.gmra.mrb[0].mxu0 %v4828
        %v4877 = vpop.f32.mrb[0].mxu0
        %v4878 = vadd.f32 0.0, %v4877
        %v4879 = vpop.f32.mrb[0].mxu0
        %v4880 = vpop.f32.mrb[0].mxu0
        %v4881 = vadd.f32 0.0, %v4880
        %v4882 = vpop.f32.mrb[0].mxu0
        %4883 = vmatprep.mubr.bf16.mxu0 0
        %4884 = vmatmul.mubr.bf16.gmra.mrb[0].mxu0 %v4829
        %v4885 = vpop.f32.mrb[0].mxu0
        %v4886 = vadd.f32 0.0, %v4885
        %v4887 = vpop.f32.mrb[0].mxu0
        %v4888 = vpop.f32.mrb[0].mxu0
        %v4889 = vadd.f32 0.0, %v4888
        %v4890 = vpop.f32.mrb[0].mxu0
        %4891 = vmatprep.mubr.bf16.mxu0 0
        %4892 = vmatmul.mubr.bf16.gmra.mrb[0].mxu0 %v4830
        %v4893 = vpop.f32.mrb[0].mxu0
        %v4894 = vadd.f32 0.0, %v4893
        %v4895 = vpop.f32.mrb[0].mxu0
        %v4896 = vpop.f32.mrb[0].mxu0
        %v4897 = vadd.f32 0.0, %v4896
        %v4898 = vpop.f32.mrb[0].mxu0
        %4899 = vmatprep.mubr.bf16.mxu0 0
        %4900 = vmatmul.mubr.bf16.gmra.mrb[0].mxu0 %v4831
        %v4901 = vpop.f32.mrb[0].mxu0
        %v4902 = vadd.f32 0.0, %v4901
        %v4903 = vpop.f32.mrb[0].mxu0
        %v4904 = vpop.f32.mrb[0].mxu0
        %v4905 = vadd.f32 0.0, %v4904
        %v4906 = vpop.f32.mrb[0].mxu0
        %4907 = vmatprep.mubr.bf16.mxu0 0
        %4908 = vmatmul.mubr.bf16.gmra.mrb[0].mxu0 %v4832
        %v4909 = vpop.f32.mrb[0].mxu0
        %v4910 = vadd.f32 0.0, %v4909
        %v4911 = vpop.f32.mrb[0].mxu0
        %v4912 = vpop.f32.mrb[0].mxu0
        %v4913 = vadd.f32 0.0, %v4912
        %v4914 = vpop.f32.mrb[0].mxu0
        %4915 = vmatprep.mubr.bf16.mxu0 0
        %4916 = vmatmul.mubr.bf16.gmra.mrb[0].mxu0 %v4833
        %v4917 = vpop.f32.mrb[0].mxu0
        %v4918 = vadd.f32 0.0, %v4917
        %v4919 = vpop.f32.mrb[0].mxu0
        %v4920 = vpop.f32.mrb[0].mxu0
        %v4921 = vadd.f32 0.0, %v4920
        %v4922 = vpop.f32.mrb[0].mxu0
        %4923 = vmatprep.mubr.bf16.mxu0 0
        %4924 = vmatmul.mubr.bf16.gmra.mrb[0].mxu0 %v4834
        %v4925 = vpop.f32.mrb[0].mxu0
        %v4926 = vadd.f32 0.0, %v4925
        %v4927 = vpop.f32.mrb[0].mxu0
        %v4928 = vpop.f32.mrb[0].mxu0
        %v4929 = vadd.f32 0.0, %v4928
        %v4930 = vpop.f32.mrb[0].mxu0
        %4931 = vdwg.mxu0
        %v4932 = vpack.c.bf16 %v4873, %v4870
        %v4933 = vpack.c.bf16 %v4881, %v4878
        %v4934 = vpack.c.bf16 %v4889, %v4886
        %v4935 = vpack.c.bf16 %v4897, %v4894
        %v4936 = vpack.c.bf16 %v4905, %v4902
        %v4937 = vpack.c.bf16 %v4913, %v4910
        %v4938 = vpack.c.bf16 %v4921, %v4918
        %v4939 = vpack.c.bf16 %v4929, %v4926
        %v4940 = vld [vmem:[#allocation13] sm:$0xff]
        %v4941 = vld [vmem:[#allocation13 + $0x8] sm:$0xff]
        %v4942 = vld [vmem:[#allocation13 + $0x10] sm:$0xff]
        %v4943 = vld [vmem:[#allocation13 + $0x18] sm:$0xff]
        %v4944 = vld [vmem:[#allocation13 + $0x20] sm:$0xff]
        %v4945 = vld [vmem:[#allocation13 + $0x28] sm:$0xff]
        %v4946 = vld [vmem:[#allocation13 + $0x30] sm:$0xff]
        %v4947 = vld [vmem:[#allocation13 + $0x38] sm:$0xff]
        %v4948 = vld [vmem:[#allocation13 + $0x40] sm:$0xff]
        %v4949 = vld [vmem:[#allocation13 + $0x48] sm:$0xff]
        %v4950 = vld [vmem:[#allocation13 + $0x50] sm:$0xff]
        %v4951 = vld [vmem:[#allocation13 + $0x58] sm:$0xff]
        %v4952 = vld [vmem:[#allocation13 + $0x60] sm:$0xff]
        %v4953 = vld [vmem:[#allocation13 + $0x68] sm:$0xff]
        %v4954 = vld [vmem:[#allocation13 + $0x70] sm:$0xff]
        %v4955 = vld [vmem:[#allocation13 + $0x78] sm:$0xff]
        %v4956 = vld [vmem:[#allocation13 + $0x80] sm:$0xff]
        %v4957 = vld [vmem:[#allocation13 + $0x88] sm:$0xff]
        %v4958 = vld [vmem:[#allocation13 + $0x90] sm:$0xff]
        %v4959 = vld [vmem:[#allocation13 + $0x98] sm:$0xff]
        %v4960 = vld [vmem:[#allocation13 + $0xa0] sm:$0xff]
        %v4961 = vld [vmem:[#allocation13 + $0xa8] sm:$0xff]
        %v4962 = vld [vmem:[#allocation13 + $0xb0] sm:$0xff]
        %v4963 = vld [vmem:[#allocation13 + $0xb8] sm:$0xff]
        %v4964 = vld [vmem:[#allocation13 + $0xc0] sm:$0xff]
        %v4965 = vld [vmem:[#allocation13 + $0xc8] sm:$0xff]
        %v4966 = vld [vmem:[#allocation13 + $0xd0] sm:$0xff]
        %v4967 = vld [vmem:[#allocation13 + $0xd8] sm:$0xff]
        %v4968 = vld [vmem:[#allocation13 + $0xe0] sm:$0xff]
        %v4969 = vld [vmem:[#allocation13 + $0xe8] sm:$0xff]
        %v4970 = vld [vmem:[#allocation13 + $0xf0] sm:$0xff]
        %v4971 = vld [vmem:[#allocation13 + $0xf8] sm:$0xff]
        %v4972 = vpack.c.bf16 %v1780, %v1776
        %v4973 = vpack.c.bf16 %v1790, %v1786
        %v4974 = vpack.c.bf16 %v1800, %v1796
        %v4975 = vpack.c.bf16 %v1810, %v1806
        %v4976 = vpack.c.bf16 %v1820, %v1816
        %v4977 = vpack.c.bf16 %v1830, %v1826
        %v4978 = vpack.c.bf16 %v1840, %v1836
        %v4979 = vpack.c.bf16 %v1850, %v1846
        %v4980 = vpack.c.bf16 %v3022, %v3018
        %v4981 = vpack.c.bf16 %v3032, %v3028
        %v4982 = vpack.c.bf16 %v3042, %v3038
        %v4983 = vpack.c.bf16 %v3052, %v3048
        %v4984 = vpack.c.bf16 %v3062, %v3058
        %v4985 = vpack.c.bf16 %v3072, %v3068
        %v4986 = vpack.c.bf16 %v3082, %v3078
        %v4987 = vpack.c.bf16 %v3092, %v3088
        %v4988 = vpack.c.bf16 %v4264, %v4260
        %v4989 = vpack.c.bf16 %v4274, %v4270
        %v4990 = vpack.c.bf16 %v4284, %v4280
        %v4991 = vpack.c.bf16 %v4294, %v4290
        %v4992 = vpack.c.bf16 %v4304, %v4300
        %v4993 = vpack.c.bf16 %v4314, %v4310
        %v4994 = vpack.c.bf16 %v4324, %v4320
        %v4995 = vpack.c.bf16 %v4334, %v4330
        %4996 = vmatprep.subr.bf16.mxu0 0
        %4997 = vmatpush1.bf16.xpose.msra.mxu0 %v4980
        %4998 = vmatprep.subr.bf16.mxu0 0
        %4999 = vmatpush1.bf16.xpose.msra.mxu0 %v4981
        %5000 = vmatprep.subr.bf16.mxu0 0
        %5001 = vmatpush1.bf16.xpose.msra.mxu0 %v4982
        %5002 = vmatprep.subr.bf16.mxu0 0
        %5003 = vmatpush1.bf16.xpose.msra.mxu0 %v4983
        %5004 = vmatprep.subr.bf16.mxu0 0
        %5005 = vmatpush1.bf16.xpose.msra.mxu0 %v4984
        %5006 = vmatprep.subr.bf16.mxu0 0
        %5007 = vmatpush1.bf16.xpose.msra.mxu0 %v4985
        %5008 = vmatprep.subr.bf16.mxu0 0
        %5009 = vmatpush1.bf16.xpose.msra.mxu0 %v4986
        %5010 = vmatprep.subr.bf16.mxu0 0
        %5011 = vmatpush1.bf16.xpose.msra.mxu0 %v4987
        %5012 = vmatprep.subr.bf16.mxu0 0
        %5013 = vmatpush1.bf16.xpose.msra.mxu0 0
        %5014 = vmatprep.subr.bf16.mxu0 0
        %5015 = vmatpush1.bf16.xpose.msra.mxu0 0
        %5016 = vmatprep.subr.bf16.mxu0 0
        %5017 = vmatpush1.bf16.xpose.msra.mxu0 0
        %5018 = vmatprep.subr.bf16.mxu0 0
        %5019 = vmatpush1.bf16.xpose.msra.mxu0 0
        %5020 = vmatprep.subr.bf16.mxu0 0
        %5021 = vmatpush1.bf16.xpose.msra.mxu0 0
        %5022 = vmatprep.subr.bf16.mxu0 0
        %5023 = vmatpush1.bf16.xpose.msra.mxu0 0
        %5024 = vmatprep.subr.bf16.mxu0 0
        %5025 = vmatpush1.bf16.xpose.msra.mxu0 0
        %5026 = vmatprep.subr.bf16.mxu0 0
        %5027 = vmatpush1.bf16.xpose.msra.mxu0 0
        %5028 = vmatprep.mubr.bf16.mxu0 0
        %5029 = vmatmul.mubr.bf16.gmra.mrb[0].mxu0 %v4972
        %v5030 = vpop.f32.mrb[0].mxu0
        %v5031 = vadd.f32 0.0, %v5030
        %v5032 = vpop.f32.mrb[0].mxu0
        %v5033 = vpop.f32.mrb[0].mxu0
        %v5034 = vadd.f32 0.0, %v5033
        %v5035 = vpop.f32.mrb[0].mxu0
        %5036 = vmatprep.mubr.bf16.mxu0 0
        %5037 = vmatmul.mubr.bf16.gmra.mrb[0].mxu0 %v4973
        %v5038 = vpop.f32.mrb[0].mxu0
        %v5039 = vadd.f32 0.0, %v5038
        %v5040 = vpop.f32.mrb[0].mxu0
        %v5041 = vpop.f32.mrb[0].mxu0
        %v5042 = vadd.f32 0.0, %v5041
        %v5043 = vpop.f32.mrb[0].mxu0
        %5044 = vmatprep.mubr.bf16.mxu0 0
        %5045 = vmatmul.mubr.bf16.gmra.mrb[0].mxu0 %v4974
        %v5046 = vpop.f32.mrb[0].mxu0
        %v5047 = vadd.f32 0.0, %v5046
        %v5048 = vpop.f32.mrb[0].mxu0
        %v5049 = vpop.f32.mrb[0].mxu0
        %v5050 = vadd.f32 0.0, %v5049
        %v5051 = vpop.f32.mrb[0].mxu0
        %5052 = vmatprep.mubr.bf16.mxu0 0
        %5053 = vmatmul.mubr.bf16.gmra.mrb[0].mxu0 %v4975
        %v5054 = vpop.f32.mrb[0].mxu0
        %v5055 = vadd.f32 0.0, %v5054
        %v5056 = vpop.f32.mrb[0].mxu0
        %v5057 = vpop.f32.mrb[0].mxu0
        %v5058 = vadd.f32 0.0, %v5057
        %v5059 = vpop.f32.mrb[0].mxu0
        %5060 = vmatprep.mubr.bf16.mxu0 0
        %5061 = vmatmul.mubr.bf16.gmra.mrb[0].mxu0 %v4976
        %v5062 = vpop.f32.mrb[0].mxu0
        %v5063 = vadd.f32 0.0, %v5062
        %v5064 = vpop.f32.mrb[0].mxu0
        %v5065 = vpop.f32.mrb[0].mxu0
        %v5066 = vadd.f32 0.0, %v5065
        %v5067 = vpop.f32.mrb[0].mxu0
        %5068 = vmatprep.mubr.bf16.mxu0 0
        %5069 = vmatmul.mubr.bf16.gmra.mrb[0].mxu0 %v4977
        %v5070 = vpop.f32.mrb[0].mxu0
        %v5071 = vadd.f32 0.0, %v5070
        %v5072 = vpop.f32.mrb[0].mxu0
        %v5073 = vpop.f32.mrb[0].mxu0
        %v5074 = vadd.f32 0.0, %v5073
        %v5075 = vpop.f32.mrb[0].mxu0
        %5076 = vmatprep.mubr.bf16.mxu0 0
        %5077 = vmatmul.mubr.bf16.gmra.mrb[0].mxu0 %v4978
        %v5078 = vpop.f32.mrb[0].mxu0
        %v5079 = vadd.f32 0.0, %v5078
        %v5080 = vpop.f32.mrb[0].mxu0
        %v5081 = vpop.f32.mrb[0].mxu0
        %v5082 = vadd.f32 0.0, %v5081
        %v5083 = vpop.f32.mrb[0].mxu0
        %5084 = vmatprep.mubr.bf16.mxu0 0
        %5085 = vmatmul.mubr.bf16.gmra.mrb[0].mxu0 %v4979
        %v5086 = vpop.f32.mrb[0].mxu0
        %v5087 = vadd.f32 0.0, %v5086
        %v5088 = vpop.f32.mrb[0].mxu0
        %v5089 = vpop.f32.mrb[0].mxu0
        %v5090 = vadd.f32 0.0, %v5089
        %v5091 = vpop.f32.mrb[0].mxu0
        %5092 = vdwg.mxu0
        %5093 = vmax.xlane.f32.xlu0 %v5031
        %v5094 = vpop.xlane.xlu0 %5093
        %5095 = vmax.xlane.f32.xlu0 %v5034
        %v5096 = vpop.xlane.xlu0 %5095
        %5097 = vmax.xlane.f32.xlu0 %v5039
        %v5098 = vpop.xlane.xlu0 %5097
        %5099 = vmax.xlane.f32.xlu0 %v5042
        %v5100 = vpop.xlane.xlu0 %5099
        %5101 = vmax.xlane.f32.xlu0 %v5047
        %v5102 = vpop.xlane.xlu0 %5101
        %5103 = vmax.xlane.f32.xlu0 %v5050
        %v5104 = vpop.xlane.xlu0 %5103
        %5105 = vmax.xlane.f32.xlu0 %v5055
        %v5106 = vpop.xlane.xlu0 %5105
        %5107 = vmax.xlane.f32.xlu0 %v5058
        %v5108 = vpop.xlane.xlu0 %5107
        %5109 = vmax.xlane.f32.xlu0 %v5063
        %v5110 = vpop.xlane.xlu0 %5109
        %5111 = vmax.xlane.f32.xlu0 %v5066
        %v5112 = vpop.xlane.xlu0 %5111
        %5113 = vmax.xlane.f32.xlu0 %v5071
        %v5114 = vpop.xlane.xlu0 %5113
        %5115 = vmax.xlane.f32.xlu0 %v5074
        %v5116 = vpop.xlane.xlu0 %5115
        %5117 = vmax.xlane.f32.xlu0 %v5079
        %v5118 = vpop.xlane.xlu0 %5117
        %5119 = vmax.xlane.f32.xlu0 %v5082
        %v5120 = vpop.xlane.xlu0 %5119
        %5121 = vmax.xlane.f32.xlu0 %v5087
        %v5122 = vpop.xlane.xlu0 %5121
        %5123 = vmax.xlane.f32.xlu0 %v5090
        %v5124 = vpop.xlane.xlu0 %5123
        %v5125 = vsub.f32 %v5031, %v5094
        %v5126 = vsub.f32 %v5034, %v5096
        %v5127 = vsub.f32 %v5039, %v5098
        %v5128 = vsub.f32 %v5042, %v5100
        %v5129 = vsub.f32 %v5047, %v5102
        %v5130 = vsub.f32 %v5050, %v5104
        %v5131 = vsub.f32 %v5055, %v5106
        %v5132 = vsub.f32 %v5058, %v5108
        %v5133 = vsub.f32 %v5063, %v5110
        %v5134 = vsub.f32 %v5066, %v5112
        %v5135 = vsub.f32 %v5071, %v5114
        %v5136 = vsub.f32 %v5074, %v5116
        %v5137 = vsub.f32 %v5079, %v5118
        %v5138 = vsub.f32 %v5082, %v5120
        %v5139 = vsub.f32 %v5087, %v5122
        %v5140 = vsub.f32 %v5090, %v5124
        %v5141 = vmul.f32 %v5125, 1.442695
        %v5142 = vpow.pop %v5141
        %v5143 = vmul.f32 %v5126, 1.442695
        %v5144 = vpow.pop %v5143
        %v5145 = vmul.f32 %v5127, 1.442695
        %v5146 = vpow.pop %v5145
        %v5147 = vmul.f32 %v5128, 1.442695
        %v5148 = vpow.pop %v5147
        %v5149 = vmul.f32 %v5129, 1.442695
        %v5150 = vpow.pop %v5149
        %v5151 = vmul.f32 %v5130, 1.442695
        %v5152 = vpow.pop %v5151
        %v5153 = vmul.f32 %v5131, 1.442695
        %v5154 = vpow.pop %v5153
        %v5155 = vmul.f32 %v5132, 1.442695
        %v5156 = vpow.pop %v5155
        %v5157 = vmul.f32 %v5133, 1.442695
        %v5158 = vpow.pop %v5157
        %v5159 = vmul.f32 %v5134, 1.442695
        %v5160 = vpow.pop %v5159
        %v5161 = vmul.f32 %v5135, 1.442695
        %v5162 = vpow.pop %v5161
        %v5163 = vmul.f32 %v5136, 1.442695
        %v5164 = vpow.pop %v5163
        %v5165 = vmul.f32 %v5137, 1.442695
        %v5166 = vpow.pop %v5165
        %v5167 = vmul.f32 %v5138, 1.442695
        %v5168 = vpow.pop %v5167
        %v5169 = vmul.f32 %v5139, 1.442695
        %v5170 = vpow.pop %v5169
        %v5171 = vmul.f32 %v5140, 1.442695
        %v5172 = vpow.pop %v5171
        %5173 = vadd.xlane.f32.xlu0 %v5142
        %v5174 = vpop.xlane.xlu0 %5173
        %5175 = vadd.xlane.f32.xlu0 %v5144
        %v5176 = vpop.xlane.xlu0 %5175
        %5177 = vadd.xlane.f32.xlu0 %v5146
        %v5178 = vpop.xlane.xlu0 %5177
        %5179 = vadd.xlane.f32.xlu0 %v5148
        %v5180 = vpop.xlane.xlu0 %5179
        %5181 = vadd.xlane.f32.xlu0 %v5150
        %v5182 = vpop.xlane.xlu0 %5181
        %5183 = vadd.xlane.f32.xlu0 %v5152
        %v5184 = vpop.xlane.xlu0 %5183
        %5185 = vadd.xlane.f32.xlu0 %v5154
        %v5186 = vpop.xlane.xlu0 %5185
        %5187 = vadd.xlane.f32.xlu0 %v5156
        %v5188 = vpop.xlane.xlu0 %5187
        %5189 = vadd.xlane.f32.xlu0 %v5158
        %v5190 = vpop.xlane.xlu0 %5189
        %5191 = vadd.xlane.f32.xlu0 %v5160
        %v5192 = vpop.xlane.xlu0 %5191
        %5193 = vadd.xlane.f32.xlu0 %v5162
        %v5194 = vpop.xlane.xlu0 %5193
        %5195 = vadd.xlane.f32.xlu0 %v5164
        %v5196 = vpop.xlane.xlu0 %5195
        %5197 = vadd.xlane.f32.xlu0 %v5166
        %v5198 = vpop.xlane.xlu0 %5197
        %5199 = vadd.xlane.f32.xlu0 %v5168
        %v5200 = vpop.xlane.xlu0 %5199
        %5201 = vadd.xlane.f32.xlu0 %v5170
        %v5202 = vpop.xlane.xlu0 %5201
        %5203 = vadd.xlane.f32.xlu0 %v5172
        %v5204 = vpop.xlane.xlu0 %5203
        %v5205 = vrcp.pop %v5174
        %v5206 = vrcp.pop %v5176
        %v5207 = vrcp.pop %v5178
        %v5208 = vrcp.pop %v5180
        %v5209 = vrcp.pop %v5182
        %v5210 = vrcp.pop %v5184
        %v5211 = vrcp.pop %v5186
        %v5212 = vrcp.pop %v5188
        %v5213 = vrcp.pop %v5190
        %v5214 = vrcp.pop %v5192
        %v5215 = vrcp.pop %v5194
        %v5216 = vrcp.pop %v5196
        %v5217 = vrcp.pop %v5198
        %v5218 = vrcp.pop %v5200
        %v5219 = vrcp.pop %v5202
        %v5220 = vrcp.pop %v5204
        %v5221 = vmul.f32 %v5142, %v5205
        %v5222 = vmul.f32 %v5144, %v5206
        %v5223 = vmul.f32 %v5146, %v5207
        %v5224 = vmul.f32 %v5148, %v5208
        %v5225 = vmul.f32 %v5150, %v5209
        %v5226 = vmul.f32 %v5152, %v5210
        %v5227 = vmul.f32 %v5154, %v5211
        %v5228 = vmul.f32 %v5156, %v5212
        %v5229 = vmul.f32 %v5158, %v5213
        %v5230 = vmul.f32 %v5160, %v5214
        %v5231 = vmul.f32 %v5162, %v5215
        %v5232 = vmul.f32 %v5164, %v5216
        %v5233 = vmul.f32 %v5166, %v5217
        %v5234 = vmul.f32 %v5168, %v5218
        %v5235 = vmul.f32 %v5170, %v5219
        %v5236 = vmul.f32 %v5172, %v5220
        %v5237 = vpack.c.bf16 %v5222, %v5221
        %v5238 = vpack.c.bf16 %v5224, %v5223
        %v5239 = vpack.c.bf16 %v5226, %v5225
        %v5240 = vpack.c.bf16 %v5228, %v5227
        %v5241 = vpack.c.bf16 %v5230, %v5229
        %v5242 = vpack.c.bf16 %v5232, %v5231
        %v5243 = vpack.c.bf16 %v5234, %v5233
        %v5244 = vpack.c.bf16 %v5236, %v5235
        %5245 = vmatprep.subr.bf16.mxu0 0
        %5246 = vmatpush1.bf16.msra.mxu0 %v4988
        %5247 = vmatprep.subr.bf16.mxu0 0
        %5248 = vmatpush1.bf16.msra.mxu0 %v4989
        %5249 = vmatprep.subr.bf16.mxu0 0
        %5250 = vmatpush1.bf16.msra.mxu0 %v4990
        %5251 = vmatprep.subr.bf16.mxu0 0
        %5252 = vmatpush1.bf16.msra.mxu0 %v4991
        %5253 = vmatprep.subr.bf16.mxu0 0
        %5254 = vmatpush1.bf16.msra.mxu0 %v4992
        %5255 = vmatprep.subr.bf16.mxu0 0
        %5256 = vmatpush1.bf16.msra.mxu0 %v4993
        %5257 = vmatprep.subr.bf16.mxu0 0
        %5258 = vmatpush1.bf16.msra.mxu0 %v4994
        %5259 = vmatprep.subr.bf16.mxu0 0
        %5260 = vmatpush1.bf16.msra.mxu0 %v4995
        %5261 = vmatprep.subr.bf16.mxu0 0
        %5262 = vmatpush1.bf16.msra.mxu0 0
        %5263 = vmatprep.subr.bf16.mxu0 0
        %5264 = vmatpush1.bf16.msra.mxu0 0
        %5265 = vmatprep.subr.bf16.mxu0 0
        %5266 = vmatpush1.bf16.msra.mxu0 0
        %5267 = vmatprep.subr.bf16.mxu0 0
        %5268 = vmatpush1.bf16.msra.mxu0 0
        %5269 = vmatprep.subr.bf16.mxu0 0
        %5270 = vmatpush1.bf16.msra.mxu0 0
        %5271 = vmatprep.subr.bf16.mxu0 0
        %5272 = vmatpush1.bf16.msra.mxu0 0
        %5273 = vmatprep.subr.bf16.mxu0 0
        %5274 = vmatpush1.bf16.msra.mxu0 0
        %5275 = vmatprep.subr.bf16.mxu0 0
        %5276 = vmatpush1.bf16.msra.mxu0 0
        %5277 = vmatprep.mubr.bf16.mxu0 0
        %5278 = vmatmul.mubr.bf16.gmra.mrb[0].mxu0 %v5237
        %v5279 = vpop.f32.mrb[0].mxu0
        %v5280 = vadd.f32 0.0, %v5279
        %v5281 = vpop.f32.mrb[0].mxu0
        %v5282 = vpop.f32.mrb[0].mxu0
        %v5283 = vadd.f32 0.0, %v5282
        %v5284 = vpop.f32.mrb[0].mxu0
        %5285 = vmatprep.mubr.bf16.mxu0 0
        %5286 = vmatmul.mubr.bf16.gmra.mrb[0].mxu0 %v5238
        %v5287 = vpop.f32.mrb[0].mxu0
        %v5288 = vadd.f32 0.0, %v5287
        %v5289 = vpop.f32.mrb[0].mxu0
        %v5290 = vpop.f32.mrb[0].mxu0
        %v5291 = vadd.f32 0.0, %v5290
        %v5292 = vpop.f32.mrb[0].mxu0
        %5293 = vmatprep.mubr.bf16.mxu0 0
        %5294 = vmatmul.mubr.bf16.gmra.mrb[0].mxu0 %v5239
        %v5295 = vpop.f32.mrb[0].mxu0
        %v5296 = vadd.f32 0.0, %v5295
        %v5297 = vpop.f32.mrb[0].mxu0
        %v5298 = vpop.f32.mrb[0].mxu0
        %v5299 = vadd.f32 0.0, %v5298
        %v5300 = vpop.f32.mrb[0].mxu0
        %5301 = vmatprep.mubr.bf16.mxu0 0
        %5302 = vmatmul.mubr.bf16.gmra.mrb[0].mxu0 %v5240
        %v5303 = vpop.f32.mrb[0].mxu0
        %v5304 = vadd.f32 0.0, %v5303
        %v5305 = vpop.f32.mrb[0].mxu0
        %v5306 = vpop.f32.mrb[0].mxu0
        %v5307 = vadd.f32 0.0, %v5306
        %v5308 = vpop.f32.mrb[0].mxu0
        %5309 = vmatprep.mubr.bf16.mxu0 0
        %5310 = vmatmul.mubr.bf16.gmra.mrb[0].mxu0 %v5241
        %v5311 = vpop.f32.mrb[0].mxu0
        %v5312 = vadd.f32 0.0, %v5311
        %v5313 = vpop.f32.mrb[0].mxu0
        %v5314 = vpop.f32.mrb[0].mxu0
        %v5315 = vadd.f32 0.0, %v5314
        %v5316 = vpop.f32.mrb[0].mxu0
        %5317 = vmatprep.mubr.bf16.mxu0 0
        %5318 = vmatmul.mubr.bf16.gmra.mrb[0].mxu0 %v5242
        %v5319 = vpop.f32.mrb[0].mxu0
        %v5320 = vadd.f32 0.0, %v5319
        %v5321 = vpop.f32.mrb[0].mxu0
        %v5322 = vpop.f32.mrb[0].mxu0
        %v5323 = vadd.f32 0.0, %v5322
        %v5324 = vpop.f32.mrb[0].mxu0
        %5325 = vmatprep.mubr.bf16.mxu0 0
        %5326 = vmatmul.mubr.bf16.gmra.mrb[0].mxu0 %v5243
        %v5327 = vpop.f32.mrb[0].mxu0
        %v5328 = vadd.f32 0.0, %v5327
        %v5329 = vpop.f32.mrb[0].mxu0
        %v5330 = vpop.f32.mrb[0].mxu0
        %v5331 = vadd.f32 0.0, %v5330
        %v5332 = vpop.f32.mrb[0].mxu0
        %5333 = vmatprep.mubr.bf16.mxu0 0
        %5334 = vmatmul.mubr.bf16.gmra.mrb[0].mxu0 %v5244
        %v5335 = vpop.f32.mrb[0].mxu0
        %v5336 = vadd.f32 0.0, %v5335
        %v5337 = vpop.f32.mrb[0].mxu0
        %v5338 = vpop.f32.mrb[0].mxu0
        %v5339 = vadd.f32 0.0, %v5338
        %v5340 = vpop.f32.mrb[0].mxu0
        %5341 = vdwg.mxu0
        %v5342 = vpack.c.bf16 %v5283, %v5280
        %v5343 = vpack.c.bf16 %v5291, %v5288
        %v5344 = vpack.c.bf16 %v5299, %v5296
        %v5345 = vpack.c.bf16 %v5307, %v5304
        %v5346 = vpack.c.bf16 %v5315, %v5312
        %v5347 = vpack.c.bf16 %v5323, %v5320
        %v5348 = vpack.c.bf16 %v5331, %v5328
        %v5349 = vpack.c.bf16 %v5339, %v5336
        %v5350 = vld [vmem:[#allocation13 + $0x100] sm:$0xff]
        %v5351 = vld [vmem:[#allocation13 + $0x108] sm:$0xff]
        %v5352 = vld [vmem:[#allocation13 + $0x110] sm:$0xff]
        %v5353 = vld [vmem:[#allocation13 + $0x118] sm:$0xff]
        %v5354 = vld [vmem:[#allocation13 + $0x120] sm:$0xff]
        %v5355 = vld [vmem:[#allocation13 + $0x128] sm:$0xff]
        %v5356 = vld [vmem:[#allocation13 + $0x130] sm:$0xff]
        %v5357 = vld [vmem:[#allocation13 + $0x138] sm:$0xff]
        %v5358 = vld [vmem:[#allocation13 + $0x140] sm:$0xff]
        %v5359 = vld [vmem:[#allocation13 + $0x148] sm:$0xff]
        %v5360 = vld [vmem:[#allocation13 + $0x150] sm:$0xff]
        %v5361 = vld [vmem:[#allocation13 + $0x158] sm:$0xff]
        %v5362 = vld [vmem:[#allocation13 + $0x160] sm:$0xff]
        %v5363 = vld [vmem:[#allocation13 + $0x168] sm:$0xff]
        %v5364 = vld [vmem:[#allocation13 + $0x170] sm:$0xff]
        %v5365 = vld [vmem:[#allocation13 + $0x178] sm:$0xff]
        %v5366 = vld [vmem:[#allocation13 + $0x180] sm:$0xff]
        %v5367 = vld [vmem:[#allocation13 + $0x188] sm:$0xff]
        %v5368 = vld [vmem:[#allocation13 + $0x190] sm:$0xff]
        %v5369 = vld [vmem:[#allocation13 + $0x198] sm:$0xff]
        %v5370 = vld [vmem:[#allocation13 + $0x1a0] sm:$0xff]
        %v5371 = vld [vmem:[#allocation13 + $0x1a8] sm:$0xff]
        %v5372 = vld [vmem:[#allocation13 + $0x1b0] sm:$0xff]
        %v5373 = vld [vmem:[#allocation13 + $0x1b8] sm:$0xff]
        %v5374 = vld [vmem:[#allocation13 + $0x1c0] sm:$0xff]
        %v5375 = vld [vmem:[#allocation13 + $0x1c8] sm:$0xff]
        %v5376 = vld [vmem:[#allocation13 + $0x1d0] sm:$0xff]
        %v5377 = vld [vmem:[#allocation13 + $0x1d8] sm:$0xff]
        %v5378 = vld [vmem:[#allocation13 + $0x1e0] sm:$0xff]
        %v5379 = vld [vmem:[#allocation13 + $0x1e8] sm:$0xff]
        %v5380 = vld [vmem:[#allocation13 + $0x1f0] sm:$0xff]
        %v5381 = vld [vmem:[#allocation13 + $0x1f8] sm:$0xff]
        %v5414 = vunpack.c.l.b16 %v5350
        %v5415 = vunpack.c.h.b16 %v5350
        %v5416 = vunpack.c.l.b16 %v5351
        %v5417 = vunpack.c.h.b16 %v5351
        %v5418 = vunpack.c.l.b16 %v5352
        %v5419 = vunpack.c.h.b16 %v5352
        %v5420 = vunpack.c.l.b16 %v5353
        %v5421 = vunpack.c.h.b16 %v5353
        %v5422 = vunpack.c.l.b16 %v5354
        %v5423 = vunpack.c.h.b16 %v5354
        %v5424 = vunpack.c.l.b16 %v5355
        %v5425 = vunpack.c.h.b16 %v5355
        %v5426 = vunpack.c.l.b16 %v5356
        %v5427 = vunpack.c.h.b16 %v5356
        %v5428 = vunpack.c.l.b16 %v5357
        %v5429 = vunpack.c.h.b16 %v5357
        %v5430 = vunpack.c.l.b16 %v5358
        %v5431 = vunpack.c.h.b16 %v5358
        %v5432 = vunpack.c.l.b16 %v5359
        %v5433 = vunpack.c.h.b16 %v5359
        %v5434 = vunpack.c.l.b16 %v5360
        %v5435 = vunpack.c.h.b16 %v5360
        %v5436 = vunpack.c.l.b16 %v5361
        %v5437 = vunpack.c.h.b16 %v5361
        %v5438 = vunpack.c.l.b16 %v5362
        %v5439 = vunpack.c.h.b16 %v5362
        %v5440 = vunpack.c.l.b16 %v5363
        %v5441 = vunpack.c.h.b16 %v5363
        %v5442 = vunpack.c.l.b16 %v5364
        %v5443 = vunpack.c.h.b16 %v5364
        %v5444 = vunpack.c.l.b16 %v5365
        %v5445 = vunpack.c.h.b16 %v5365
        %v5446 = vunpack.c.l.b16 %v5366
        %v5447 = vunpack.c.h.b16 %v5366
        %v5448 = vunpack.c.l.b16 %v5367
        %v5449 = vunpack.c.h.b16 %v5367
        %v5450 = vunpack.c.l.b16 %v5368
        %v5451 = vunpack.c.h.b16 %v5368
        %v5452 = vunpack.c.l.b16 %v5369
        %v5453 = vunpack.c.h.b16 %v5369
        %v5454 = vunpack.c.l.b16 %v5370
        %v5455 = vunpack.c.h.b16 %v5370
        %v5456 = vunpack.c.l.b16 %v5371
        %v5457 = vunpack.c.h.b16 %v5371
        %v5458 = vunpack.c.l.b16 %v5372
        %v5459 = vunpack.c.h.b16 %v5372
        %v5460 = vunpack.c.l.b16 %v5373
        %v5461 = vunpack.c.h.b16 %v5373
        %v5462 = vunpack.c.l.b16 %v5374
        %v5463 = vunpack.c.h.b16 %v5374
        %v5464 = vunpack.c.l.b16 %v5375
        %v5465 = vunpack.c.h.b16 %v5375
        %v5466 = vunpack.c.l.b16 %v5376
        %v5467 = vunpack.c.h.b16 %v5376
        %v5468 = vunpack.c.l.b16 %v5377
        %v5469 = vunpack.c.h.b16 %v5377
        %v5470 = vunpack.c.l.b16 %v5378
        %v5471 = vunpack.c.h.b16 %v5378
        %v5472 = vunpack.c.l.b16 %v5379
        %v5473 = vunpack.c.h.b16 %v5379
        %v5474 = vunpack.c.l.b16 %v5380
        %v5475 = vunpack.c.h.b16 %v5380
        %v5476 = vunpack.c.l.b16 %v5381
        %v5477 = vunpack.c.h.b16 %v5381
        %v5478 = vpack.c.b16 %v5418, %v5414
        %v5479 = vpack.c.b16 %v5419, %v5415
        %v5480 = vpack.c.b16 %v5420, %v5416
        %v5481 = vpack.c.b16 %v5421, %v5417
        %v5482 = vpack.c.b16 %v5426, %v5422
        %v5483 = vpack.c.b16 %v5427, %v5423
        %v5484 = vpack.c.b16 %v5428, %v5424
        %v5485 = vpack.c.b16 %v5429, %v5425
        %v5486 = vpack.c.b16 %v5434, %v5430
        %v5487 = vpack.c.b16 %v5435, %v5431
        %v5488 = vpack.c.b16 %v5436, %v5432
        %v5489 = vpack.c.b16 %v5437, %v5433
        %v5490 = vpack.c.b16 %v5442, %v5438
        %v5491 = vpack.c.b16 %v5443, %v5439
        %v5492 = vpack.c.b16 %v5444, %v5440
        %v5493 = vpack.c.b16 %v5445, %v5441
        %v5494 = vpack.c.b16 %v5450, %v5446
        %v5495 = vpack.c.b16 %v5451, %v5447
        %v5496 = vpack.c.b16 %v5452, %v5448
        %v5497 = vpack.c.b16 %v5453, %v5449
        %v5498 = vpack.c.b16 %v5458, %v5454
        %v5499 = vpack.c.b16 %v5459, %v5455
        %v5500 = vpack.c.b16 %v5460, %v5456
        %v5501 = vpack.c.b16 %v5461, %v5457
        %v5502 = vpack.c.b16 %v5466, %v5462
        %v5503 = vpack.c.b16 %v5467, %v5463
        %v5504 = vpack.c.b16 %v5468, %v5464
        %v5505 = vpack.c.b16 %v5469, %v5465
        %v5506 = vpack.c.b16 %v5474, %v5470
        %v5507 = vpack.c.b16 %v5475, %v5471
        %v5508 = vpack.c.b16 %v5476, %v5472
        %v5509 = vpack.c.b16 %v5477, %v5473
        %5542 = vmatprep.subr.bf16.mxu0 %v5479
        %5543 = vmatpush1.bf16.msra.mxu0 %v5478
        %5544 = vmatprep.subr.bf16.mxu0 %v5483
        %5545 = vmatpush1.bf16.msra.mxu0 %v5482
        %5546 = vmatprep.subr.bf16.mxu0 %v5487
        %5547 = vmatpush1.bf16.msra.mxu0 %v5486
        %5548 = vmatprep.subr.bf16.mxu0 %v5491
        %5549 = vmatpush1.bf16.msra.mxu0 %v5490
        %5550 = vmatprep.subr.bf16.mxu0 %v5495
        %5551 = vmatpush1.bf16.msra.mxu0 %v5494
        %5552 = vmatprep.subr.bf16.mxu0 %v5499
        %5553 = vmatpush1.bf16.msra.mxu0 %v5498
        %5554 = vmatprep.subr.bf16.mxu0 %v5503
        %5555 = vmatpush1.bf16.msra.mxu0 %v5502
        %5556 = vmatprep.subr.bf16.mxu0 %v5507
        %5557 = vmatpush1.bf16.msra.mxu0 %v5506
        %5558 = vmatprep.subr.bf16.mxu0 0
        %5559 = vmatpush1.bf16.msra.mxu0 0
        %5560 = vmatprep.subr.bf16.mxu0 0
        %5561 = vmatpush1.bf16.msra.mxu0 0
        %5562 = vmatprep.subr.bf16.mxu0 0
        %5563 = vmatpush1.bf16.msra.mxu0 0
        %5564 = vmatprep.subr.bf16.mxu0 0
        %5565 = vmatpush1.bf16.msra.mxu0 0
        %5566 = vmatprep.subr.bf16.mxu0 0
        %5567 = vmatpush1.bf16.msra.mxu0 0
        %5568 = vmatprep.subr.bf16.mxu0 0
        %5569 = vmatpush1.bf16.msra.mxu0 0
        %5570 = vmatprep.subr.bf16.mxu0 0
        %5571 = vmatpush1.bf16.msra.mxu0 0
        %5572 = vmatprep.subr.bf16.mxu0 0
        %5573 = vmatpush1.bf16.msra.mxu0 0
        %5574 = vmatprep.mubr.bf16.mxu0 0
        %5575 = vmatmul.mubr.bf16.gmra.mrb[0].mxu0 %v5342
        %v5576 = vpop.f32.mrb[0].mxu0
        %v5577 = vadd.f32 0.0, %v5576
        %v5578 = vpop.f32.mrb[0].mxu0
        %v5579 = vadd.f32 0.0, %v5578
        %v5580 = vpop.f32.mrb[0].mxu0
        %v5581 = vadd.f32 0.0, %v5580
        %v5582 = vpop.f32.mrb[0].mxu0
        %v5583 = vadd.f32 0.0, %v5582
        %5584 = vmatprep.mubr.bf16.mxu0 0
        %5585 = vmatmul.mubr.bf16.gmra.mrb[0].mxu0 %v5343
        %v5586 = vpop.f32.mrb[0].mxu0
        %v5587 = vadd.f32 0.0, %v5586
        %v5588 = vpop.f32.mrb[0].mxu0
        %v5589 = vadd.f32 0.0, %v5588
        %v5590 = vpop.f32.mrb[0].mxu0
        %v5591 = vadd.f32 0.0, %v5590
        %v5592 = vpop.f32.mrb[0].mxu0
        %v5593 = vadd.f32 0.0, %v5592
        %5594 = vmatprep.mubr.bf16.mxu0 0
        %5595 = vmatmul.mubr.bf16.gmra.mrb[0].mxu0 %v5344
        %v5596 = vpop.f32.mrb[0].mxu0
        %v5597 = vadd.f32 0.0, %v5596
        %v5598 = vpop.f32.mrb[0].mxu0
        %v5599 = vadd.f32 0.0, %v5598
        %v5600 = vpop.f32.mrb[0].mxu0
        %v5601 = vadd.f32 0.0, %v5600
        %v5602 = vpop.f32.mrb[0].mxu0
        %v5603 = vadd.f32 0.0, %v5602
        %5604 = vmatprep.mubr.bf16.mxu0 0
        %5605 = vmatmul.mubr.bf16.gmra.mrb[0].mxu0 %v5345
        %v5606 = vpop.f32.mrb[0].mxu0
        %v5607 = vadd.f32 0.0, %v5606
        %v5608 = vpop.f32.mrb[0].mxu0
        %v5609 = vadd.f32 0.0, %v5608
        %v5610 = vpop.f32.mrb[0].mxu0
        %v5611 = vadd.f32 0.0, %v5610
        %v5612 = vpop.f32.mrb[0].mxu0
        %v5613 = vadd.f32 0.0, %v5612
        %5614 = vmatprep.mubr.bf16.mxu0 0
        %5615 = vmatmul.mubr.bf16.gmra.mrb[0].mxu0 %v5346
        %v5616 = vpop.f32.mrb[0].mxu0
        %v5617 = vadd.f32 0.0, %v5616
        %v5618 = vpop.f32.mrb[0].mxu0
        %v5619 = vadd.f32 0.0, %v5618
        %v5620 = vpop.f32.mrb[0].mxu0
        %v5621 = vadd.f32 0.0, %v5620
        %v5622 = vpop.f32.mrb[0].mxu0
        %v5623 = vadd.f32 0.0, %v5622
        %5624 = vmatprep.mubr.bf16.mxu0 0
        %5625 = vmatmul.mubr.bf16.gmra.mrb[0].mxu0 %v5347
        %v5626 = vpop.f32.mrb[0].mxu0
        %v5627 = vadd.f32 0.0, %v5626
        %v5628 = vpop.f32.mrb[0].mxu0
        %v5629 = vadd.f32 0.0, %v5628
        %v5630 = vpop.f32.mrb[0].mxu0
        %v5631 = vadd.f32 0.0, %v5630
        %v5632 = vpop.f32.mrb[0].mxu0
        %v5633 = vadd.f32 0.0, %v5632
        %5634 = vmatprep.mubr.bf16.mxu0 0
        %5635 = vmatmul.mubr.bf16.gmra.mrb[0].mxu0 %v5348
        %v5636 = vpop.f32.mrb[0].mxu0
        %v5637 = vadd.f32 0.0, %v5636
        %v5638 = vpop.f32.mrb[0].mxu0
        %v5639 = vadd.f32 0.0, %v5638
        %v5640 = vpop.f32.mrb[0].mxu0
        %v5641 = vadd.f32 0.0, %v5640
        %v5642 = vpop.f32.mrb[0].mxu0
        %v5643 = vadd.f32 0.0, %v5642
        %5644 = vmatprep.mubr.bf16.mxu0 0
        %5645 = vmatmul.mubr.bf16.gmra.mrb[0].mxu0 %v5349
        %v5646 = vpop.f32.mrb[0].mxu0
        %v5647 = vadd.f32 0.0, %v5646
        %v5648 = vpop.f32.mrb[0].mxu0
        %v5649 = vadd.f32 0.0, %v5648
        %v5650 = vpop.f32.mrb[0].mxu0
        %v5651 = vadd.f32 0.0, %v5650
        %v5652 = vpop.f32.mrb[0].mxu0
        %v5653 = vadd.f32 0.0, %v5652
        %5654 = vdwg.mxu0
        %5655 = vmatprep.subr.bf16.mxu0 %v5481
        %5656 = vmatpush1.bf16.msra.mxu0 %v5480
        %5657 = vmatprep.subr.bf16.mxu0 %v5485
        %5658 = vmatpush1.bf16.msra.mxu0 %v5484
        %5659 = vmatprep.subr.bf16.mxu0 %v5489
        %5660 = vmatpush1.bf16.msra.mxu0 %v5488
        %5661 = vmatprep.subr.bf16.mxu0 %v5493
        %5662 = vmatpush1.bf16.msra.mxu0 %v5492
        %5663 = vmatprep.subr.bf16.mxu0 %v5497
        %5664 = vmatpush1.bf16.msra.mxu0 %v5496
        %5665 = vmatprep.subr.bf16.mxu0 %v5501
        %5666 = vmatpush1.bf16.msra.mxu0 %v5500
        %5667 = vmatprep.subr.bf16.mxu0 %v5505
        %5668 = vmatpush1.bf16.msra.mxu0 %v5504
        %5669 = vmatprep.subr.bf16.mxu0 %v5509
        %5670 = vmatpush1.bf16.msra.mxu0 %v5508
        %5671 = vmatprep.subr.bf16.mxu0 0
        %5672 = vmatpush1.bf16.msra.mxu0 0
        %5673 = vmatprep.subr.bf16.mxu0 0
        %5674 = vmatpush1.bf16.msra.mxu0 0
        %5675 = vmatprep.subr.bf16.mxu0 0
        %5676 = vmatpush1.bf16.msra.mxu0 0
        %5677 = vmatprep.subr.bf16.mxu0 0
        %5678 = vmatpush1.bf16.msra.mxu0 0
        %5679 = vmatprep.subr.bf16.mxu0 0
        %5680 = vmatpush1.bf16.msra.mxu0 0
        %5681 = vmatprep.subr.bf16.mxu0 0
        %5682 = vmatpush1.bf16.msra.mxu0 0
        %5683 = vmatprep.subr.bf16.mxu0 0
        %5684 = vmatpush1.bf16.msra.mxu0 0
        %5685 = vmatprep.subr.bf16.mxu0 0
        %5686 = vmatpush1.bf16.msra.mxu0 0
        %5687 = vmatprep.mubr.bf16.mxu0 0
        %5688 = vmatmul.mubr.bf16.gmra.mrb[0].mxu0 %v5342
        %v5689 = vpop.f32.mrb[0].mxu0
        %v5690 = vadd.f32 0.0, %v5689
        %v5691 = vpop.f32.mrb[0].mxu0
        %v5692 = vadd.f32 0.0, %v5691
        %v5693 = vpop.f32.mrb[0].mxu0
        %v5694 = vadd.f32 0.0, %v5693
        %v5695 = vpop.f32.mrb[0].mxu0
        %v5696 = vadd.f32 0.0, %v5695
        %5697 = vmatprep.mubr.bf16.mxu0 0
        %5698 = vmatmul.mubr.bf16.gmra.mrb[0].mxu0 %v5343
        %v5699 = vpop.f32.mrb[0].mxu0
        %v5700 = vadd.f32 0.0, %v5699
        %v5701 = vpop.f32.mrb[0].mxu0
        %v5702 = vadd.f32 0.0, %v5701
        %v5703 = vpop.f32.mrb[0].mxu0
        %v5704 = vadd.f32 0.0, %v5703
        %v5705 = vpop.f32.mrb[0].mxu0
        %v5706 = vadd.f32 0.0, %v5705
        %5707 = vmatprep.mubr.bf16.mxu0 0
        %5708 = vmatmul.mubr.bf16.gmra.mrb[0].mxu0 %v5344
        %v5709 = vpop.f32.mrb[0].mxu0
        %v5710 = vadd.f32 0.0, %v5709
        %v5711 = vpop.f32.mrb[0].mxu0
        %v5712 = vadd.f32 0.0, %v5711
        %v5713 = vpop.f32.mrb[0].mxu0
        %v5714 = vadd.f32 0.0, %v5713
        %v5715 = vpop.f32.mrb[0].mxu0
        %v5716 = vadd.f32 0.0, %v5715
        %5717 = vmatprep.mubr.bf16.mxu0 0
        %5718 = vmatmul.mubr.bf16.gmra.mrb[0].mxu0 %v5345
        %v5719 = vpop.f32.mrb[0].mxu0
        %v5720 = vadd.f32 0.0, %v5719
        %v5721 = vpop.f32.mrb[0].mxu0
        %v5722 = vadd.f32 0.0, %v5721
        %v5723 = vpop.f32.mrb[0].mxu0
        %v5724 = vadd.f32 0.0, %v5723
        %v5725 = vpop.f32.mrb[0].mxu0
        %v5726 = vadd.f32 0.0, %v5725
        %5727 = vmatprep.mubr.bf16.mxu0 0
        %5728 = vmatmul.mubr.bf16.gmra.mrb[0].mxu0 %v5346
        %v5729 = vpop.f32.mrb[0].mxu0
        %v5730 = vadd.f32 0.0, %v5729
        %v5731 = vpop.f32.mrb[0].mxu0
        %v5732 = vadd.f32 0.0, %v5731
        %v5733 = vpop.f32.mrb[0].mxu0
        %v5734 = vadd.f32 0.0, %v5733
        %v5735 = vpop.f32.mrb[0].mxu0
        %v5736 = vadd.f32 0.0, %v5735
        %5737 = vmatprep.mubr.bf16.mxu0 0
        %5738 = vmatmul.mubr.bf16.gmra.mrb[0].mxu0 %v5347
        %v5739 = vpop.f32.mrb[0].mxu0
        %v5740 = vadd.f32 0.0, %v5739
        %v5741 = vpop.f32.mrb[0].mxu0
        %v5742 = vadd.f32 0.0, %v5741
        %v5743 = vpop.f32.mrb[0].mxu0
        %v5744 = vadd.f32 0.0, %v5743
        %v5745 = vpop.f32.mrb[0].mxu0
        %v5746 = vadd.f32 0.0, %v5745
        %5747 = vmatprep.mubr.bf16.mxu0 0
        %5748 = vmatmul.mubr.bf16.gmra.mrb[0].mxu0 %v5348
        %v5749 = vpop.f32.mrb[0].mxu0
        %v5750 = vadd.f32 0.0, %v5749
        %v5751 = vpop.f32.mrb[0].mxu0
        %v5752 = vadd.f32 0.0, %v5751
        %v5753 = vpop.f32.mrb[0].mxu0
        %v5754 = vadd.f32 0.0, %v5753
        %v5755 = vpop.f32.mrb[0].mxu0
        %v5756 = vadd.f32 0.0, %v5755
        %5757 = vmatprep.mubr.bf16.mxu0 0
        %5758 = vmatmul.mubr.bf16.gmra.mrb[0].mxu0 %v5349
        %v5759 = vpop.f32.mrb[0].mxu0
        %v5760 = vadd.f32 0.0, %v5759
        %v5761 = vpop.f32.mrb[0].mxu0
        %v5762 = vadd.f32 0.0, %v5761
        %v5763 = vpop.f32.mrb[0].mxu0
        %v5764 = vadd.f32 0.0, %v5763
        %v5765 = vpop.f32.mrb[0].mxu0
        %v5766 = vadd.f32 0.0, %v5765
        %5767 = vdwg.mxu0
        %v5800 = vunpack.c.l.b16 %v4940
        %v5801 = vunpack.c.h.b16 %v4940
        %v5802 = vunpack.c.l.b16 %v4941
        %v5803 = vunpack.c.h.b16 %v4941
        %v5804 = vunpack.c.l.b16 %v4942
        %v5805 = vunpack.c.h.b16 %v4942
        %v5806 = vunpack.c.l.b16 %v4943
        %v5807 = vunpack.c.h.b16 %v4943
        %v5808 = vunpack.c.l.b16 %v4944
        %v5809 = vunpack.c.h.b16 %v4944
        %v5810 = vunpack.c.l.b16 %v4945
        %v5811 = vunpack.c.h.b16 %v4945
        %v5812 = vunpack.c.l.b16 %v4946
        %v5813 = vunpack.c.h.b16 %v4946
        %v5814 = vunpack.c.l.b16 %v4947
        %v5815 = vunpack.c.h.b16 %v4947
        %v5816 = vunpack.c.l.b16 %v4948
        %v5817 = vunpack.c.h.b16 %v4948
        %v5818 = vunpack.c.l.b16 %v4949
        %v5819 = vunpack.c.h.b16 %v4949
        %v5820 = vunpack.c.l.b16 %v4950
        %v5821 = vunpack.c.h.b16 %v4950
        %v5822 = vunpack.c.l.b16 %v4951
        %v5823 = vunpack.c.h.b16 %v4951
        %v5824 = vunpack.c.l.b16 %v4952
        %v5825 = vunpack.c.h.b16 %v4952
        %v5826 = vunpack.c.l.b16 %v4953
        %v5827 = vunpack.c.h.b16 %v4953
        %v5828 = vunpack.c.l.b16 %v4954
        %v5829 = vunpack.c.h.b16 %v4954
        %v5830 = vunpack.c.l.b16 %v4955
        %v5831 = vunpack.c.h.b16 %v4955
        %v5832 = vunpack.c.l.b16 %v4956
        %v5833 = vunpack.c.h.b16 %v4956
        %v5834 = vunpack.c.l.b16 %v4957
        %v5835 = vunpack.c.h.b16 %v4957
        %v5836 = vunpack.c.l.b16 %v4958
        %v5837 = vunpack.c.h.b16 %v4958
        %v5838 = vunpack.c.l.b16 %v4959
        %v5839 = vunpack.c.h.b16 %v4959
        %v5840 = vunpack.c.l.b16 %v4960
        %v5841 = vunpack.c.h.b16 %v4960
        %v5842 = vunpack.c.l.b16 %v4961
        %v5843 = vunpack.c.h.b16 %v4961
        %v5844 = vunpack.c.l.b16 %v4962
        %v5845 = vunpack.c.h.b16 %v4962
        %v5846 = vunpack.c.l.b16 %v4963
        %v5847 = vunpack.c.h.b16 %v4963
        %v5848 = vunpack.c.l.b16 %v4964
        %v5849 = vunpack.c.h.b16 %v4964
        %v5850 = vunpack.c.l.b16 %v4965
        %v5851 = vunpack.c.h.b16 %v4965
        %v5852 = vunpack.c.l.b16 %v4966
        %v5853 = vunpack.c.h.b16 %v4966
        %v5854 = vunpack.c.l.b16 %v4967
        %v5855 = vunpack.c.h.b16 %v4967
        %v5856 = vunpack.c.l.b16 %v4968
        %v5857 = vunpack.c.h.b16 %v4968
        %v5858 = vunpack.c.l.b16 %v4969
        %v5859 = vunpack.c.h.b16 %v4969
        %v5860 = vunpack.c.l.b16 %v4970
        %v5861 = vunpack.c.h.b16 %v4970
        %v5862 = vunpack.c.l.b16 %v4971
        %v5863 = vunpack.c.h.b16 %v4971
        %v5864 = vpack.c.b16 %v5804, %v5800
        %v5865 = vpack.c.b16 %v5805, %v5801
        %v5866 = vpack.c.b16 %v5806, %v5802
        %v5867 = vpack.c.b16 %v5807, %v5803
        %v5868 = vpack.c.b16 %v5812, %v5808
        %v5869 = vpack.c.b16 %v5813, %v5809
        %v5870 = vpack.c.b16 %v5814, %v5810
        %v5871 = vpack.c.b16 %v5815, %v5811
        %v5872 = vpack.c.b16 %v5820, %v5816
        %v5873 = vpack.c.b16 %v5821, %v5817
        %v5874 = vpack.c.b16 %v5822, %v5818
        %v5875 = vpack.c.b16 %v5823, %v5819
        %v5876 = vpack.c.b16 %v5828, %v5824
        %v5877 = vpack.c.b16 %v5829, %v5825
        %v5878 = vpack.c.b16 %v5830, %v5826
        %v5879 = vpack.c.b16 %v5831, %v5827
        %v5880 = vpack.c.b16 %v5836, %v5832
        %v5881 = vpack.c.b16 %v5837, %v5833
        %v5882 = vpack.c.b16 %v5838, %v5834
        %v5883 = vpack.c.b16 %v5839, %v5835
        %v5884 = vpack.c.b16 %v5844, %v5840
        %v5885 = vpack.c.b16 %v5845, %v5841
        %v5886 = vpack.c.b16 %v5846, %v5842
        %v5887 = vpack.c.b16 %v5847, %v5843
        %v5888 = vpack.c.b16 %v5852, %v5848
        %v5889 = vpack.c.b16 %v5853, %v5849
        %v5890 = vpack.c.b16 %v5854, %v5850
        %v5891 = vpack.c.b16 %v5855, %v5851
        %v5892 = vpack.c.b16 %v5860, %v5856
        %v5893 = vpack.c.b16 %v5861, %v5857
        %v5894 = vpack.c.b16 %v5862, %v5858
        %v5895 = vpack.c.b16 %v5863, %v5859
        %5928 = vmatprep.subr.bf16.mxu0 %v5865
        %5929 = vmatpush1.bf16.msra.mxu0 %v5864
        %5930 = vmatprep.subr.bf16.mxu0 %v5869
        %5931 = vmatpush1.bf16.msra.mxu0 %v5868
        %5932 = vmatprep.subr.bf16.mxu0 %v5873
        %5933 = vmatpush1.bf16.msra.mxu0 %v5872
        %5934 = vmatprep.subr.bf16.mxu0 %v5877
        %5935 = vmatpush1.bf16.msra.mxu0 %v5876
        %5936 = vmatprep.subr.bf16.mxu0 %v5881
        %5937 = vmatpush1.bf16.msra.mxu0 %v5880
        %5938 = vmatprep.subr.bf16.mxu0 %v5885
        %5939 = vmatpush1.bf16.msra.mxu0 %v5884
        %5940 = vmatprep.subr.bf16.mxu0 %v5889
        %5941 = vmatpush1.bf16.msra.mxu0 %v5888
        %5942 = vmatprep.subr.bf16.mxu0 %v5893
        %5943 = vmatpush1.bf16.msra.mxu0 %v5892
        %5944 = vmatprep.subr.bf16.mxu0 0
        %5945 = vmatpush1.bf16.msra.mxu0 0
        %5946 = vmatprep.subr.bf16.mxu0 0
        %5947 = vmatpush1.bf16.msra.mxu0 0
        %5948 = vmatprep.subr.bf16.mxu0 0
        %5949 = vmatpush1.bf16.msra.mxu0 0
        %5950 = vmatprep.subr.bf16.mxu0 0
        %5951 = vmatpush1.bf16.msra.mxu0 0
        %5952 = vmatprep.subr.bf16.mxu0 0
        %5953 = vmatpush1.bf16.msra.mxu0 0
        %5954 = vmatprep.subr.bf16.mxu0 0
        %5955 = vmatpush1.bf16.msra.mxu0 0
        %5956 = vmatprep.subr.bf16.mxu0 0
        %5957 = vmatpush1.bf16.msra.mxu0 0
        %5958 = vmatprep.subr.bf16.mxu0 0
        %5959 = vmatpush1.bf16.msra.mxu0 0
        %5960 = vmatprep.mubr.bf16.mxu0 0
        %5961 = vmatmul.mubr.bf16.gmra.mrb[0].mxu0 %v4932
        %v5962 = vpop.f32.mrb[0].mxu0
        %v5963 = vadd.f32 %v5577, %v5962
        %v5964 = vpop.f32.mrb[0].mxu0
        %v5965 = vadd.f32 %v5579, %v5964
        %v5966 = vpop.f32.mrb[0].mxu0
        %v5967 = vadd.f32 %v5581, %v5966
        %v5968 = vpop.f32.mrb[0].mxu0
        %v5969 = vadd.f32 %v5583, %v5968
        %5970 = vmatprep.mubr.bf16.mxu0 0
        %5971 = vmatmul.mubr.bf16.gmra.mrb[0].mxu0 %v4933
        %v5972 = vpop.f32.mrb[0].mxu0
        %v5973 = vadd.f32 %v5587, %v5972
        %v5974 = vpop.f32.mrb[0].mxu0
        %v5975 = vadd.f32 %v5589, %v5974
        %v5976 = vpop.f32.mrb[0].mxu0
        %v5977 = vadd.f32 %v5591, %v5976
        %v5978 = vpop.f32.mrb[0].mxu0
        %v5979 = vadd.f32 %v5593, %v5978
        %5980 = vmatprep.mubr.bf16.mxu0 0
        %5981 = vmatmul.mubr.bf16.gmra.mrb[0].mxu0 %v4934
        %v5982 = vpop.f32.mrb[0].mxu0
        %v5983 = vadd.f32 %v5597, %v5982
        %v5984 = vpop.f32.mrb[0].mxu0
        %v5985 = vadd.f32 %v5599, %v5984
        %v5986 = vpop.f32.mrb[0].mxu0
        %v5987 = vadd.f32 %v5601, %v5986
        %v5988 = vpop.f32.mrb[0].mxu0
        %v5989 = vadd.f32 %v5603, %v5988
        %5990 = vmatprep.mubr.bf16.mxu0 0
        %5991 = vmatmul.mubr.bf16.gmra.mrb[0].mxu0 %v4935
        %v5992 = vpop.f32.mrb[0].mxu0
        %v5993 = vadd.f32 %v5607, %v5992
        %v5994 = vpop.f32.mrb[0].mxu0
        %v5995 = vadd.f32 %v5609, %v5994
        %v5996 = vpop.f32.mrb[0].mxu0
        %v5997 = vadd.f32 %v5611, %v5996
        %v5998 = vpop.f32.mrb[0].mxu0
        %v5999 = vadd.f32 %v5613, %v5998
        %6000 = vmatprep.mubr.bf16.mxu0 0
        %6001 = vmatmul.mubr.bf16.gmra.mrb[0].mxu0 %v4936
        %v6002 = vpop.f32.mrb[0].mxu0
        %v6003 = vadd.f32 %v5617, %v6002
        %v6004 = vpop.f32.mrb[0].mxu0
        %v6005 = vadd.f32 %v5619, %v6004
        %v6006 = vpop.f32.mrb[0].mxu0
        %v6007 = vadd.f32 %v5621, %v6006
        %v6008 = vpop.f32.mrb[0].mxu0
        %v6009 = vadd.f32 %v5623, %v6008
        %6010 = vmatprep.mubr.bf16.mxu0 0
        %6011 = vmatmul.mubr.bf16.gmra.mrb[0].mxu0 %v4937
        %v6012 = vpop.f32.mrb[0].mxu0
        %v6013 = vadd.f32 %v5627, %v6012
        %v6014 = vpop.f32.mrb[0].mxu0
        %v6015 = vadd.f32 %v5629, %v6014
        %v6016 = vpop.f32.mrb[0].mxu0
        %v6017 = vadd.f32 %v5631, %v6016
        %v6018 = vpop.f32.mrb[0].mxu0
        %v6019 = vadd.f32 %v5633, %v6018
        %6020 = vmatprep.mubr.bf16.mxu0 0
        %6021 = vmatmul.mubr.bf16.gmra.mrb[0].mxu0 %v4938
        %v6022 = vpop.f32.mrb[0].mxu0
        %v6023 = vadd.f32 %v5637, %v6022
        %v6024 = vpop.f32.mrb[0].mxu0
        %v6025 = vadd.f32 %v5639, %v6024
        %v6026 = vpop.f32.mrb[0].mxu0
        %v6027 = vadd.f32 %v5641, %v6026
        %v6028 = vpop.f32.mrb[0].mxu0
        %v6029 = vadd.f32 %v5643, %v6028
        %6030 = vmatprep.mubr.bf16.mxu0 0
        %6031 = vmatmul.mubr.bf16.gmra.mrb[0].mxu0 %v4939
        %v6032 = vpop.f32.mrb[0].mxu0
        %v6033 = vadd.f32 %v5647, %v6032
        %v6034 = vpop.f32.mrb[0].mxu0
        %v6035 = vadd.f32 %v5649, %v6034
        %v6036 = vpop.f32.mrb[0].mxu0
        %v6037 = vadd.f32 %v5651, %v6036
        %v6038 = vpop.f32.mrb[0].mxu0
        %v6039 = vadd.f32 %v5653, %v6038
        %6040 = vdwg.mxu0
        %6041 = vmatprep.subr.bf16.mxu0 %v5867
        %6042 = vmatpush1.bf16.msra.mxu0 %v5866
        %6043 = vmatprep.subr.bf16.mxu0 %v5871
        %6044 = vmatpush1.bf16.msra.mxu0 %v5870
        %6045 = vmatprep.subr.bf16.mxu0 %v5875
        %6046 = vmatpush1.bf16.msra.mxu0 %v5874
        %6047 = vmatprep.subr.bf16.mxu0 %v5879
        %6048 = vmatpush1.bf16.msra.mxu0 %v5878
        %6049 = vmatprep.subr.bf16.mxu0 %v5883
        %6050 = vmatpush1.bf16.msra.mxu0 %v5882
        %6051 = vmatprep.subr.bf16.mxu0 %v5887
        %6052 = vmatpush1.bf16.msra.mxu0 %v5886
        %6053 = vmatprep.subr.bf16.mxu0 %v5891
        %6054 = vmatpush1.bf16.msra.mxu0 %v5890
        %6055 = vmatprep.subr.bf16.mxu0 %v5895
        %6056 = vmatpush1.bf16.msra.mxu0 %v5894
        %6057 = vmatprep.subr.bf16.mxu0 0
        %6058 = vmatpush1.bf16.msra.mxu0 0
        %6059 = vmatprep.subr.bf16.mxu0 0
        %6060 = vmatpush1.bf16.msra.mxu0 0
        %6061 = vmatprep.subr.bf16.mxu0 0
        %6062 = vmatpush1.bf16.msra.mxu0 0
        %6063 = vmatprep.subr.bf16.mxu0 0
        %6064 = vmatpush1.bf16.msra.mxu0 0
        %6065 = vmatprep.subr.bf16.mxu0 0
        %6066 = vmatpush1.bf16.msra.mxu0 0
        %6067 = vmatprep.subr.bf16.mxu0 0
        %6068 = vmatpush1.bf16.msra.mxu0 0
        %6069 = vmatprep.subr.bf16.mxu0 0
        %6070 = vmatpush1.bf16.msra.mxu0 0
        %6071 = vmatprep.subr.bf16.mxu0 0
        %6072 = vmatpush1.bf16.msra.mxu0 0
        %6073 = vmatprep.mubr.bf16.mxu0 0
        %6074 = vmatmul.mubr.bf16.gmra.mrb[0].mxu0 %v4932
        %v6075 = vpop.f32.mrb[0].mxu0
        %v6076 = vadd.f32 %v5690, %v6075
        %v6077 = vpop.f32.mrb[0].mxu0
        %v6078 = vadd.f32 %v5692, %v6077
        %v6079 = vpop.f32.mrb[0].mxu0
        %v6080 = vadd.f32 %v5694, %v6079
        %v6081 = vpop.f32.mrb[0].mxu0
        %v6082 = vadd.f32 %v5696, %v6081
        %6083 = vmatprep.mubr.bf16.mxu0 0
        %6084 = vmatmul.mubr.bf16.gmra.mrb[0].mxu0 %v4933
        %v6085 = vpop.f32.mrb[0].mxu0
        %v6086 = vadd.f32 %v5700, %v6085
        %v6087 = vpop.f32.mrb[0].mxu0
        %v6088 = vadd.f32 %v5702, %v6087
        %v6089 = vpop.f32.mrb[0].mxu0
        %v6090 = vadd.f32 %v5704, %v6089
        %v6091 = vpop.f32.mrb[0].mxu0
        %v6092 = vadd.f32 %v5706, %v6091
        %6093 = vmatprep.mubr.bf16.mxu0 0
        %6094 = vmatmul.mubr.bf16.gmra.mrb[0].mxu0 %v4934
        %v6095 = vpop.f32.mrb[0].mxu0
        %v6096 = vadd.f32 %v5710, %v6095
        %v6097 = vpop.f32.mrb[0].mxu0
        %v6098 = vadd.f32 %v5712, %v6097
        %v6099 = vpop.f32.mrb[0].mxu0
        %v6100 = vadd.f32 %v5714, %v6099
        %v6101 = vpop.f32.mrb[0].mxu0
        %v6102 = vadd.f32 %v5716, %v6101
        %6103 = vmatprep.mubr.bf16.mxu0 0
        %6104 = vmatmul.mubr.bf16.gmra.mrb[0].mxu0 %v4935
        %v6105 = vpop.f32.mrb[0].mxu0
        %v6106 = vadd.f32 %v5720, %v6105
        %v6107 = vpop.f32.mrb[0].mxu0
        %v6108 = vadd.f32 %v5722, %v6107
        %v6109 = vpop.f32.mrb[0].mxu0
        %v6110 = vadd.f32 %v5724, %v6109
        %v6111 = vpop.f32.mrb[0].mxu0
        %v6112 = vadd.f32 %v5726, %v6111
        %6113 = vmatprep.mubr.bf16.mxu0 0
        %6114 = vmatmul.mubr.bf16.gmra.mrb[0].mxu0 %v4936
        %v6115 = vpop.f32.mrb[0].mxu0
        %v6116 = vadd.f32 %v5730, %v6115
        %v6117 = vpop.f32.mrb[0].mxu0
        %v6118 = vadd.f32 %v5732, %v6117
        %v6119 = vpop.f32.mrb[0].mxu0
        %v6120 = vadd.f32 %v5734, %v6119
        %v6121 = vpop.f32.mrb[0].mxu0
        %v6122 = vadd.f32 %v5736, %v6121
        %6123 = vmatprep.mubr.bf16.mxu0 0
        %6124 = vmatmul.mubr.bf16.gmra.mrb[0].mxu0 %v4937
        %v6125 = vpop.f32.mrb[0].mxu0
        %v6126 = vadd.f32 %v5740, %v6125
        %v6127 = vpop.f32.mrb[0].mxu0
        %v6128 = vadd.f32 %v5742, %v6127
        %v6129 = vpop.f32.mrb[0].mxu0
        %v6130 = vadd.f32 %v5744, %v6129
        %v6131 = vpop.f32.mrb[0].mxu0
        %v6132 = vadd.f32 %v5746, %v6131
        %6133 = vmatprep.mubr.bf16.mxu0 0
        %6134 = vmatmul.mubr.bf16.gmra.mrb[0].mxu0 %v4938
        %v6135 = vpop.f32.mrb[0].mxu0
        %v6136 = vadd.f32 %v5750, %v6135
        %v6137 = vpop.f32.mrb[0].mxu0
        %v6138 = vadd.f32 %v5752, %v6137
        %v6139 = vpop.f32.mrb[0].mxu0
        %v6140 = vadd.f32 %v5754, %v6139
        %v6141 = vpop.f32.mrb[0].mxu0
        %v6142 = vadd.f32 %v5756, %v6141
        %6143 = vmatprep.mubr.bf16.mxu0 0
        %6144 = vmatmul.mubr.bf16.gmra.mrb[0].mxu0 %v4939
        %v6145 = vpop.f32.mrb[0].mxu0
        %v6146 = vadd.f32 %v5760, %v6145
        %v6147 = vpop.f32.mrb[0].mxu0
        %v6148 = vadd.f32 %v5762, %v6147
        %v6149 = vpop.f32.mrb[0].mxu0
        %v6150 = vadd.f32 %v5764, %v6149
        %v6151 = vpop.f32.mrb[0].mxu0
        %v6152 = vadd.f32 %v5766, %v6151
        %6153 = vdwg.mxu0
        %v6154 = vpack.c.bf16 %v2004, %v2000
        %v6155 = vpack.c.bf16 %v2014, %v2010
        %v6156 = vpack.c.bf16 %v2024, %v2020
        %v6157 = vpack.c.bf16 %v2034, %v2030
        %v6158 = vpack.c.bf16 %v2044, %v2040
        %v6159 = vpack.c.bf16 %v2054, %v2050
        %v6160 = vpack.c.bf16 %v2064, %v2060
        %v6161 = vpack.c.bf16 %v2074, %v2070
        %v6162 = vpack.c.bf16 %v3246, %v3242
        %v6163 = vpack.c.bf16 %v3256, %v3252
        %v6164 = vpack.c.bf16 %v3266, %v3262
        %v6165 = vpack.c.bf16 %v3276, %v3272
        %v6166 = vpack.c.bf16 %v3286, %v3282
        %v6167 = vpack.c.bf16 %v3296, %v3292
        %v6168 = vpack.c.bf16 %v3306, %v3302
        %v6169 = vpack.c.bf16 %v3316, %v3312
        %v6170 = vpack.c.bf16 %v4488, %v4484
        %v6171 = vpack.c.bf16 %v4498, %v4494
        %v6172 = vpack.c.bf16 %v4508, %v4504
        %v6173 = vpack.c.bf16 %v4518, %v4514
        %v6174 = vpack.c.bf16 %v4528, %v4524
        %v6175 = vpack.c.bf16 %v4538, %v4534
        %v6176 = vpack.c.bf16 %v4548, %v4544
        %v6177 = vpack.c.bf16 %v4558, %v4554
        %6178 = vmatprep.subr.bf16.mxu0 0
        %6179 = vmatpush1.bf16.xpose.msra.mxu0 %v6162
        %6180 = vmatprep.subr.bf16.mxu0 0
        %6181 = vmatpush1.bf16.xpose.msra.mxu0 %v6163
        %6182 = vmatprep.subr.bf16.mxu0 0
        %6183 = vmatpush1.bf16.xpose.msra.mxu0 %v6164
        %6184 = vmatprep.subr.bf16.mxu0 0
        %6185 = vmatpush1.bf16.xpose.msra.mxu0 %v6165
        %6186 = vmatprep.subr.bf16.mxu0 0
        %6187 = vmatpush1.bf16.xpose.msra.mxu0 %v6166
        %6188 = vmatprep.subr.bf16.mxu0 0
        %6189 = vmatpush1.bf16.xpose.msra.mxu0 %v6167
        %6190 = vmatprep.subr.bf16.mxu0 0
        %6191 = vmatpush1.bf16.xpose.msra.mxu0 %v6168
        %6192 = vmatprep.subr.bf16.mxu0 0
        %6193 = vmatpush1.bf16.xpose.msra.mxu0 %v6169
        %6194 = vmatprep.subr.bf16.mxu0 0
        %6195 = vmatpush1.bf16.xpose.msra.mxu0 0
        %6196 = vmatprep.subr.bf16.mxu0 0
        %6197 = vmatpush1.bf16.xpose.msra.mxu0 0
        %6198 = vmatprep.subr.bf16.mxu0 0
        %6199 = vmatpush1.bf16.xpose.msra.mxu0 0
        %6200 = vmatprep.subr.bf16.mxu0 0
        %6201 = vmatpush1.bf16.xpose.msra.mxu0 0
        %6202 = vmatprep.subr.bf16.mxu0 0
        %6203 = vmatpush1.bf16.xpose.msra.mxu0 0
        %6204 = vmatprep.subr.bf16.mxu0 0
        %6205 = vmatpush1.bf16.xpose.msra.mxu0 0
        %6206 = vmatprep.subr.bf16.mxu0 0
        %6207 = vmatpush1.bf16.xpose.msra.mxu0 0
        %6208 = vmatprep.subr.bf16.mxu0 0
        %6209 = vmatpush1.bf16.xpose.msra.mxu0 0
        %6210 = vmatprep.mubr.bf16.mxu0 0
        %6211 = vmatmul.mubr.bf16.gmra.mrb[0].mxu0 %v6154
        %v6212 = vpop.f32.mrb[0].mxu0
        %v6213 = vadd.f32 0.0, %v6212
        %v6214 = vpop.f32.mrb[0].mxu0
        %v6215 = vpop.f32.mrb[0].mxu0
        %v6216 = vadd.f32 0.0, %v6215
        %v6217 = vpop.f32.mrb[0].mxu0
        %6218 = vmatprep.mubr.bf16.mxu0 0
        %6219 = vmatmul.mubr.bf16.gmra.mrb[0].mxu0 %v6155
        %v6220 = vpop.f32.mrb[0].mxu0
        %v6221 = vadd.f32 0.0, %v6220
        %v6222 = vpop.f32.mrb[0].mxu0
        %v6223 = vpop.f32.mrb[0].mxu0
        %v6224 = vadd.f32 0.0, %v6223
        %v6225 = vpop.f32.mrb[0].mxu0
        %6226 = vmatprep.mubr.bf16.mxu0 0
        %6227 = vmatmul.mubr.bf16.gmra.mrb[0].mxu0 %v6156
        %v6228 = vpop.f32.mrb[0].mxu0
        %v6229 = vadd.f32 0.0, %v6228
        %v6230 = vpop.f32.mrb[0].mxu0
        %v6231 = vpop.f32.mrb[0].mxu0
        %v6232 = vadd.f32 0.0, %v6231
        %v6233 = vpop.f32.mrb[0].mxu0
        %6234 = vmatprep.mubr.bf16.mxu0 0
        %6235 = vmatmul.mubr.bf16.gmra.mrb[0].mxu0 %v6157
        %v6236 = vpop.f32.mrb[0].mxu0
        %v6237 = vadd.f32 0.0, %v6236
        %v6238 = vpop.f32.mrb[0].mxu0
        %v6239 = vpop.f32.mrb[0].mxu0
        %v6240 = vadd.f32 0.0, %v6239
        %v6241 = vpop.f32.mrb[0].mxu0
        %6242 = vmatprep.mubr.bf16.mxu0 0
        %6243 = vmatmul.mubr.bf16.gmra.mrb[0].mxu0 %v6158
        %v6244 = vpop.f32.mrb[0].mxu0
        %v6245 = vadd.f32 0.0, %v6244
        %v6246 = vpop.f32.mrb[0].mxu0
        %v6247 = vpop.f32.mrb[0].mxu0
        %v6248 = vadd.f32 0.0, %v6247
        %v6249 = vpop.f32.mrb[0].mxu0
        %6250 = vmatprep.mubr.bf16.mxu0 0
        %6251 = vmatmul.mubr.bf16.gmra.mrb[0].mxu0 %v6159
        %v6252 = vpop.f32.mrb[0].mxu0
        %v6253 = vadd.f32 0.0, %v6252
        %v6254 = vpop.f32.mrb[0].mxu0
        %v6255 = vpop.f32.mrb[0].mxu0
        %v6256 = vadd.f32 0.0, %v6255
        %v6257 = vpop.f32.mrb[0].mxu0
        %6258 = vmatprep.mubr.bf16.mxu0 0
        %6259 = vmatmul.mubr.bf16.gmra.mrb[0].mxu0 %v6160
        %v6260 = vpop.f32.mrb[0].mxu0
        %v6261 = vadd.f32 0.0, %v6260
        %v6262 = vpop.f32.mrb[0].mxu0
        %v6263 = vpop.f32.mrb[0].mxu0
        %v6264 = vadd.f32 0.0, %v6263
        %v6265 = vpop.f32.mrb[0].mxu0
        %6266 = vmatprep.mubr.bf16.mxu0 0
        %6267 = vmatmul.mubr.bf16.gmra.mrb[0].mxu0 %v6161
        %v6268 = vpop.f32.mrb[0].mxu0
        %v6269 = vadd.f32 0.0, %v6268
        %v6270 = vpop.f32.mrb[0].mxu0
        %v6271 = vpop.f32.mrb[0].mxu0
        %v6272 = vadd.f32 0.0, %v6271
        %v6273 = vpop.f32.mrb[0].mxu0
        %6274 = vdwg.mxu0
        %6275 = vmax.xlane.f32.xlu0 %v6213
        %v6276 = vpop.xlane.xlu0 %6275
        %6277 = vmax.xlane.f32.xlu0 %v6216
        %v6278 = vpop.xlane.xlu0 %6277
        %6279 = vmax.xlane.f32.xlu0 %v6221
        %v6280 = vpop.xlane.xlu0 %6279
        %6281 = vmax.xlane.f32.xlu0 %v6224
        %v6282 = vpop.xlane.xlu0 %6281
        %6283 = vmax.xlane.f32.xlu0 %v6229
        %v6284 = vpop.xlane.xlu0 %6283
        %6285 = vmax.xlane.f32.xlu0 %v6232
        %v6286 = vpop.xlane.xlu0 %6285
        %6287 = vmax.xlane.f32.xlu0 %v6237
        %v6288 = vpop.xlane.xlu0 %6287
        %6289 = vmax.xlane.f32.xlu0 %v6240
        %v6290 = vpop.xlane.xlu0 %6289
        %6291 = vmax.xlane.f32.xlu0 %v6245
        %v6292 = vpop.xlane.xlu0 %6291
        %6293 = vmax.xlane.f32.xlu0 %v6248
        %v6294 = vpop.xlane.xlu0 %6293
        %6295 = vmax.xlane.f32.xlu0 %v6253
        %v6296 = vpop.xlane.xlu0 %6295
        %6297 = vmax.xlane.f32.xlu0 %v6256
        %v6298 = vpop.xlane.xlu0 %6297
        %6299 = vmax.xlane.f32.xlu0 %v6261
        %v6300 = vpop.xlane.xlu0 %6299
        %6301 = vmax.xlane.f32.xlu0 %v6264
        %v6302 = vpop.xlane.xlu0 %6301
        %6303 = vmax.xlane.f32.xlu0 %v6269
        %v6304 = vpop.xlane.xlu0 %6303
        %6305 = vmax.xlane.f32.xlu0 %v6272
        %v6306 = vpop.xlane.xlu0 %6305
        %v6307 = vsub.f32 %v6213, %v6276
        %v6308 = vsub.f32 %v6216, %v6278
        %v6309 = vsub.f32 %v6221, %v6280
        %v6310 = vsub.f32 %v6224, %v6282
        %v6311 = vsub.f32 %v6229, %v6284
        %v6312 = vsub.f32 %v6232, %v6286
        %v6313 = vsub.f32 %v6237, %v6288
        %v6314 = vsub.f32 %v6240, %v6290
        %v6315 = vsub.f32 %v6245, %v6292
        %v6316 = vsub.f32 %v6248, %v6294
        %v6317 = vsub.f32 %v6253, %v6296
        %v6318 = vsub.f32 %v6256, %v6298
        %v6319 = vsub.f32 %v6261, %v6300
        %v6320 = vsub.f32 %v6264, %v6302
        %v6321 = vsub.f32 %v6269, %v6304
        %v6322 = vsub.f32 %v6272, %v6306
        %v6323 = vmul.f32 %v6307, 1.442695
        %v6324 = vpow.pop %v6323
        %v6325 = vmul.f32 %v6308, 1.442695
        %v6326 = vpow.pop %v6325
        %v6327 = vmul.f32 %v6309, 1.442695
        %v6328 = vpow.pop %v6327
        %v6329 = vmul.f32 %v6310, 1.442695
        %v6330 = vpow.pop %v6329
        %v6331 = vmul.f32 %v6311, 1.442695
        %v6332 = vpow.pop %v6331
        %v6333 = vmul.f32 %v6312, 1.442695
        %v6334 = vpow.pop %v6333
        %v6335 = vmul.f32 %v6313, 1.442695
        %v6336 = vpow.pop %v6335
        %v6337 = vmul.f32 %v6314, 1.442695
        %v6338 = vpow.pop %v6337
        %v6339 = vmul.f32 %v6315, 1.442695
        %v6340 = vpow.pop %v6339
        %v6341 = vmul.f32 %v6316, 1.442695
        %v6342 = vpow.pop %v6341
        %v6343 = vmul.f32 %v6317, 1.442695
        %v6344 = vpow.pop %v6343
        %v6345 = vmul.f32 %v6318, 1.442695
        %v6346 = vpow.pop %v6345
        %v6347 = vmul.f32 %v6319, 1.442695
        %v6348 = vpow.pop %v6347
        %v6349 = vmul.f32 %v6320, 1.442695
        %v6350 = vpow.pop %v6349
        %v6351 = vmul.f32 %v6321, 1.442695
        %v6352 = vpow.pop %v6351
        %v6353 = vmul.f32 %v6322, 1.442695
        %v6354 = vpow.pop %v6353
        %6355 = vadd.xlane.f32.xlu0 %v6324
        %v6356 = vpop.xlane.xlu0 %6355
        %6357 = vadd.xlane.f32.xlu0 %v6326
        %v6358 = vpop.xlane.xlu0 %6357
        %6359 = vadd.xlane.f32.xlu0 %v6328
        %v6360 = vpop.xlane.xlu0 %6359
        %6361 = vadd.xlane.f32.xlu0 %v6330
        %v6362 = vpop.xlane.xlu0 %6361
        %6363 = vadd.xlane.f32.xlu0 %v6332
        %v6364 = vpop.xlane.xlu0 %6363
        %6365 = vadd.xlane.f32.xlu0 %v6334
        %v6366 = vpop.xlane.xlu0 %6365
        %6367 = vadd.xlane.f32.xlu0 %v6336
        %v6368 = vpop.xlane.xlu0 %6367
        %6369 = vadd.xlane.f32.xlu0 %v6338
        %v6370 = vpop.xlane.xlu0 %6369
        %6371 = vadd.xlane.f32.xlu0 %v6340
        %v6372 = vpop.xlane.xlu0 %6371
        %6373 = vadd.xlane.f32.xlu0 %v6342
        %v6374 = vpop.xlane.xlu0 %6373
        %6375 = vadd.xlane.f32.xlu0 %v6344
        %v6376 = vpop.xlane.xlu0 %6375
        %6377 = vadd.xlane.f32.xlu0 %v6346
        %v6378 = vpop.xlane.xlu0 %6377
        %6379 = vadd.xlane.f32.xlu0 %v6348
        %v6380 = vpop.xlane.xlu0 %6379
        %6381 = vadd.xlane.f32.xlu0 %v6350
        %v6382 = vpop.xlane.xlu0 %6381
        %6383 = vadd.xlane.f32.xlu0 %v6352
        %v6384 = vpop.xlane.xlu0 %6383
        %6385 = vadd.xlane.f32.xlu0 %v6354
        %v6386 = vpop.xlane.xlu0 %6385
        %v6387 = vrcp.pop %v6356
        %v6388 = vrcp.pop %v6358
        %v6389 = vrcp.pop %v6360
        %v6390 = vrcp.pop %v6362
        %v6391 = vrcp.pop %v6364
        %v6392 = vrcp.pop %v6366
        %v6393 = vrcp.pop %v6368
        %v6394 = vrcp.pop %v6370
        %v6395 = vrcp.pop %v6372
        %v6396 = vrcp.pop %v6374
        %v6397 = vrcp.pop %v6376
        %v6398 = vrcp.pop %v6378
        %v6399 = vrcp.pop %v6380
        %v6400 = vrcp.pop %v6382
        %v6401 = vrcp.pop %v6384
        %v6402 = vrcp.pop %v6386
        %v6403 = vmul.f32 %v6324, %v6387
        %v6404 = vmul.f32 %v6326, %v6388
        %v6405 = vmul.f32 %v6328, %v6389
        %v6406 = vmul.f32 %v6330, %v6390
        %v6407 = vmul.f32 %v6332, %v6391
        %v6408 = vmul.f32 %v6334, %v6392
        %v6409 = vmul.f32 %v6336, %v6393
        %v6410 = vmul.f32 %v6338, %v6394
        %v6411 = vmul.f32 %v6340, %v6395
        %v6412 = vmul.f32 %v6342, %v6396
        %v6413 = vmul.f32 %v6344, %v6397
        %v6414 = vmul.f32 %v6346, %v6398
        %v6415 = vmul.f32 %v6348, %v6399
        %v6416 = vmul.f32 %v6350, %v6400
        %v6417 = vmul.f32 %v6352, %v6401
        %v6418 = vmul.f32 %v6354, %v6402
        %v6419 = vpack.c.bf16 %v6404, %v6403
        %v6420 = vpack.c.bf16 %v6406, %v6405
        %v6421 = vpack.c.bf16 %v6408, %v6407
        %v6422 = vpack.c.bf16 %v6410, %v6409
        %v6423 = vpack.c.bf16 %v6412, %v6411
        %v6424 = vpack.c.bf16 %v6414, %v6413
        %v6425 = vpack.c.bf16 %v6416, %v6415
        %v6426 = vpack.c.bf16 %v6418, %v6417
        %6427 = vmatprep.subr.bf16.mxu0 0
        %6428 = vmatpush1.bf16.msra.mxu0 %v6170
        %6429 = vmatprep.subr.bf16.mxu0 0
        %6430 = vmatpush1.bf16.msra.mxu0 %v6171
        %6431 = vmatprep.subr.bf16.mxu0 0
        %6432 = vmatpush1.bf16.msra.mxu0 %v6172
        %6433 = vmatprep.subr.bf16.mxu0 0
        %6434 = vmatpush1.bf16.msra.mxu0 %v6173
        %6435 = vmatprep.subr.bf16.mxu0 0
        %6436 = vmatpush1.bf16.msra.mxu0 %v6174
        %6437 = vmatprep.subr.bf16.mxu0 0
        %6438 = vmatpush1.bf16.msra.mxu0 %v6175
        %6439 = vmatprep.subr.bf16.mxu0 0
        %6440 = vmatpush1.bf16.msra.mxu0 %v6176
        %6441 = vmatprep.subr.bf16.mxu0 0
        %6442 = vmatpush1.bf16.msra.mxu0 %v6177
        %6443 = vmatprep.subr.bf16.mxu0 0
        %6444 = vmatpush1.bf16.msra.mxu0 0
        %6445 = vmatprep.subr.bf16.mxu0 0
        %6446 = vmatpush1.bf16.msra.mxu0 0
        %6447 = vmatprep.subr.bf16.mxu0 0
        %6448 = vmatpush1.bf16.msra.mxu0 0
        %6449 = vmatprep.subr.bf16.mxu0 0
        %6450 = vmatpush1.bf16.msra.mxu0 0
        %6451 = vmatprep.subr.bf16.mxu0 0
        %6452 = vmatpush1.bf16.msra.mxu0 0
        %6453 = vmatprep.subr.bf16.mxu0 0
        %6454 = vmatpush1.bf16.msra.mxu0 0
        %6455 = vmatprep.subr.bf16.mxu0 0
        %6456 = vmatpush1.bf16.msra.mxu0 0
        %6457 = vmatprep.subr.bf16.mxu0 0
        %6458 = vmatpush1.bf16.msra.mxu0 0
        %6459 = vmatprep.mubr.bf16.mxu0 0
        %6460 = vmatmul.mubr.bf16.gmra.mrb[0].mxu0 %v6419
        %v6461 = vpop.f32.mrb[0].mxu0
        %v6462 = vadd.f32 0.0, %v6461
        %v6463 = vpop.f32.mrb[0].mxu0
        %v6464 = vpop.f32.mrb[0].mxu0
        %v6465 = vadd.f32 0.0, %v6464
        %v6466 = vpop.f32.mrb[0].mxu0
        %6467 = vmatprep.mubr.bf16.mxu0 0
        %6468 = vmatmul.mubr.bf16.gmra.mrb[0].mxu0 %v6420
        %v6469 = vpop.f32.mrb[0].mxu0
        %v6470 = vadd.f32 0.0, %v6469
        %v6471 = vpop.f32.mrb[0].mxu0
        %v6472 = vpop.f32.mrb[0].mxu0
        %v6473 = vadd.f32 0.0, %v6472
        %v6474 = vpop.f32.mrb[0].mxu0
        %6475 = vmatprep.mubr.bf16.mxu0 0
        %6476 = vmatmul.mubr.bf16.gmra.mrb[0].mxu0 %v6421
        %v6477 = vpop.f32.mrb[0].mxu0
        %v6478 = vadd.f32 0.0, %v6477
        %v6479 = vpop.f32.mrb[0].mxu0
        %v6480 = vpop.f32.mrb[0].mxu0
        %v6481 = vadd.f32 0.0, %v6480
        %v6482 = vpop.f32.mrb[0].mxu0
        %6483 = vmatprep.mubr.bf16.mxu0 0
        %6484 = vmatmul.mubr.bf16.gmra.mrb[0].mxu0 %v6422
        %v6485 = vpop.f32.mrb[0].mxu0
        %v6486 = vadd.f32 0.0, %v6485
        %v6487 = vpop.f32.mrb[0].mxu0
        %v6488 = vpop.f32.mrb[0].mxu0
        %v6489 = vadd.f32 0.0, %v6488
        %v6490 = vpop.f32.mrb[0].mxu0
        %6491 = vmatprep.mubr.bf16.mxu0 0
        %6492 = vmatmul.mubr.bf16.gmra.mrb[0].mxu0 %v6423
        %v6493 = vpop.f32.mrb[0].mxu0
        %v6494 = vadd.f32 0.0, %v6493
        %v6495 = vpop.f32.mrb[0].mxu0
        %v6496 = vpop.f32.mrb[0].mxu0
        %v6497 = vadd.f32 0.0, %v6496
        %v6498 = vpop.f32.mrb[0].mxu0
        %6499 = vmatprep.mubr.bf16.mxu0 0
        %6500 = vmatmul.mubr.bf16.gmra.mrb[0].mxu0 %v6424
        %v6501 = vpop.f32.mrb[0].mxu0
        %v6502 = vadd.f32 0.0, %v6501
        %v6503 = vpop.f32.mrb[0].mxu0
        %v6504 = vpop.f32.mrb[0].mxu0
        %v6505 = vadd.f32 0.0, %v6504
        %v6506 = vpop.f32.mrb[0].mxu0
        %6507 = vmatprep.mubr.bf16.mxu0 0
        %6508 = vmatmul.mubr.bf16.gmra.mrb[0].mxu0 %v6425
        %v6509 = vpop.f32.mrb[0].mxu0
        %v6510 = vadd.f32 0.0, %v6509
        %v6511 = vpop.f32.mrb[0].mxu0
        %v6512 = vpop.f32.mrb[0].mxu0
        %v6513 = vadd.f32 0.0, %v6512
        %v6514 = vpop.f32.mrb[0].mxu0
        %6515 = vmatprep.mubr.bf16.mxu0 0
        %6516 = vmatmul.mubr.bf16.gmra.mrb[0].mxu0 %v6426
        %v6517 = vpop.f32.mrb[0].mxu0
        %v6518 = vadd.f32 0.0, %v6517
        %v6519 = vpop.f32.mrb[0].mxu0
        %v6520 = vpop.f32.mrb[0].mxu0
        %v6521 = vadd.f32 0.0, %v6520
        %v6522 = vpop.f32.mrb[0].mxu0
        %6523 = vdwg.mxu0
        %v6524 = vpack.c.bf16 %v6465, %v6462
        %v6525 = vpack.c.bf16 %v6473, %v6470
        %v6526 = vpack.c.bf16 %v6481, %v6478
        %v6527 = vpack.c.bf16 %v6489, %v6486
        %v6528 = vpack.c.bf16 %v6497, %v6494
        %v6529 = vpack.c.bf16 %v6505, %v6502
        %v6530 = vpack.c.bf16 %v6513, %v6510
        %v6531 = vpack.c.bf16 %v6521, %v6518
        %v6532 = vld [vmem:[#allocation13 + $0x200] sm:$0xff]
        %v6533 = vld [vmem:[#allocation13 + $0x208] sm:$0xff]
        %v6534 = vld [vmem:[#allocation13 + $0x210] sm:$0xff]
        %v6535 = vld [vmem:[#allocation13 + $0x218] sm:$0xff]
        %v6536 = vld [vmem:[#allocation13 + $0x220] sm:$0xff]
        %v6537 = vld [vmem:[#allocation13 + $0x228] sm:$0xff]
        %v6538 = vld [vmem:[#allocation13 + $0x230] sm:$0xff]
        %v6539 = vld [vmem:[#allocation13 + $0x238] sm:$0xff]
        %v6540 = vld [vmem:[#allocation13 + $0x240] sm:$0xff]
        %v6541 = vld [vmem:[#allocation13 + $0x248] sm:$0xff]
        %v6542 = vld [vmem:[#allocation13 + $0x250] sm:$0xff]
        %v6543 = vld [vmem:[#allocation13 + $0x258] sm:$0xff]
        %v6544 = vld [vmem:[#allocation13 + $0x260] sm:$0xff]
        %v6545 = vld [vmem:[#allocation13 + $0x268] sm:$0xff]
        %v6546 = vld [vmem:[#allocation13 + $0x270] sm:$0xff]
        %v6547 = vld [vmem:[#allocation13 + $0x278] sm:$0xff]
        %v6548 = vld [vmem:[#allocation13 + $0x280] sm:$0xff]
        %v6549 = vld [vmem:[#allocation13 + $0x288] sm:$0xff]
        %v6550 = vld [vmem:[#allocation13 + $0x290] sm:$0xff]
        %v6551 = vld [vmem:[#allocation13 + $0x298] sm:$0xff]
        %v6552 = vld [vmem:[#allocation13 + $0x2a0] sm:$0xff]
        %v6553 = vld [vmem:[#allocation13 + $0x2a8] sm:$0xff]
        %v6554 = vld [vmem:[#allocation13 + $0x2b0] sm:$0xff]
        %v6555 = vld [vmem:[#allocation13 + $0x2b8] sm:$0xff]
        %v6556 = vld [vmem:[#allocation13 + $0x2c0] sm:$0xff]
        %v6557 = vld [vmem:[#allocation13 + $0x2c8] sm:$0xff]
        %v6558 = vld [vmem:[#allocation13 + $0x2d0] sm:$0xff]
        %v6559 = vld [vmem:[#allocation13 + $0x2d8] sm:$0xff]
        %v6560 = vld [vmem:[#allocation13 + $0x2e0] sm:$0xff]
        %v6561 = vld [vmem:[#allocation13 + $0x2e8] sm:$0xff]
        %v6562 = vld [vmem:[#allocation13 + $0x2f0] sm:$0xff]
        %v6563 = vld [vmem:[#allocation13 + $0x2f8] sm:$0xff]
        %v6596 = vunpack.c.l.b16 %v6532
        %v6597 = vunpack.c.h.b16 %v6532
        %v6598 = vunpack.c.l.b16 %v6533
        %v6599 = vunpack.c.h.b16 %v6533
        %v6600 = vunpack.c.l.b16 %v6534
        %v6601 = vunpack.c.h.b16 %v6534
        %v6602 = vunpack.c.l.b16 %v6535
        %v6603 = vunpack.c.h.b16 %v6535
        %v6604 = vunpack.c.l.b16 %v6536
        %v6605 = vunpack.c.h.b16 %v6536
        %v6606 = vunpack.c.l.b16 %v6537
        %v6607 = vunpack.c.h.b16 %v6537
        %v6608 = vunpack.c.l.b16 %v6538
        %v6609 = vunpack.c.h.b16 %v6538
        %v6610 = vunpack.c.l.b16 %v6539
        %v6611 = vunpack.c.h.b16 %v6539
        %v6612 = vunpack.c.l.b16 %v6540
        %v6613 = vunpack.c.h.b16 %v6540
        %v6614 = vunpack.c.l.b16 %v6541
        %v6615 = vunpack.c.h.b16 %v6541
        %v6616 = vunpack.c.l.b16 %v6542
        %v6617 = vunpack.c.h.b16 %v6542
        %v6618 = vunpack.c.l.b16 %v6543
        %v6619 = vunpack.c.h.b16 %v6543
        %v6620 = vunpack.c.l.b16 %v6544
        %v6621 = vunpack.c.h.b16 %v6544
        %v6622 = vunpack.c.l.b16 %v6545
        %v6623 = vunpack.c.h.b16 %v6545
        %v6624 = vunpack.c.l.b16 %v6546
        %v6625 = vunpack.c.h.b16 %v6546
        %v6626 = vunpack.c.l.b16 %v6547
        %v6627 = vunpack.c.h.b16 %v6547
        %v6628 = vunpack.c.l.b16 %v6548
        %v6629 = vunpack.c.h.b16 %v6548
        %v6630 = vunpack.c.l.b16 %v6549
        %v6631 = vunpack.c.h.b16 %v6549
        %v6632 = vunpack.c.l.b16 %v6550
        %v6633 = vunpack.c.h.b16 %v6550
        %v6634 = vunpack.c.l.b16 %v6551
        %v6635 = vunpack.c.h.b16 %v6551
        %v6636 = vunpack.c.l.b16 %v6552
        %v6637 = vunpack.c.h.b16 %v6552
        %v6638 = vunpack.c.l.b16 %v6553
        %v6639 = vunpack.c.h.b16 %v6553
        %v6640 = vunpack.c.l.b16 %v6554
        %v6641 = vunpack.c.h.b16 %v6554
        %v6642 = vunpack.c.l.b16 %v6555
        %v6643 = vunpack.c.h.b16 %v6555
        %v6644 = vunpack.c.l.b16 %v6556
        %v6645 = vunpack.c.h.b16 %v6556
        %v6646 = vunpack.c.l.b16 %v6557
        %v6647 = vunpack.c.h.b16 %v6557
        %v6648 = vunpack.c.l.b16 %v6558
        %v6649 = vunpack.c.h.b16 %v6558
        %v6650 = vunpack.c.l.b16 %v6559
        %v6651 = vunpack.c.h.b16 %v6559
        %v6652 = vunpack.c.l.b16 %v6560
        %v6653 = vunpack.c.h.b16 %v6560
        %v6654 = vunpack.c.l.b16 %v6561
        %v6655 = vunpack.c.h.b16 %v6561
        %v6656 = vunpack.c.l.b16 %v6562
        %v6657 = vunpack.c.h.b16 %v6562
        %v6658 = vunpack.c.l.b16 %v6563
        %v6659 = vunpack.c.h.b16 %v6563
        %v6660 = vpack.c.b16 %v6600, %v6596
        %v6661 = vpack.c.b16 %v6601, %v6597
        %v6662 = vpack.c.b16 %v6602, %v6598
        %v6663 = vpack.c.b16 %v6603, %v6599
        %v6664 = vpack.c.b16 %v6608, %v6604
        %v6665 = vpack.c.b16 %v6609, %v6605
        %v6666 = vpack.c.b16 %v6610, %v6606
        %v6667 = vpack.c.b16 %v6611, %v6607
        %v6668 = vpack.c.b16 %v6616, %v6612
        %v6669 = vpack.c.b16 %v6617, %v6613
        %v6670 = vpack.c.b16 %v6618, %v6614
        %v6671 = vpack.c.b16 %v6619, %v6615
        %v6672 = vpack.c.b16 %v6624, %v6620
        %v6673 = vpack.c.b16 %v6625, %v6621
        %v6674 = vpack.c.b16 %v6626, %v6622
        %v6675 = vpack.c.b16 %v6627, %v6623
        %v6676 = vpack.c.b16 %v6632, %v6628
        %v6677 = vpack.c.b16 %v6633, %v6629
        %v6678 = vpack.c.b16 %v6634, %v6630
        %v6679 = vpack.c.b16 %v6635, %v6631
        %v6680 = vpack.c.b16 %v6640, %v6636
        %v6681 = vpack.c.b16 %v6641, %v6637
        %v6682 = vpack.c.b16 %v6642, %v6638
        %v6683 = vpack.c.b16 %v6643, %v6639
        %v6684 = vpack.c.b16 %v6648, %v6644
        %v6685 = vpack.c.b16 %v6649, %v6645
        %v6686 = vpack.c.b16 %v6650, %v6646
        %v6687 = vpack.c.b16 %v6651, %v6647
        %v6688 = vpack.c.b16 %v6656, %v6652
        %v6689 = vpack.c.b16 %v6657, %v6653
        %v6690 = vpack.c.b16 %v6658, %v6654
        %v6691 = vpack.c.b16 %v6659, %v6655
        %6724 = vmatprep.subr.bf16.mxu0 %v6661
        %6725 = vmatpush1.bf16.msra.mxu0 %v6660
        %6726 = vmatprep.subr.bf16.mxu0 %v6665
        %6727 = vmatpush1.bf16.msra.mxu0 %v6664
        %6728 = vmatprep.subr.bf16.mxu0 %v6669
        %6729 = vmatpush1.bf16.msra.mxu0 %v6668
        %6730 = vmatprep.subr.bf16.mxu0 %v6673
        %6731 = vmatpush1.bf16.msra.mxu0 %v6672
        %6732 = vmatprep.subr.bf16.mxu0 %v6677
        %6733 = vmatpush1.bf16.msra.mxu0 %v6676
        %6734 = vmatprep.subr.bf16.mxu0 %v6681
        %6735 = vmatpush1.bf16.msra.mxu0 %v6680
        %6736 = vmatprep.subr.bf16.mxu0 %v6685
        %6737 = vmatpush1.bf16.msra.mxu0 %v6684
        %6738 = vmatprep.subr.bf16.mxu0 %v6689
        %6739 = vmatpush1.bf16.msra.mxu0 %v6688
        %6740 = vmatprep.subr.bf16.mxu0 0
        %6741 = vmatpush1.bf16.msra.mxu0 0
        %6742 = vmatprep.subr.bf16.mxu0 0
        %6743 = vmatpush1.bf16.msra.mxu0 0
        %6744 = vmatprep.subr.bf16.mxu0 0
        %6745 = vmatpush1.bf16.msra.mxu0 0
        %6746 = vmatprep.subr.bf16.mxu0 0
        %6747 = vmatpush1.bf16.msra.mxu0 0
        %6748 = vmatprep.subr.bf16.mxu0 0
        %6749 = vmatpush1.bf16.msra.mxu0 0
        %6750 = vmatprep.subr.bf16.mxu0 0
        %6751 = vmatpush1.bf16.msra.mxu0 0
        %6752 = vmatprep.subr.bf16.mxu0 0
        %6753 = vmatpush1.bf16.msra.mxu0 0
        %6754 = vmatprep.subr.bf16.mxu0 0
        %6755 = vmatpush1.bf16.msra.mxu0 0
        %6756 = vmatprep.mubr.bf16.mxu0 0
        %6757 = vmatmul.mubr.bf16.gmra.mrb[0].mxu0 %v6524
        %v6758 = vpop.f32.mrb[0].mxu0
        %v6759 = vadd.f32 0.0, %v6758
        %v6760 = vpop.f32.mrb[0].mxu0
        %v6761 = vadd.f32 0.0, %v6760
        %v6762 = vpop.f32.mrb[0].mxu0
        %v6763 = vadd.f32 0.0, %v6762
        %v6764 = vpop.f32.mrb[0].mxu0
        %v6765 = vadd.f32 0.0, %v6764
        %6766 = vmatprep.mubr.bf16.mxu0 0
        %6767 = vmatmul.mubr.bf16.gmra.mrb[0].mxu0 %v6525
        %v6768 = vpop.f32.mrb[0].mxu0
        %v6769 = vadd.f32 0.0, %v6768
        %v6770 = vpop.f32.mrb[0].mxu0
        %v6771 = vadd.f32 0.0, %v6770
        %v6772 = vpop.f32.mrb[0].mxu0
        %v6773 = vadd.f32 0.0, %v6772
        %v6774 = vpop.f32.mrb[0].mxu0
        %v6775 = vadd.f32 0.0, %v6774
        %6776 = vmatprep.mubr.bf16.mxu0 0
        %6777 = vmatmul.mubr.bf16.gmra.mrb[0].mxu0 %v6526
        %v6778 = vpop.f32.mrb[0].mxu0
        %v6779 = vadd.f32 0.0, %v6778
        %v6780 = vpop.f32.mrb[0].mxu0
        %v6781 = vadd.f32 0.0, %v6780
        %v6782 = vpop.f32.mrb[0].mxu0
        %v6783 = vadd.f32 0.0, %v6782
        %v6784 = vpop.f32.mrb[0].mxu0
        %v6785 = vadd.f32 0.0, %v6784
        %6786 = vmatprep.mubr.bf16.mxu0 0
        %6787 = vmatmul.mubr.bf16.gmra.mrb[0].mxu0 %v6527
        %v6788 = vpop.f32.mrb[0].mxu0
        %v6789 = vadd.f32 0.0, %v6788
        %v6790 = vpop.f32.mrb[0].mxu0
        %v6791 = vadd.f32 0.0, %v6790
        %v6792 = vpop.f32.mrb[0].mxu0
        %v6793 = vadd.f32 0.0, %v6792
        %v6794 = vpop.f32.mrb[0].mxu0
        %v6795 = vadd.f32 0.0, %v6794
        %6796 = vmatprep.mubr.bf16.mxu0 0
        %6797 = vmatmul.mubr.bf16.gmra.mrb[0].mxu0 %v6528
        %v6798 = vpop.f32.mrb[0].mxu0
        %v6799 = vadd.f32 0.0, %v6798
        %v6800 = vpop.f32.mrb[0].mxu0
        %v6801 = vadd.f32 0.0, %v6800
        %v6802 = vpop.f32.mrb[0].mxu0
        %v6803 = vadd.f32 0.0, %v6802
        %v6804 = vpop.f32.mrb[0].mxu0
        %v6805 = vadd.f32 0.0, %v6804
        %6806 = vmatprep.mubr.bf16.mxu0 0
        %6807 = vmatmul.mubr.bf16.gmra.mrb[0].mxu0 %v6529
        %v6808 = vpop.f32.mrb[0].mxu0
        %v6809 = vadd.f32 0.0, %v6808
        %v6810 = vpop.f32.mrb[0].mxu0
        %v6811 = vadd.f32 0.0, %v6810
        %v6812 = vpop.f32.mrb[0].mxu0
        %v6813 = vadd.f32 0.0, %v6812
        %v6814 = vpop.f32.mrb[0].mxu0
        %v6815 = vadd.f32 0.0, %v6814
        %6816 = vmatprep.mubr.bf16.mxu0 0
        %6817 = vmatmul.mubr.bf16.gmra.mrb[0].mxu0 %v6530
        %v6818 = vpop.f32.mrb[0].mxu0
        %v6819 = vadd.f32 0.0, %v6818
        %v6820 = vpop.f32.mrb[0].mxu0
        %v6821 = vadd.f32 0.0, %v6820
        %v6822 = vpop.f32.mrb[0].mxu0
        %v6823 = vadd.f32 0.0, %v6822
        %v6824 = vpop.f32.mrb[0].mxu0
        %v6825 = vadd.f32 0.0, %v6824
        %6826 = vmatprep.mubr.bf16.mxu0 0
        %6827 = vmatmul.mubr.bf16.gmra.mrb[0].mxu0 %v6531
        %v6828 = vpop.f32.mrb[0].mxu0
        %v6829 = vadd.f32 0.0, %v6828
        %v6830 = vpop.f32.mrb[0].mxu0
        %v6831 = vadd.f32 0.0, %v6830
        %v6832 = vpop.f32.mrb[0].mxu0
        %v6833 = vadd.f32 0.0, %v6832
        %v6834 = vpop.f32.mrb[0].mxu0
        %v6835 = vadd.f32 0.0, %v6834
        %6836 = vdwg.mxu0
        %6837 = vmatprep.subr.bf16.mxu0 %v6663
        %6838 = vmatpush1.bf16.msra.mxu0 %v6662
        %6839 = vmatprep.subr.bf16.mxu0 %v6667
        %6840 = vmatpush1.bf16.msra.mxu0 %v6666
        %6841 = vmatprep.subr.bf16.mxu0 %v6671
        %6842 = vmatpush1.bf16.msra.mxu0 %v6670
        %6843 = vmatprep.subr.bf16.mxu0 %v6675
        %6844 = vmatpush1.bf16.msra.mxu0 %v6674
        %6845 = vmatprep.subr.bf16.mxu0 %v6679
        %6846 = vmatpush1.bf16.msra.mxu0 %v6678
        %6847 = vmatprep.subr.bf16.mxu0 %v6683
        %6848 = vmatpush1.bf16.msra.mxu0 %v6682
        %6849 = vmatprep.subr.bf16.mxu0 %v6687
        %6850 = vmatpush1.bf16.msra.mxu0 %v6686
        %6851 = vmatprep.subr.bf16.mxu0 %v6691
        %6852 = vmatpush1.bf16.msra.mxu0 %v6690
        %6853 = vmatprep.subr.bf16.mxu0 0
        %6854 = vmatpush1.bf16.msra.mxu0 0
        %6855 = vmatprep.subr.bf16.mxu0 0
        %6856 = vmatpush1.bf16.msra.mxu0 0
        %6857 = vmatprep.subr.bf16.mxu0 0
        %6858 = vmatpush1.bf16.msra.mxu0 0
        %6859 = vmatprep.subr.bf16.mxu0 0
        %6860 = vmatpush1.bf16.msra.mxu0 0
        %6861 = vmatprep.subr.bf16.mxu0 0
        %6862 = vmatpush1.bf16.msra.mxu0 0
        %6863 = vmatprep.subr.bf16.mxu0 0
        %6864 = vmatpush1.bf16.msra.mxu0 0
        %6865 = vmatprep.subr.bf16.mxu0 0
        %6866 = vmatpush1.bf16.msra.mxu0 0
        %6867 = vmatprep.subr.bf16.mxu0 0
        %6868 = vmatpush1.bf16.msra.mxu0 0
        %6869 = vmatprep.mubr.bf16.mxu0 0
        %6870 = vmatmul.mubr.bf16.gmra.mrb[0].mxu0 %v6524
        %v6871 = vpop.f32.mrb[0].mxu0
        %v6872 = vadd.f32 0.0, %v6871
        %v6873 = vpop.f32.mrb[0].mxu0
        %v6874 = vadd.f32 0.0, %v6873
        %v6875 = vpop.f32.mrb[0].mxu0
        %v6876 = vadd.f32 0.0, %v6875
        %v6877 = vpop.f32.mrb[0].mxu0
        %v6878 = vadd.f32 0.0, %v6877
        %6879 = vmatprep.mubr.bf16.mxu0 0
        %6880 = vmatmul.mubr.bf16.gmra.mrb[0].mxu0 %v6525
        %v6881 = vpop.f32.mrb[0].mxu0
        %v6882 = vadd.f32 0.0, %v6881
        %v6883 = vpop.f32.mrb[0].mxu0
        %v6884 = vadd.f32 0.0, %v6883
        %v6885 = vpop.f32.mrb[0].mxu0
        %v6886 = vadd.f32 0.0, %v6885
        %v6887 = vpop.f32.mrb[0].mxu0
        %v6888 = vadd.f32 0.0, %v6887
        %6889 = vmatprep.mubr.bf16.mxu0 0
        %6890 = vmatmul.mubr.bf16.gmra.mrb[0].mxu0 %v6526
        %v6891 = vpop.f32.mrb[0].mxu0
        %v6892 = vadd.f32 0.0, %v6891
        %v6893 = vpop.f32.mrb[0].mxu0
        %v6894 = vadd.f32 0.0, %v6893
        %v6895 = vpop.f32.mrb[0].mxu0
        %v6896 = vadd.f32 0.0, %v6895
        %v6897 = vpop.f32.mrb[0].mxu0
        %v6898 = vadd.f32 0.0, %v6897
        %6899 = vmatprep.mubr.bf16.mxu0 0
        %6900 = vmatmul.mubr.bf16.gmra.mrb[0].mxu0 %v6527
        %v6901 = vpop.f32.mrb[0].mxu0
        %v6902 = vadd.f32 0.0, %v6901
        %v6903 = vpop.f32.mrb[0].mxu0
        %v6904 = vadd.f32 0.0, %v6903
        %v6905 = vpop.f32.mrb[0].mxu0
        %v6906 = vadd.f32 0.0, %v6905
        %v6907 = vpop.f32.mrb[0].mxu0
        %v6908 = vadd.f32 0.0, %v6907
        %6909 = vmatprep.mubr.bf16.mxu0 0
        %6910 = vmatmul.mubr.bf16.gmra.mrb[0].mxu0 %v6528
        %v6911 = vpop.f32.mrb[0].mxu0
        %v6912 = vadd.f32 0.0, %v6911
        %v6913 = vpop.f32.mrb[0].mxu0
        %v6914 = vadd.f32 0.0, %v6913
        %v6915 = vpop.f32.mrb[0].mxu0
        %v6916 = vadd.f32 0.0, %v6915
        %v6917 = vpop.f32.mrb[0].mxu0
        %v6918 = vadd.f32 0.0, %v6917
        %6919 = vmatprep.mubr.bf16.mxu0 0
        %6920 = vmatmul.mubr.bf16.gmra.mrb[0].mxu0 %v6529
        %v6921 = vpop.f32.mrb[0].mxu0
        %v6922 = vadd.f32 0.0, %v6921
        %v6923 = vpop.f32.mrb[0].mxu0
        %v6924 = vadd.f32 0.0, %v6923
        %v6925 = vpop.f32.mrb[0].mxu0
        %v6926 = vadd.f32 0.0, %v6925
        %v6927 = vpop.f32.mrb[0].mxu0
        %v6928 = vadd.f32 0.0, %v6927
        %6929 = vmatprep.mubr.bf16.mxu0 0
        %6930 = vmatmul.mubr.bf16.gmra.mrb[0].mxu0 %v6530
        %v6931 = vpop.f32.mrb[0].mxu0
        %v6932 = vadd.f32 0.0, %v6931
        %v6933 = vpop.f32.mrb[0].mxu0
        %v6934 = vadd.f32 0.0, %v6933
        %v6935 = vpop.f32.mrb[0].mxu0
        %v6936 = vadd.f32 0.0, %v6935
        %v6937 = vpop.f32.mrb[0].mxu0
        %v6938 = vadd.f32 0.0, %v6937
        %6939 = vmatprep.mubr.bf16.mxu0 0
        %6940 = vmatmul.mubr.bf16.gmra.mrb[0].mxu0 %v6531
        %v6941 = vpop.f32.mrb[0].mxu0
        %v6942 = vadd.f32 0.0, %v6941
        %v6943 = vpop.f32.mrb[0].mxu0
        %v6944 = vadd.f32 0.0, %v6943
        %v6945 = vpop.f32.mrb[0].mxu0
        %v6946 = vadd.f32 0.0, %v6945
        %v6947 = vpop.f32.mrb[0].mxu0
        %v6948 = vadd.f32 0.0, %v6947
        %6949 = vdwg.mxu0
        %v6950 = vadd.f32 %v5963, %v6759
        %v6951 = vadd.f32 %v5965, %v6761
        %v6952 = vadd.f32 %v6076, %v6872
        %v6953 = vadd.f32 %v6078, %v6874
        %v6954 = vadd.f32 %v5967, %v6763
        %v6955 = vadd.f32 %v5969, %v6765
        %v6956 = vadd.f32 %v6080, %v6876
        %v6957 = vadd.f32 %v6082, %v6878
        %v6958 = vadd.f32 %v5973, %v6769
        %v6959 = vadd.f32 %v5975, %v6771
        %v6960 = vadd.f32 %v6086, %v6882
        %v6961 = vadd.f32 %v6088, %v6884
        %v6962 = vadd.f32 %v5977, %v6773
        %v6963 = vadd.f32 %v5979, %v6775
        %v6964 = vadd.f32 %v6090, %v6886
        %v6965 = vadd.f32 %v6092, %v6888
        %v6966 = vadd.f32 %v5983, %v6779
        %v6967 = vadd.f32 %v5985, %v6781
        %v6968 = vadd.f32 %v6096, %v6892
        %v6969 = vadd.f32 %v6098, %v6894
        %v6970 = vadd.f32 %v5987, %v6783
        %v6971 = vadd.f32 %v5989, %v6785
        %v6972 = vadd.f32 %v6100, %v6896
        %v6973 = vadd.f32 %v6102, %v6898
        %v6974 = vadd.f32 %v5993, %v6789
        %v6975 = vadd.f32 %v5995, %v6791
        %v6976 = vadd.f32 %v6106, %v6902
        %v6977 = vadd.f32 %v6108, %v6904
        %v6978 = vadd.f32 %v5997, %v6793
        %v6979 = vadd.f32 %v5999, %v6795
        %v6980 = vadd.f32 %v6110, %v6906
        %v6981 = vadd.f32 %v6112, %v6908
        %v6982 = vadd.f32 %v6003, %v6799
        %v6983 = vadd.f32 %v6005, %v6801
        %v6984 = vadd.f32 %v6116, %v6912
        %v6985 = vadd.f32 %v6118, %v6914
        %v6986 = vadd.f32 %v6007, %v6803
        %v6987 = vadd.f32 %v6009, %v6805
        %v6988 = vadd.f32 %v6120, %v6916
        %v6989 = vadd.f32 %v6122, %v6918
        %v6990 = vadd.f32 %v6013, %v6809
        %v6991 = vadd.f32 %v6015, %v6811
        %v6992 = vadd.f32 %v6126, %v6922
        %v6993 = vadd.f32 %v6128, %v6924
        %v6994 = vadd.f32 %v6017, %v6813
        %v6995 = vadd.f32 %v6019, %v6815
        %v6996 = vadd.f32 %v6130, %v6926
        %v6997 = vadd.f32 %v6132, %v6928
        %v6998 = vadd.f32 %v6023, %v6819
        %v6999 = vadd.f32 %v6025, %v6821
        %v7000 = vadd.f32 %v6136, %v6932
        %v7001 = vadd.f32 %v6138, %v6934
        %v7002 = vadd.f32 %v6027, %v6823
        %v7003 = vadd.f32 %v6029, %v6825
        %v7004 = vadd.f32 %v6140, %v6936
        %v7005 = vadd.f32 %v6142, %v6938
        %v7006 = vadd.f32 %v6033, %v6829
        %v7007 = vadd.f32 %v6035, %v6831
        %v7008 = vadd.f32 %v6146, %v6942
        %v7009 = vadd.f32 %v6148, %v6944
        %v7010 = vadd.f32 %v6037, %v6833
        %v7011 = vadd.f32 %v6039, %v6835
        %v7012 = vadd.f32 %v6150, %v6946
        %v7013 = vadd.f32 %v6152, %v6948
        %v7014 = vpack.c.bf16 %v2006, %v2002
        %v7015 = vpack.c.bf16 %v2016, %v2012
        %v7016 = vpack.c.bf16 %v2026, %v2022
        %v7017 = vpack.c.bf16 %v2036, %v2032
        %v7018 = vpack.c.bf16 %v2046, %v2042
        %v7019 = vpack.c.bf16 %v2056, %v2052
        %v7020 = vpack.c.bf16 %v2066, %v2062
        %v7021 = vpack.c.bf16 %v2076, %v2072
        %v7022 = vpack.c.bf16 %v3248, %v3244
        %v7023 = vpack.c.bf16 %v3258, %v3254
        %v7024 = vpack.c.bf16 %v3268, %v3264
        %v7025 = vpack.c.bf16 %v3278, %v3274
        %v7026 = vpack.c.bf16 %v3288, %v3284
        %v7027 = vpack.c.bf16 %v3298, %v3294
        %v7028 = vpack.c.bf16 %v3308, %v3304
        %v7029 = vpack.c.bf16 %v3318, %v3314
        %v7030 = vpack.c.bf16 %v4490, %v4486
        %v7031 = vpack.c.bf16 %v4500, %v4496
        %v7032 = vpack.c.bf16 %v4510, %v4506
        %v7033 = vpack.c.bf16 %v4520, %v4516
        %v7034 = vpack.c.bf16 %v4530, %v4526
        %v7035 = vpack.c.bf16 %v4540, %v4536
        %v7036 = vpack.c.bf16 %v4550, %v4546
        %v7037 = vpack.c.bf16 %v4560, %v4556
        %7038 = vmatprep.subr.bf16.mxu0 0
        %7039 = vmatpush1.bf16.xpose.msra.mxu0 %v7022
        %7040 = vmatprep.subr.bf16.mxu0 0
        %7041 = vmatpush1.bf16.xpose.msra.mxu0 %v7023
        %7042 = vmatprep.subr.bf16.mxu0 0
        %7043 = vmatpush1.bf16.xpose.msra.mxu0 %v7024
        %7044 = vmatprep.subr.bf16.mxu0 0
        %7045 = vmatpush1.bf16.xpose.msra.mxu0 %v7025
        %7046 = vmatprep.subr.bf16.mxu0 0
        %7047 = vmatpush1.bf16.xpose.msra.mxu0 %v7026
        %7048 = vmatprep.subr.bf16.mxu0 0
        %7049 = vmatpush1.bf16.xpose.msra.mxu0 %v7027
        %7050 = vmatprep.subr.bf16.mxu0 0
        %7051 = vmatpush1.bf16.xpose.msra.mxu0 %v7028
        %7052 = vmatprep.subr.bf16.mxu0 0
        %7053 = vmatpush1.bf16.xpose.msra.mxu0 %v7029
        %7054 = vmatprep.subr.bf16.mxu0 0
        %7055 = vmatpush1.bf16.xpose.msra.mxu0 0
        %7056 = vmatprep.subr.bf16.mxu0 0
        %7057 = vmatpush1.bf16.xpose.msra.mxu0 0
        %7058 = vmatprep.subr.bf16.mxu0 0
        %7059 = vmatpush1.bf16.xpose.msra.mxu0 0
        %7060 = vmatprep.subr.bf16.mxu0 0
        %7061 = vmatpush1.bf16.xpose.msra.mxu0 0
        %7062 = vmatprep.subr.bf16.mxu0 0
        %7063 = vmatpush1.bf16.xpose.msra.mxu0 0
        %7064 = vmatprep.subr.bf16.mxu0 0
        %7065 = vmatpush1.bf16.xpose.msra.mxu0 0
        %7066 = vmatprep.subr.bf16.mxu0 0
        %7067 = vmatpush1.bf16.xpose.msra.mxu0 0
        %7068 = vmatprep.subr.bf16.mxu0 0
        %7069 = vmatpush1.bf16.xpose.msra.mxu0 0
        %7070 = vmatprep.mubr.bf16.mxu0 0
        %7071 = vmatmul.mubr.bf16.gmra.mrb[0].mxu0 %v7014
        %v7072 = vpop.f32.mrb[0].mxu0
        %v7073 = vadd.f32 0.0, %v7072
        %v7074 = vpop.f32.mrb[0].mxu0
        %v7075 = vpop.f32.mrb[0].mxu0
        %v7076 = vadd.f32 0.0, %v7075
        %v7077 = vpop.f32.mrb[0].mxu0
        %7078 = vmatprep.mubr.bf16.mxu0 0
        %7079 = vmatmul.mubr.bf16.gmra.mrb[0].mxu0 %v7015
        %v7080 = vpop.f32.mrb[0].mxu0
        %v7081 = vadd.f32 0.0, %v7080
        %v7082 = vpop.f32.mrb[0].mxu0
        %v7083 = vpop.f32.mrb[0].mxu0
        %v7084 = vadd.f32 0.0, %v7083
        %v7085 = vpop.f32.mrb[0].mxu0
        %7086 = vmatprep.mubr.bf16.mxu0 0
        %7087 = vmatmul.mubr.bf16.gmra.mrb[0].mxu0 %v7016
        %v7088 = vpop.f32.mrb[0].mxu0
        %v7089 = vadd.f32 0.0, %v7088
        %v7090 = vpop.f32.mrb[0].mxu0
        %v7091 = vpop.f32.mrb[0].mxu0
        %v7092 = vadd.f32 0.0, %v7091
        %v7093 = vpop.f32.mrb[0].mxu0
        %7094 = vmatprep.mubr.bf16.mxu0 0
        %7095 = vmatmul.mubr.bf16.gmra.mrb[0].mxu0 %v7017
        %v7096 = vpop.f32.mrb[0].mxu0
        %v7097 = vadd.f32 0.0, %v7096
        %v7098 = vpop.f32.mrb[0].mxu0
        %v7099 = vpop.f32.mrb[0].mxu0
        %v7100 = vadd.f32 0.0, %v7099
        %v7101 = vpop.f32.mrb[0].mxu0
        %7102 = vmatprep.mubr.bf16.mxu0 0
        %7103 = vmatmul.mubr.bf16.gmra.mrb[0].mxu0 %v7018
        %v7104 = vpop.f32.mrb[0].mxu0
        %v7105 = vadd.f32 0.0, %v7104
        %v7106 = vpop.f32.mrb[0].mxu0
        %v7107 = vpop.f32.mrb[0].mxu0
        %v7108 = vadd.f32 0.0, %v7107
        %v7109 = vpop.f32.mrb[0].mxu0
        %7110 = vmatprep.mubr.bf16.mxu0 0
        %7111 = vmatmul.mubr.bf16.gmra.mrb[0].mxu0 %v7019
        %v7112 = vpop.f32.mrb[0].mxu0
        %v7113 = vadd.f32 0.0, %v7112
        %v7114 = vpop.f32.mrb[0].mxu0
        %v7115 = vpop.f32.mrb[0].mxu0
        %v7116 = vadd.f32 0.0, %v7115
        %v7117 = vpop.f32.mrb[0].mxu0
        %7118 = vmatprep.mubr.bf16.mxu0 0
        %7119 = vmatmul.mubr.bf16.gmra.mrb[0].mxu0 %v7020
        %v7120 = vpop.f32.mrb[0].mxu0
        %v7121 = vadd.f32 0.0, %v7120
        %v7122 = vpop.f32.mrb[0].mxu0
        %v7123 = vpop.f32.mrb[0].mxu0
        %v7124 = vadd.f32 0.0, %v7123
        %v7125 = vpop.f32.mrb[0].mxu0
        %7126 = vmatprep.mubr.bf16.mxu0 0
        %7127 = vmatmul.mubr.bf16.gmra.mrb[0].mxu0 %v7021
        %v7128 = vpop.f32.mrb[0].mxu0
        %v7129 = vadd.f32 0.0, %v7128
        %v7130 = vpop.f32.mrb[0].mxu0
        %v7131 = vpop.f32.mrb[0].mxu0
        %v7132 = vadd.f32 0.0, %v7131
        %v7133 = vpop.f32.mrb[0].mxu0
        %7134 = vdwg.mxu0
        %7135 = vmax.xlane.f32.xlu0 %v7073
        %v7136 = vpop.xlane.xlu0 %7135
        %7137 = vmax.xlane.f32.xlu0 %v7076
        %v7138 = vpop.xlane.xlu0 %7137
        %7139 = vmax.xlane.f32.xlu0 %v7081
        %v7140 = vpop.xlane.xlu0 %7139
        %7141 = vmax.xlane.f32.xlu0 %v7084
        %v7142 = vpop.xlane.xlu0 %7141
        %7143 = vmax.xlane.f32.xlu0 %v7089
        %v7144 = vpop.xlane.xlu0 %7143
        %7145 = vmax.xlane.f32.xlu0 %v7092
        %v7146 = vpop.xlane.xlu0 %7145
        %7147 = vmax.xlane.f32.xlu0 %v7097
        %v7148 = vpop.xlane.xlu0 %7147
        %7149 = vmax.xlane.f32.xlu0 %v7100
        %v7150 = vpop.xlane.xlu0 %7149
        %7151 = vmax.xlane.f32.xlu0 %v7105
        %v7152 = vpop.xlane.xlu0 %7151
        %7153 = vmax.xlane.f32.xlu0 %v7108
        %v7154 = vpop.xlane.xlu0 %7153
        %7155 = vmax.xlane.f32.xlu0 %v7113
        %v7156 = vpop.xlane.xlu0 %7155
        %7157 = vmax.xlane.f32.xlu0 %v7116
        %v7158 = vpop.xlane.xlu0 %7157
        %7159 = vmax.xlane.f32.xlu0 %v7121
        %v7160 = vpop.xlane.xlu0 %7159
        %7161 = vmax.xlane.f32.xlu0 %v7124
        %v7162 = vpop.xlane.xlu0 %7161
        %7163 = vmax.xlane.f32.xlu0 %v7129
        %v7164 = vpop.xlane.xlu0 %7163
        %7165 = vmax.xlane.f32.xlu0 %v7132
        %v7166 = vpop.xlane.xlu0 %7165
        %v7167 = vsub.f32 %v7073, %v7136
        %v7168 = vsub.f32 %v7076, %v7138
        %v7169 = vsub.f32 %v7081, %v7140
        %v7170 = vsub.f32 %v7084, %v7142
        %v7171 = vsub.f32 %v7089, %v7144
        %v7172 = vsub.f32 %v7092, %v7146
        %v7173 = vsub.f32 %v7097, %v7148
        %v7174 = vsub.f32 %v7100, %v7150
        %v7175 = vsub.f32 %v7105, %v7152
        %v7176 = vsub.f32 %v7108, %v7154
        %v7177 = vsub.f32 %v7113, %v7156
        %v7178 = vsub.f32 %v7116, %v7158
        %v7179 = vsub.f32 %v7121, %v7160
        %v7180 = vsub.f32 %v7124, %v7162
        %v7181 = vsub.f32 %v7129, %v7164
        %v7182 = vsub.f32 %v7132, %v7166
        %v7183 = vmul.f32 %v7167, 1.442695
        %v7184 = vpow.pop %v7183
        %v7185 = vmul.f32 %v7168, 1.442695
        %v7186 = vpow.pop %v7185
        %v7187 = vmul.f32 %v7169, 1.442695
        %v7188 = vpow.pop %v7187
        %v7189 = vmul.f32 %v7170, 1.442695
        %v7190 = vpow.pop %v7189
        %v7191 = vmul.f32 %v7171, 1.442695
        %v7192 = vpow.pop %v7191
        %v7193 = vmul.f32 %v7172, 1.442695
        %v7194 = vpow.pop %v7193
        %v7195 = vmul.f32 %v7173, 1.442695
        %v7196 = vpow.pop %v7195
        %v7197 = vmul.f32 %v7174, 1.442695
        %v7198 = vpow.pop %v7197
        %v7199 = vmul.f32 %v7175, 1.442695
        %v7200 = vpow.pop %v7199
        %v7201 = vmul.f32 %v7176, 1.442695
        %v7202 = vpow.pop %v7201
        %v7203 = vmul.f32 %v7177, 1.442695
        %v7204 = vpow.pop %v7203
        %v7205 = vmul.f32 %v7178, 1.442695
        %v7206 = vpow.pop %v7205
        %v7207 = vmul.f32 %v7179, 1.442695
        %v7208 = vpow.pop %v7207
        %v7209 = vmul.f32 %v7180, 1.442695
        %v7210 = vpow.pop %v7209
        %v7211 = vmul.f32 %v7181, 1.442695
        %v7212 = vpow.pop %v7211
        %v7213 = vmul.f32 %v7182, 1.442695
        %v7214 = vpow.pop %v7213
        %7215 = vadd.xlane.f32.xlu0 %v7184
        %v7216 = vpop.xlane.xlu0 %7215
        %7217 = vadd.xlane.f32.xlu0 %v7186
        %v7218 = vpop.xlane.xlu0 %7217
        %7219 = vadd.xlane.f32.xlu0 %v7188
        %v7220 = vpop.xlane.xlu0 %7219
        %7221 = vadd.xlane.f32.xlu0 %v7190
        %v7222 = vpop.xlane.xlu0 %7221
        %7223 = vadd.xlane.f32.xlu0 %v7192
        %v7224 = vpop.xlane.xlu0 %7223
        %7225 = vadd.xlane.f32.xlu0 %v7194
        %v7226 = vpop.xlane.xlu0 %7225
        %7227 = vadd.xlane.f32.xlu0 %v7196
        %v7228 = vpop.xlane.xlu0 %7227
        %7229 = vadd.xlane.f32.xlu0 %v7198
        %v7230 = vpop.xlane.xlu0 %7229
        %7231 = vadd.xlane.f32.xlu0 %v7200
        %v7232 = vpop.xlane.xlu0 %7231
        %7233 = vadd.xlane.f32.xlu0 %v7202
        %v7234 = vpop.xlane.xlu0 %7233
        %7235 = vadd.xlane.f32.xlu0 %v7204
        %v7236 = vpop.xlane.xlu0 %7235
        %7237 = vadd.xlane.f32.xlu0 %v7206
        %v7238 = vpop.xlane.xlu0 %7237
        %7239 = vadd.xlane.f32.xlu0 %v7208
        %v7240 = vpop.xlane.xlu0 %7239
        %7241 = vadd.xlane.f32.xlu0 %v7210
        %v7242 = vpop.xlane.xlu0 %7241
        %7243 = vadd.xlane.f32.xlu0 %v7212
        %v7244 = vpop.xlane.xlu0 %7243
        %7245 = vadd.xlane.f32.xlu0 %v7214
        %v7246 = vpop.xlane.xlu0 %7245
        %v7247 = vrcp.pop %v7216
        %v7248 = vrcp.pop %v7218
        %v7249 = vrcp.pop %v7220
        %v7250 = vrcp.pop %v7222
        %v7251 = vrcp.pop %v7224
        %v7252 = vrcp.pop %v7226
        %v7253 = vrcp.pop %v7228
        %v7254 = vrcp.pop %v7230
        %v7255 = vrcp.pop %v7232
        %v7256 = vrcp.pop %v7234
        %v7257 = vrcp.pop %v7236
        %v7258 = vrcp.pop %v7238
        %v7259 = vrcp.pop %v7240
        %v7260 = vrcp.pop %v7242
        %v7261 = vrcp.pop %v7244
        %v7262 = vrcp.pop %v7246
        %v7263 = vmul.f32 %v7184, %v7247
        %v7264 = vmul.f32 %v7186, %v7248
        %v7265 = vmul.f32 %v7188, %v7249
        %v7266 = vmul.f32 %v7190, %v7250
        %v7267 = vmul.f32 %v7192, %v7251
        %v7268 = vmul.f32 %v7194, %v7252
        %v7269 = vmul.f32 %v7196, %v7253
        %v7270 = vmul.f32 %v7198, %v7254
        %v7271 = vmul.f32 %v7200, %v7255
        %v7272 = vmul.f32 %v7202, %v7256
        %v7273 = vmul.f32 %v7204, %v7257
        %v7274 = vmul.f32 %v7206, %v7258
        %v7275 = vmul.f32 %v7208, %v7259
        %v7276 = vmul.f32 %v7210, %v7260
        %v7277 = vmul.f32 %v7212, %v7261
        %v7278 = vmul.f32 %v7214, %v7262
        %v7279 = vpack.c.bf16 %v7264, %v7263
        %v7280 = vpack.c.bf16 %v7266, %v7265
        %v7281 = vpack.c.bf16 %v7268, %v7267
        %v7282 = vpack.c.bf16 %v7270, %v7269
        %v7283 = vpack.c.bf16 %v7272, %v7271
        %v7284 = vpack.c.bf16 %v7274, %v7273
        %v7285 = vpack.c.bf16 %v7276, %v7275
        %v7286 = vpack.c.bf16 %v7278, %v7277
        %7287 = vmatprep.subr.bf16.mxu0 0
        %7288 = vmatpush1.bf16.msra.mxu0 %v7030
        %7289 = vmatprep.subr.bf16.mxu0 0
        %7290 = vmatpush1.bf16.msra.mxu0 %v7031
        %7291 = vmatprep.subr.bf16.mxu0 0
        %7292 = vmatpush1.bf16.msra.mxu0 %v7032
        %7293 = vmatprep.subr.bf16.mxu0 0
        %7294 = vmatpush1.bf16.msra.mxu0 %v7033
        %7295 = vmatprep.subr.bf16.mxu0 0
        %7296 = vmatpush1.bf16.msra.mxu0 %v7034
        %7297 = vmatprep.subr.bf16.mxu0 0
        %7298 = vmatpush1.bf16.msra.mxu0 %v7035
        %7299 = vmatprep.subr.bf16.mxu0 0
        %7300 = vmatpush1.bf16.msra.mxu0 %v7036
        %7301 = vmatprep.subr.bf16.mxu0 0
        %7302 = vmatpush1.bf16.msra.mxu0 %v7037
        %7303 = vmatprep.subr.bf16.mxu0 0
        %7304 = vmatpush1.bf16.msra.mxu0 0
        %7305 = vmatprep.subr.bf16.mxu0 0
        %7306 = vmatpush1.bf16.msra.mxu0 0
        %7307 = vmatprep.subr.bf16.mxu0 0
        %7308 = vmatpush1.bf16.msra.mxu0 0
        %7309 = vmatprep.subr.bf16.mxu0 0
        %7310 = vmatpush1.bf16.msra.mxu0 0
        %7311 = vmatprep.subr.bf16.mxu0 0
        %7312 = vmatpush1.bf16.msra.mxu0 0
        %7313 = vmatprep.subr.bf16.mxu0 0
        %7314 = vmatpush1.bf16.msra.mxu0 0
        %7315 = vmatprep.subr.bf16.mxu0 0
        %7316 = vmatpush1.bf16.msra.mxu0 0
        %7317 = vmatprep.subr.bf16.mxu0 0
        %7318 = vmatpush1.bf16.msra.mxu0 0
        %7319 = vmatprep.mubr.bf16.mxu0 0
        %7320 = vmatmul.mubr.bf16.gmra.mrb[0].mxu0 %v7279
        %v7321 = vpop.f32.mrb[0].mxu0
        %v7322 = vadd.f32 0.0, %v7321
        %v7323 = vpop.f32.mrb[0].mxu0
        %v7324 = vpop.f32.mrb[0].mxu0
        %v7325 = vadd.f32 0.0, %v7324
        %v7326 = vpop.f32.mrb[0].mxu0
        %7327 = vmatprep.mubr.bf16.mxu0 0
        %7328 = vmatmul.mubr.bf16.gmra.mrb[0].mxu0 %v7280
        %v7329 = vpop.f32.mrb[0].mxu0
        %v7330 = vadd.f32 0.0, %v7329
        %v7331 = vpop.f32.mrb[0].mxu0
        %v7332 = vpop.f32.mrb[0].mxu0
        %v7333 = vadd.f32 0.0, %v7332
        %v7334 = vpop.f32.mrb[0].mxu0
        %7335 = vmatprep.mubr.bf16.mxu0 0
        %7336 = vmatmul.mubr.bf16.gmra.mrb[0].mxu0 %v7281
        %v7337 = vpop.f32.mrb[0].mxu0
        %v7338 = vadd.f32 0.0, %v7337
        %v7339 = vpop.f32.mrb[0].mxu0
        %v7340 = vpop.f32.mrb[0].mxu0
        %v7341 = vadd.f32 0.0, %v7340
        %v7342 = vpop.f32.mrb[0].mxu0
        %7343 = vmatprep.mubr.bf16.mxu0 0
        %7344 = vmatmul.mubr.bf16.gmra.mrb[0].mxu0 %v7282
        %v7345 = vpop.f32.mrb[0].mxu0
        %v7346 = vadd.f32 0.0, %v7345
        %v7347 = vpop.f32.mrb[0].mxu0
        %v7348 = vpop.f32.mrb[0].mxu0
        %v7349 = vadd.f32 0.0, %v7348
        %v7350 = vpop.f32.mrb[0].mxu0
        %7351 = vmatprep.mubr.bf16.mxu0 0
        %7352 = vmatmul.mubr.bf16.gmra.mrb[0].mxu0 %v7283
        %v7353 = vpop.f32.mrb[0].mxu0
        %v7354 = vadd.f32 0.0, %v7353
        %v7355 = vpop.f32.mrb[0].mxu0
        %v7356 = vpop.f32.mrb[0].mxu0
        %v7357 = vadd.f32 0.0, %v7356
        %v7358 = vpop.f32.mrb[0].mxu0
        %7359 = vmatprep.mubr.bf16.mxu0 0
        %7360 = vmatmul.mubr.bf16.gmra.mrb[0].mxu0 %v7284
        %v7361 = vpop.f32.mrb[0].mxu0
        %v7362 = vadd.f32 0.0, %v7361
        %v7363 = vpop.f32.mrb[0].mxu0
        %v7364 = vpop.f32.mrb[0].mxu0
        %v7365 = vadd.f32 0.0, %v7364
        %v7366 = vpop.f32.mrb[0].mxu0
        %7367 = vmatprep.mubr.bf16.mxu0 0
        %7368 = vmatmul.mubr.bf16.gmra.mrb[0].mxu0 %v7285
        %v7369 = vpop.f32.mrb[0].mxu0
        %v7370 = vadd.f32 0.0, %v7369
        %v7371 = vpop.f32.mrb[0].mxu0
        %v7372 = vpop.f32.mrb[0].mxu0
        %v7373 = vadd.f32 0.0, %v7372
        %v7374 = vpop.f32.mrb[0].mxu0
        %7375 = vmatprep.mubr.bf16.mxu0 0
        %7376 = vmatmul.mubr.bf16.gmra.mrb[0].mxu0 %v7286
        %v7377 = vpop.f32.mrb[0].mxu0
        %v7378 = vadd.f32 0.0, %v7377
        %v7379 = vpop.f32.mrb[0].mxu0
        %v7380 = vpop.f32.mrb[0].mxu0
        %v7381 = vadd.f32 0.0, %v7380
        %v7382 = vpop.f32.mrb[0].mxu0
        %7383 = vdwg.mxu0
        %v7384 = vpack.c.bf16 %v7325, %v7322
        %v7385 = vpack.c.bf16 %v7333, %v7330
        %v7386 = vpack.c.bf16 %v7341, %v7338
        %v7387 = vpack.c.bf16 %v7349, %v7346
        %v7388 = vpack.c.bf16 %v7357, %v7354
        %v7389 = vpack.c.bf16 %v7365, %v7362
        %v7390 = vpack.c.bf16 %v7373, %v7370
        %v7391 = vpack.c.bf16 %v7381, %v7378
        %v7392 = vld [vmem:[#allocation13 + $0x300] sm:$0xff]
        %v7393 = vld [vmem:[#allocation13 + $0x308] sm:$0xff]
        %v7394 = vld [vmem:[#allocation13 + $0x310] sm:$0xff]
        %v7395 = vld [vmem:[#allocation13 + $0x318] sm:$0xff]
        %v7396 = vld [vmem:[#allocation13 + $0x320] sm:$0xff]
        %v7397 = vld [vmem:[#allocation13 + $0x328] sm:$0xff]
        %v7398 = vld [vmem:[#allocation13 + $0x330] sm:$0xff]
        %v7399 = vld [vmem:[#allocation13 + $0x338] sm:$0xff]
        %v7400 = vld [vmem:[#allocation13 + $0x340] sm:$0xff]
        %v7401 = vld [vmem:[#allocation13 + $0x348] sm:$0xff]
        %v7402 = vld [vmem:[#allocation13 + $0x350] sm:$0xff]
        %v7403 = vld [vmem:[#allocation13 + $0x358] sm:$0xff]
        %v7404 = vld [vmem:[#allocation13 + $0x360] sm:$0xff]
        %v7405 = vld [vmem:[#allocation13 + $0x368] sm:$0xff]
        %v7406 = vld [vmem:[#allocation13 + $0x370] sm:$0xff]
        %v7407 = vld [vmem:[#allocation13 + $0x378] sm:$0xff]
        %v7408 = vld [vmem:[#allocation13 + $0x380] sm:$0xff]
        %v7409 = vld [vmem:[#allocation13 + $0x388] sm:$0xff]
        %v7410 = vld [vmem:[#allocation13 + $0x390] sm:$0xff]
        %v7411 = vld [vmem:[#allocation13 + $0x398] sm:$0xff]
        %v7412 = vld [vmem:[#allocation13 + $0x3a0] sm:$0xff]
        %v7413 = vld [vmem:[#allocation13 + $0x3a8] sm:$0xff]
        %v7414 = vld [vmem:[#allocation13 + $0x3b0] sm:$0xff]
        %v7415 = vld [vmem:[#allocation13 + $0x3b8] sm:$0xff]
        %v7416 = vld [vmem:[#allocation13 + $0x3c0] sm:$0xff]
        %v7417 = vld [vmem:[#allocation13 + $0x3c8] sm:$0xff]
        %v7418 = vld [vmem:[#allocation13 + $0x3d0] sm:$0xff]
        %v7419 = vld [vmem:[#allocation13 + $0x3d8] sm:$0xff]
        %v7420 = vld [vmem:[#allocation13 + $0x3e0] sm:$0xff]
        %v7421 = vld [vmem:[#allocation13 + $0x3e8] sm:$0xff]
        %v7422 = vld [vmem:[#allocation13 + $0x3f0] sm:$0xff]
        %v7423 = vld [vmem:[#allocation13 + $0x3f8] sm:$0xff]
        %v7456 = vunpack.c.l.b16 %v7392
        %v7457 = vunpack.c.h.b16 %v7392
        %v7458 = vunpack.c.l.b16 %v7393
        %v7459 = vunpack.c.h.b16 %v7393
        %v7460 = vunpack.c.l.b16 %v7394
        %v7461 = vunpack.c.h.b16 %v7394
        %v7462 = vunpack.c.l.b16 %v7395
        %v7463 = vunpack.c.h.b16 %v7395
        %v7464 = vunpack.c.l.b16 %v7396
        %v7465 = vunpack.c.h.b16 %v7396
        %v7466 = vunpack.c.l.b16 %v7397
        %v7467 = vunpack.c.h.b16 %v7397
        %v7468 = vunpack.c.l.b16 %v7398
        %v7469 = vunpack.c.h.b16 %v7398
        %v7470 = vunpack.c.l.b16 %v7399
        %v7471 = vunpack.c.h.b16 %v7399
        %v7472 = vunpack.c.l.b16 %v7400
        %v7473 = vunpack.c.h.b16 %v7400
        %v7474 = vunpack.c.l.b16 %v7401
        %v7475 = vunpack.c.h.b16 %v7401
        %v7476 = vunpack.c.l.b16 %v7402
        %v7477 = vunpack.c.h.b16 %v7402
        %v7478 = vunpack.c.l.b16 %v7403
        %v7479 = vunpack.c.h.b16 %v7403
        %v7480 = vunpack.c.l.b16 %v7404
        %v7481 = vunpack.c.h.b16 %v7404
        %v7482 = vunpack.c.l.b16 %v7405
        %v7483 = vunpack.c.h.b16 %v7405
        %v7484 = vunpack.c.l.b16 %v7406
        %v7485 = vunpack.c.h.b16 %v7406
        %v7486 = vunpack.c.l.b16 %v7407
        %v7487 = vunpack.c.h.b16 %v7407
        %v7488 = vunpack.c.l.b16 %v7408
        %v7489 = vunpack.c.h.b16 %v7408
        %v7490 = vunpack.c.l.b16 %v7409
        %v7491 = vunpack.c.h.b16 %v7409
        %v7492 = vunpack.c.l.b16 %v7410
        %v7493 = vunpack.c.h.b16 %v7410
        %v7494 = vunpack.c.l.b16 %v7411
        %v7495 = vunpack.c.h.b16 %v7411
        %v7496 = vunpack.c.l.b16 %v7412
        %v7497 = vunpack.c.h.b16 %v7412
        %v7498 = vunpack.c.l.b16 %v7413
        %v7499 = vunpack.c.h.b16 %v7413
        %v7500 = vunpack.c.l.b16 %v7414
        %v7501 = vunpack.c.h.b16 %v7414
        %v7502 = vunpack.c.l.b16 %v7415
        %v7503 = vunpack.c.h.b16 %v7415
        %v7504 = vunpack.c.l.b16 %v7416
        %v7505 = vunpack.c.h.b16 %v7416
        %v7506 = vunpack.c.l.b16 %v7417
        %v7507 = vunpack.c.h.b16 %v7417
        %v7508 = vunpack.c.l.b16 %v7418
        %v7509 = vunpack.c.h.b16 %v7418
        %v7510 = vunpack.c.l.b16 %v7419
        %v7511 = vunpack.c.h.b16 %v7419
        %v7512 = vunpack.c.l.b16 %v7420
        %v7513 = vunpack.c.h.b16 %v7420
        %v7514 = vunpack.c.l.b16 %v7421
        %v7515 = vunpack.c.h.b16 %v7421
        %v7516 = vunpack.c.l.b16 %v7422
        %v7517 = vunpack.c.h.b16 %v7422
        %v7518 = vunpack.c.l.b16 %v7423
        %v7519 = vunpack.c.h.b16 %v7423
        %v7520 = vpack.c.b16 %v7460, %v7456
        %v7521 = vpack.c.b16 %v7461, %v7457
        %v7522 = vpack.c.b16 %v7462, %v7458
        %v7523 = vpack.c.b16 %v7463, %v7459
        %v7524 = vpack.c.b16 %v7468, %v7464
        %v7525 = vpack.c.b16 %v7469, %v7465
        %v7526 = vpack.c.b16 %v7470, %v7466
        %v7527 = vpack.c.b16 %v7471, %v7467
        %v7528 = vpack.c.b16 %v7476, %v7472
        %v7529 = vpack.c.b16 %v7477, %v7473
        %v7530 = vpack.c.b16 %v7478, %v7474
        %v7531 = vpack.c.b16 %v7479, %v7475
        %v7532 = vpack.c.b16 %v7484, %v7480
        %v7533 = vpack.c.b16 %v7485, %v7481
        %v7534 = vpack.c.b16 %v7486, %v7482
        %v7535 = vpack.c.b16 %v7487, %v7483
        %v7536 = vpack.c.b16 %v7492, %v7488
        %v7537 = vpack.c.b16 %v7493, %v7489
        %v7538 = vpack.c.b16 %v7494, %v7490
        %v7539 = vpack.c.b16 %v7495, %v7491
        %v7540 = vpack.c.b16 %v7500, %v7496
        %v7541 = vpack.c.b16 %v7501, %v7497
        %v7542 = vpack.c.b16 %v7502, %v7498
        %v7543 = vpack.c.b16 %v7503, %v7499
        %v7544 = vpack.c.b16 %v7508, %v7504
        %v7545 = vpack.c.b16 %v7509, %v7505
        %v7546 = vpack.c.b16 %v7510, %v7506
        %v7547 = vpack.c.b16 %v7511, %v7507
        %v7548 = vpack.c.b16 %v7516, %v7512
        %v7549 = vpack.c.b16 %v7517, %v7513
        %v7550 = vpack.c.b16 %v7518, %v7514
        %v7551 = vpack.c.b16 %v7519, %v7515
        %7584 = vmatprep.subr.bf16.mxu0 %v7521
        %7585 = vmatpush1.bf16.msra.mxu0 %v7520
        %7586 = vmatprep.subr.bf16.mxu0 %v7525
        %7587 = vmatpush1.bf16.msra.mxu0 %v7524
        %7588 = vmatprep.subr.bf16.mxu0 %v7529
        %7589 = vmatpush1.bf16.msra.mxu0 %v7528
        %7590 = vmatprep.subr.bf16.mxu0 %v7533
        %7591 = vmatpush1.bf16.msra.mxu0 %v7532
        %7592 = vmatprep.subr.bf16.mxu0 %v7537
        %7593 = vmatpush1.bf16.msra.mxu0 %v7536
        %7594 = vmatprep.subr.bf16.mxu0 %v7541
        %7595 = vmatpush1.bf16.msra.mxu0 %v7540
        %7596 = vmatprep.subr.bf16.mxu0 %v7545
        %7597 = vmatpush1.bf16.msra.mxu0 %v7544
        %7598 = vmatprep.subr.bf16.mxu0 %v7549
        %7599 = vmatpush1.bf16.msra.mxu0 %v7548
        %7600 = vmatprep.subr.bf16.mxu0 0
        %7601 = vmatpush1.bf16.msra.mxu0 0
        %7602 = vmatprep.subr.bf16.mxu0 0
        %7603 = vmatpush1.bf16.msra.mxu0 0
        %7604 = vmatprep.subr.bf16.mxu0 0
        %7605 = vmatpush1.bf16.msra.mxu0 0
        %7606 = vmatprep.subr.bf16.mxu0 0
        %7607 = vmatpush1.bf16.msra.mxu0 0
        %7608 = vmatprep.subr.bf16.mxu0 0
        %7609 = vmatpush1.bf16.msra.mxu0 0
        %7610 = vmatprep.subr.bf16.mxu0 0
        %7611 = vmatpush1.bf16.msra.mxu0 0
        %7612 = vmatprep.subr.bf16.mxu0 0
        %7613 = vmatpush1.bf16.msra.mxu0 0
        %7614 = vmatprep.subr.bf16.mxu0 0
        %7615 = vmatpush1.bf16.msra.mxu0 0
        %7616 = vmatprep.mubr.bf16.mxu0 0
        %7617 = vmatmul.mubr.bf16.gmra.mrb[0].mxu0 %v7384
        %v7618 = vpop.f32.mrb[0].mxu0
        %v7619 = vadd.f32 0.0, %v7618
        %v7620 = vpop.f32.mrb[0].mxu0
        %v7621 = vadd.f32 0.0, %v7620
        %v7622 = vpop.f32.mrb[0].mxu0
        %v7623 = vadd.f32 0.0, %v7622
        %v7624 = vpop.f32.mrb[0].mxu0
        %v7625 = vadd.f32 0.0, %v7624
        %7626 = vmatprep.mubr.bf16.mxu0 0
        %7627 = vmatmul.mubr.bf16.gmra.mrb[0].mxu0 %v7385
        %v7628 = vpop.f32.mrb[0].mxu0
        %v7629 = vadd.f32 0.0, %v7628
        %v7630 = vpop.f32.mrb[0].mxu0
        %v7631 = vadd.f32 0.0, %v7630
        %v7632 = vpop.f32.mrb[0].mxu0
        %v7633 = vadd.f32 0.0, %v7632
        %v7634 = vpop.f32.mrb[0].mxu0
        %v7635 = vadd.f32 0.0, %v7634
        %7636 = vmatprep.mubr.bf16.mxu0 0
        %7637 = vmatmul.mubr.bf16.gmra.mrb[0].mxu0 %v7386
        %v7638 = vpop.f32.mrb[0].mxu0
        %v7639 = vadd.f32 0.0, %v7638
        %v7640 = vpop.f32.mrb[0].mxu0
        %v7641 = vadd.f32 0.0, %v7640
        %v7642 = vpop.f32.mrb[0].mxu0
        %v7643 = vadd.f32 0.0, %v7642
        %v7644 = vpop.f32.mrb[0].mxu0
        %v7645 = vadd.f32 0.0, %v7644
        %7646 = vmatprep.mubr.bf16.mxu0 0
        %7647 = vmatmul.mubr.bf16.gmra.mrb[0].mxu0 %v7387
        %v7648 = vpop.f32.mrb[0].mxu0
        %v7649 = vadd.f32 0.0, %v7648
        %v7650 = vpop.f32.mrb[0].mxu0
        %v7651 = vadd.f32 0.0, %v7650
        %v7652 = vpop.f32.mrb[0].mxu0
        %v7653 = vadd.f32 0.0, %v7652
        %v7654 = vpop.f32.mrb[0].mxu0
        %v7655 = vadd.f32 0.0, %v7654
        %7656 = vmatprep.mubr.bf16.mxu0 0
        %7657 = vmatmul.mubr.bf16.gmra.mrb[0].mxu0 %v7388
        %v7658 = vpop.f32.mrb[0].mxu0
        %v7659 = vadd.f32 0.0, %v7658
        %v7660 = vpop.f32.mrb[0].mxu0
        %v7661 = vadd.f32 0.0, %v7660
        %v7662 = vpop.f32.mrb[0].mxu0
        %v7663 = vadd.f32 0.0, %v7662
        %v7664 = vpop.f32.mrb[0].mxu0
        %v7665 = vadd.f32 0.0, %v7664
        %7666 = vmatprep.mubr.bf16.mxu0 0
        %7667 = vmatmul.mubr.bf16.gmra.mrb[0].mxu0 %v7389
        %v7668 = vpop.f32.mrb[0].mxu0
        %v7669 = vadd.f32 0.0, %v7668
        %v7670 = vpop.f32.mrb[0].mxu0
        %v7671 = vadd.f32 0.0, %v7670
        %v7672 = vpop.f32.mrb[0].mxu0
        %v7673 = vadd.f32 0.0, %v7672
        %v7674 = vpop.f32.mrb[0].mxu0
        %v7675 = vadd.f32 0.0, %v7674
        %7676 = vmatprep.mubr.bf16.mxu0 0
        %7677 = vmatmul.mubr.bf16.gmra.mrb[0].mxu0 %v7390
        %v7678 = vpop.f32.mrb[0].mxu0
        %v7679 = vadd.f32 0.0, %v7678
        %v7680 = vpop.f32.mrb[0].mxu0
        %v7681 = vadd.f32 0.0, %v7680
        %v7682 = vpop.f32.mrb[0].mxu0
        %v7683 = vadd.f32 0.0, %v7682
        %v7684 = vpop.f32.mrb[0].mxu0
        %v7685 = vadd.f32 0.0, %v7684
        %7686 = vmatprep.mubr.bf16.mxu0 0
        %7687 = vmatmul.mubr.bf16.gmra.mrb[0].mxu0 %v7391
        %v7688 = vpop.f32.mrb[0].mxu0
        %v7689 = vadd.f32 0.0, %v7688
        %v7690 = vpop.f32.mrb[0].mxu0
        %v7691 = vadd.f32 0.0, %v7690
        %v7692 = vpop.f32.mrb[0].mxu0
        %v7693 = vadd.f32 0.0, %v7692
        %v7694 = vpop.f32.mrb[0].mxu0
        %v7695 = vadd.f32 0.0, %v7694
        %7696 = vdwg.mxu0
        %7697 = vmatprep.subr.bf16.mxu0 %v7523
        %7698 = vmatpush1.bf16.msra.mxu0 %v7522
        %7699 = vmatprep.subr.bf16.mxu0 %v7527
        %7700 = vmatpush1.bf16.msra.mxu0 %v7526
        %7701 = vmatprep.subr.bf16.mxu0 %v7531
        %7702 = vmatpush1.bf16.msra.mxu0 %v7530
        %7703 = vmatprep.subr.bf16.mxu0 %v7535
        %7704 = vmatpush1.bf16.msra.mxu0 %v7534
        %7705 = vmatprep.subr.bf16.mxu0 %v7539
        %7706 = vmatpush1.bf16.msra.mxu0 %v7538
        %7707 = vmatprep.subr.bf16.mxu0 %v7543
        %7708 = vmatpush1.bf16.msra.mxu0 %v7542
        %7709 = vmatprep.subr.bf16.mxu0 %v7547
        %7710 = vmatpush1.bf16.msra.mxu0 %v7546
        %7711 = vmatprep.subr.bf16.mxu0 %v7551
        %7712 = vmatpush1.bf16.msra.mxu0 %v7550
        %7713 = vmatprep.subr.bf16.mxu0 0
        %7714 = vmatpush1.bf16.msra.mxu0 0
        %7715 = vmatprep.subr.bf16.mxu0 0
        %7716 = vmatpush1.bf16.msra.mxu0 0
        %7717 = vmatprep.subr.bf16.mxu0 0
        %7718 = vmatpush1.bf16.msra.mxu0 0
        %7719 = vmatprep.subr.bf16.mxu0 0
        %7720 = vmatpush1.bf16.msra.mxu0 0
        %7721 = vmatprep.subr.bf16.mxu0 0
        %7722 = vmatpush1.bf16.msra.mxu0 0
        %7723 = vmatprep.subr.bf16.mxu0 0
        %7724 = vmatpush1.bf16.msra.mxu0 0
        %7725 = vmatprep.subr.bf16.mxu0 0
        %7726 = vmatpush1.bf16.msra.mxu0 0
        %7727 = vmatprep.subr.bf16.mxu0 0
        %7728 = vmatpush1.bf16.msra.mxu0 0
        %7729 = vmatprep.mubr.bf16.mxu0 0
        %7730 = vmatmul.mubr.bf16.gmra.mrb[0].mxu0 %v7384
        %v7731 = vpop.f32.mrb[0].mxu0
        %v7732 = vadd.f32 0.0, %v7731
        %v7733 = vpop.f32.mrb[0].mxu0
        %v7734 = vadd.f32 0.0, %v7733
        %v7735 = vpop.f32.mrb[0].mxu0
        %v7736 = vadd.f32 0.0, %v7735
        %v7737 = vpop.f32.mrb[0].mxu0
        %v7738 = vadd.f32 0.0, %v7737
        %7739 = vmatprep.mubr.bf16.mxu0 0
        %7740 = vmatmul.mubr.bf16.gmra.mrb[0].mxu0 %v7385
        %v7741 = vpop.f32.mrb[0].mxu0
        %v7742 = vadd.f32 0.0, %v7741
        %v7743 = vpop.f32.mrb[0].mxu0
        %v7744 = vadd.f32 0.0, %v7743
        %v7745 = vpop.f32.mrb[0].mxu0
        %v7746 = vadd.f32 0.0, %v7745
        %v7747 = vpop.f32.mrb[0].mxu0
        %v7748 = vadd.f32 0.0, %v7747
        %7749 = vmatprep.mubr.bf16.mxu0 0
        %7750 = vmatmul.mubr.bf16.gmra.mrb[0].mxu0 %v7386
        %v7751 = vpop.f32.mrb[0].mxu0
        %v7752 = vadd.f32 0.0, %v7751
        %v7753 = vpop.f32.mrb[0].mxu0
        %v7754 = vadd.f32 0.0, %v7753
        %v7755 = vpop.f32.mrb[0].mxu0
        %v7756 = vadd.f32 0.0, %v7755
        %v7757 = vpop.f32.mrb[0].mxu0
        %v7758 = vadd.f32 0.0, %v7757
        %7759 = vmatprep.mubr.bf16.mxu0 0
        %7760 = vmatmul.mubr.bf16.gmra.mrb[0].mxu0 %v7387
        %v7761 = vpop.f32.mrb[0].mxu0
        %v7762 = vadd.f32 0.0, %v7761
        %v7763 = vpop.f32.mrb[0].mxu0
        %v7764 = vadd.f32 0.0, %v7763
        %v7765 = vpop.f32.mrb[0].mxu0
        %v7766 = vadd.f32 0.0, %v7765
        %v7767 = vpop.f32.mrb[0].mxu0
        %v7768 = vadd.f32 0.0, %v7767
        %7769 = vmatprep.mubr.bf16.mxu0 0
        %7770 = vmatmul.mubr.bf16.gmra.mrb[0].mxu0 %v7388
        %v7771 = vpop.f32.mrb[0].mxu0
        %v7772 = vadd.f32 0.0, %v7771
        %v7773 = vpop.f32.mrb[0].mxu0
        %v7774 = vadd.f32 0.0, %v7773
        %v7775 = vpop.f32.mrb[0].mxu0
        %v7776 = vadd.f32 0.0, %v7775
        %v7777 = vpop.f32.mrb[0].mxu0
        %v7778 = vadd.f32 0.0, %v7777
        %7779 = vmatprep.mubr.bf16.mxu0 0
        %7780 = vmatmul.mubr.bf16.gmra.mrb[0].mxu0 %v7389
        %v7781 = vpop.f32.mrb[0].mxu0
        %v7782 = vadd.f32 0.0, %v7781
        %v7783 = vpop.f32.mrb[0].mxu0
        %v7784 = vadd.f32 0.0, %v7783
        %v7785 = vpop.f32.mrb[0].mxu0
        %v7786 = vadd.f32 0.0, %v7785
        %v7787 = vpop.f32.mrb[0].mxu0
        %v7788 = vadd.f32 0.0, %v7787
        %7789 = vmatprep.mubr.bf16.mxu0 0
        %7790 = vmatmul.mubr.bf16.gmra.mrb[0].mxu0 %v7390
        %v7791 = vpop.f32.mrb[0].mxu0
        %v7792 = vadd.f32 0.0, %v7791
        %v7793 = vpop.f32.mrb[0].mxu0
        %v7794 = vadd.f32 0.0, %v7793
        %v7795 = vpop.f32.mrb[0].mxu0
        %v7796 = vadd.f32 0.0, %v7795
        %v7797 = vpop.f32.mrb[0].mxu0
        %v7798 = vadd.f32 0.0, %v7797
        %7799 = vmatprep.mubr.bf16.mxu0 0
        %7800 = vmatmul.mubr.bf16.gmra.mrb[0].mxu0 %v7391
        %v7801 = vpop.f32.mrb[0].mxu0
        %v7802 = vadd.f32 0.0, %v7801
        %v7803 = vpop.f32.mrb[0].mxu0
        %v7804 = vadd.f32 0.0, %v7803
        %v7805 = vpop.f32.mrb[0].mxu0
        %v7806 = vadd.f32 0.0, %v7805
        %v7807 = vpop.f32.mrb[0].mxu0
        %v7808 = vadd.f32 0.0, %v7807
        %7809 = vdwg.mxu0
        %v7810 = vadd.f32 %v6950, %v7619
        %v7811 = vadd.f32 %v6951, %v7621
        %v7812 = vadd.f32 %v6952, %v7732
        %v7813 = vadd.f32 %v6953, %v7734
        %v7814 = vadd.f32 %v6954, %v7623
        %v7815 = vadd.f32 %v6955, %v7625
        %v7816 = vadd.f32 %v6956, %v7736
        %v7817 = vadd.f32 %v6957, %v7738
        %v7818 = vadd.f32 %v6958, %v7629
        %v7819 = vadd.f32 %v6959, %v7631
        %v7820 = vadd.f32 %v6960, %v7742
        %v7821 = vadd.f32 %v6961, %v7744
        %v7822 = vadd.f32 %v6962, %v7633
        %v7823 = vadd.f32 %v6963, %v7635
        %v7824 = vadd.f32 %v6964, %v7746
        %v7825 = vadd.f32 %v6965, %v7748
        %v7826 = vadd.f32 %v6966, %v7639
        %v7827 = vadd.f32 %v6967, %v7641
        %v7828 = vadd.f32 %v6968, %v7752
        %v7829 = vadd.f32 %v6969, %v7754
        %v7830 = vadd.f32 %v6970, %v7643
        %v7831 = vadd.f32 %v6971, %v7645
        %v7832 = vadd.f32 %v6972, %v7756
        %v7833 = vadd.f32 %v6973, %v7758
        %v7834 = vadd.f32 %v6974, %v7649
        %v7835 = vadd.f32 %v6975, %v7651
        %v7836 = vadd.f32 %v6976, %v7762
        %v7837 = vadd.f32 %v6977, %v7764
        %v7838 = vadd.f32 %v6978, %v7653
        %v7839 = vadd.f32 %v6979, %v7655
        %v7840 = vadd.f32 %v6980, %v7766
        %v7841 = vadd.f32 %v6981, %v7768
        %v7842 = vadd.f32 %v6982, %v7659
        %v7843 = vadd.f32 %v6983, %v7661
        %v7844 = vadd.f32 %v6984, %v7772
        %v7845 = vadd.f32 %v6985, %v7774
        %v7846 = vadd.f32 %v6986, %v7663
        %v7847 = vadd.f32 %v6987, %v7665
        %v7848 = vadd.f32 %v6988, %v7776
        %v7849 = vadd.f32 %v6989, %v7778
        %v7850 = vadd.f32 %v6990, %v7669
        %v7851 = vadd.f32 %v6991, %v7671
        %v7852 = vadd.f32 %v6992, %v7782
        %v7853 = vadd.f32 %v6993, %v7784
        %v7854 = vadd.f32 %v6994, %v7673
        %v7855 = vadd.f32 %v6995, %v7675
        %v7856 = vadd.f32 %v6996, %v7786
        %v7857 = vadd.f32 %v6997, %v7788
        %v7858 = vadd.f32 %v6998, %v7679
        %v7859 = vadd.f32 %v6999, %v7681
        %v7860 = vadd.f32 %v7000, %v7792
        %v7861 = vadd.f32 %v7001, %v7794
        %v7862 = vadd.f32 %v7002, %v7683
        %v7863 = vadd.f32 %v7003, %v7685
        %v7864 = vadd.f32 %v7004, %v7796
        %v7865 = vadd.f32 %v7005, %v7798
        %v7866 = vadd.f32 %v7006, %v7689
        %v7867 = vadd.f32 %v7007, %v7691
        %v7868 = vadd.f32 %v7008, %v7802
        %v7869 = vadd.f32 %v7009, %v7804
        %v7870 = vadd.f32 %v7010, %v7693
        %v7871 = vadd.f32 %v7011, %v7695
        %v7872 = vadd.f32 %v7012, %v7806
        %v7873 = vadd.f32 %v7013, %v7808
        %v7874 = vld [vmem:[%s10] sm:$0xf]
        %v7876 = vlaneseq
        %v7877 = vshrl.u32 %v7876, 7
        %v7878 = vsub.s32 0, %v7877
        %v7879 = vrot.slane %v7874, %v7878
        %v7880 = vlaneseq
        %v7881 = vshrl.u32 %v7880, 7
        %v7882 = vsub.s32 1, %v7881
        %v7883 = vrot.slane %v7874, %v7882
        %v7884 = vlaneseq
        %v7885 = vshrl.u32 %v7884, 7
        %v7886 = vsub.s32 2, %v7885
        %v7887 = vrot.slane %v7874, %v7886
        %v7888 = vlaneseq
        %v7889 = vshrl.u32 %v7888, 7
        %v7890 = vsub.s32 3, %v7889
        %v7891 = vrot.slane %v7874, %v7890
        %v7896 = vadd.f32 %v7810, %v7879
        %v7897 = vadd.f32 %v7811, %v7883
        %v7898 = vadd.f32 %v7812, %v7887
        %v7899 = vadd.f32 %v7813, %v7891
        %v7900 = vadd.f32 %v7814, %v7879
        %v7901 = vadd.f32 %v7815, %v7883
        %v7902 = vadd.f32 %v7816, %v7887
        %v7903 = vadd.f32 %v7817, %v7891
        %v7904 = vadd.f32 %v7818, %v7879
        %v7905 = vadd.f32 %v7819, %v7883
        %v7906 = vadd.f32 %v7820, %v7887
        %v7907 = vadd.f32 %v7821, %v7891
        %v7908 = vadd.f32 %v7822, %v7879
        %v7909 = vadd.f32 %v7823, %v7883
        %v7910 = vadd.f32 %v7824, %v7887
        %v7911 = vadd.f32 %v7825, %v7891
        %v7912 = vadd.f32 %v7826, %v7879
        %v7913 = vadd.f32 %v7827, %v7883
        %v7914 = vadd.f32 %v7828, %v7887
        %v7915 = vadd.f32 %v7829, %v7891
        %v7916 = vadd.f32 %v7830, %v7879
        %v7917 = vadd.f32 %v7831, %v7883
        %v7918 = vadd.f32 %v7832, %v7887
        %v7919 = vadd.f32 %v7833, %v7891
        %v7920 = vadd.f32 %v7834, %v7879
        %v7921 = vadd.f32 %v7835, %v7883
        %v7922 = vadd.f32 %v7836, %v7887
        %v7923 = vadd.f32 %v7837, %v7891
        %v7924 = vadd.f32 %v7838, %v7879
        %v7925 = vadd.f32 %v7839, %v7883
        %v7926 = vadd.f32 %v7840, %v7887
        %v7927 = vadd.f32 %v7841, %v7891
        %v7928 = vadd.f32 %v7842, %v7879
        %v7929 = vadd.f32 %v7843, %v7883
        %v7930 = vadd.f32 %v7844, %v7887
        %v7931 = vadd.f32 %v7845, %v7891
        %v7932 = vadd.f32 %v7846, %v7879
        %v7933 = vadd.f32 %v7847, %v7883
        %v7934 = vadd.f32 %v7848, %v7887
        %v7935 = vadd.f32 %v7849, %v7891
        %v7936 = vadd.f32 %v7850, %v7879
        %v7937 = vadd.f32 %v7851, %v7883
        %v7938 = vadd.f32 %v7852, %v7887
        %v7939 = vadd.f32 %v7853, %v7891
        %v7940 = vadd.f32 %v7854, %v7879
        %v7941 = vadd.f32 %v7855, %v7883
        %v7942 = vadd.f32 %v7856, %v7887
        %v7943 = vadd.f32 %v7857, %v7891
        %v7944 = vadd.f32 %v7858, %v7879
        %v7945 = vadd.f32 %v7859, %v7883
        %v7946 = vadd.f32 %v7860, %v7887
        %v7947 = vadd.f32 %v7861, %v7891
        %v7948 = vadd.f32 %v7862, %v7879
        %v7949 = vadd.f32 %v7863, %v7883
        %v7950 = vadd.f32 %v7864, %v7887
        %v7951 = vadd.f32 %v7865, %v7891
        %v7952 = vadd.f32 %v7866, %v7879
        %v7953 = vadd.f32 %v7867, %v7883
        %v7954 = vadd.f32 %v7868, %v7887
        %v7955 = vadd.f32 %v7869, %v7891
        %v7956 = vadd.f32 %v7870, %v7879
        %v7957 = vadd.f32 %v7871, %v7883
        %v7958 = vadd.f32 %v7872, %v7887
        %v7959 = vadd.f32 %v7873, %v7891
        %7960 = vst [vmem:[%s542] sm:$0xff] %v7896
        %7961 = vst [vmem:[%s542 + $0x8] sm:$0xff] %v7897
        %7962 = vst [vmem:[%s542 + $0x10] sm:$0xff] %v7898
        %7963 = vst [vmem:[%s542 + $0x18] sm:$0xff] %v7899
        %7964 = vst [vmem:[%s542 + $0x20] sm:$0xff] %v7900
        %7965 = vst [vmem:[%s542 + $0x28] sm:$0xff] %v7901
        %7966 = vst [vmem:[%s542 + $0x30] sm:$0xff] %v7902
        %7967 = vst [vmem:[%s542 + $0x38] sm:$0xff] %v7903
        %7968 = vst [vmem:[%s542 + $0x40] sm:$0xff] %v7904
        %7969 = vst [vmem:[%s542 + $0x48] sm:$0xff] %v7905
        %7970 = vst [vmem:[%s542 + $0x50] sm:$0xff] %v7906
        %7971 = vst [vmem:[%s542 + $0x58] sm:$0xff] %v7907
        %7972 = vst [vmem:[%s542 + $0x60] sm:$0xff] %v7908
        %7973 = vst [vmem:[%s542 + $0x68] sm:$0xff] %v7909
        %7974 = vst [vmem:[%s542 + $0x70] sm:$0xff] %v7910
        %7975 = vst [vmem:[%s542 + $0x78] sm:$0xff] %v7911
        %7976 = vst [vmem:[%s542 + $0x80] sm:$0xff] %v7912
        %7977 = vst [vmem:[%s542 + $0x88] sm:$0xff] %v7913
        %7978 = vst [vmem:[%s542 + $0x90] sm:$0xff] %v7914
        %7979 = vst [vmem:[%s542 + $0x98] sm:$0xff] %v7915
        %7980 = vst [vmem:[%s542 + $0xa0] sm:$0xff] %v7916
        %7981 = vst [vmem:[%s542 + $0xa8] sm:$0xff] %v7917
        %7982 = vst [vmem:[%s542 + $0xb0] sm:$0xff] %v7918
        %7983 = vst [vmem:[%s542 + $0xb8] sm:$0xff] %v7919
        %7984 = vst [vmem:[%s542 + $0xc0] sm:$0xff] %v7920
        %7985 = vst [vmem:[%s542 + $0xc8] sm:$0xff] %v7921
        %7986 = vst [vmem:[%s542 + $0xd0] sm:$0xff] %v7922
        %7987 = vst [vmem:[%s542 + $0xd8] sm:$0xff] %v7923
        %7988 = vst [vmem:[%s542 + $0xe0] sm:$0xff] %v7924
        %7989 = vst [vmem:[%s542 + $0xe8] sm:$0xff] %v7925
        %7990 = vst [vmem:[%s542 + $0xf0] sm:$0xff] %v7926
        %7991 = vst [vmem:[%s542 + $0xf8] sm:$0xff] %v7927
        %7992 = vst [vmem:[%s542 + $0x100] sm:$0xff] %v7928
        %7993 = vst [vmem:[%s542 + $0x108] sm:$0xff] %v7929
        %7994 = vst [vmem:[%s542 + $0x110] sm:$0xff] %v7930
        %7995 = vst [vmem:[%s542 + $0x118] sm:$0xff] %v7931
        %7996 = vst [vmem:[%s542 + $0x120] sm:$0xff] %v7932
        %7997 = vst [vmem:[%s542 + $0x128] sm:$0xff] %v7933
        %7998 = vst [vmem:[%s542 + $0x130] sm:$0xff] %v7934
        %7999 = vst [vmem:[%s542 + $0x138] sm:$0xff] %v7935
        %8000 = vst [vmem:[%s542 + $0x140] sm:$0xff] %v7936
        %8001 = vst [vmem:[%s542 + $0x148] sm:$0xff] %v7937
        %8002 = vst [vmem:[%s542 + $0x150] sm:$0xff] %v7938
        %8003 = vst [vmem:[%s542 + $0x158] sm:$0xff] %v7939
        %8004 = vst [vmem:[%s542 + $0x160] sm:$0xff] %v7940
        %8005 = vst [vmem:[%s542 + $0x168] sm:$0xff] %v7941
        %8006 = vst [vmem:[%s542 + $0x170] sm:$0xff] %v7942
        %8007 = vst [vmem:[%s542 + $0x178] sm:$0xff] %v7943
        %8008 = vst [vmem:[%s542 + $0x180] sm:$0xff] %v7944
        %8009 = vst [vmem:[%s542 + $0x188] sm:$0xff] %v7945
        %8010 = vst [vmem:[%s542 + $0x190] sm:$0xff] %v7946
        %8011 = vst [vmem:[%s542 + $0x198] sm:$0xff] %v7947
        %8012 = vst [vmem:[%s542 + $0x1a0] sm:$0xff] %v7948
        %8013 = vst [vmem:[%s542 + $0x1a8] sm:$0xff] %v7949
        %8014 = vst [vmem:[%s542 + $0x1b0] sm:$0xff] %v7950
        %8015 = vst [vmem:[%s542 + $0x1b8] sm:$0xff] %v7951
        %8016 = vst [vmem:[%s542 + $0x1c0] sm:$0xff] %v7952
        %8017 = vst [vmem:[%s542 + $0x1c8] sm:$0xff] %v7953
        %8018 = vst [vmem:[%s542 + $0x1d0] sm:$0xff] %v7954
        %8019 = vst [vmem:[%s542 + $0x1d8] sm:$0xff] %v7955
        %8020 = vst [vmem:[%s542 + $0x1e0] sm:$0xff] %v7956
        %8021 = vst [vmem:[%s542 + $0x1e8] sm:$0xff] %v7957
        %8022 = vst [vmem:[%s542 + $0x1f0] sm:$0xff] %v7958
        %8023 = vst [vmem:[%s542 + $0x1f8] sm:$0xff] %v7959
        %s8024 = sand.u32 %s287, 1
        %s8025 = scalar_lea.sflag [#allocation4], %s8024
        %s8026 = sand.u32 %s287, 1
        %s8027 = smul.addr %s8026, 512
        %s8028 = scalar_lea.vmem [#allocation14], %s8027
        // Predicated region
        $region93: #{tpu_custom_call.1} parent=63 // pred_check
          %p8029 = pneg %p297
        $region94: #{tpu_custom_call.1} parent=63 // pred_check_branch
          %8031 = sbr.rel (%p8029) target = $region96
        $region95: #{tpu_custom_call.1} parent=63 // pred_region
          %s8032 = smul.u32 16, %s33
          %s8034 = ssub.s32 8192, 8192
          %8035 = vsyncadd %s8025, %s8034
          %s8036 = smul.addr %s8032, 4
          %s8037 = smul.addr %s8036, 128
          %s8038 = scalar_lea.hbm %s11, %s8037
          %s8039 = sshll.u32 %s8028, 4
          %s8040 = int_to_ptr.vmem [resolvable:$true] %s8039
          %8045 = dma.vmem_to_hbm [thread:$0]  %s8040, 8192, %s8038, %s8025, 512, 512, 32
        $region96: #{tpu_custom_call.1} parent=63 // pred_fallthru
          _
      $region64: #{tpu_custom_call.1} parent=5 // pred_fallthru
        _
      %p8046 = scmp.le.s32.totalorder 2, %s28
      // Predicated region
      $region97: #{tpu_custom_call.1} parent=5 // pred_check
        %p8047 = pneg %p8046
      $region98: #{tpu_custom_call.1} parent=5 // pred_check_branch
        %8049 = sbr.rel (%p8047) target = $region100
      $region99: #{tpu_custom_call.1} parent=5 // pred_region
        %s8050 = ssub.s32 %s28, 2
        // Predicated region
        $region101: #{tpu_custom_call.1} parent=99 // pred_check
          %p8051 = pneg %p303
        $region102: #{tpu_custom_call.1} parent=99 // pred_check_branch
          %8053 = sbr.rel (%p8051) target = $region104
        $region103: #{tpu_custom_call.1} parent=99 // pred_region
          %s8054 = sand.u32 %s288, 1
          %s8055 = scalar_lea.sflag [#allocation4], %s8054
          %s8056 = sand.u32 %s288, 1
          %s8057 = smul.addr %s8056, 512
          %s8058 = scalar_lea.vmem [#allocation14], %s8057
          %8059 = dma.done %s8055, 8192
        $region104: #{tpu_custom_call.1} parent=99 // pred_fallthru
          _
      $region100: #{tpu_custom_call.1} parent=5 // pred_fallthru
        _
    $region6: #{tpu_custom_call.1} parent=1 // loop_footer
      %s32 = sadd.s32 1, %s28
    $region7: #{tpu_custom_call.1} parent=1 // loop_footer_branch
      %27 = sbr.rel target = $region3
    $region8: #{tpu_custom_call.1} parent=1 // loop_exit
      _
    %8060 = vsyncpa [#allocation3], 1
    %s8061 = scalar_lea.sflag [#allocation3], 1
    %8062 = vsyncpa %s8061, 1
    %8063 = vsyncpa [#allocation6], 1
    %s8064 = scalar_lea.sflag [#allocation6], 1
    %8065 = vsyncpa %s8064, 1
    %8066 = vsyncpa [#allocation9], 1
    %8067 = vsyncpa [#allocation12], 1
    %8068 = vsyncpa [#allocation4], 1
    %s8069 = scalar_lea.sflag [#allocation4], 1
    %8070 = vsyncpa %s8069, 1

</llo_original>
